<compile_context>
chip_gen: v7x
topology: tpu7x:2x2x1
jax: 0.10.0
libtpu: 0.0.40
codegen_flags: <defaults>
</compile_context>

<pallas_src>
import numpy as np
import jax
import jax.numpy as jnp
from jax.experimental import pallas as pl
from jax.experimental.pallas import tpu as pltpu

# Small synthetic config (cfg.GAN.DF_DIM, cfg.GAN.EMBEDDING_DIM, cfg.GAN.B_CONDITION=True)
NDF = 8
EFG = 16
LRELU_SLOPE = 0.2
BN_EPS = 1e-5
IMG = 64
BATCH = 2


# ----------------------------- in-kernel helpers ----------------------------

def _lrelu(y):
    return jnp.maximum(y, LRELU_SLOPE * y)


def _banded_conv(x, r_ref, wb_ref):
    """Conv as  sum_di (R_di @ X) @ Wband_di  -> (rows_out, lanes_out) f32.

    x: (rows_in, lanes_in) f32 value; r_ref: (kh, rows_out, rows_in) f32 ref;
    wb_ref: (kh, lanes_in, lanes_out) bf16 ref.  R is a 0/1 selection so the
    f32 first dot is exact; the big banded dot runs on the MXU in bf16 with
    f32 accumulation.
    """
    kh = r_ref.shape[0]
    acc = None
    for di in range(kh):
        rows = jnp.dot(r_ref[di], x, preferred_element_type=jnp.float32)
        part = jnp.dot(rows.astype(jnp.bfloat16), wb_ref[di],
                       preferred_element_type=jnp.float32)
        acc = part if acc is None else acc + part
    return acc


def _bn_lrelu(y, gs_ref, ge_ref, g_ref, b_ref):
    """Training-mode BatchNorm2d (+ LeakyReLU 0.2) on a (B*Ho, Wo*C) layout.

    gs: (Wo*C, C) lane->channel sum matrix, ge: (C, Wo*C) channel->lane expand.
    """
    c = g_ref.shape[-1]
    wo = y.shape[-1] // c
    m = float(y.shape[0] * wo)  # elements per channel = B*Ho*Wo
    col_sum = jnp.sum(y, axis=0, keepdims=True)            # (1, Wo*C)
    col_sq = jnp.sum(y * y, axis=0, keepdims=True)
    ch_mean = jnp.dot(col_sum, gs_ref[...], preferred_element_type=jnp.float32) / m
    ch_sq = jnp.dot(col_sq, gs_ref[...], preferred_element_type=jnp.float32) / m
    var = jnp.maximum(ch_sq - ch_mean * ch_mean, 0.0)       # biased batch variance
    scale = g_ref[...] * jax.lax.rsqrt(var + BN_EPS)        # (1, C)
    shift = b_ref[...] - ch_mean * scale
    lane_scale = jnp.dot(scale, ge_ref[...], preferred_element_type=jnp.float32)
    lane_shift = jnp.dot(shift, ge_ref[...], preferred_element_type=jnp.float32)
    return _lrelu(y * lane_scale + lane_shift)


# ------------------------------- fused kernel -------------------------------

def _dnet64_kernel(
    x_ref,
    r1_ref, w1_ref,
    r2_ref, w2_ref, gs2_ref, ge2_ref, g2_ref, b2_ref,
    r3_ref, w3_ref, gs3_ref, ge3_ref, g3_ref, b3_ref,
    r4_ref, w4_ref, gs4_ref, ge4_ref, g4_ref, b4_ref,
    c_ref, rj_ref, wjx_ref, wjc_ref, gsj_ref, gej_ref, gj_ref, bj_ref,
    rh_ref, whl_ref, bl_ref, whu_ref, bu_ref,
    out_c_ref, out_u_ref,
):
    # encode_image_by_16times: 64x64x3 -> 4x4x(ndf*8)
    h = _lrelu(_banded_conv(x_ref[...], r1_ref, w1_ref))                      # (B*32, 256)
    h = _bn_lrelu(_banded_conv(h, r2_ref, w2_ref), gs2_ref, ge2_ref, g2_ref, b2_ref)
    h = _bn_lrelu(_banded_conv(h, r3_ref, w3_ref), gs3_ref, ge3_ref, g3_ref, b3_ref)
    x_code = _bn_lrelu(_banded_conv(h, r4_ref, w4_ref), gs4_ref, ge4_ref, g4_ref, b4_ref)

    # jointConv on torch.cat((c_code, x_code), dim=1) == sum of two banded convs
    joint = (_banded_conv(x_code, rj_ref, wjx_ref)
             + _banded_conv(c_ref[...], rj_ref, wjc_ref))
    h_c = _bn_lrelu(joint, gsj_ref, gej_ref, gj_ref, bj_ref)

    # 4x4 stride-4 conv heads + bias + sigmoid -> (B, 1) each
    out_c_ref[...] = jax.nn.sigmoid(_banded_conv(h_c, rh_ref, whl_ref) + bl_ref[...])
    out_u_ref[...] = jax.nn.sigmoid(_banded_conv(x_code, rh_ref, whu_ref) + bu_ref[...])


# -------------------- host-side constant / weight preparation ---------------

def _row_select(batch, h_in, h_out, kh, stride, pad):
    r = np.zeros((kh, batch * h_out, batch * h_in), np.float32)
    for di in range(kh):
        for b in range(batch):
            for oh in range(h_out):
                h = stride * oh + di - pad
                if 0 <= h < h_in:
                    r[di, b * h_out + oh, b * h_in + h] = 1.0
    return jnp.asarray(r)


def _banded_weight(wc, w_in, w_out, stride, pad, dtype=jnp.bfloat16):
    wc = np.asarray(wc)  # (kh, kw, Cin, Cout)
    kh, kw, cin, cout = wc.shape
    wb = np.zeros((kh, w_in * cin, w_out * cout), np.float32)
    for ow in range(w_out):
        for dj in range(kw):
            w = stride * ow + dj - pad
            if 0 <= w < w_in:
                wb[:, w * cin:(w + 1) * cin, ow * cout:(ow + 1) * cout] = wc[:, dj]
    return jnp.asarray(wb, dtype)


def _bn_helpers(w_out, c):
    gs = np.tile(np.eye(c, dtype=np.float32), (w_out, 1))   # (Wo*C, C)
    return jnp.asarray(gs), jnp.asarray(np.array(gs.T))     # sum, expand


def prepare_operands(params, batch):
    """One-time host prep: selection, banded-weight and BN helper matrices."""
    ndf, efg = NDF, EFG
    ops = {}
    # layer 1: 3 -> ndf, 64 -> 32 (conv 4x4 s2 p1, LeakyReLU)
    ops["r1"] = _row_select(batch, 64, 32, 4, 2, 1)
    ops["w1"] = _banded_weight(params["w1"], 64, 32, 2, 1)
    # layer 2: ndf -> 2ndf, 32 -> 16 (+BN)
    ops["r2"] = _row_select(batch, 32, 16, 4, 2, 1)
    ops["w2"] = _banded_weight(params["w2"], 32, 16, 2, 1)
    ops["gs2"], ops["ge2"] = _bn_helpers(16, 2 * ndf)
    ops["g2"] = params["g2"].reshape(1, -1); ops["b2"] = params["b2"].reshape(1, -1)
    # layer 3: 2ndf -> 4ndf, 16 -> 8 (+BN)
    ops["r3"] = _row_select(batch, 16, 8, 4, 2, 1)
    ops["w3"] = _banded_weight(params["w3"], 16, 8, 2, 1)
    ops["gs3"], ops["ge3"] = _bn_helpers(8, 4 * ndf)
    ops["g3"] = params["g3"].reshape(1, -1); ops["b3"] = params["b3"].reshape(1, -1)
    # layer 4: 4ndf -> 8ndf, 8 -> 4 (+BN)
    ops["r4"] = _row_select(batch, 8, 4, 4, 2, 1)
    ops["w4"] = _banded_weight(params["w4"], 8, 4, 2, 1)
    ops["gs4"], ops["ge4"] = _bn_helpers(4, 8 * ndf)
    ops["g4"] = params["g4"].reshape(1, -1); ops["b4"] = params["b4"].reshape(1, -1)
    # jointConv: 3x3 s1 p1 on cat([c (efg), x_code (8ndf)]) -> split weight by channel group
    ops["rj"] = _row_select(batch, 4, 4, 3, 1, 1)
    ops["wjc"] = _banded_weight(params["wj"][:, :, :efg, :], 4, 4, 1, 1)
    ops["wjx"] = _banded_weight(params["wj"][:, :, efg:, :], 4, 4, 1, 1)
    ops["gsj"], ops["gej"] = _bn_helpers(4, 8 * ndf)
    ops["gj"] = params["gj"].reshape(1, -1); ops["bj"] = params["bj"].reshape(1, -1)
    # heads: 4x4 stride-4 convs on 4x4 maps -> 1x1 logits
    ops["rh"] = _row_select(batch, 4, 1, 4, 4, 0)
    ops["whl"] = _banded_weight(params["w_log"], 4, 1, 4, 0)
    ops["bl"] = params["b_log"].reshape(1, 1)
    ops["whu"] = _banded_weight(params["w_usn"], 4, 1, 4, 0)  # already spectral-normalized
    ops["bu"] = params["b_usn"].reshape(1, 1)
    return ops


# --------------------------------- forward ----------------------------------

def _zero_map(ndim):
    return lambda i: (0,) * ndim


def d_net64_forward(ops, x_nchw, c_code):
    b = x_nchw.shape[0]
    # NCHW -> NHWC -> lane-dense 2D layout X[b*H + h, w*C + c]
    x = jnp.transpose(x_nchw, (0, 2, 3, 1)).reshape(b * IMG, IMG * 3)
    c2d = jnp.broadcast_to(c_code.reshape(b, 1, 1, EFG),
                           (b, 4, 4, EFG)).reshape(b * 4, 4 * EFG)

    args = (
        x,
        ops["r1"], ops["w1"],
        ops["r2"], ops["w2"], ops["gs2"], ops["ge2"], ops["g2"], ops["b2"],
        ops["r3"], ops["w3"], ops["gs3"], ops["ge3"], ops["g3"], ops["b3"],
        ops["r4"], ops["w4"], ops["gs4"], ops["ge4"], ops["g4"], ops["b4"],
        c2d, ops["rj"], ops["wjx"], ops["wjc"], ops["gsj"], ops["gej"], ops["gj"], ops["bj"],
        ops["rh"], ops["whl"], ops["bl"], ops["whu"], ops["bu"],
    )
    in_specs = [pl.BlockSpec(a.shape, _zero_map(a.ndim)) for a in args]
    out_shape = (jax.ShapeDtypeStruct((b, 1), jnp.float32),
                 jax.ShapeDtypeStruct((b, 1), jnp.float32))
    out_specs = (pl.BlockSpec((b, 1), _zero_map(2)),
                 pl.BlockSpec((b, 1), _zero_map(2)))

    out_c, out_u = pl.pallas_call(
        _dnet64_kernel,
        out_shape=out_shape,
        grid=(1,),
        in_specs=in_specs,
        out_specs=out_specs,
        compiler_params=pltpu.CompilerParams(dimension_semantics=("arbitrary",)),
    )(*args)
    return [out_c.reshape(-1), out_u.reshape(-1)]


# ----------------------------- pure-JAX reference ---------------------------

def _conv_ref(x, w, stride, pad):
    return jax.lax.conv_general_dilated(
        x, w, window_strides=(stride, stride),
        padding=[(pad, pad), (pad, pad)],
        dimension_numbers=("NHWC", "HWIO", "NHWC"))


def _bn_lrelu_ref(y, gamma, beta):
    mean = jnp.mean(y, axis=(0, 1, 2), keepdims=True)
    var = jnp.mean(jnp.square(y - mean), axis=(0, 1, 2), keepdims=True)
    yn = (y - mean) * jax.lax.rsqrt(var + BN_EPS) * gamma + beta
    return jnp.maximum(yn, LRELU_SLOPE * yn)


def d_net64_reference(params, x_nchw, c_code):
    x = jnp.transpose(x_nchw, (0, 2, 3, 1))
    h = _conv_ref(x, params["w1"], 2, 1)
    h = jnp.maximum(h, LRELU_SLOPE * h)
    h = _bn_lrelu_ref(_conv_ref(h, params["w2"], 2, 1), params["g2"], params["b2"])
    h = _bn_lrelu_ref(_conv_ref(h, params["w3"], 2, 1), params["g3"], params["b3"])
    x_code = _bn_lrelu_ref(_conv_ref(h, params["w4"], 2, 1), params["g4"], params["b4"])
    b = x_code.shape[0]
    c = jnp.broadcast_to(c_code.reshape(b, 1, 1, EFG), (b, 4, 4, EFG))
    h_c = jnp.concatenate([c, x_code], axis=-1)
    h_c = _bn_lrelu_ref(_conv_ref(h_c, params["wj"], 1, 1), params["gj"], params["bj"])
    out = jax.nn.sigmoid(_conv_ref(h_c, params["w_log"], 4, 0) + params["b_log"]).reshape(-1)
    out_u = jax.nn.sigmoid(_conv_ref(x_code, params["w_usn"], 4, 0) + params["b_usn"]).reshape(-1)
    return out, out_u


# ------------------------- parameter construction ---------------------------

def init_params(key):
    ks = jax.random.split(key, 10)

    def cw(k, kh, kw, cin, cout, scale=0.05):
        return scale * jax.random.normal(k, (kh, kw, cin, cout), jnp.float32)

    ndf, efg = NDF, EFG
    p = {}
    # encode_image_by_16times
    p["w1"] = cw(ks[0], 4, 4, 3, ndf)
    p["w2"] = cw(ks[1], 4, 4, ndf, ndf * 2)
    p["g2"] = jnp.ones((ndf * 2,), jnp.float32); p["b2"] = jnp.zeros((ndf * 2,), jnp.float32)
    p["w3"] = cw(ks[2], 4, 4, ndf * 2, ndf * 4)
    p["g3"] = jnp.ones((ndf * 4,), jnp.float32); p["b3"] = jnp.zeros((ndf * 4,), jnp.float32)
    p["w4"] = cw(ks[3], 4, 4, ndf * 4, ndf * 8)
    p["g4"] = jnp.ones((ndf * 8,), jnp.float32); p["b4"] = jnp.zeros((ndf * 8,), jnp.float32)
    # jointConv: Block3x3_leakReLu(ndf*8 + efg, ndf*8)
    p["wj"] = cw(ks[4], 3, 3, ndf * 8 + efg, ndf * 8)
    p["gj"] = jnp.ones((ndf * 8,), jnp.float32); p["bj"] = jnp.zeros((ndf * 8,), jnp.float32)
    # logits: Conv2d(ndf*8, 1, 4, stride=4) + Sigmoid
    p["w_log"] = cw(ks[5], 4, 4, ndf * 8, 1)
    p["b_log"] = 0.05 * jax.random.normal(ks[6], (1,), jnp.float32)
    # uncond_logits_sn: spectral_norm(Conv2d(ndf*8, 1, 4, stride=4)) + Sigmoid.
    # out_channels == 1 -> spectral norm is exactly the weight's L2 norm.
    w_usn = cw(ks[7], 4, 4, ndf * 8, 1)
    p["w_usn"] = w_usn / jnp.sqrt(jnp.sum(jnp.square(w_usn)))
    p["b_usn"] = 0.05 * jax.random.normal(ks[8], (1,), jnp.float32)
    return p


# ----------------------------------- main ------------------------------------

if __name__ == "__main__":
    key = jax.random.PRNGKey(0)
    k_param, k_x, k_c = jax.random.split(key, 3)

    params = init_params(k_param)
    ops = prepare_operands(params, BATCH)

    # D_NET64 expects 64x64 RGB images (16x downsample, then 4x4-stride-4 heads).
    x = jax.random.normal(k_x, (BATCH, 3, IMG, IMG), jnp.float32)   # NCHW like PyTorch
    c_code = jax.random.normal(k_c, (BATCH, EFG), jnp.float32)

    fwd = jax.jit(d_net64_forward)
    out, out_uncond = fwd(ops, x, c_code)
    jax.block_until_ready(out)
    jax.block_until_ready(out_uncond)

    assert out.shape == (BATCH,) and out_uncond.shape == (BATCH,)
    assert bool(jnp.all(jnp.isfinite(out))) and bool(jnp.all(jnp.isfinite(out_uncond)))

    # Cross-check the fused bf16/f32 Pallas kernel against the pure-JAX f32 reference.
    ref_c, ref_u = jax.jit(d_net64_reference)(params, x, c_code)
    assert bool(jnp.allclose(out, ref_c, atol=5e-2))
    assert bool(jnp.allclose(out_uncond, ref_u, atol=5e-2))

    print("KERNEL_OK")
</pallas_src>

<mosaic_0001>
module attributes {stable_mosaic.version = 11 : i64} {
  func.func @_dnet64_kernel(%arg0: i32, %arg1: memref<128x192xf32, #tpu.memory_space<vmem>>, %arg2: memref<4x64x128xf32, #tpu.memory_space<vmem>>, %arg3: memref<4x192x256xbf16, #tpu.memory_space<vmem>>, %arg4: memref<4x32x64xf32, #tpu.memory_space<vmem>>, %arg5: memref<4x256x256xbf16, #tpu.memory_space<vmem>>, %arg6: memref<256x16xf32, #tpu.memory_space<vmem>>, %arg7: memref<16x256xf32, #tpu.memory_space<vmem>>, %arg8: memref<1x16xf32, #tpu.memory_space<vmem>>, %arg9: memref<1x16xf32, #tpu.memory_space<vmem>>, %arg10: memref<4x16x32xf32, #tpu.memory_space<vmem>>, %arg11: memref<4x256x256xbf16, #tpu.memory_space<vmem>>, %arg12: memref<256x32xf32, #tpu.memory_space<vmem>>, %arg13: memref<32x256xf32, #tpu.memory_space<vmem>>, %arg14: memref<1x32xf32, #tpu.memory_space<vmem>>, %arg15: memref<1x32xf32, #tpu.memory_space<vmem>>, %arg16: memref<4x8x16xf32, #tpu.memory_space<vmem>>, %arg17: memref<4x256x256xbf16, #tpu.memory_space<vmem>>, %arg18: memref<256x64xf32, #tpu.memory_space<vmem>>, %arg19: memref<64x256xf32, #tpu.memory_space<vmem>>, %arg20: memref<1x64xf32, #tpu.memory_space<vmem>>, %arg21: memref<1x64xf32, #tpu.memory_space<vmem>>, %arg22: memref<8x64xf32, #tpu.memory_space<vmem>>, %arg23: memref<3x8x8xf32, #tpu.memory_space<vmem>>, %arg24: memref<3x256x256xbf16, #tpu.memory_space<vmem>>, %arg25: memref<3x64x256xbf16, #tpu.memory_space<vmem>>, %arg26: memref<256x64xf32, #tpu.memory_space<vmem>>, %arg27: memref<64x256xf32, #tpu.memory_space<vmem>>, %arg28: memref<1x64xf32, #tpu.memory_space<vmem>>, %arg29: memref<1x64xf32, #tpu.memory_space<vmem>>, %arg30: memref<4x2x8xf32, #tpu.memory_space<vmem>>, %arg31: memref<4x256x1xbf16, #tpu.memory_space<vmem>>, %arg32: memref<1x1xf32, #tpu.memory_space<vmem>>, %arg33: memref<4x256x1xbf16, #tpu.memory_space<vmem>>, %arg34: memref<1x1xf32, #tpu.memory_space<vmem>>, %arg35: memref<2x1xf32, #tpu.memory_space<vmem>>, %arg36: memref<2x1xf32, #tpu.memory_space<vmem>>) attributes {dimension_semantics = [#tpu.dimension_semantics<arbitrary>], iteration_bounds = array<i64: 1>, scalar_prefetch = 0 : i64, scratch_operands = 0 : i64, tpu.core_type = #tpu.core_type<tc>, window_params = [{pipeline_mode = #tpu.pipeline_mode<synchronous>, transform_indices = @transform_0, window_bounds = array<i64: 128, 192>}, {pipeline_mode = #tpu.pipeline_mode<synchronous>, transform_indices = @transform_1, window_bounds = array<i64: 4, 64, 128>}, {pipeline_mode = #tpu.pipeline_mode<synchronous>, transform_indices = @transform_2, window_bounds = array<i64: 4, 192, 256>}, {pipeline_mode = #tpu.pipeline_mode<synchronous>, transform_indices = @transform_3, window_bounds = array<i64: 4, 32, 64>}, {pipeline_mode = #tpu.pipeline_mode<synchronous>, transform_indices = @transform_4, window_bounds = array<i64: 4, 256, 256>}, {pipeline_mode = #tpu.pipeline_mode<synchronous>, transform_indices = @transform_5, window_bounds = array<i64: 256, 16>}, {pipeline_mode = #tpu.pipeline_mode<synchronous>, transform_indices = @transform_6, window_bounds = array<i64: 16, 256>}, {pipeline_mode = #tpu.pipeline_mode<synchronous>, transform_indices = @transform_7, window_bounds = array<i64: 1, 16>}, {pipeline_mode = #tpu.pipeline_mode<synchronous>, transform_indices = @transform_8, window_bounds = array<i64: 1, 16>}, {pipeline_mode = #tpu.pipeline_mode<synchronous>, transform_indices = @transform_9, window_bounds = array<i64: 4, 16, 32>}, {pipeline_mode = #tpu.pipeline_mode<synchronous>, transform_indices = @transform_10, window_bounds = array<i64: 4, 256, 256>}, {pipeline_mode = #tpu.pipeline_mode<synchronous>, transform_indices = @transform_11, window_bounds = array<i64: 256, 32>}, {pipeline_mode = #tpu.pipeline_mode<synchronous>, transform_indices = @transform_12, window_bounds = array<i64: 32, 256>}, {pipeline_mode = #tpu.pipeline_mode<synchronous>, transform_indices = @transform_13, window_bounds = array<i64: 1, 32>}, {pipeline_mode = #tpu.pipeline_mode<synchronous>, transform_indices = @transform_14, window_bounds = array<i64: 1, 32>}, {pipeline_mode = #tpu.pipeline_mode<synchronous>, transform_indices = @transform_15, window_bounds = array<i64: 4, 8, 16>}, {pipeline_mode = #tpu.pipeline_mode<synchronous>, transform_indices = @transform_16, window_bounds = array<i64: 4, 256, 256>}, {pipeline_mode = #tpu.pipeline_mode<synchronous>, transform_indices = @transform_17, window_bounds = array<i64: 256, 64>}, {pipeline_mode = #tpu.pipeline_mode<synchronous>, transform_indices = @transform_18, window_bounds = array<i64: 64, 256>}, {pipeline_mode = #tpu.pipeline_mode<synchronous>, transform_indices = @transform_19, window_bounds = array<i64: 1, 64>}, {pipeline_mode = #tpu.pipeline_mode<synchronous>, transform_indices = @transform_20, window_bounds = array<i64: 1, 64>}, {pipeline_mode = #tpu.pipeline_mode<synchronous>, transform_indices = @transform_21, window_bounds = array<i64: 8, 64>}, {pipeline_mode = #tpu.pipeline_mode<synchronous>, transform_indices = @transform_22, window_bounds = array<i64: 3, 8, 8>}, {pipeline_mode = #tpu.pipeline_mode<synchronous>, transform_indices = @transform_23, window_bounds = array<i64: 3, 256, 256>}, {pipeline_mode = #tpu.pipeline_mode<synchronous>, transform_indices = @transform_24, window_bounds = array<i64: 3, 64, 256>}, {pipeline_mode = #tpu.pipeline_mode<synchronous>, transform_indices = @transform_25, window_bounds = array<i64: 256, 64>}, {pipeline_mode = #tpu.pipeline_mode<synchronous>, transform_indices = @transform_26, window_bounds = array<i64: 64, 256>}, {pipeline_mode = #tpu.pipeline_mode<synchronous>, transform_indices = @transform_27, window_bounds = array<i64: 1, 64>}, {pipeline_mode = #tpu.pipeline_mode<synchronous>, transform_indices = @transform_28, window_bounds = array<i64: 1, 64>}, {pipeline_mode = #tpu.pipeline_mode<synchronous>, transform_indices = @transform_29, window_bounds = array<i64: 4, 2, 8>}, {pipeline_mode = #tpu.pipeline_mode<synchronous>, transform_indices = @transform_30, window_bounds = array<i64: 4, 256, 1>}, {pipeline_mode = #tpu.pipeline_mode<synchronous>, transform_indices = @transform_31, window_bounds = array<i64: 1, 1>}, {pipeline_mode = #tpu.pipeline_mode<synchronous>, transform_indices = @transform_32, window_bounds = array<i64: 4, 256, 1>}, {pipeline_mode = #tpu.pipeline_mode<synchronous>, transform_indices = @transform_33, window_bounds = array<i64: 1, 1>}, {pipeline_mode = #tpu.pipeline_mode<synchronous>, transform_indices = @transform_34, window_bounds = array<i64: 2, 1>}, {pipeline_mode = #tpu.pipeline_mode<synchronous>, transform_indices = @transform_35, window_bounds = array<i64: 2, 1>}]} {
    %c0 = arith.constant 0 : index
    %c0_0 = arith.constant 0 : index
    %0 = vector.load %arg1[%c0, %c0_0] : memref<128x192xf32, #tpu.memory_space<vmem>>, vector<128x192xf32>
    %c0_1 = arith.constant 0 : index
    %c0_2 = arith.constant 0 : index
    %c0_3 = arith.constant 0 : index
    %1 = vector.load %arg2[%c0_1, %c0_2, %c0_3] : memref<4x64x128xf32, #tpu.memory_space<vmem>>, vector<1x64x128xf32>
    %2 = vector.shape_cast %1 : vector<1x64x128xf32> to vector<64x128xf32>
    %cst = arith.constant dense<0.000000e+00> : vector<64x192xf32>
    %3 = tpu.matmul %2, %0, %cst {dimension_numbers = #tpu.dot_dimension_numbers<[1], [0], [0], [1], [0, 0, 1, 1], [], []>} : vector<64x128xf32>, vector<128x192xf32>, vector<64x192xf32> -> vector<64x192xf32>
    %4 = arith.truncf %3 : vector<64x192xf32> to vector<64x192xbf16>
    %c0_4 = arith.constant 0 : index
    %c0_5 = arith.constant 0 : index
    %c0_6 = arith.constant 0 : index
    %5 = vector.load %arg3[%c0_4, %c0_5, %c0_6] : memref<4x192x256xbf16, #tpu.memory_space<vmem>>, vector<1x192x256xbf16>
    %6 = vector.shape_cast %5 : vector<1x192x256xbf16> to vector<192x256xbf16>
    %cst_7 = arith.constant dense<0.000000e+00> : vector<64x256xf32>
    %7 = tpu.matmul %4, %6, %cst_7 {dimension_numbers = #tpu.dot_dimension_numbers<[1], [0], [0], [1], [0, 0, 1, 1], [], []>} : vector<64x192xbf16>, vector<192x256xbf16>, vector<64x256xf32> -> vector<64x256xf32>
    %c1 = arith.constant 1 : index
    %c0_8 = arith.constant 0 : index
    %c0_9 = arith.constant 0 : index
    %8 = vector.load %arg2[%c1, %c0_8, %c0_9] : memref<4x64x128xf32, #tpu.memory_space<vmem>>, vector<1x64x128xf32>
    %9 = vector.shape_cast %8 : vector<1x64x128xf32> to vector<64x128xf32>
    %cst_10 = arith.constant dense<0.000000e+00> : vector<64x192xf32>
    %10 = tpu.matmul %9, %0, %cst_10 {dimension_numbers = #tpu.dot_dimension_numbers<[1], [0], [0], [1], [0, 0, 1, 1], [], []>} : vector<64x128xf32>, vector<128x192xf32>, vector<64x192xf32> -> vector<64x192xf32>
    %11 = arith.truncf %10 : vector<64x192xf32> to vector<64x192xbf16>
    %c1_11 = arith.constant 1 : index
    %c0_12 = arith.constant 0 : index
    %c0_13 = arith.constant 0 : index
    %12 = vector.load %arg3[%c1_11, %c0_12, %c0_13] : memref<4x192x256xbf16, #tpu.memory_space<vmem>>, vector<1x192x256xbf16>
    %13 = vector.shape_cast %12 : vector<1x192x256xbf16> to vector<192x256xbf16>
    %cst_14 = arith.constant dense<0.000000e+00> : vector<64x256xf32>
    %14 = tpu.matmul %11, %13, %cst_14 {dimension_numbers = #tpu.dot_dimension_numbers<[1], [0], [0], [1], [0, 0, 1, 1], [], []>} : vector<64x192xbf16>, vector<192x256xbf16>, vector<64x256xf32> -> vector<64x256xf32>
    %15 = arith.addf %7, %14 : vector<64x256xf32>
    %c2 = arith.constant 2 : index
    %c0_15 = arith.constant 0 : index
    %c0_16 = arith.constant 0 : index
    %16 = vector.load %arg2[%c2, %c0_15, %c0_16] : memref<4x64x128xf32, #tpu.memory_space<vmem>>, vector<1x64x128xf32>
    %17 = vector.shape_cast %16 : vector<1x64x128xf32> to vector<64x128xf32>
    %cst_17 = arith.constant dense<0.000000e+00> : vector<64x192xf32>
    %18 = tpu.matmul %17, %0, %cst_17 {dimension_numbers = #tpu.dot_dimension_numbers<[1], [0], [0], [1], [0, 0, 1, 1], [], []>} : vector<64x128xf32>, vector<128x192xf32>, vector<64x192xf32> -> vector<64x192xf32>
    %19 = arith.truncf %18 : vector<64x192xf32> to vector<64x192xbf16>
    %c2_18 = arith.constant 2 : index
    %c0_19 = arith.constant 0 : index
    %c0_20 = arith.constant 0 : index
    %20 = vector.load %arg3[%c2_18, %c0_19, %c0_20] : memref<4x192x256xbf16, #tpu.memory_space<vmem>>, vector<1x192x256xbf16>
    %21 = vector.shape_cast %20 : vector<1x192x256xbf16> to vector<192x256xbf16>
    %cst_21 = arith.constant dense<0.000000e+00> : vector<64x256xf32>
    %22 = tpu.matmul %19, %21, %cst_21 {dimension_numbers = #tpu.dot_dimension_numbers<[1], [0], [0], [1], [0, 0, 1, 1], [], []>} : vector<64x192xbf16>, vector<192x256xbf16>, vector<64x256xf32> -> vector<64x256xf32>
    %23 = arith.addf %15, %22 : vector<64x256xf32>
    %c3 = arith.constant 3 : index
    %c0_22 = arith.constant 0 : index
    %c0_23 = arith.constant 0 : index
    %24 = vector.load %arg2[%c3, %c0_22, %c0_23] : memref<4x64x128xf32, #tpu.memory_space<vmem>>, vector<1x64x128xf32>
    %25 = vector.shape_cast %24 : vector<1x64x128xf32> to vector<64x128xf32>
    %cst_24 = arith.constant dense<0.000000e+00> : vector<64x192xf32>
    %26 = tpu.matmul %25, %0, %cst_24 {dimension_numbers = #tpu.dot_dimension_numbers<[1], [0], [0], [1], [0, 0, 1, 1], [], []>} : vector<64x128xf32>, vector<128x192xf32>, vector<64x192xf32> -> vector<64x192xf32>
    %27 = arith.truncf %26 : vector<64x192xf32> to vector<64x192xbf16>
    %c3_25 = arith.constant 3 : index
    %c0_26 = arith.constant 0 : index
    %c0_27 = arith.constant 0 : index
    %28 = vector.load %arg3[%c3_25, %c0_26, %c0_27] : memref<4x192x256xbf16, #tpu.memory_space<vmem>>, vector<1x192x256xbf16>
    %29 = vector.shape_cast %28 : vector<1x192x256xbf16> to vector<192x256xbf16>
    %cst_28 = arith.constant dense<0.000000e+00> : vector<64x256xf32>
    %30 = tpu.matmul %27, %29, %cst_28 {dimension_numbers = #tpu.dot_dimension_numbers<[1], [0], [0], [1], [0, 0, 1, 1], [], []>} : vector<64x192xbf16>, vector<192x256xbf16>, vector<64x256xf32> -> vector<64x256xf32>
    %31 = arith.addf %23, %30 : vector<64x256xf32>
    %cst_29 = arith.constant 2.000000e-01 : f32
    %32 = vector.broadcast %cst_29 : f32 to vector<64x256xf32>
    %33 = arith.mulf %32, %31 : vector<64x256xf32>
    %34 = arith.maximumf %31, %33 : vector<64x256xf32>
    %c0_30 = arith.constant 0 : index
    %c0_31 = arith.constant 0 : index
    %c0_32 = arith.constant 0 : index
    %35 = vector.load %arg4[%c0_30, %c0_31, %c0_32] : memref<4x32x64xf32, #tpu.memory_space<vmem>>, vector<1x32x64xf32>
    %36 = vector.shape_cast %35 : vector<1x32x64xf32> to vector<32x64xf32>
    %cst_33 = arith.constant dense<0.000000e+00> : vector<32x256xf32>
    %37 = tpu.matmul %36, %34, %cst_33 {dimension_numbers = #tpu.dot_dimension_numbers<[1], [0], [0], [1], [0, 0, 1, 1], [], []>} : vector<32x64xf32>, vector<64x256xf32>, vector<32x256xf32> -> vector<32x256xf32>
    %38 = arith.truncf %37 : vector<32x256xf32> to vector<32x256xbf16>
    %c0_34 = arith.constant 0 : index
    %c0_35 = arith.constant 0 : index
    %c0_36 = arith.constant 0 : index
    %39 = vector.load %arg5[%c0_34, %c0_35, %c0_36] : memref<4x256x256xbf16, #tpu.memory_space<vmem>>, vector<1x256x256xbf16>
    %40 = vector.shape_cast %39 : vector<1x256x256xbf16> to vector<256x256xbf16>
    %cst_37 = arith.constant dense<0.000000e+00> : vector<32x256xf32>
    %41 = tpu.matmul %38, %40, %cst_37 {dimension_numbers = #tpu.dot_dimension_numbers<[1], [0], [0], [1], [0, 0, 1, 1], [], []>} : vector<32x256xbf16>, vector<256x256xbf16>, vector<32x256xf32> -> vector<32x256xf32>
    %c1_38 = arith.constant 1 : index
    %c0_39 = arith.constant 0 : index
    %c0_40 = arith.constant 0 : index
    %42 = vector.load %arg4[%c1_38, %c0_39, %c0_40] : memref<4x32x64xf32, #tpu.memory_space<vmem>>, vector<1x32x64xf32>
    %43 = vector.shape_cast %42 : vector<1x32x64xf32> to vector<32x64xf32>
    %cst_41 = arith.constant dense<0.000000e+00> : vector<32x256xf32>
    %44 = tpu.matmul %43, %34, %cst_41 {dimension_numbers = #tpu.dot_dimension_numbers<[1], [0], [0], [1], [0, 0, 1, 1], [], []>} : vector<32x64xf32>, vector<64x256xf32>, vector<32x256xf32> -> vector<32x256xf32>
    %45 = arith.truncf %44 : vector<32x256xf32> to vector<32x256xbf16>
    %c1_42 = arith.constant 1 : index
    %c0_43 = arith.constant 0 : index
    %c0_44 = arith.constant 0 : index
    %46 = vector.load %arg5[%c1_42, %c0_43, %c0_44] : memref<4x256x256xbf16, #tpu.memory_space<vmem>>, vector<1x256x256xbf16>
    %47 = vector.shape_cast %46 : vector<1x256x256xbf16> to vector<256x256xbf16>
    %cst_45 = arith.constant dense<0.000000e+00> : vector<32x256xf32>
    %48 = tpu.matmul %45, %47, %cst_45 {dimension_numbers = #tpu.dot_dimension_numbers<[1], [0], [0], [1], [0, 0, 1, 1], [], []>} : vector<32x256xbf16>, vector<256x256xbf16>, vector<32x256xf32> -> vector<32x256xf32>
    %49 = arith.addf %41, %48 : vector<32x256xf32>
    %c2_46 = arith.constant 2 : index
    %c0_47 = arith.constant 0 : index
    %c0_48 = arith.constant 0 : index
    %50 = vector.load %arg4[%c2_46, %c0_47, %c0_48] : memref<4x32x64xf32, #tpu.memory_space<vmem>>, vector<1x32x64xf32>
    %51 = vector.shape_cast %50 : vector<1x32x64xf32> to vector<32x64xf32>
    %cst_49 = arith.constant dense<0.000000e+00> : vector<32x256xf32>
    %52 = tpu.matmul %51, %34, %cst_49 {dimension_numbers = #tpu.dot_dimension_numbers<[1], [0], [0], [1], [0, 0, 1, 1], [], []>} : vector<32x64xf32>, vector<64x256xf32>, vector<32x256xf32> -> vector<32x256xf32>
    %53 = arith.truncf %52 : vector<32x256xf32> to vector<32x256xbf16>
    %c2_50 = arith.constant 2 : index
    %c0_51 = arith.constant 0 : index
    %c0_52 = arith.constant 0 : index
    %54 = vector.load %arg5[%c2_50, %c0_51, %c0_52] : memref<4x256x256xbf16, #tpu.memory_space<vmem>>, vector<1x256x256xbf16>
    %55 = vector.shape_cast %54 : vector<1x256x256xbf16> to vector<256x256xbf16>
    %cst_53 = arith.constant dense<0.000000e+00> : vector<32x256xf32>
    %56 = tpu.matmul %53, %55, %cst_53 {dimension_numbers = #tpu.dot_dimension_numbers<[1], [0], [0], [1], [0, 0, 1, 1], [], []>} : vector<32x256xbf16>, vector<256x256xbf16>, vector<32x256xf32> -> vector<32x256xf32>
    %57 = arith.addf %49, %56 : vector<32x256xf32>
    %c3_54 = arith.constant 3 : index
    %c0_55 = arith.constant 0 : index
    %c0_56 = arith.constant 0 : index
    %58 = vector.load %arg4[%c3_54, %c0_55, %c0_56] : memref<4x32x64xf32, #tpu.memory_space<vmem>>, vector<1x32x64xf32>
    %59 = vector.shape_cast %58 : vector<1x32x64xf32> to vector<32x64xf32>
    %cst_57 = arith.constant dense<0.000000e+00> : vector<32x256xf32>
    %60 = tpu.matmul %59, %34, %cst_57 {dimension_numbers = #tpu.dot_dimension_numbers<[1], [0], [0], [1], [0, 0, 1, 1], [], []>} : vector<32x64xf32>, vector<64x256xf32>, vector<32x256xf32> -> vector<32x256xf32>
    %61 = arith.truncf %60 : vector<32x256xf32> to vector<32x256xbf16>
    %c3_58 = arith.constant 3 : index
    %c0_59 = arith.constant 0 : index
    %c0_60 = arith.constant 0 : index
    %62 = vector.load %arg5[%c3_58, %c0_59, %c0_60] : memref<4x256x256xbf16, #tpu.memory_space<vmem>>, vector<1x256x256xbf16>
    %63 = vector.shape_cast %62 : vector<1x256x256xbf16> to vector<256x256xbf16>
    %cst_61 = arith.constant dense<0.000000e+00> : vector<32x256xf32>
    %64 = tpu.matmul %61, %63, %cst_61 {dimension_numbers = #tpu.dot_dimension_numbers<[1], [0], [0], [1], [0, 0, 1, 1], [], []>} : vector<32x256xbf16>, vector<256x256xbf16>, vector<32x256xf32> -> vector<32x256xf32>
    %65 = arith.addf %57, %64 : vector<32x256xf32>
    %cst_62 = arith.constant dense<0.000000e+00> : vector<256xf32>
    %66 = vector.multi_reduction <add>, %65, %cst_62 [0] : vector<32x256xf32> to vector<256xf32>
    %67 = vector.shape_cast %66 : vector<256xf32> to vector<1x256xf32>
    %68 = arith.mulf %65, %65 : vector<32x256xf32>
    %cst_63 = arith.constant dense<0.000000e+00> : vector<256xf32>
    %69 = vector.multi_reduction <add>, %68, %cst_63 [0] : vector<32x256xf32> to vector<256xf32>
    %70 = vector.shape_cast %69 : vector<256xf32> to vector<1x256xf32>
    %c0_64 = arith.constant 0 : index
    %c0_65 = arith.constant 0 : index
    %71 = vector.load %arg6[%c0_64, %c0_65] : memref<256x16xf32, #tpu.memory_space<vmem>>, vector<256x16xf32>
    %cst_66 = arith.constant dense<0.000000e+00> : vector<1x16xf32>
    %72 = tpu.matmul %67, %71, %cst_66 {dimension_numbers = #tpu.dot_dimension_numbers<[1], [0], [0], [1], [0, 0, 1, 1], [], []>} : vector<1x256xf32>, vector<256x16xf32>, vector<1x16xf32> -> vector<1x16xf32>
    %cst_67 = arith.constant 5.120000e+02 : f32
    %73 = vector.broadcast %cst_67 : f32 to vector<1x16xf32>
    %74 = arith.divf %72, %73 : vector<1x16xf32>
    %c0_68 = arith.constant 0 : index
    %c0_69 = arith.constant 0 : index
    %75 = vector.load %arg6[%c0_68, %c0_69] : memref<256x16xf32, #tpu.memory_space<vmem>>, vector<256x16xf32>
    %cst_70 = arith.constant dense<0.000000e+00> : vector<1x16xf32>
    %76 = tpu.matmul %70, %75, %cst_70 {dimension_numbers = #tpu.dot_dimension_numbers<[1], [0], [0], [1], [0, 0, 1, 1], [], []>} : vector<1x256xf32>, vector<256x16xf32>, vector<1x16xf32> -> vector<1x16xf32>
    %cst_71 = arith.constant 5.120000e+02 : f32
    %77 = vector.broadcast %cst_71 : f32 to vector<1x16xf32>
    %78 = arith.divf %76, %77 : vector<1x16xf32>
    %79 = arith.mulf %74, %74 : vector<1x16xf32>
    %80 = arith.subf %78, %79 : vector<1x16xf32>
    %cst_72 = arith.constant 0.000000e+00 : f32
    %81 = vector.broadcast %cst_72 : f32 to vector<1x16xf32>
    %82 = arith.maximumf %80, %81 : vector<1x16xf32>
    %c0_73 = arith.constant 0 : index
    %c0_74 = arith.constant 0 : index
    %83 = vector.load %arg8[%c0_73, %c0_74] : memref<1x16xf32, #tpu.memory_space<vmem>>, vector<1x16xf32>
    %cst_75 = arith.constant 9.99999974E-6 : f32
    %84 = vector.broadcast %cst_75 : f32 to vector<1x16xf32>
    %85 = arith.addf %82, %84 : vector<1x16xf32>
    %86 = math.rsqrt %85 : vector<1x16xf32>
    %87 = arith.mulf %83, %86 : vector<1x16xf32>
    %c0_76 = arith.constant 0 : index
    %c0_77 = arith.constant 0 : index
    %88 = vector.load %arg9[%c0_76, %c0_77] : memref<1x16xf32, #tpu.memory_space<vmem>>, vector<1x16xf32>
    %89 = arith.mulf %74, %87 : vector<1x16xf32>
    %90 = arith.subf %88, %89 : vector<1x16xf32>
    %c0_78 = arith.constant 0 : index
    %c0_79 = arith.constant 0 : index
    %91 = vector.load %arg7[%c0_78, %c0_79] : memref<16x256xf32, #tpu.memory_space<vmem>>, vector<16x256xf32>
    %cst_80 = arith.constant dense<0.000000e+00> : vector<1x256xf32>
    %92 = tpu.matmul %87, %91, %cst_80 {dimension_numbers = #tpu.dot_dimension_numbers<[1], [0], [0], [1], [0, 0, 1, 1], [], []>} : vector<1x16xf32>, vector<16x256xf32>, vector<1x256xf32> -> vector<1x256xf32>
    %c0_81 = arith.constant 0 : index
    %c0_82 = arith.constant 0 : index
    %93 = vector.load %arg7[%c0_81, %c0_82] : memref<16x256xf32, #tpu.memory_space<vmem>>, vector<16x256xf32>
    %cst_83 = arith.constant dense<0.000000e+00> : vector<1x256xf32>
    %94 = tpu.matmul %90, %93, %cst_83 {dimension_numbers = #tpu.dot_dimension_numbers<[1], [0], [0], [1], [0, 0, 1, 1], [], []>} : vector<1x16xf32>, vector<16x256xf32>, vector<1x256xf32> -> vector<1x256xf32>
    %95 = vector.broadcast %92 : vector<1x256xf32> to vector<32x256xf32>
    %96 = arith.mulf %65, %95 : vector<32x256xf32>
    %97 = vector.broadcast %94 : vector<1x256xf32> to vector<32x256xf32>
    %98 = arith.addf %96, %97 : vector<32x256xf32>
    %cst_84 = arith.constant 2.000000e-01 : f32
    %99 = vector.broadcast %cst_84 : f32 to vector<32x256xf32>
    %100 = arith.mulf %99, %98 : vector<32x256xf32>
    %101 = arith.maximumf %98, %100 : vector<32x256xf32>
    %c0_85 = arith.constant 0 : index
    %c0_86 = arith.constant 0 : index
    %c0_87 = arith.constant 0 : index
    %102 = vector.load %arg10[%c0_85, %c0_86, %c0_87] : memref<4x16x32xf32, #tpu.memory_space<vmem>>, vector<1x16x32xf32>
    %103 = vector.shape_cast %102 : vector<1x16x32xf32> to vector<16x32xf32>
    %cst_88 = arith.constant dense<0.000000e+00> : vector<16x256xf32>
    %104 = tpu.matmul %103, %101, %cst_88 {dimension_numbers = #tpu.dot_dimension_numbers<[1], [0], [0], [1], [0, 0, 1, 1], [], []>} : vector<16x32xf32>, vector<32x256xf32>, vector<16x256xf32> -> vector<16x256xf32>
    %105 = arith.truncf %104 : vector<16x256xf32> to vector<16x256xbf16>
    %c0_89 = arith.constant 0 : index
    %c0_90 = arith.constant 0 : index
    %c0_91 = arith.constant 0 : index
    %106 = vector.load %arg11[%c0_89, %c0_90, %c0_91] : memref<4x256x256xbf16, #tpu.memory_space<vmem>>, vector<1x256x256xbf16>
    %107 = vector.shape_cast %106 : vector<1x256x256xbf16> to vector<256x256xbf16>
    %cst_92 = arith.constant dense<0.000000e+00> : vector<16x256xf32>
    %108 = tpu.matmul %105, %107, %cst_92 {dimension_numbers = #tpu.dot_dimension_numbers<[1], [0], [0], [1], [0, 0, 1, 1], [], []>} : vector<16x256xbf16>, vector<256x256xbf16>, vector<16x256xf32> -> vector<16x256xf32>
    %c1_93 = arith.constant 1 : index
    %c0_94 = arith.constant 0 : index
    %c0_95 = arith.constant 0 : index
    %109 = vector.load %arg10[%c1_93, %c0_94, %c0_95] : memref<4x16x32xf32, #tpu.memory_space<vmem>>, vector<1x16x32xf32>
    %110 = vector.shape_cast %109 : vector<1x16x32xf32> to vector<16x32xf32>
    %cst_96 = arith.constant dense<0.000000e+00> : vector<16x256xf32>
    %111 = tpu.matmul %110, %101, %cst_96 {dimension_numbers = #tpu.dot_dimension_numbers<[1], [0], [0], [1], [0, 0, 1, 1], [], []>} : vector<16x32xf32>, vector<32x256xf32>, vector<16x256xf32> -> vector<16x256xf32>
    %112 = arith.truncf %111 : vector<16x256xf32> to vector<16x256xbf16>
    %c1_97 = arith.constant 1 : index
    %c0_98 = arith.constant 0 : index
    %c0_99 = arith.constant 0 : index
    %113 = vector.load %arg11[%c1_97, %c0_98, %c0_99] : memref<4x256x256xbf16, #tpu.memory_space<vmem>>, vector<1x256x256xbf16>
    %114 = vector.shape_cast %113 : vector<1x256x256xbf16> to vector<256x256xbf16>
    %cst_100 = arith.constant dense<0.000000e+00> : vector<16x256xf32>
    %115 = tpu.matmul %112, %114, %cst_100 {dimension_numbers = #tpu.dot_dimension_numbers<[1], [0], [0], [1], [0, 0, 1, 1], [], []>} : vector<16x256xbf16>, vector<256x256xbf16>, vector<16x256xf32> -> vector<16x256xf32>
    %116 = arith.addf %108, %115 : vector<16x256xf32>
    %c2_101 = arith.constant 2 : index
    %c0_102 = arith.constant 0 : index
    %c0_103 = arith.constant 0 : index
    %117 = vector.load %arg10[%c2_101, %c0_102, %c0_103] : memref<4x16x32xf32, #tpu.memory_space<vmem>>, vector<1x16x32xf32>
    %118 = vector.shape_cast %117 : vector<1x16x32xf32> to vector<16x32xf32>
    %cst_104 = arith.constant dense<0.000000e+00> : vector<16x256xf32>
    %119 = tpu.matmul %118, %101, %cst_104 {dimension_numbers = #tpu.dot_dimension_numbers<[1], [0], [0], [1], [0, 0, 1, 1], [], []>} : vector<16x32xf32>, vector<32x256xf32>, vector<16x256xf32> -> vector<16x256xf32>
    %120 = arith.truncf %119 : vector<16x256xf32> to vector<16x256xbf16>
    %c2_105 = arith.constant 2 : index
    %c0_106 = arith.constant 0 : index
    %c0_107 = arith.constant 0 : index
    %121 = vector.load %arg11[%c2_105, %c0_106, %c0_107] : memref<4x256x256xbf16, #tpu.memory_space<vmem>>, vector<1x256x256xbf16>
    %122 = vector.shape_cast %121 : vector<1x256x256xbf16> to vector<256x256xbf16>
    %cst_108 = arith.constant dense<0.000000e+00> : vector<16x256xf32>
    %123 = tpu.matmul %120, %122, %cst_108 {dimension_numbers = #tpu.dot_dimension_numbers<[1], [0], [0], [1], [0, 0, 1, 1], [], []>} : vector<16x256xbf16>, vector<256x256xbf16>, vector<16x256xf32> -> vector<16x256xf32>
    %124 = arith.addf %116, %123 : vector<16x256xf32>
    %c3_109 = arith.constant 3 : index
    %c0_110 = arith.constant 0 : index
    %c0_111 = arith.constant 0 : index
    %125 = vector.load %arg10[%c3_109, %c0_110, %c0_111] : memref<4x16x32xf32, #tpu.memory_space<vmem>>, vector<1x16x32xf32>
    %126 = vector.shape_cast %125 : vector<1x16x32xf32> to vector<16x32xf32>
    %cst_112 = arith.constant dense<0.000000e+00> : vector<16x256xf32>
    %127 = tpu.matmul %126, %101, %cst_112 {dimension_numbers = #tpu.dot_dimension_numbers<[1], [0], [0], [1], [0, 0, 1, 1], [], []>} : vector<16x32xf32>, vector<32x256xf32>, vector<16x256xf32> -> vector<16x256xf32>
    %128 = arith.truncf %127 : vector<16x256xf32> to vector<16x256xbf16>
    %c3_113 = arith.constant 3 : index
    %c0_114 = arith.constant 0 : index
    %c0_115 = arith.constant 0 : index
    %129 = vector.load %arg11[%c3_113, %c0_114, %c0_115] : memref<4x256x256xbf16, #tpu.memory_space<vmem>>, vector<1x256x256xbf16>
    %130 = vector.shape_cast %129 : vector<1x256x256xbf16> to vector<256x256xbf16>
    %cst_116 = arith.constant dense<0.000000e+00> : vector<16x256xf32>
    %131 = tpu.matmul %128, %130, %cst_116 {dimension_numbers = #tpu.dot_dimension_numbers<[1], [0], [0], [1], [0, 0, 1, 1], [], []>} : vector<16x256xbf16>, vector<256x256xbf16>, vector<16x256xf32> -> vector<16x256xf32>
    %132 = arith.addf %124, %131 : vector<16x256xf32>
    %cst_117 = arith.constant dense<0.000000e+00> : vector<256xf32>
    %133 = vector.multi_reduction <add>, %132, %cst_117 [0] : vector<16x256xf32> to vector<256xf32>
    %134 = vector.shape_cast %133 : vector<256xf32> to vector<1x256xf32>
    %135 = arith.mulf %132, %132 : vector<16x256xf32>
    %cst_118 = arith.constant dense<0.000000e+00> : vector<256xf32>
    %136 = vector.multi_reduction <add>, %135, %cst_118 [0] : vector<16x256xf32> to vector<256xf32>
    %137 = vector.shape_cast %136 : vector<256xf32> to vector<1x256xf32>
    %c0_119 = arith.constant 0 : index
    %c0_120 = arith.constant 0 : index
    %138 = vector.load %arg12[%c0_119, %c0_120] : memref<256x32xf32, #tpu.memory_space<vmem>>, vector<256x32xf32>
    %cst_121 = arith.constant dense<0.000000e+00> : vector<1x32xf32>
    %139 = tpu.matmul %134, %138, %cst_121 {dimension_numbers = #tpu.dot_dimension_numbers<[1], [0], [0], [1], [0, 0, 1, 1], [], []>} : vector<1x256xf32>, vector<256x32xf32>, vector<1x32xf32> -> vector<1x32xf32>
    %cst_122 = arith.constant 1.280000e+02 : f32
    %140 = vector.broadcast %cst_122 : f32 to vector<1x32xf32>
    %141 = arith.divf %139, %140 : vector<1x32xf32>
    %c0_123 = arith.constant 0 : index
    %c0_124 = arith.constant 0 : index
    %142 = vector.load %arg12[%c0_123, %c0_124] : memref<256x32xf32, #tpu.memory_space<vmem>>, vector<256x32xf32>
    %cst_125 = arith.constant dense<0.000000e+00> : vector<1x32xf32>
    %143 = tpu.matmul %137, %142, %cst_125 {dimension_numbers = #tpu.dot_dimension_numbers<[1], [0], [0], [1], [0, 0, 1, 1], [], []>} : vector<1x256xf32>, vector<256x32xf32>, vector<1x32xf32> -> vector<1x32xf32>
    %cst_126 = arith.constant 1.280000e+02 : f32
    %144 = vector.broadcast %cst_126 : f32 to vector<1x32xf32>
    %145 = arith.divf %143, %144 : vector<1x32xf32>
    %146 = arith.mulf %141, %141 : vector<1x32xf32>
    %147 = arith.subf %145, %146 : vector<1x32xf32>
    %cst_127 = arith.constant 0.000000e+00 : f32
    %148 = vector.broadcast %cst_127 : f32 to vector<1x32xf32>
    %149 = arith.maximumf %147, %148 : vector<1x32xf32>
    %c0_128 = arith.constant 0 : index
    %c0_129 = arith.constant 0 : index
    %150 = vector.load %arg14[%c0_128, %c0_129] : memref<1x32xf32, #tpu.memory_space<vmem>>, vector<1x32xf32>
    %cst_130 = arith.constant 9.99999974E-6 : f32
    %151 = vector.broadcast %cst_130 : f32 to vector<1x32xf32>
    %152 = arith.addf %149, %151 : vector<1x32xf32>
    %153 = math.rsqrt %152 : vector<1x32xf32>
    %154 = arith.mulf %150, %153 : vector<1x32xf32>
    %c0_131 = arith.constant 0 : index
    %c0_132 = arith.constant 0 : index
    %155 = vector.load %arg15[%c0_131, %c0_132] : memref<1x32xf32, #tpu.memory_space<vmem>>, vector<1x32xf32>
    %156 = arith.mulf %141, %154 : vector<1x32xf32>
    %157 = arith.subf %155, %156 : vector<1x32xf32>
    %c0_133 = arith.constant 0 : index
    %c0_134 = arith.constant 0 : index
    %158 = vector.load %arg13[%c0_133, %c0_134] : memref<32x256xf32, #tpu.memory_space<vmem>>, vector<32x256xf32>
    %cst_135 = arith.constant dense<0.000000e+00> : vector<1x256xf32>
    %159 = tpu.matmul %154, %158, %cst_135 {dimension_numbers = #tpu.dot_dimension_numbers<[1], [0], [0], [1], [0, 0, 1, 1], [], []>} : vector<1x32xf32>, vector<32x256xf32>, vector<1x256xf32> -> vector<1x256xf32>
    %c0_136 = arith.constant 0 : index
    %c0_137 = arith.constant 0 : index
    %160 = vector.load %arg13[%c0_136, %c0_137] : memref<32x256xf32, #tpu.memory_space<vmem>>, vector<32x256xf32>
    %cst_138 = arith.constant dense<0.000000e+00> : vector<1x256xf32>
    %161 = tpu.matmul %157, %160, %cst_138 {dimension_numbers = #tpu.dot_dimension_numbers<[1], [0], [0], [1], [0, 0, 1, 1], [], []>} : vector<1x32xf32>, vector<32x256xf32>, vector<1x256xf32> -> vector<1x256xf32>
    %162 = vector.broadcast %159 : vector<1x256xf32> to vector<16x256xf32>
    %163 = arith.mulf %132, %162 : vector<16x256xf32>
    %164 = vector.broadcast %161 : vector<1x256xf32> to vector<16x256xf32>
    %165 = arith.addf %163, %164 : vector<16x256xf32>
    %cst_139 = arith.constant 2.000000e-01 : f32
    %166 = vector.broadcast %cst_139 : f32 to vector<16x256xf32>
    %167 = arith.mulf %166, %165 : vector<16x256xf32>
    %168 = arith.maximumf %165, %167 : vector<16x256xf32>
    %c0_140 = arith.constant 0 : index
    %c0_141 = arith.constant 0 : index
    %c0_142 = arith.constant 0 : index
    %169 = vector.load %arg16[%c0_140, %c0_141, %c0_142] : memref<4x8x16xf32, #tpu.memory_space<vmem>>, vector<1x8x16xf32>
    %170 = vector.shape_cast %169 : vector<1x8x16xf32> to vector<8x16xf32>
    %cst_143 = arith.constant dense<0.000000e+00> : vector<8x256xf32>
    %171 = tpu.matmul %170, %168, %cst_143 {dimension_numbers = #tpu.dot_dimension_numbers<[1], [0], [0], [1], [0, 0, 1, 1], [], []>} : vector<8x16xf32>, vector<16x256xf32>, vector<8x256xf32> -> vector<8x256xf32>
    %172 = arith.truncf %171 : vector<8x256xf32> to vector<8x256xbf16>
    %c0_144 = arith.constant 0 : index
    %c0_145 = arith.constant 0 : index
    %c0_146 = arith.constant 0 : index
    %173 = vector.load %arg17[%c0_144, %c0_145, %c0_146] : memref<4x256x256xbf16, #tpu.memory_space<vmem>>, vector<1x256x256xbf16>
    %174 = vector.shape_cast %173 : vector<1x256x256xbf16> to vector<256x256xbf16>
    %cst_147 = arith.constant dense<0.000000e+00> : vector<8x256xf32>
    %175 = tpu.matmul %172, %174, %cst_147 {dimension_numbers = #tpu.dot_dimension_numbers<[1], [0], [0], [1], [0, 0, 1, 1], [], []>} : vector<8x256xbf16>, vector<256x256xbf16>, vector<8x256xf32> -> vector<8x256xf32>
    %c1_148 = arith.constant 1 : index
    %c0_149 = arith.constant 0 : index
    %c0_150 = arith.constant 0 : index
    %176 = vector.load %arg16[%c1_148, %c0_149, %c0_150] : memref<4x8x16xf32, #tpu.memory_space<vmem>>, vector<1x8x16xf32>
    %177 = vector.shape_cast %176 : vector<1x8x16xf32> to vector<8x16xf32>
    %cst_151 = arith.constant dense<0.000000e+00> : vector<8x256xf32>
    %178 = tpu.matmul %177, %168, %cst_151 {dimension_numbers = #tpu.dot_dimension_numbers<[1], [0], [0], [1], [0, 0, 1, 1], [], []>} : vector<8x16xf32>, vector<16x256xf32>, vector<8x256xf32> -> vector<8x256xf32>
    %179 = arith.truncf %178 : vector<8x256xf32> to vector<8x256xbf16>
    %c1_152 = arith.constant 1 : index
    %c0_153 = arith.constant 0 : index
    %c0_154 = arith.constant 0 : index
    %180 = vector.load %arg17[%c1_152, %c0_153, %c0_154] : memref<4x256x256xbf16, #tpu.memory_space<vmem>>, vector<1x256x256xbf16>
    %181 = vector.shape_cast %180 : vector<1x256x256xbf16> to vector<256x256xbf16>
    %cst_155 = arith.constant dense<0.000000e+00> : vector<8x256xf32>
    %182 = tpu.matmul %179, %181, %cst_155 {dimension_numbers = #tpu.dot_dimension_numbers<[1], [0], [0], [1], [0, 0, 1, 1], [], []>} : vector<8x256xbf16>, vector<256x256xbf16>, vector<8x256xf32> -> vector<8x256xf32>
    %183 = arith.addf %175, %182 : vector<8x256xf32>
    %c2_156 = arith.constant 2 : index
    %c0_157 = arith.constant 0 : index
    %c0_158 = arith.constant 0 : index
    %184 = vector.load %arg16[%c2_156, %c0_157, %c0_158] : memref<4x8x16xf32, #tpu.memory_space<vmem>>, vector<1x8x16xf32>
    %185 = vector.shape_cast %184 : vector<1x8x16xf32> to vector<8x16xf32>
    %cst_159 = arith.constant dense<0.000000e+00> : vector<8x256xf32>
    %186 = tpu.matmul %185, %168, %cst_159 {dimension_numbers = #tpu.dot_dimension_numbers<[1], [0], [0], [1], [0, 0, 1, 1], [], []>} : vector<8x16xf32>, vector<16x256xf32>, vector<8x256xf32> -> vector<8x256xf32>
    %187 = arith.truncf %186 : vector<8x256xf32> to vector<8x256xbf16>
    %c2_160 = arith.constant 2 : index
    %c0_161 = arith.constant 0 : index
    %c0_162 = arith.constant 0 : index
    %188 = vector.load %arg17[%c2_160, %c0_161, %c0_162] : memref<4x256x256xbf16, #tpu.memory_space<vmem>>, vector<1x256x256xbf16>
    %189 = vector.shape_cast %188 : vector<1x256x256xbf16> to vector<256x256xbf16>
    %cst_163 = arith.constant dense<0.000000e+00> : vector<8x256xf32>
    %190 = tpu.matmul %187, %189, %cst_163 {dimension_numbers = #tpu.dot_dimension_numbers<[1], [0], [0], [1], [0, 0, 1, 1], [], []>} : vector<8x256xbf16>, vector<256x256xbf16>, vector<8x256xf32> -> vector<8x256xf32>
    %191 = arith.addf %183, %190 : vector<8x256xf32>
    %c3_164 = arith.constant 3 : index
    %c0_165 = arith.constant 0 : index
    %c0_166 = arith.constant 0 : index
    %192 = vector.load %arg16[%c3_164, %c0_165, %c0_166] : memref<4x8x16xf32, #tpu.memory_space<vmem>>, vector<1x8x16xf32>
    %193 = vector.shape_cast %192 : vector<1x8x16xf32> to vector<8x16xf32>
    %cst_167 = arith.constant dense<0.000000e+00> : vector<8x256xf32>
    %194 = tpu.matmul %193, %168, %cst_167 {dimension_numbers = #tpu.dot_dimension_numbers<[1], [0], [0], [1], [0, 0, 1, 1], [], []>} : vector<8x16xf32>, vector<16x256xf32>, vector<8x256xf32> -> vector<8x256xf32>
    %195 = arith.truncf %194 : vector<8x256xf32> to vector<8x256xbf16>
    %c3_168 = arith.constant 3 : index
    %c0_169 = arith.constant 0 : index
    %c0_170 = arith.constant 0 : index
    %196 = vector.load %arg17[%c3_168, %c0_169, %c0_170] : memref<4x256x256xbf16, #tpu.memory_space<vmem>>, vector<1x256x256xbf16>
    %197 = vector.shape_cast %196 : vector<1x256x256xbf16> to vector<256x256xbf16>
    %cst_171 = arith.constant dense<0.000000e+00> : vector<8x256xf32>
    %198 = tpu.matmul %195, %197, %cst_171 {dimension_numbers = #tpu.dot_dimension_numbers<[1], [0], [0], [1], [0, 0, 1, 1], [], []>} : vector<8x256xbf16>, vector<256x256xbf16>, vector<8x256xf32> -> vector<8x256xf32>
    %199 = arith.addf %191, %198 : vector<8x256xf32>
    %cst_172 = arith.constant dense<0.000000e+00> : vector<256xf32>
    %200 = vector.multi_reduction <add>, %199, %cst_172 [0] : vector<8x256xf32> to vector<256xf32>
    %201 = vector.shape_cast %200 : vector<256xf32> to vector<1x256xf32>
    %202 = arith.mulf %199, %199 : vector<8x256xf32>
    %cst_173 = arith.constant dense<0.000000e+00> : vector<256xf32>
    %203 = vector.multi_reduction <add>, %202, %cst_173 [0] : vector<8x256xf32> to vector<256xf32>
    %204 = vector.shape_cast %203 : vector<256xf32> to vector<1x256xf32>
    %c0_174 = arith.constant 0 : index
    %c0_175 = arith.constant 0 : index
    %205 = vector.load %arg18[%c0_174, %c0_175] : memref<256x64xf32, #tpu.memory_space<vmem>>, vector<256x64xf32>
    %cst_176 = arith.constant dense<0.000000e+00> : vector<1x64xf32>
    %206 = tpu.matmul %201, %205, %cst_176 {dimension_numbers = #tpu.dot_dimension_numbers<[1], [0], [0], [1], [0, 0, 1, 1], [], []>} : vector<1x256xf32>, vector<256x64xf32>, vector<1x64xf32> -> vector<1x64xf32>
    %cst_177 = arith.constant 3.200000e+01 : f32
    %207 = vector.broadcast %cst_177 : f32 to vector<1x64xf32>
    %208 = arith.divf %206, %207 : vector<1x64xf32>
    %c0_178 = arith.constant 0 : index
    %c0_179 = arith.constant 0 : index
    %209 = vector.load %arg18[%c0_178, %c0_179] : memref<256x64xf32, #tpu.memory_space<vmem>>, vector<256x64xf32>
    %cst_180 = arith.constant dense<0.000000e+00> : vector<1x64xf32>
    %210 = tpu.matmul %204, %209, %cst_180 {dimension_numbers = #tpu.dot_dimension_numbers<[1], [0], [0], [1], [0, 0, 1, 1], [], []>} : vector<1x256xf32>, vector<256x64xf32>, vector<1x64xf32> -> vector<1x64xf32>
    %cst_181 = arith.constant 3.200000e+01 : f32
    %211 = vector.broadcast %cst_181 : f32 to vector<1x64xf32>
    %212 = arith.divf %210, %211 : vector<1x64xf32>
    %213 = arith.mulf %208, %208 : vector<1x64xf32>
    %214 = arith.subf %212, %213 : vector<1x64xf32>
    %cst_182 = arith.constant 0.000000e+00 : f32
    %215 = vector.broadcast %cst_182 : f32 to vector<1x64xf32>
    %216 = arith.maximumf %214, %215 : vector<1x64xf32>
    %c0_183 = arith.constant 0 : index
    %c0_184 = arith.constant 0 : index
    %217 = vector.load %arg20[%c0_183, %c0_184] : memref<1x64xf32, #tpu.memory_space<vmem>>, vector<1x64xf32>
    %cst_185 = arith.constant 9.99999974E-6 : f32
    %218 = vector.broadcast %cst_185 : f32 to vector<1x64xf32>
    %219 = arith.addf %216, %218 : vector<1x64xf32>
    %220 = math.rsqrt %219 : vector<1x64xf32>
    %221 = arith.mulf %217, %220 : vector<1x64xf32>
    %c0_186 = arith.constant 0 : index
    %c0_187 = arith.constant 0 : index
    %222 = vector.load %arg21[%c0_186, %c0_187] : memref<1x64xf32, #tpu.memory_space<vmem>>, vector<1x64xf32>
    %223 = arith.mulf %208, %221 : vector<1x64xf32>
    %224 = arith.subf %222, %223 : vector<1x64xf32>
    %c0_188 = arith.constant 0 : index
    %c0_189 = arith.constant 0 : index
    %225 = vector.load %arg19[%c0_188, %c0_189] : memref<64x256xf32, #tpu.memory_space<vmem>>, vector<64x256xf32>
    %cst_190 = arith.constant dense<0.000000e+00> : vector<1x256xf32>
    %226 = tpu.matmul %221, %225, %cst_190 {dimension_numbers = #tpu.dot_dimension_numbers<[1], [0], [0], [1], [0, 0, 1, 1], [], []>} : vector<1x64xf32>, vector<64x256xf32>, vector<1x256xf32> -> vector<1x256xf32>
    %c0_191 = arith.constant 0 : index
    %c0_192 = arith.constant 0 : index
    %227 = vector.load %arg19[%c0_191, %c0_192] : memref<64x256xf32, #tpu.memory_space<vmem>>, vector<64x256xf32>
    %cst_193 = arith.constant dense<0.000000e+00> : vector<1x256xf32>
    %228 = tpu.matmul %224, %227, %cst_193 {dimension_numbers = #tpu.dot_dimension_numbers<[1], [0], [0], [1], [0, 0, 1, 1], [], []>} : vector<1x64xf32>, vector<64x256xf32>, vector<1x256xf32> -> vector<1x256xf32>
    %229 = vector.broadcast %226 : vector<1x256xf32> to vector<8x256xf32>
    %230 = arith.mulf %199, %229 : vector<8x256xf32>
    %231 = vector.broadcast %228 : vector<1x256xf32> to vector<8x256xf32>
    %232 = arith.addf %230, %231 : vector<8x256xf32>
    %cst_194 = arith.constant 2.000000e-01 : f32
    %233 = vector.broadcast %cst_194 : f32 to vector<8x256xf32>
    %234 = arith.mulf %233, %232 : vector<8x256xf32>
    %235 = arith.maximumf %232, %234 : vector<8x256xf32>
    %c0_195 = arith.constant 0 : index
    %c0_196 = arith.constant 0 : index
    %c0_197 = arith.constant 0 : index
    %236 = vector.load %arg23[%c0_195, %c0_196, %c0_197] : memref<3x8x8xf32, #tpu.memory_space<vmem>>, vector<1x8x8xf32>
    %237 = vector.shape_cast %236 : vector<1x8x8xf32> to vector<8x8xf32>
    %cst_198 = arith.constant dense<0.000000e+00> : vector<8x256xf32>
    %238 = tpu.matmul %237, %235, %cst_198 {dimension_numbers = #tpu.dot_dimension_numbers<[1], [0], [0], [1], [0, 0, 1, 1], [], []>} : vector<8x8xf32>, vector<8x256xf32>, vector<8x256xf32> -> vector<8x256xf32>
    %239 = arith.truncf %238 : vector<8x256xf32> to vector<8x256xbf16>
    %c0_199 = arith.constant 0 : index
    %c0_200 = arith.constant 0 : index
    %c0_201 = arith.constant 0 : index
    %240 = vector.load %arg24[%c0_199, %c0_200, %c0_201] : memref<3x256x256xbf16, #tpu.memory_space<vmem>>, vector<1x256x256xbf16>
    %241 = vector.shape_cast %240 : vector<1x256x256xbf16> to vector<256x256xbf16>
    %cst_202 = arith.constant dense<0.000000e+00> : vector<8x256xf32>
    %242 = tpu.matmul %239, %241, %cst_202 {dimension_numbers = #tpu.dot_dimension_numbers<[1], [0], [0], [1], [0, 0, 1, 1], [], []>} : vector<8x256xbf16>, vector<256x256xbf16>, vector<8x256xf32> -> vector<8x256xf32>
    %c1_203 = arith.constant 1 : index
    %c0_204 = arith.constant 0 : index
    %c0_205 = arith.constant 0 : index
    %243 = vector.load %arg23[%c1_203, %c0_204, %c0_205] : memref<3x8x8xf32, #tpu.memory_space<vmem>>, vector<1x8x8xf32>
    %244 = vector.shape_cast %243 : vector<1x8x8xf32> to vector<8x8xf32>
    %cst_206 = arith.constant dense<0.000000e+00> : vector<8x256xf32>
    %245 = tpu.matmul %244, %235, %cst_206 {dimension_numbers = #tpu.dot_dimension_numbers<[1], [0], [0], [1], [0, 0, 1, 1], [], []>} : vector<8x8xf32>, vector<8x256xf32>, vector<8x256xf32> -> vector<8x256xf32>
    %246 = arith.truncf %245 : vector<8x256xf32> to vector<8x256xbf16>
    %c1_207 = arith.constant 1 : index
    %c0_208 = arith.constant 0 : index
    %c0_209 = arith.constant 0 : index
    %247 = vector.load %arg24[%c1_207, %c0_208, %c0_209] : memref<3x256x256xbf16, #tpu.memory_space<vmem>>, vector<1x256x256xbf16>
    %248 = vector.shape_cast %247 : vector<1x256x256xbf16> to vector<256x256xbf16>
    %cst_210 = arith.constant dense<0.000000e+00> : vector<8x256xf32>
    %249 = tpu.matmul %246, %248, %cst_210 {dimension_numbers = #tpu.dot_dimension_numbers<[1], [0], [0], [1], [0, 0, 1, 1], [], []>} : vector<8x256xbf16>, vector<256x256xbf16>, vector<8x256xf32> -> vector<8x256xf32>
    %250 = arith.addf %242, %249 : vector<8x256xf32>
    %c2_211 = arith.constant 2 : index
    %c0_212 = arith.constant 0 : index
    %c0_213 = arith.constant 0 : index
    %251 = vector.load %arg23[%c2_211, %c0_212, %c0_213] : memref<3x8x8xf32, #tpu.memory_space<vmem>>, vector<1x8x8xf32>
    %252 = vector.shape_cast %251 : vector<1x8x8xf32> to vector<8x8xf32>
    %cst_214 = arith.constant dense<0.000000e+00> : vector<8x256xf32>
    %253 = tpu.matmul %252, %235, %cst_214 {dimension_numbers = #tpu.dot_dimension_numbers<[1], [0], [0], [1], [0, 0, 1, 1], [], []>} : vector<8x8xf32>, vector<8x256xf32>, vector<8x256xf32> -> vector<8x256xf32>
    %254 = arith.truncf %253 : vector<8x256xf32> to vector<8x256xbf16>
    %c2_215 = arith.constant 2 : index
    %c0_216 = arith.constant 0 : index
    %c0_217 = arith.constant 0 : index
    %255 = vector.load %arg24[%c2_215, %c0_216, %c0_217] : memref<3x256x256xbf16, #tpu.memory_space<vmem>>, vector<1x256x256xbf16>
    %256 = vector.shape_cast %255 : vector<1x256x256xbf16> to vector<256x256xbf16>
    %cst_218 = arith.constant dense<0.000000e+00> : vector<8x256xf32>
    %257 = tpu.matmul %254, %256, %cst_218 {dimension_numbers = #tpu.dot_dimension_numbers<[1], [0], [0], [1], [0, 0, 1, 1], [], []>} : vector<8x256xbf16>, vector<256x256xbf16>, vector<8x256xf32> -> vector<8x256xf32>
    %258 = arith.addf %250, %257 : vector<8x256xf32>
    %c0_219 = arith.constant 0 : index
    %c0_220 = arith.constant 0 : index
    %259 = vector.load %arg22[%c0_219, %c0_220] : memref<8x64xf32, #tpu.memory_space<vmem>>, vector<8x64xf32>
    %c0_221 = arith.constant 0 : index
    %c0_222 = arith.constant 0 : index
    %c0_223 = arith.constant 0 : index
    %260 = vector.load %arg23[%c0_221, %c0_222, %c0_223] : memref<3x8x8xf32, #tpu.memory_space<vmem>>, vector<1x8x8xf32>
    %261 = vector.shape_cast %260 : vector<1x8x8xf32> to vector<8x8xf32>
    %cst_224 = arith.constant dense<0.000000e+00> : vector<8x64xf32>
    %262 = tpu.matmul %261, %259, %cst_224 {dimension_numbers = #tpu.dot_dimension_numbers<[1], [0], [0], [1], [0, 0, 1, 1], [], []>} : vector<8x8xf32>, vector<8x64xf32>, vector<8x64xf32> -> vector<8x64xf32>
    %263 = arith.truncf %262 : vector<8x64xf32> to vector<8x64xbf16>
    %c0_225 = arith.constant 0 : index
    %c0_226 = arith.constant 0 : index
    %c0_227 = arith.constant 0 : index
    %264 = vector.load %arg25[%c0_225, %c0_226, %c0_227] : memref<3x64x256xbf16, #tpu.memory_space<vmem>>, vector<1x64x256xbf16>
    %265 = vector.shape_cast %264 : vector<1x64x256xbf16> to vector<64x256xbf16>
    %cst_228 = arith.constant dense<0.000000e+00> : vector<8x256xf32>
    %266 = tpu.matmul %263, %265, %cst_228 {dimension_numbers = #tpu.dot_dimension_numbers<[1], [0], [0], [1], [0, 0, 1, 1], [], []>} : vector<8x64xbf16>, vector<64x256xbf16>, vector<8x256xf32> -> vector<8x256xf32>
    %c1_229 = arith.constant 1 : index
    %c0_230 = arith.constant 0 : index
    %c0_231 = arith.constant 0 : index
    %267 = vector.load %arg23[%c1_229, %c0_230, %c0_231] : memref<3x8x8xf32, #tpu.memory_space<vmem>>, vector<1x8x8xf32>
    %268 = vector.shape_cast %267 : vector<1x8x8xf32> to vector<8x8xf32>
    %cst_232 = arith.constant dense<0.000000e+00> : vector<8x64xf32>
    %269 = tpu.matmul %268, %259, %cst_232 {dimension_numbers = #tpu.dot_dimension_numbers<[1], [0], [0], [1], [0, 0, 1, 1], [], []>} : vector<8x8xf32>, vector<8x64xf32>, vector<8x64xf32> -> vector<8x64xf32>
    %270 = arith.truncf %269 : vector<8x64xf32> to vector<8x64xbf16>
    %c1_233 = arith.constant 1 : index
    %c0_234 = arith.constant 0 : index
    %c0_235 = arith.constant 0 : index
    %271 = vector.load %arg25[%c1_233, %c0_234, %c0_235] : memref<3x64x256xbf16, #tpu.memory_space<vmem>>, vector<1x64x256xbf16>
    %272 = vector.shape_cast %271 : vector<1x64x256xbf16> to vector<64x256xbf16>
    %cst_236 = arith.constant dense<0.000000e+00> : vector<8x256xf32>
    %273 = tpu.matmul %270, %272, %cst_236 {dimension_numbers = #tpu.dot_dimension_numbers<[1], [0], [0], [1], [0, 0, 1, 1], [], []>} : vector<8x64xbf16>, vector<64x256xbf16>, vector<8x256xf32> -> vector<8x256xf32>
    %274 = arith.addf %266, %273 : vector<8x256xf32>
    %c2_237 = arith.constant 2 : index
    %c0_238 = arith.constant 0 : index
    %c0_239 = arith.constant 0 : index
    %275 = vector.load %arg23[%c2_237, %c0_238, %c0_239] : memref<3x8x8xf32, #tpu.memory_space<vmem>>, vector<1x8x8xf32>
    %276 = vector.shape_cast %275 : vector<1x8x8xf32> to vector<8x8xf32>
    %cst_240 = arith.constant dense<0.000000e+00> : vector<8x64xf32>
    %277 = tpu.matmul %276, %259, %cst_240 {dimension_numbers = #tpu.dot_dimension_numbers<[1], [0], [0], [1], [0, 0, 1, 1], [], []>} : vector<8x8xf32>, vector<8x64xf32>, vector<8x64xf32> -> vector<8x64xf32>
    %278 = arith.truncf %277 : vector<8x64xf32> to vector<8x64xbf16>
    %c2_241 = arith.constant 2 : index
    %c0_242 = arith.constant 0 : index
    %c0_243 = arith.constant 0 : index
    %279 = vector.load %arg25[%c2_241, %c0_242, %c0_243] : memref<3x64x256xbf16, #tpu.memory_space<vmem>>, vector<1x64x256xbf16>
    %280 = vector.shape_cast %279 : vector<1x64x256xbf16> to vector<64x256xbf16>
    %cst_244 = arith.constant dense<0.000000e+00> : vector<8x256xf32>
    %281 = tpu.matmul %278, %280, %cst_244 {dimension_numbers = #tpu.dot_dimension_numbers<[1], [0], [0], [1], [0, 0, 1, 1], [], []>} : vector<8x64xbf16>, vector<64x256xbf16>, vector<8x256xf32> -> vector<8x256xf32>
    %282 = arith.addf %274, %281 : vector<8x256xf32>
    %283 = arith.addf %258, %282 : vector<8x256xf32>
    %cst_245 = arith.constant dense<0.000000e+00> : vector<256xf32>
    %284 = vector.multi_reduction <add>, %283, %cst_245 [0] : vector<8x256xf32> to vector<256xf32>
    %285 = vector.shape_cast %284 : vector<256xf32> to vector<1x256xf32>
    %286 = arith.mulf %283, %283 : vector<8x256xf32>
    %cst_246 = arith.constant dense<0.000000e+00> : vector<256xf32>
    %287 = vector.multi_reduction <add>, %286, %cst_246 [0] : vector<8x256xf32> to vector<256xf32>
    %288 = vector.shape_cast %287 : vector<256xf32> to vector<1x256xf32>
    %c0_247 = arith.constant 0 : index
    %c0_248 = arith.constant 0 : index
    %289 = vector.load %arg26[%c0_247, %c0_248] : memref<256x64xf32, #tpu.memory_space<vmem>>, vector<256x64xf32>
    %cst_249 = arith.constant dense<0.000000e+00> : vector<1x64xf32>
    %290 = tpu.matmul %285, %289, %cst_249 {dimension_numbers = #tpu.dot_dimension_numbers<[1], [0], [0], [1], [0, 0, 1, 1], [], []>} : vector<1x256xf32>, vector<256x64xf32>, vector<1x64xf32> -> vector<1x64xf32>
    %cst_250 = arith.constant 3.200000e+01 : f32
    %291 = vector.broadcast %cst_250 : f32 to vector<1x64xf32>
    %292 = arith.divf %290, %291 : vector<1x64xf32>
    %c0_251 = arith.constant 0 : index
    %c0_252 = arith.constant 0 : index
    %293 = vector.load %arg26[%c0_251, %c0_252] : memref<256x64xf32, #tpu.memory_space<vmem>>, vector<256x64xf32>
    %cst_253 = arith.constant dense<0.000000e+00> : vector<1x64xf32>
    %294 = tpu.matmul %288, %293, %cst_253 {dimension_numbers = #tpu.dot_dimension_numbers<[1], [0], [0], [1], [0, 0, 1, 1], [], []>} : vector<1x256xf32>, vector<256x64xf32>, vector<1x64xf32> -> vector<1x64xf32>
    %cst_254 = arith.constant 3.200000e+01 : f32
    %295 = vector.broadcast %cst_254 : f32 to vector<1x64xf32>
    %296 = arith.divf %294, %295 : vector<1x64xf32>
    %297 = arith.mulf %292, %292 : vector<1x64xf32>
    %298 = arith.subf %296, %297 : vector<1x64xf32>
    %cst_255 = arith.constant 0.000000e+00 : f32
    %299 = vector.broadcast %cst_255 : f32 to vector<1x64xf32>
    %300 = arith.maximumf %298, %299 : vector<1x64xf32>
    %c0_256 = arith.constant 0 : index
    %c0_257 = arith.constant 0 : index
    %301 = vector.load %arg28[%c0_256, %c0_257] : memref<1x64xf32, #tpu.memory_space<vmem>>, vector<1x64xf32>
    %cst_258 = arith.constant 9.99999974E-6 : f32
    %302 = vector.broadcast %cst_258 : f32 to vector<1x64xf32>
    %303 = arith.addf %300, %302 : vector<1x64xf32>
    %304 = math.rsqrt %303 : vector<1x64xf32>
    %305 = arith.mulf %301, %304 : vector<1x64xf32>
    %c0_259 = arith.constant 0 : index
    %c0_260 = arith.constant 0 : index
    %306 = vector.load %arg29[%c0_259, %c0_260] : memref<1x64xf32, #tpu.memory_space<vmem>>, vector<1x64xf32>
    %307 = arith.mulf %292, %305 : vector<1x64xf32>
    %308 = arith.subf %306, %307 : vector<1x64xf32>
    %c0_261 = arith.constant 0 : index
    %c0_262 = arith.constant 0 : index
    %309 = vector.load %arg27[%c0_261, %c0_262] : memref<64x256xf32, #tpu.memory_space<vmem>>, vector<64x256xf32>
    %cst_263 = arith.constant dense<0.000000e+00> : vector<1x256xf32>
    %310 = tpu.matmul %305, %309, %cst_263 {dimension_numbers = #tpu.dot_dimension_numbers<[1], [0], [0], [1], [0, 0, 1, 1], [], []>} : vector<1x64xf32>, vector<64x256xf32>, vector<1x256xf32> -> vector<1x256xf32>
    %c0_264 = arith.constant 0 : index
    %c0_265 = arith.constant 0 : index
    %311 = vector.load %arg27[%c0_264, %c0_265] : memref<64x256xf32, #tpu.memory_space<vmem>>, vector<64x256xf32>
    %cst_266 = arith.constant dense<0.000000e+00> : vector<1x256xf32>
    %312 = tpu.matmul %308, %311, %cst_266 {dimension_numbers = #tpu.dot_dimension_numbers<[1], [0], [0], [1], [0, 0, 1, 1], [], []>} : vector<1x64xf32>, vector<64x256xf32>, vector<1x256xf32> -> vector<1x256xf32>
    %313 = vector.broadcast %310 : vector<1x256xf32> to vector<8x256xf32>
    %314 = arith.mulf %283, %313 : vector<8x256xf32>
    %315 = vector.broadcast %312 : vector<1x256xf32> to vector<8x256xf32>
    %316 = arith.addf %314, %315 : vector<8x256xf32>
    %cst_267 = arith.constant 2.000000e-01 : f32
    %317 = vector.broadcast %cst_267 : f32 to vector<8x256xf32>
    %318 = arith.mulf %317, %316 : vector<8x256xf32>
    %319 = arith.maximumf %316, %318 : vector<8x256xf32>
    %c0_268 = arith.constant 0 : index
    %c0_269 = arith.constant 0 : index
    %c0_270 = arith.constant 0 : index
    %320 = vector.load %arg30[%c0_268, %c0_269, %c0_270] : memref<4x2x8xf32, #tpu.memory_space<vmem>>, vector<1x2x8xf32>
    %321 = vector.shape_cast %320 : vector<1x2x8xf32> to vector<2x8xf32>
    %cst_271 = arith.constant dense<0.000000e+00> : vector<2x256xf32>
    %322 = tpu.matmul %321, %319, %cst_271 {dimension_numbers = #tpu.dot_dimension_numbers<[1], [0], [0], [1], [0, 0, 1, 1], [], []>} : vector<2x8xf32>, vector<8x256xf32>, vector<2x256xf32> -> vector<2x256xf32>
    %323 = arith.truncf %322 : vector<2x256xf32> to vector<2x256xbf16>
    %c0_272 = arith.constant 0 : index
    %c0_273 = arith.constant 0 : index
    %c0_274 = arith.constant 0 : index
    %324 = vector.load %arg31[%c0_272, %c0_273, %c0_274] : memref<4x256x1xbf16, #tpu.memory_space<vmem>>, vector<1x256x1xbf16>
    %325 = vector.shape_cast %324 : vector<1x256x1xbf16> to vector<256x1xbf16>
    %cst_275 = arith.constant dense<0.000000e+00> : vector<2x1xf32>
    %326 = tpu.matmul %323, %325, %cst_275 {dimension_numbers = #tpu.dot_dimension_numbers<[1], [0], [0], [1], [0, 0, 1, 1], [], []>} : vector<2x256xbf16>, vector<256x1xbf16>, vector<2x1xf32> -> vector<2x1xf32>
    %c1_276 = arith.constant 1 : index
    %c0_277 = arith.constant 0 : index
    %c0_278 = arith.constant 0 : index
    %327 = vector.load %arg30[%c1_276, %c0_277, %c0_278] : memref<4x2x8xf32, #tpu.memory_space<vmem>>, vector<1x2x8xf32>
    %328 = vector.shape_cast %327 : vector<1x2x8xf32> to vector<2x8xf32>
    %cst_279 = arith.constant dense<0.000000e+00> : vector<2x256xf32>
    %329 = tpu.matmul %328, %319, %cst_279 {dimension_numbers = #tpu.dot_dimension_numbers<[1], [0], [0], [1], [0, 0, 1, 1], [], []>} : vector<2x8xf32>, vector<8x256xf32>, vector<2x256xf32> -> vector<2x256xf32>
    %330 = arith.truncf %329 : vector<2x256xf32> to vector<2x256xbf16>
    %c1_280 = arith.constant 1 : index
    %c0_281 = arith.constant 0 : index
    %c0_282 = arith.constant 0 : index
    %331 = vector.load %arg31[%c1_280, %c0_281, %c0_282] : memref<4x256x1xbf16, #tpu.memory_space<vmem>>, vector<1x256x1xbf16>
    %332 = vector.shape_cast %331 : vector<1x256x1xbf16> to vector<256x1xbf16>
    %cst_283 = arith.constant dense<0.000000e+00> : vector<2x1xf32>
    %333 = tpu.matmul %330, %332, %cst_283 {dimension_numbers = #tpu.dot_dimension_numbers<[1], [0], [0], [1], [0, 0, 1, 1], [], []>} : vector<2x256xbf16>, vector<256x1xbf16>, vector<2x1xf32> -> vector<2x1xf32>
    %334 = arith.addf %326, %333 : vector<2x1xf32>
    %c2_284 = arith.constant 2 : index
    %c0_285 = arith.constant 0 : index
    %c0_286 = arith.constant 0 : index
    %335 = vector.load %arg30[%c2_284, %c0_285, %c0_286] : memref<4x2x8xf32, #tpu.memory_space<vmem>>, vector<1x2x8xf32>
    %336 = vector.shape_cast %335 : vector<1x2x8xf32> to vector<2x8xf32>
    %cst_287 = arith.constant dense<0.000000e+00> : vector<2x256xf32>
    %337 = tpu.matmul %336, %319, %cst_287 {dimension_numbers = #tpu.dot_dimension_numbers<[1], [0], [0], [1], [0, 0, 1, 1], [], []>} : vector<2x8xf32>, vector<8x256xf32>, vector<2x256xf32> -> vector<2x256xf32>
    %338 = arith.truncf %337 : vector<2x256xf32> to vector<2x256xbf16>
    %c2_288 = arith.constant 2 : index
    %c0_289 = arith.constant 0 : index
    %c0_290 = arith.constant 0 : index
    %339 = vector.load %arg31[%c2_288, %c0_289, %c0_290] : memref<4x256x1xbf16, #tpu.memory_space<vmem>>, vector<1x256x1xbf16>
    %340 = vector.shape_cast %339 : vector<1x256x1xbf16> to vector<256x1xbf16>
    %cst_291 = arith.constant dense<0.000000e+00> : vector<2x1xf32>
    %341 = tpu.matmul %338, %340, %cst_291 {dimension_numbers = #tpu.dot_dimension_numbers<[1], [0], [0], [1], [0, 0, 1, 1], [], []>} : vector<2x256xbf16>, vector<256x1xbf16>, vector<2x1xf32> -> vector<2x1xf32>
    %342 = arith.addf %334, %341 : vector<2x1xf32>
    %c3_292 = arith.constant 3 : index
    %c0_293 = arith.constant 0 : index
    %c0_294 = arith.constant 0 : index
    %343 = vector.load %arg30[%c3_292, %c0_293, %c0_294] : memref<4x2x8xf32, #tpu.memory_space<vmem>>, vector<1x2x8xf32>
    %344 = vector.shape_cast %343 : vector<1x2x8xf32> to vector<2x8xf32>
    %cst_295 = arith.constant dense<0.000000e+00> : vector<2x256xf32>
    %345 = tpu.matmul %344, %319, %cst_295 {dimension_numbers = #tpu.dot_dimension_numbers<[1], [0], [0], [1], [0, 0, 1, 1], [], []>} : vector<2x8xf32>, vector<8x256xf32>, vector<2x256xf32> -> vector<2x256xf32>
    %346 = arith.truncf %345 : vector<2x256xf32> to vector<2x256xbf16>
    %c3_296 = arith.constant 3 : index
    %c0_297 = arith.constant 0 : index
    %c0_298 = arith.constant 0 : index
    %347 = vector.load %arg31[%c3_296, %c0_297, %c0_298] : memref<4x256x1xbf16, #tpu.memory_space<vmem>>, vector<1x256x1xbf16>
    %348 = vector.shape_cast %347 : vector<1x256x1xbf16> to vector<256x1xbf16>
    %cst_299 = arith.constant dense<0.000000e+00> : vector<2x1xf32>
    %349 = tpu.matmul %346, %348, %cst_299 {dimension_numbers = #tpu.dot_dimension_numbers<[1], [0], [0], [1], [0, 0, 1, 1], [], []>} : vector<2x256xbf16>, vector<256x1xbf16>, vector<2x1xf32> -> vector<2x1xf32>
    %350 = arith.addf %342, %349 : vector<2x1xf32>
    %c0_300 = arith.constant 0 : index
    %c0_301 = arith.constant 0 : index
    %351 = vector.load %arg32[%c0_300, %c0_301] : memref<1x1xf32, #tpu.memory_space<vmem>>, vector<1x1xf32>
    %352 = vector.broadcast %351 : vector<1x1xf32> to vector<2x1xf32>
    %353 = arith.addf %350, %352 : vector<2x1xf32>
    %354 = arith.negf %353 : vector<2x1xf32>
    %355 = math.exp %354 : vector<2x1xf32>
    %cst_302 = arith.constant 1.000000e+00 : f32
    %356 = vector.broadcast %cst_302 : f32 to vector<2x1xf32>
    %357 = arith.addf %356, %355 : vector<2x1xf32>
    %358 = arith.divf %356, %357 : vector<2x1xf32>
    %c0_303 = arith.constant 0 : index
    %c0_304 = arith.constant 0 : index
    %359 = vector.load %arg35[%c0_303, %c0_304] : memref<2x1xf32, #tpu.memory_space<vmem>>, vector<2x1xf32>
    tpu.vector_store %arg35[%c0_303, %c0_304], %358 {strides = array<i32>} : memref<2x1xf32, #tpu.memory_space<vmem>>, vector<2x1xf32>,
    %c0_305 = arith.constant 0 : index
    %c0_306 = arith.constant 0 : index
    %c0_307 = arith.constant 0 : index
    %360 = vector.load %arg30[%c0_305, %c0_306, %c0_307] : memref<4x2x8xf32, #tpu.memory_space<vmem>>, vector<1x2x8xf32>
    %361 = vector.shape_cast %360 : vector<1x2x8xf32> to vector<2x8xf32>
    %cst_308 = arith.constant dense<0.000000e+00> : vector<2x256xf32>
    %362 = tpu.matmul %361, %235, %cst_308 {dimension_numbers = #tpu.dot_dimension_numbers<[1], [0], [0], [1], [0, 0, 1, 1], [], []>} : vector<2x8xf32>, vector<8x256xf32>, vector<2x256xf32> -> vector<2x256xf32>
    %363 = arith.truncf %362 : vector<2x256xf32> to vector<2x256xbf16>
    %c0_309 = arith.constant 0 : index
    %c0_310 = arith.constant 0 : index
    %c0_311 = arith.constant 0 : index
    %364 = vector.load %arg33[%c0_309, %c0_310, %c0_311] : memref<4x256x1xbf16, #tpu.memory_space<vmem>>, vector<1x256x1xbf16>
    %365 = vector.shape_cast %364 : vector<1x256x1xbf16> to vector<256x1xbf16>
    %cst_312 = arith.constant dense<0.000000e+00> : vector<2x1xf32>
    %366 = tpu.matmul %363, %365, %cst_312 {dimension_numbers = #tpu.dot_dimension_numbers<[1], [0], [0], [1], [0, 0, 1, 1], [], []>} : vector<2x256xbf16>, vector<256x1xbf16>, vector<2x1xf32> -> vector<2x1xf32>
    %c1_313 = arith.constant 1 : index
    %c0_314 = arith.constant 0 : index
    %c0_315 = arith.constant 0 : index
    %367 = vector.load %arg30[%c1_313, %c0_314, %c0_315] : memref<4x2x8xf32, #tpu.memory_space<vmem>>, vector<1x2x8xf32>
    %368 = vector.shape_cast %367 : vector<1x2x8xf32> to vector<2x8xf32>
    %cst_316 = arith.constant dense<0.000000e+00> : vector<2x256xf32>
    %369 = tpu.matmul %368, %235, %cst_316 {dimension_numbers = #tpu.dot_dimension_numbers<[1], [0], [0], [1], [0, 0, 1, 1], [], []>} : vector<2x8xf32>, vector<8x256xf32>, vector<2x256xf32> -> vector<2x256xf32>
    %370 = arith.truncf %369 : vector<2x256xf32> to vector<2x256xbf16>
    %c1_317 = arith.constant 1 : index
    %c0_318 = arith.constant 0 : index
    %c0_319 = arith.constant 0 : index
    %371 = vector.load %arg33[%c1_317, %c0_318, %c0_319] : memref<4x256x1xbf16, #tpu.memory_space<vmem>>, vector<1x256x1xbf16>
    %372 = vector.shape_cast %371 : vector<1x256x1xbf16> to vector<256x1xbf16>
    %cst_320 = arith.constant dense<0.000000e+00> : vector<2x1xf32>
    %373 = tpu.matmul %370, %372, %cst_320 {dimension_numbers = #tpu.dot_dimension_numbers<[1], [0], [0], [1], [0, 0, 1, 1], [], []>} : vector<2x256xbf16>, vector<256x1xbf16>, vector<2x1xf32> -> vector<2x1xf32>
    %374 = arith.addf %366, %373 : vector<2x1xf32>
    %c2_321 = arith.constant 2 : index
    %c0_322 = arith.constant 0 : index
    %c0_323 = arith.constant 0 : index
    %375 = vector.load %arg30[%c2_321, %c0_322, %c0_323] : memref<4x2x8xf32, #tpu.memory_space<vmem>>, vector<1x2x8xf32>
    %376 = vector.shape_cast %375 : vector<1x2x8xf32> to vector<2x8xf32>
    %cst_324 = arith.constant dense<0.000000e+00> : vector<2x256xf32>
    %377 = tpu.matmul %376, %235, %cst_324 {dimension_numbers = #tpu.dot_dimension_numbers<[1], [0], [0], [1], [0, 0, 1, 1], [], []>} : vector<2x8xf32>, vector<8x256xf32>, vector<2x256xf32> -> vector<2x256xf32>
    %378 = arith.truncf %377 : vector<2x256xf32> to vector<2x256xbf16>
    %c2_325 = arith.constant 2 : index
    %c0_326 = arith.constant 0 : index
    %c0_327 = arith.constant 0 : index
    %379 = vector.load %arg33[%c2_325, %c0_326, %c0_327] : memref<4x256x1xbf16, #tpu.memory_space<vmem>>, vector<1x256x1xbf16>
    %380 = vector.shape_cast %379 : vector<1x256x1xbf16> to vector<256x1xbf16>
    %cst_328 = arith.constant dense<0.000000e+00> : vector<2x1xf32>
    %381 = tpu.matmul %378, %380, %cst_328 {dimension_numbers = #tpu.dot_dimension_numbers<[1], [0], [0], [1], [0, 0, 1, 1], [], []>} : vector<2x256xbf16>, vector<256x1xbf16>, vector<2x1xf32> -> vector<2x1xf32>
    %382 = arith.addf %374, %381 : vector<2x1xf32>
    %c3_329 = arith.constant 3 : index
    %c0_330 = arith.constant 0 : index
    %c0_331 = arith.constant 0 : index
    %383 = vector.load %arg30[%c3_329, %c0_330, %c0_331] : memref<4x2x8xf32, #tpu.memory_space<vmem>>, vector<1x2x8xf32>
    %384 = vector.shape_cast %383 : vector<1x2x8xf32> to vector<2x8xf32>
    %cst_332 = arith.constant dense<0.000000e+00> : vector<2x256xf32>
    %385 = tpu.matmul %384, %235, %cst_332 {dimension_numbers = #tpu.dot_dimension_numbers<[1], [0], [0], [1], [0, 0, 1, 1], [], []>} : vector<2x8xf32>, vector<8x256xf32>, vector<2x256xf32> -> vector<2x256xf32>
    %386 = arith.truncf %385 : vector<2x256xf32> to vector<2x256xbf16>
    %c3_333 = arith.constant 3 : index
    %c0_334 = arith.constant 0 : index
    %c0_335 = arith.constant 0 : index
    %387 = vector.load %arg33[%c3_333, %c0_334, %c0_335] : memref<4x256x1xbf16, #tpu.memory_space<vmem>>, vector<1x256x1xbf16>
    %388 = vector.shape_cast %387 : vector<1x256x1xbf16> to vector<256x1xbf16>
    %cst_336 = arith.constant dense<0.000000e+00> : vector<2x1xf32>
    %389 = tpu.matmul %386, %388, %cst_336 {dimension_numbers = #tpu.dot_dimension_numbers<[1], [0], [0], [1], [0, 0, 1, 1], [], []>} : vector<2x256xbf16>, vector<256x1xbf16>, vector<2x1xf32> -> vector<2x1xf32>
    %390 = arith.addf %382, %389 : vector<2x1xf32>
    %c0_337 = arith.constant 0 : index
    %c0_338 = arith.constant 0 : index
    %391 = vector.load %arg34[%c0_337, %c0_338] : memref<1x1xf32, #tpu.memory_space<vmem>>, vector<1x1xf32>
    %392 = vector.broadcast %391 : vector<1x1xf32> to vector<2x1xf32>
    %393 = arith.addf %390, %392 : vector<2x1xf32>
    %394 = arith.negf %393 : vector<2x1xf32>
    %395 = math.exp %394 : vector<2x1xf32>
    %cst_339 = arith.constant 1.000000e+00 : f32
    %396 = vector.broadcast %cst_339 : f32 to vector<2x1xf32>
    %397 = arith.addf %396, %395 : vector<2x1xf32>
    %398 = arith.divf %396, %397 : vector<2x1xf32>
    %c0_340 = arith.constant 0 : index
    %c0_341 = arith.constant 0 : index
    %399 = vector.load %arg36[%c0_340, %c0_341] : memref<2x1xf32, #tpu.memory_space<vmem>>, vector<2x1xf32>
    tpu.vector_store %arg36[%c0_340, %c0_341], %398 {strides = array<i32>} : memref<2x1xf32, #tpu.memory_space<vmem>>, vector<2x1xf32>,
    return
  }
  func.func @transform_0(%arg0: i32) -> (i32, i32) {
    %c0_i32 = arith.constant 0 : i32
    %c0_i32_0 = arith.constant 0 : i32
    %c0_i32_1 = arith.constant 0 : i32
    return %c0_i32, %c0_i32_0 : i32, i32
  }
  func.func @transform_1(%arg0: i32) -> (i32, i32, i32) {
    %c0_i32 = arith.constant 0 : i32
    %c0_i32_0 = arith.constant 0 : i32
    %c0_i32_1 = arith.constant 0 : i32
    %c0_i32_2 = arith.constant 0 : i32
    return %c0_i32, %c0_i32_0, %c0_i32_1 : i32, i32, i32
  }
  func.func @transform_2(%arg0: i32) -> (i32, i32, i32) {
    %c0_i32 = arith.constant 0 : i32
    %c0_i32_0 = arith.constant 0 : i32
    %c0_i32_1 = arith.constant 0 : i32
    %c0_i32_2 = arith.constant 0 : i32
    return %c0_i32, %c0_i32_0, %c0_i32_1 : i32, i32, i32
  }
  func.func @transform_3(%arg0: i32) -> (i32, i32, i32) {
    %c0_i32 = arith.constant 0 : i32
    %c0_i32_0 = arith.constant 0 : i32
    %c0_i32_1 = arith.constant 0 : i32
    %c0_i32_2 = arith.constant 0 : i32
    return %c0_i32, %c0_i32_0, %c0_i32_1 : i32, i32, i32
  }
  func.func @transform_4(%arg0: i32) -> (i32, i32, i32) {
    %c0_i32 = arith.constant 0 : i32
    %c0_i32_0 = arith.constant 0 : i32
    %c0_i32_1 = arith.constant 0 : i32
    %c0_i32_2 = arith.constant 0 : i32
    return %c0_i32, %c0_i32_0, %c0_i32_1 : i32, i32, i32
  }
  func.func @transform_5(%arg0: i32) -> (i32, i32) {
    %c0_i32 = arith.constant 0 : i32
    %c0_i32_0 = arith.constant 0 : i32
    %c0_i32_1 = arith.constant 0 : i32
    return %c0_i32, %c0_i32_0 : i32, i32
  }
  func.func @transform_6(%arg0: i32) -> (i32, i32) {
    %c0_i32 = arith.constant 0 : i32
    %c0_i32_0 = arith.constant 0 : i32
    %c0_i32_1 = arith.constant 0 : i32
    return %c0_i32, %c0_i32_0 : i32, i32
  }
  func.func @transform_7(%arg0: i32) -> (i32, i32) {
    %c0_i32 = arith.constant 0 : i32
    %c0_i32_0 = arith.constant 0 : i32
    %c0_i32_1 = arith.constant 0 : i32
    return %c0_i32, %c0_i32_0 : i32, i32
  }
  func.func @transform_8(%arg0: i32) -> (i32, i32) {
    %c0_i32 = arith.constant 0 : i32
    %c0_i32_0 = arith.constant 0 : i32
    %c0_i32_1 = arith.constant 0 : i32
    return %c0_i32, %c0_i32_0 : i32, i32
  }
  func.func @transform_9(%arg0: i32) -> (i32, i32, i32) {
    %c0_i32 = arith.constant 0 : i32
    %c0_i32_0 = arith.constant 0 : i32
    %c0_i32_1 = arith.constant 0 : i32
    %c0_i32_2 = arith.constant 0 : i32
    return %c0_i32, %c0_i32_0, %c0_i32_1 : i32, i32, i32
  }
  func.func @transform_10(%arg0: i32) -> (i32, i32, i32) {
    %c0_i32 = arith.constant 0 : i32
    %c0_i32_0 = arith.constant 0 : i32
    %c0_i32_1 = arith.constant 0 : i32
    %c0_i32_2 = arith.constant 0 : i32
    return %c0_i32, %c0_i32_0, %c0_i32_1 : i32, i32, i32
  }
  func.func @transform_11(%arg0: i32) -> (i32, i32) {
    %c0_i32 = arith.constant 0 : i32
    %c0_i32_0 = arith.constant 0 : i32
    %c0_i32_1 = arith.constant 0 : i32
    return %c0_i32, %c0_i32_0 : i32, i32
  }
  func.func @transform_12(%arg0: i32) -> (i32, i32) {
    %c0_i32 = arith.constant 0 : i32
    %c0_i32_0 = arith.constant 0 : i32
    %c0_i32_1 = arith.constant 0 : i32
    return %c0_i32, %c0_i32_0 : i32, i32
  }
  func.func @transform_13(%arg0: i32) -> (i32, i32) {
    %c0_i32 = arith.constant 0 : i32
    %c0_i32_0 = arith.constant 0 : i32
    %c0_i32_1 = arith.constant 0 : i32
    return %c0_i32, %c0_i32_0 : i32, i32
  }
  func.func @transform_14(%arg0: i32) -> (i32, i32) {
    %c0_i32 = arith.constant 0 : i32
    %c0_i32_0 = arith.constant 0 : i32
    %c0_i32_1 = arith.constant 0 : i32
    return %c0_i32, %c0_i32_0 : i32, i32
  }
  func.func @transform_15(%arg0: i32) -> (i32, i32, i32) {
    %c0_i32 = arith.constant 0 : i32
    %c0_i32_0 = arith.constant 0 : i32
    %c0_i32_1 = arith.constant 0 : i32
    %c0_i32_2 = arith.constant 0 : i32
    return %c0_i32, %c0_i32_0, %c0_i32_1 : i32, i32, i32
  }
  func.func @transform_16(%arg0: i32) -> (i32, i32, i32) {
    %c0_i32 = arith.constant 0 : i32
    %c0_i32_0 = arith.constant 0 : i32
    %c0_i32_1 = arith.constant 0 : i32
    %c0_i32_2 = arith.constant 0 : i32
    return %c0_i32, %c0_i32_0, %c0_i32_1 : i32, i32, i32
  }
  func.func @transform_17(%arg0: i32) -> (i32, i32) {
    %c0_i32 = arith.constant 0 : i32
    %c0_i32_0 = arith.constant 0 : i32
    %c0_i32_1 = arith.constant 0 : i32
    return %c0_i32, %c0_i32_0 : i32, i32
  }
  func.func @transform_18(%arg0: i32) -> (i32, i32) {
    %c0_i32 = arith.constant 0 : i32
    %c0_i32_0 = arith.constant 0 : i32
    %c0_i32_1 = arith.constant 0 : i32
    return %c0_i32, %c0_i32_0 : i32, i32
  }
  func.func @transform_19(%arg0: i32) -> (i32, i32) {
    %c0_i32 = arith.constant 0 : i32
    %c0_i32_0 = arith.constant 0 : i32
    %c0_i32_1 = arith.constant 0 : i32
    return %c0_i32, %c0_i32_0 : i32, i32
  }
  func.func @transform_20(%arg0: i32) -> (i32, i32) {
    %c0_i32 = arith.constant 0 : i32
    %c0_i32_0 = arith.constant 0 : i32
    %c0_i32_1 = arith.constant 0 : i32
    return %c0_i32, %c0_i32_0 : i32, i32
  }
  func.func @transform_21(%arg0: i32) -> (i32, i32) {
    %c0_i32 = arith.constant 0 : i32
    %c0_i32_0 = arith.constant 0 : i32
    %c0_i32_1 = arith.constant 0 : i32
    return %c0_i32, %c0_i32_0 : i32, i32
  }
  func.func @transform_22(%arg0: i32) -> (i32, i32, i32) {
    %c0_i32 = arith.constant 0 : i32
    %c0_i32_0 = arith.constant 0 : i32
    %c0_i32_1 = arith.constant 0 : i32
    %c0_i32_2 = arith.constant 0 : i32
    return %c0_i32, %c0_i32_0, %c0_i32_1 : i32, i32, i32
  }
  func.func @transform_23(%arg0: i32) -> (i32, i32, i32) {
    %c0_i32 = arith.constant 0 : i32
    %c0_i32_0 = arith.constant 0 : i32
    %c0_i32_1 = arith.constant 0 : i32
    %c0_i32_2 = arith.constant 0 : i32
    return %c0_i32, %c0_i32_0, %c0_i32_1 : i32, i32, i32
  }
  func.func @transform_24(%arg0: i32) -> (i32, i32, i32) {
    %c0_i32 = arith.constant 0 : i32
    %c0_i32_0 = arith.constant 0 : i32
    %c0_i32_1 = arith.constant 0 : i32
    %c0_i32_2 = arith.constant 0 : i32
    return %c0_i32, %c0_i32_0, %c0_i32_1 : i32, i32, i32
  }
  func.func @transform_25(%arg0: i32) -> (i32, i32) {
    %c0_i32 = arith.constant 0 : i32
    %c0_i32_0 = arith.constant 0 : i32
    %c0_i32_1 = arith.constant 0 : i32
    return %c0_i32, %c0_i32_0 : i32, i32
  }
  func.func @transform_26(%arg0: i32) -> (i32, i32) {
    %c0_i32 = arith.constant 0 : i32
    %c0_i32_0 = arith.constant 0 : i32
    %c0_i32_1 = arith.constant 0 : i32
    return %c0_i32, %c0_i32_0 : i32, i32
  }
  func.func @transform_27(%arg0: i32) -> (i32, i32) {
    %c0_i32 = arith.constant 0 : i32
    %c0_i32_0 = arith.constant 0 : i32
    %c0_i32_1 = arith.constant 0 : i32
    return %c0_i32, %c0_i32_0 : i32, i32
  }
  func.func @transform_28(%arg0: i32) -> (i32, i32) {
    %c0_i32 = arith.constant 0 : i32
    %c0_i32_0 = arith.constant 0 : i32
    %c0_i32_1 = arith.constant 0 : i32
    return %c0_i32, %c0_i32_0 : i32, i32
  }
  func.func @transform_29(%arg0: i32) -> (i32, i32, i32) {
    %c0_i32 = arith.constant 0 : i32
    %c0_i32_0 = arith.constant 0 : i32
    %c0_i32_1 = arith.constant 0 : i32
    %c0_i32_2 = arith.constant 0 : i32
    return %c0_i32, %c0_i32_0, %c0_i32_1 : i32, i32, i32
  }
  func.func @transform_30(%arg0: i32) -> (i32, i32, i32) {
    %c0_i32 = arith.constant 0 : i32
    %c0_i32_0 = arith.constant 0 : i32
    %c0_i32_1 = arith.constant 0 : i32
    %c0_i32_2 = arith.constant 0 : i32
    return %c0_i32, %c0_i32_0, %c0_i32_1 : i32, i32, i32
  }
  func.func @transform_31(%arg0: i32) -> (i32, i32) {
    %c0_i32 = arith.constant 0 : i32
    %c0_i32_0 = arith.constant 0 : i32
    %c0_i32_1 = arith.constant 0 : i32
    return %c0_i32, %c0_i32_0 : i32, i32
  }
  func.func @transform_32(%arg0: i32) -> (i32, i32, i32) {
    %c0_i32 = arith.constant 0 : i32
    %c0_i32_0 = arith.constant 0 : i32
    %c0_i32_1 = arith.constant 0 : i32
    %c0_i32_2 = arith.constant 0 : i32
    return %c0_i32, %c0_i32_0, %c0_i32_1 : i32, i32, i32
  }
  func.func @transform_33(%arg0: i32) -> (i32, i32) {
    %c0_i32 = arith.constant 0 : i32
    %c0_i32_0 = arith.constant 0 : i32
    %c0_i32_1 = arith.constant 0 : i32
    return %c0_i32, %c0_i32_0 : i32, i32
  }
  func.func @transform_34(%arg0: i32) -> (i32, i32) {
    %c0_i32 = arith.constant 0 : i32
    %c0_i32_0 = arith.constant 0 : i32
    %c0_i32_1 = arith.constant 0 : i32
    return %c0_i32, %c0_i32_0 : i32, i32
  }
  func.func @transform_35(%arg0: i32) -> (i32, i32) {
    %c0_i32 = arith.constant 0 : i32
    %c0_i32_0 = arith.constant 0 : i32
    %c0_i32_1 = arith.constant 0 : i32
    return %c0_i32, %c0_i32_0 : i32, i32
  }
}

</mosaic_0001>

<llo_original>
// kernel: d_net64_forward.1
$region0: #{d_net64_forward.1}
  #allocation0 [shape = 'u32[]', space=smem, size = 0x4, offset = 0x4, fixed_abs, tag = 'smem constant byte address 0x4 - core index']
  #allocation1 [shape = 'u32[144,128]{1,0:T(1,128)}', space=vmem, size = 0x12000, scoped, tag = 'internal scratch']
  #allocation2 [shape = 'f32[1,1]{1,0:T(1,128)S(1)}', space=vmem, size = 0x200, scoped, tag = 'scoped memory for d_net64_forward.1']
  #allocation3 [shape = 'f32[1,1]{1,0:T(1,128)S(1)}', space=vmem, size = 0x200, scoped, tag = 'scoped memory for d_net64_forward.1']
  %s0 = inlined_call_operand.smem [shape: u32[36], index: -1, kind: input, shape index: {}]
  %s1 = sld [smem:[%s0]]
  %s2 = scalar_lea.smem %s0, 1
  %s3 = sld [smem:[%s2]]
  %s4 = scalar_lea.smem %s0, 2
  %s5 = sld [smem:[%s4]]
  %s6 = scalar_lea.smem %s0, 3
  %s7 = sld [smem:[%s6]]
  %s8 = scalar_lea.smem %s0, 4
  %s9 = sld [smem:[%s8]]
  %s10 = scalar_lea.smem %s0, 5
  %s11 = sld [smem:[%s10]]
  %s12 = scalar_lea.smem %s0, 6
  %s13 = sld [smem:[%s12]]
  %s14 = scalar_lea.smem %s0, 7
  %s15 = sld [smem:[%s14]]
  %s16 = scalar_lea.smem %s0, 8
  %s17 = sld [smem:[%s16]]
  %s18 = scalar_lea.smem %s0, 9
  %s19 = sld [smem:[%s18]]
  %s20 = scalar_lea.smem %s0, 10
  %s21 = sld [smem:[%s20]]
  %s22 = scalar_lea.smem %s0, 11
  %s23 = sld [smem:[%s22]]
  %s24 = scalar_lea.smem %s0, 12
  %s25 = sld [smem:[%s24]]
  %s26 = scalar_lea.smem %s0, 13
  %s27 = sld [smem:[%s26]]
  %s28 = scalar_lea.smem %s0, 14
  %s29 = sld [smem:[%s28]]
  %s30 = scalar_lea.smem %s0, 15
  %s31 = sld [smem:[%s30]]
  %s32 = scalar_lea.smem %s0, 16
  %s33 = sld [smem:[%s32]]
  %s34 = scalar_lea.smem %s0, 17
  %s35 = sld [smem:[%s34]]
  %s36 = scalar_lea.smem %s0, 18
  %s37 = sld [smem:[%s36]]
  %s38 = scalar_lea.smem %s0, 19
  %s39 = sld [smem:[%s38]]
  %s40 = scalar_lea.smem %s0, 20
  %s41 = sld [smem:[%s40]]
  %s42 = scalar_lea.smem %s0, 21
  %s43 = sld [smem:[%s42]]
  %s44 = scalar_lea.smem %s0, 22
  %s45 = sld [smem:[%s44]]
  %s46 = scalar_lea.smem %s0, 23
  %s47 = sld [smem:[%s46]]
  %s48 = scalar_lea.smem %s0, 24
  %s49 = sld [smem:[%s48]]
  %s50 = scalar_lea.smem %s0, 25
  %s51 = sld [smem:[%s50]]
  %s52 = scalar_lea.smem %s0, 26
  %s53 = sld [smem:[%s52]]
  %s54 = scalar_lea.smem %s0, 27
  %s55 = sld [smem:[%s54]]
  %s56 = scalar_lea.smem %s0, 28
  %s57 = sld [smem:[%s56]]
  %s58 = scalar_lea.smem %s0, 29
  %s59 = sld [smem:[%s58]]
  %s60 = scalar_lea.smem %s0, 30
  %s61 = sld [smem:[%s60]]
  %s62 = scalar_lea.smem %s0, 31
  %s63 = sld [smem:[%s62]]
  %s64 = scalar_lea.smem %s0, 32
  %s65 = sld [smem:[%s64]]
  %s66 = scalar_lea.smem %s0, 33
  %s67 = sld [smem:[%s66]]
  %s68 = scalar_lea.smem %s0, 34
  %s69 = sld [smem:[%s68]]
  %s70 = scalar_lea.smem %s0, 35
  %s71 = sld [smem:[%s70]]
  %72 = xla_tuple %s69, %s71
  %s73 = sld [smem:[#allocation0]]
  $region222: #{d_net64_forward.1} parent=0
    _
  %s75 = ssub.s32 1, %s73
  %s76 = scalar_select 0, %s75, %s73
  %v77 = vstv %s63
  %78 = vst [vmem:[#allocation2] sm:$0x1] %v77
  %v79 = vstv %s67
  %80 = vst [vmem:[#allocation3] sm:$0x1] %v79
  $region1: #{d_net64_forward.1} parent=0
    #allocation4 [shape = 'u8[131072]{0}', space=vmem, size = 0x20000, scoped, tag = 'input window, operand 1, single buffered']
    #allocation5 [shape = 's32[1]{0}', space=sflag, size = 0x4, scoped, tag = 'scoped memory for d_net64_forward.1']
    #allocation6 [shape = 'u8[65536]{0}', space=vmem, size = 0x10000, scoped, tag = 'input window, operand 3, single buffered']
    #allocation7 [shape = 's32[1]{0}', space=sflag, size = 0x4, scoped, tag = 'scoped memory for d_net64_forward.1']
    #allocation8 [shape = 'u8[16384]{0}', space=vmem, size = 0x4000, scoped, tag = 'input window, operand 6, single buffered']
    #allocation9 [shape = 'u8[512]{0}', space=vmem, size = 0x400, scoped, tag = 'input window, operand 8, single buffered']
    #allocation10 [shape = 's32[1]{0}', space=sflag, size = 0x4, scoped, tag = 'scoped memory for d_net64_forward.1']
    #allocation11 [shape = 'u8[32768]{0}', space=vmem, size = 0x8000, scoped, tag = 'input window, operand 12, single buffered']
    #allocation12 [shape = 'u8[512]{0}', space=vmem, size = 0x400, scoped, tag = 'input window, operand 13, single buffered']
    #allocation13 [shape = 's32[1]{0}', space=sflag, size = 0x4, scoped, tag = 'scoped memory for d_net64_forward.1']
    #allocation14 [shape = 'u8[512]{0}', space=vmem, size = 0x400, scoped, tag = 'input window, operand 14, single buffered']
    #allocation15 [shape = 'u8[16384]{0}', space=vmem, size = 0x4000, scoped, tag = 'input window, operand 15, single buffered']
    #allocation16 [shape = 's32[1]{0}', space=sflag, size = 0x4, scoped, tag = 'scoped memory for d_net64_forward.1']
    #allocation17 [shape = 'u8[65536]{0}', space=vmem, size = 0x10000, scoped, tag = 'input window, operand 18, single buffered']
    #allocation18 [shape = 'u8[512]{0}', space=vmem, size = 0x400, scoped, tag = 'input window, operand 19, single buffered']
    #allocation19 [shape = 's32[1]{0}', space=sflag, size = 0x4, scoped, tag = 'scoped memory for d_net64_forward.1']
    #allocation20 [shape = 'u8[512]{0}', space=vmem, size = 0x400, scoped, tag = 'input window, operand 20, single buffered']
    #allocation21 [shape = 'u8[393216]{0}', space=vmem, size = 0x60000, scoped, tag = 'input window, operand 23, single buffered']
    #allocation22 [shape = 's32[1]{0}', space=sflag, size = 0x4, scoped, tag = 'scoped memory for d_net64_forward.1']
    #allocation23 [shape = 'u8[98304]{0}', space=vmem, size = 0x18000, scoped, tag = 'input window, operand 24, single buffered']
    #allocation24 [shape = 'u8[65536]{0}', space=vmem, size = 0x10000, scoped, tag = 'input window, operand 26, single buffered']
    #allocation25 [shape = 's32[1]{0}', space=sflag, size = 0x4, scoped, tag = 'scoped memory for d_net64_forward.1']
    #allocation26 [shape = 'u8[512]{0}', space=vmem, size = 0x400, scoped, tag = 'input window, operand 27, single buffered']
    #allocation27 [shape = 'u8[512]{0}', space=vmem, size = 0x400, scoped, tag = 'input window, operand 28, single buffered']
    #allocation28 [shape = 's32[1]{0}', space=sflag, size = 0x4, scoped, tag = 'scoped memory for d_net64_forward.1']
    #allocation29 [shape = 'u8[4096]{0}', space=vmem, size = 0x1000, scoped, tag = 'input window, operand 29, single buffered']
    %81 = vsyncpa [#allocation5], 0
    %82 = vsyncpa [#allocation7], 0
    %83 = vsyncpa [#allocation10], 0
    %84 = vsyncpa [#allocation13], 0
    %85 = vsyncpa [#allocation16], 0
    %86 = vsyncpa [#allocation19], 0
    %87 = vsyncpa [#allocation22], 0
    %88 = vsyncpa [#allocation25], 0
    %89 = vsyncpa [#allocation28], 0
    // Predicated region
    $region2: #{d_net64_forward.1} parent=1 // pred_check
      _
    $region3: #{d_net64_forward.1} parent=1 // pred_check_branch
      %91 = sbr.rel (0) target = $region5
    $region4: #{d_net64_forward.1} parent=1 // pred_region
      _
    $region5: #{d_net64_forward.1} parent=1 // pred_fallthru
      _
    // Predicated region
    $region6: #{d_net64_forward.1} parent=1 // pred_check
      _
    $region7: #{d_net64_forward.1} parent=1 // pred_check_branch
      %93 = sbr.rel (0) target = $region9
    $region8: #{d_net64_forward.1} parent=1 // pred_region
      %s95 = ssub.s32 4096, 4096
      %96 = vsyncadd [#allocation5], %s95
      %s97 = sshll.u32 [#allocation4], 4
      %s98 = int_to_ptr.vmem [resolvable:$true] %s97
      %103 = dma.hbm_to_vmem [thread:$0]  %s3, 4096, %s98, [#allocation5], 128, 128, 8
    $region9: #{d_net64_forward.1} parent=1 // pred_fallthru
      _
    // Predicated region
    $region10: #{d_net64_forward.1} parent=1 // pred_check
      _
    $region11: #{d_net64_forward.1} parent=1 // pred_check_branch
      %105 = sbr.rel (0) target = $region13
    $region12: #{d_net64_forward.1} parent=1 // pred_region
      _
    $region13: #{d_net64_forward.1} parent=1 // pred_fallthru
      _
    // Predicated region
    $region14: #{d_net64_forward.1} parent=1 // pred_check
      _
    $region15: #{d_net64_forward.1} parent=1 // pred_check_branch
      %107 = sbr.rel (0) target = $region17
    $region16: #{d_net64_forward.1} parent=1 // pred_region
      %s109 = ssub.s32 2048, 2048
      %110 = vsyncadd [#allocation7], %s109
      %s111 = sshll.u32 [#allocation6], 4
      %s112 = int_to_ptr.vmem [resolvable:$true] %s111
      %117 = dma.hbm_to_vmem [thread:$0]  %s7, 2048, %s112, [#allocation7], 128, 128, 8
    $region17: #{d_net64_forward.1} parent=1 // pred_fallthru
      _
    // Predicated region
    $region18: #{d_net64_forward.1} parent=1 // pred_check
      _
    $region19: #{d_net64_forward.1} parent=1 // pred_check_branch
      %119 = sbr.rel (0) target = $region21
    $region20: #{d_net64_forward.1} parent=1 // pred_region
      _
    $region21: #{d_net64_forward.1} parent=1 // pred_fallthru
      _
    // Predicated region
    $region22: #{d_net64_forward.1} parent=1 // pred_check
      _
    $region23: #{d_net64_forward.1} parent=1 // pred_check_branch
      %121 = sbr.rel (0) target = $region25
    $region24: #{d_net64_forward.1} parent=1 // pred_region
      _
    $region25: #{d_net64_forward.1} parent=1 // pred_fallthru
      _
    // Predicated region
    $region26: #{d_net64_forward.1} parent=1 // pred_check
      _
    $region27: #{d_net64_forward.1} parent=1 // pred_check_branch
      %123 = sbr.rel (0) target = $region29
    $region28: #{d_net64_forward.1} parent=1 // pred_region
      %s125 = ssub.s32 512, 512
      %126 = vsyncadd [#allocation7], %s125
      %s127 = sshll.u32 [#allocation8], 4
      %s128 = int_to_ptr.vmem [resolvable:$true] %s127
      %133 = dma.hbm_to_vmem [thread:$0]  %s13, 512, %s128, [#allocation7], 256, 256, 16
    $region29: #{d_net64_forward.1} parent=1 // pred_fallthru
      _
    // Predicated region
    $region30: #{d_net64_forward.1} parent=1 // pred_check
      _
    $region31: #{d_net64_forward.1} parent=1 // pred_check_branch
      %135 = sbr.rel (0) target = $region33
    $region32: #{d_net64_forward.1} parent=1 // pred_region
      _
    $region33: #{d_net64_forward.1} parent=1 // pred_fallthru
      _
    // Predicated region
    $region34: #{d_net64_forward.1} parent=1 // pred_check
      _
    $region35: #{d_net64_forward.1} parent=1 // pred_check_branch
      %137 = sbr.rel (0) target = $region37
    $region36: #{d_net64_forward.1} parent=1 // pred_region
      %s139 = ssub.s32 16, 16
      %140 = vsyncadd [#allocation10], %s139
      %s142 = sshll.u32 [#allocation9], 4
      %s143 = int_to_ptr.vmem [resolvable:$true] %s142
      %145 = dma.hbm_to_vmem [thread:$0]  %s17, 16, %s143, [#allocation10]
    $region37: #{d_net64_forward.1} parent=1 // pred_fallthru
      _
    // Predicated region
    $region38: #{d_net64_forward.1} parent=1 // pred_check
      _
    $region39: #{d_net64_forward.1} parent=1 // pred_check_branch
      %147 = sbr.rel (0) target = $region41
    $region40: #{d_net64_forward.1} parent=1 // pred_region
      _
    $region41: #{d_net64_forward.1} parent=1 // pred_fallthru
      _
    // Predicated region
    $region42: #{d_net64_forward.1} parent=1 // pred_check
      _
    $region43: #{d_net64_forward.1} parent=1 // pred_check_branch
      %149 = sbr.rel (0) target = $region45
    $region44: #{d_net64_forward.1} parent=1 // pred_region
      _
    $region45: #{d_net64_forward.1} parent=1 // pred_fallthru
      _
    // Predicated region
    $region46: #{d_net64_forward.1} parent=1 // pred_check
      _
    $region47: #{d_net64_forward.1} parent=1 // pred_check_branch
      %151 = sbr.rel (0) target = $region49
    $region48: #{d_net64_forward.1} parent=1 // pred_region
      _
    $region49: #{d_net64_forward.1} parent=1 // pred_fallthru
      _
    // Predicated region
    $region50: #{d_net64_forward.1} parent=1 // pred_check
      _
    $region51: #{d_net64_forward.1} parent=1 // pred_check_branch
      %153 = sbr.rel (0) target = $region53
    $region52: #{d_net64_forward.1} parent=1 // pred_region
      %s155 = ssub.s32 1024, 1024
      %156 = vsyncadd [#allocation10], %s155
      %s157 = sshll.u32 [#allocation11], 4
      %s158 = int_to_ptr.vmem [resolvable:$true] %s157
      %163 = dma.hbm_to_vmem [thread:$0]  %s25, 1024, %s158, [#allocation10], 256, 256, 16
    $region53: #{d_net64_forward.1} parent=1 // pred_fallthru
      _
    // Predicated region
    $region54: #{d_net64_forward.1} parent=1 // pred_check
      _
    $region55: #{d_net64_forward.1} parent=1 // pred_check_branch
      %165 = sbr.rel (0) target = $region57
    $region56: #{d_net64_forward.1} parent=1 // pred_region
      %s167 = ssub.s32 16, 16
      %168 = vsyncadd [#allocation13], %s167
      %s170 = sshll.u32 [#allocation12], 4
      %s171 = int_to_ptr.vmem [resolvable:$true] %s170
      %173 = dma.hbm_to_vmem [thread:$0]  %s27, 16, %s171, [#allocation13]
    $region57: #{d_net64_forward.1} parent=1 // pred_fallthru
      _
    // Predicated region
    $region58: #{d_net64_forward.1} parent=1 // pred_check
      _
    $region59: #{d_net64_forward.1} parent=1 // pred_check_branch
      %175 = sbr.rel (0) target = $region61
    $region60: #{d_net64_forward.1} parent=1 // pred_region
      %s177 = ssub.s32 16, 16
      %178 = vsyncadd [#allocation13], %s177
      %s180 = sshll.u32 [#allocation14], 4
      %s181 = int_to_ptr.vmem [resolvable:$true] %s180
      %183 = dma.hbm_to_vmem [thread:$0]  %s29, 16, %s181, [#allocation13]
    $region61: #{d_net64_forward.1} parent=1 // pred_fallthru
      _
    // Predicated region
    $region62: #{d_net64_forward.1} parent=1 // pred_check
      _
    $region63: #{d_net64_forward.1} parent=1 // pred_check_branch
      %185 = sbr.rel (0) target = $region65
    $region64: #{d_net64_forward.1} parent=1 // pred_region
      %s187 = ssub.s32 512, 512
      %188 = vsyncadd [#allocation16], %s187
      %s189 = sshll.u32 [#allocation15], 4
      %s190 = int_to_ptr.vmem [resolvable:$true] %s189
      %195 = dma.hbm_to_vmem [thread:$0]  %s31, 512, %s190, [#allocation16], 128, 128, 8
    $region65: #{d_net64_forward.1} parent=1 // pred_fallthru
      _
    // Predicated region
    $region66: #{d_net64_forward.1} parent=1 // pred_check
      _
    $region67: #{d_net64_forward.1} parent=1 // pred_check_branch
      %197 = sbr.rel (0) target = $region69
    $region68: #{d_net64_forward.1} parent=1 // pred_region
      _
    $region69: #{d_net64_forward.1} parent=1 // pred_fallthru
      _
    // Predicated region
    $region70: #{d_net64_forward.1} parent=1 // pred_check
      _
    $region71: #{d_net64_forward.1} parent=1 // pred_check_branch
      %199 = sbr.rel (0) target = $region73
    $region72: #{d_net64_forward.1} parent=1 // pred_region
      _
    $region73: #{d_net64_forward.1} parent=1 // pred_fallthru
      _
    // Predicated region
    $region74: #{d_net64_forward.1} parent=1 // pred_check
      _
    $region75: #{d_net64_forward.1} parent=1 // pred_check_branch
      %201 = sbr.rel (0) target = $region77
    $region76: #{d_net64_forward.1} parent=1 // pred_region
      %s203 = ssub.s32 2048, 2048
      %204 = vsyncadd [#allocation16], %s203
      %s205 = sshll.u32 [#allocation17], 4
      %s206 = int_to_ptr.vmem [resolvable:$true] %s205
      %211 = dma.hbm_to_vmem [thread:$0]  %s37, 2048, %s206, [#allocation16], 256, 256, 16
    $region77: #{d_net64_forward.1} parent=1 // pred_fallthru
      _
    // Predicated region
    $region78: #{d_net64_forward.1} parent=1 // pred_check
      _
    $region79: #{d_net64_forward.1} parent=1 // pred_check_branch
      %213 = sbr.rel (0) target = $region81
    $region80: #{d_net64_forward.1} parent=1 // pred_region
      %s215 = ssub.s32 16, 16
      %216 = vsyncadd [#allocation19], %s215
      %s218 = sshll.u32 [#allocation18], 4
      %s219 = int_to_ptr.vmem [resolvable:$true] %s218
      %221 = dma.hbm_to_vmem [thread:$0]  %s39, 16, %s219, [#allocation19]
    $region81: #{d_net64_forward.1} parent=1 // pred_fallthru
      _
    // Predicated region
    $region82: #{d_net64_forward.1} parent=1 // pred_check
      _
    $region83: #{d_net64_forward.1} parent=1 // pred_check_branch
      %223 = sbr.rel (0) target = $region85
    $region84: #{d_net64_forward.1} parent=1 // pred_region
      %s225 = ssub.s32 16, 16
      %226 = vsyncadd [#allocation19], %s225
      %s228 = sshll.u32 [#allocation20], 4
      %s229 = int_to_ptr.vmem [resolvable:$true] %s228
      %231 = dma.hbm_to_vmem [thread:$0]  %s41, 16, %s229, [#allocation19]
    $region85: #{d_net64_forward.1} parent=1 // pred_fallthru
      _
    // Predicated region
    $region86: #{d_net64_forward.1} parent=1 // pred_check
      _
    $region87: #{d_net64_forward.1} parent=1 // pred_check_branch
      %233 = sbr.rel (0) target = $region89
    $region88: #{d_net64_forward.1} parent=1 // pred_region
      _
    $region89: #{d_net64_forward.1} parent=1 // pred_fallthru
      _
    // Predicated region
    $region90: #{d_net64_forward.1} parent=1 // pred_check
      _
    $region91: #{d_net64_forward.1} parent=1 // pred_check_branch
      %235 = sbr.rel (0) target = $region93
    $region92: #{d_net64_forward.1} parent=1 // pred_region
      _
    $region93: #{d_net64_forward.1} parent=1 // pred_fallthru
      _
    // Predicated region
    $region94: #{d_net64_forward.1} parent=1 // pred_check
      _
    $region95: #{d_net64_forward.1} parent=1 // pred_check_branch
      %237 = sbr.rel (0) target = $region97
    $region96: #{d_net64_forward.1} parent=1 // pred_region
      %s239 = ssub.s32 12288, 12288
      %240 = vsyncadd [#allocation22], %s239
      %s241 = sshll.u32 [#allocation21], 4
      %s242 = int_to_ptr.vmem [resolvable:$true] %s241
      %247 = dma.hbm_to_vmem [thread:$0]  %s47, 12288, %s242, [#allocation22], 128, 128, 8
    $region97: #{d_net64_forward.1} parent=1 // pred_fallthru
      _
    // Predicated region
    $region98: #{d_net64_forward.1} parent=1 // pred_check
      _
    $region99: #{d_net64_forward.1} parent=1 // pred_check_branch
      %249 = sbr.rel (0) target = $region101
    $region100: #{d_net64_forward.1} parent=1 // pred_region
      %s251 = ssub.s32 3072, 3072
      %252 = vsyncadd [#allocation22], %s251
      %s253 = sshll.u32 [#allocation23], 4
      %s254 = int_to_ptr.vmem [resolvable:$true] %s253
      %259 = dma.hbm_to_vmem [thread:$0]  %s49, 3072, %s254, [#allocation22], 128, 128, 8
    $region101: #{d_net64_forward.1} parent=1 // pred_fallthru
      _
    // Predicated region
    $region102: #{d_net64_forward.1} parent=1 // pred_check
      _
    $region103: #{d_net64_forward.1} parent=1 // pred_check_branch
      %261 = sbr.rel (0) target = $region105
    $region104: #{d_net64_forward.1} parent=1 // pred_region
      _
    $region105: #{d_net64_forward.1} parent=1 // pred_fallthru
      _
    // Predicated region
    $region106: #{d_net64_forward.1} parent=1 // pred_check
      _
    $region107: #{d_net64_forward.1} parent=1 // pred_check_branch
      %263 = sbr.rel (0) target = $region109
    $region108: #{d_net64_forward.1} parent=1 // pred_region
      %s265 = ssub.s32 2048, 2048
      %266 = vsyncadd [#allocation25], %s265
      %s267 = sshll.u32 [#allocation24], 4
      %s268 = int_to_ptr.vmem [resolvable:$true] %s267
      %273 = dma.hbm_to_vmem [thread:$0]  %s53, 2048, %s268, [#allocation25], 256, 256, 16
    $region109: #{d_net64_forward.1} parent=1 // pred_fallthru
      _
    // Predicated region
    $region110: #{d_net64_forward.1} parent=1 // pred_check
      _
    $region111: #{d_net64_forward.1} parent=1 // pred_check_branch
      %275 = sbr.rel (0) target = $region113
    $region112: #{d_net64_forward.1} parent=1 // pred_region
      %s277 = ssub.s32 16, 16
      %278 = vsyncadd [#allocation25], %s277
      %s280 = sshll.u32 [#allocation26], 4
      %s281 = int_to_ptr.vmem [resolvable:$true] %s280
      %283 = dma.hbm_to_vmem [thread:$0]  %s55, 16, %s281, [#allocation25]
    $region113: #{d_net64_forward.1} parent=1 // pred_fallthru
      _
    // Predicated region
    $region114: #{d_net64_forward.1} parent=1 // pred_check
      _
    $region115: #{d_net64_forward.1} parent=1 // pred_check_branch
      %285 = sbr.rel (0) target = $region117
    $region116: #{d_net64_forward.1} parent=1 // pred_region
      %s287 = ssub.s32 16, 16
      %288 = vsyncadd [#allocation28], %s287
      %s290 = sshll.u32 [#allocation27], 4
      %s291 = int_to_ptr.vmem [resolvable:$true] %s290
      %293 = dma.hbm_to_vmem [thread:$0]  %s57, 16, %s291, [#allocation28]
    $region117: #{d_net64_forward.1} parent=1 // pred_fallthru
      _
    // Predicated region
    $region118: #{d_net64_forward.1} parent=1 // pred_check
      _
    $region119: #{d_net64_forward.1} parent=1 // pred_check_branch
      %295 = sbr.rel (0) target = $region121
    $region120: #{d_net64_forward.1} parent=1 // pred_region
      %s297 = ssub.s32 128, 128
      %298 = vsyncadd [#allocation28], %s297
      %s299 = sshll.u32 [#allocation29], 4
      %s300 = int_to_ptr.vmem [resolvable:$true] %s299
      %305 = dma.hbm_to_vmem [thread:$0]  %s59, 128, %s300, [#allocation28], 32, 32, 2
    $region121: #{d_net64_forward.1} parent=1 // pred_fallthru
      _
    // Predicated region
    $region122: #{d_net64_forward.1} parent=1 // pred_check
      _
    $region123: #{d_net64_forward.1} parent=1 // pred_check_branch
      %307 = sbr.rel (0) target = $region125
    $region124: #{d_net64_forward.1} parent=1 // pred_region
      _
    $region125: #{d_net64_forward.1} parent=1 // pred_fallthru
      _
    // Predicated region
    $region126: #{d_net64_forward.1} parent=1 // pred_check
      _
    $region127: #{d_net64_forward.1} parent=1 // pred_check_branch
      %309 = sbr.rel (0) target = $region129
    $region128: #{d_net64_forward.1} parent=1 // pred_region
      _
    $region129: #{d_net64_forward.1} parent=1 // pred_fallthru
      _
    // Predicated region
    $region130: #{d_net64_forward.1} parent=1 // pred_check
      _
    $region131: #{d_net64_forward.1} parent=1 // pred_check_branch
      %311 = sbr.rel (0) target = $region133
    $region132: #{d_net64_forward.1} parent=1 // pred_region
      _
    $region133: #{d_net64_forward.1} parent=1 // pred_fallthru
      _
    // Predicated region
    $region134: #{d_net64_forward.1} parent=1 // pred_check
      _
    $region135: #{d_net64_forward.1} parent=1 // pred_check_branch
      %313 = sbr.rel (0) target = $region137
    $region136: #{d_net64_forward.1} parent=1 // pred_region
      _
    $region137: #{d_net64_forward.1} parent=1 // pred_fallthru
      _
    // Predicated region
    $region138: #{d_net64_forward.1} parent=1 // pred_check
      _
    $region139: #{d_net64_forward.1} parent=1 // pred_check_branch
      %315 = sbr.rel (0) target = $region141
    $region140: #{d_net64_forward.1} parent=1 // pred_region
      %316 = dma.done [#allocation5], 4096
    $region141: #{d_net64_forward.1} parent=1 // pred_fallthru
      _
    // Predicated region
    $region142: #{d_net64_forward.1} parent=1 // pred_check
      _
    $region143: #{d_net64_forward.1} parent=1 // pred_check_branch
      %318 = sbr.rel (0) target = $region145
    $region144: #{d_net64_forward.1} parent=1 // pred_region
      %319 = dma.done [#allocation7], 2048
    $region145: #{d_net64_forward.1} parent=1 // pred_fallthru
      _
    // Predicated region
    $region146: #{d_net64_forward.1} parent=1 // pred_check
      _
    $region147: #{d_net64_forward.1} parent=1 // pred_check_branch
      %321 = sbr.rel (0) target = $region149
    $region148: #{d_net64_forward.1} parent=1 // pred_region
      %322 = dma.done [#allocation7], 512
    $region149: #{d_net64_forward.1} parent=1 // pred_fallthru
      _
    // Predicated region
    $region150: #{d_net64_forward.1} parent=1 // pred_check
      _
    $region151: #{d_net64_forward.1} parent=1 // pred_check_branch
      %324 = sbr.rel (0) target = $region153
    $region152: #{d_net64_forward.1} parent=1 // pred_region
      %325 = dma.done [#allocation10], 16
    $region153: #{d_net64_forward.1} parent=1 // pred_fallthru
      _
    // Predicated region
    $region154: #{d_net64_forward.1} parent=1 // pred_check
      _
    $region155: #{d_net64_forward.1} parent=1 // pred_check_branch
      %327 = sbr.rel (0) target = $region157
    $region156: #{d_net64_forward.1} parent=1 // pred_region
      %328 = dma.done [#allocation10], 1024
    $region157: #{d_net64_forward.1} parent=1 // pred_fallthru
      _
    // Predicated region
    $region158: #{d_net64_forward.1} parent=1 // pred_check
      _
    $region159: #{d_net64_forward.1} parent=1 // pred_check_branch
      %330 = sbr.rel (0) target = $region161
    $region160: #{d_net64_forward.1} parent=1 // pred_region
      %331 = dma.done [#allocation13], 16
    $region161: #{d_net64_forward.1} parent=1 // pred_fallthru
      _
    // Predicated region
    $region162: #{d_net64_forward.1} parent=1 // pred_check
      _
    $region163: #{d_net64_forward.1} parent=1 // pred_check_branch
      %333 = sbr.rel (0) target = $region165
    $region164: #{d_net64_forward.1} parent=1 // pred_region
      %334 = dma.done [#allocation13], 16
    $region165: #{d_net64_forward.1} parent=1 // pred_fallthru
      _
    // Predicated region
    $region166: #{d_net64_forward.1} parent=1 // pred_check
      _
    $region167: #{d_net64_forward.1} parent=1 // pred_check_branch
      %336 = sbr.rel (0) target = $region169
    $region168: #{d_net64_forward.1} parent=1 // pred_region
      %337 = dma.done [#allocation16], 512
    $region169: #{d_net64_forward.1} parent=1 // pred_fallthru
      _
    // Predicated region
    $region170: #{d_net64_forward.1} parent=1 // pred_check
      _
    $region171: #{d_net64_forward.1} parent=1 // pred_check_branch
      %339 = sbr.rel (0) target = $region173
    $region172: #{d_net64_forward.1} parent=1 // pred_region
      %340 = dma.done [#allocation16], 2048
    $region173: #{d_net64_forward.1} parent=1 // pred_fallthru
      _
    // Predicated region
    $region174: #{d_net64_forward.1} parent=1 // pred_check
      _
    $region175: #{d_net64_forward.1} parent=1 // pred_check_branch
      %342 = sbr.rel (0) target = $region177
    $region176: #{d_net64_forward.1} parent=1 // pred_region
      %343 = dma.done [#allocation19], 16
    $region177: #{d_net64_forward.1} parent=1 // pred_fallthru
      _
    // Predicated region
    $region178: #{d_net64_forward.1} parent=1 // pred_check
      _
    $region179: #{d_net64_forward.1} parent=1 // pred_check_branch
      %345 = sbr.rel (0) target = $region181
    $region180: #{d_net64_forward.1} parent=1 // pred_region
      %346 = dma.done [#allocation19], 16
    $region181: #{d_net64_forward.1} parent=1 // pred_fallthru
      _
    // Predicated region
    $region182: #{d_net64_forward.1} parent=1 // pred_check
      _
    $region183: #{d_net64_forward.1} parent=1 // pred_check_branch
      %348 = sbr.rel (0) target = $region185
    $region184: #{d_net64_forward.1} parent=1 // pred_region
      %349 = dma.done [#allocation22], 12288
    $region185: #{d_net64_forward.1} parent=1 // pred_fallthru
      _
    // Predicated region
    $region186: #{d_net64_forward.1} parent=1 // pred_check
      _
    $region187: #{d_net64_forward.1} parent=1 // pred_check_branch
      %351 = sbr.rel (0) target = $region189
    $region188: #{d_net64_forward.1} parent=1 // pred_region
      %352 = dma.done [#allocation22], 3072
    $region189: #{d_net64_forward.1} parent=1 // pred_fallthru
      _
    // Predicated region
    $region190: #{d_net64_forward.1} parent=1 // pred_check
      _
    $region191: #{d_net64_forward.1} parent=1 // pred_check_branch
      %354 = sbr.rel (0) target = $region193
    $region192: #{d_net64_forward.1} parent=1 // pred_region
      %355 = dma.done [#allocation25], 2048
    $region193: #{d_net64_forward.1} parent=1 // pred_fallthru
      _
    // Predicated region
    $region194: #{d_net64_forward.1} parent=1 // pred_check
      _
    $region195: #{d_net64_forward.1} parent=1 // pred_check_branch
      %357 = sbr.rel (0) target = $region197
    $region196: #{d_net64_forward.1} parent=1 // pred_region
      %358 = dma.done [#allocation25], 16
    $region197: #{d_net64_forward.1} parent=1 // pred_fallthru
      _
    // Predicated region
    $region198: #{d_net64_forward.1} parent=1 // pred_check
      _
    $region199: #{d_net64_forward.1} parent=1 // pred_check_branch
      %360 = sbr.rel (0) target = $region201
    $region200: #{d_net64_forward.1} parent=1 // pred_region
      %361 = dma.done [#allocation28], 16
    $region201: #{d_net64_forward.1} parent=1 // pred_fallthru
      _
    // Predicated region
    $region202: #{d_net64_forward.1} parent=1 // pred_check
      _
    $region203: #{d_net64_forward.1} parent=1 // pred_check_branch
      %363 = sbr.rel (0) target = $region205
    $region204: #{d_net64_forward.1} parent=1 // pred_region
      %364 = dma.done [#allocation28], 128
    $region205: #{d_net64_forward.1} parent=1 // pred_fallthru
      _
    %v366 = vld [vmem:[%s1] sm:$0xff]
    %v367 = vld [vmem:[%s1 + $0x8] sm:$0xff]
    %v368 = vld [vmem:[%s1 + $0x10] sm:$0xff]
    %v369 = vld [vmem:[%s1 + $0x18] sm:$0xff]
    %v370 = vld [vmem:[%s1 + $0x20] sm:$0xff]
    %v371 = vld [vmem:[%s1 + $0x28] sm:$0xff]
    %v372 = vld [vmem:[%s1 + $0x30] sm:$0xff]
    %v373 = vld [vmem:[%s1 + $0x38] sm:$0xff]
    %v374 = vld [vmem:[%s1 + $0x40] sm:$0xff]
    %v375 = vld [vmem:[%s1 + $0x48] sm:$0xff]
    %v376 = vld [vmem:[%s1 + $0x50] sm:$0xff]
    %v377 = vld [vmem:[%s1 + $0x58] sm:$0xff]
    %v378 = vld [vmem:[%s1 + $0x60] sm:$0xff]
    %v379 = vld [vmem:[%s1 + $0x68] sm:$0xff]
    %v380 = vld [vmem:[%s1 + $0x70] sm:$0xff]
    %v381 = vld [vmem:[%s1 + $0x78] sm:$0xff]
    %v382 = vld [vmem:[%s1 + $0x80] sm:$0xff]
    %v383 = vld [vmem:[%s1 + $0x88] sm:$0xff]
    %v384 = vld [vmem:[%s1 + $0x90] sm:$0xff]
    %v385 = vld [vmem:[%s1 + $0x98] sm:$0xff]
    %v386 = vld [vmem:[%s1 + $0xa0] sm:$0xff]
    %v387 = vld [vmem:[%s1 + $0xa8] sm:$0xff]
    %v388 = vld [vmem:[%s1 + $0xb0] sm:$0xff]
    %v389 = vld [vmem:[%s1 + $0xb8] sm:$0xff]
    %v390 = vld [vmem:[%s1 + $0xc0] sm:$0xff]
    %v391 = vld [vmem:[%s1 + $0xc8] sm:$0xff]
    %v392 = vld [vmem:[%s1 + $0xd0] sm:$0xff]
    %v393 = vld [vmem:[%s1 + $0xd8] sm:$0xff]
    %v394 = vld [vmem:[%s1 + $0xe0] sm:$0xff]
    %v395 = vld [vmem:[%s1 + $0xe8] sm:$0xff]
    %v396 = vld [vmem:[%s1 + $0xf0] sm:$0xff]
    %v397 = vld [vmem:[%s1 + $0xf8] sm:$0xff]
    %v398 = vld [vmem:[#allocation4] sm:$0xff]
    %v399 = vld [vmem:[#allocation4 + $0x8] sm:$0xff]
    %v400 = vld [vmem:[#allocation4 + $0x10] sm:$0xff]
    %v401 = vld [vmem:[#allocation4 + $0x18] sm:$0xff]
    %v402 = vld [vmem:[#allocation4 + $0x20] sm:$0xff]
    %v403 = vld [vmem:[#allocation4 + $0x28] sm:$0xff]
    %v404 = vld [vmem:[#allocation4 + $0x30] sm:$0xff]
    %v405 = vld [vmem:[#allocation4 + $0x38] sm:$0xff]
    %406 = vmatprep.subr.mxu0 %v367
    %407 = vmatpush1.msra.mxu0 %v366
    %408 = vmatprep.subr.mxu0 %v369
    %409 = vmatpush1.msra.mxu0 %v368
    %410 = vmatprep.subr.mxu0 %v371
    %411 = vmatpush1.msra.mxu0 %v370
    %412 = vmatprep.subr.mxu0 %v373
    %413 = vmatpush1.msra.mxu0 %v372
    %414 = vmatprep.subr.mxu0 %v375
    %415 = vmatpush1.msra.mxu0 %v374
    %416 = vmatprep.subr.mxu0 %v377
    %417 = vmatpush1.msra.mxu0 %v376
    %418 = vmatprep.subr.mxu0 %v379
    %419 = vmatpush1.msra.mxu0 %v378
    %420 = vmatprep.subr.mxu0 %v381
    %421 = vmatpush1.msra.mxu0 %v380
    %422 = vmatprep.subr.mxu0 %v383
    %423 = vmatpush1.msra.mxu0 %v382
    %424 = vmatprep.subr.mxu0 %v385
    %425 = vmatpush1.msra.mxu0 %v384
    %426 = vmatprep.subr.mxu0 %v387
    %427 = vmatpush1.msra.mxu0 %v386
    %428 = vmatprep.subr.mxu0 %v389
    %429 = vmatpush1.msra.mxu0 %v388
    %430 = vmatprep.subr.mxu0 %v391
    %431 = vmatpush1.msra.mxu0 %v390
    %432 = vmatprep.subr.mxu0 %v393
    %433 = vmatpush1.msra.mxu0 %v392
    %434 = vmatprep.subr.mxu0 %v395
    %435 = vmatpush1.msra.mxu0 %v394
    %436 = vmatprep.subr.mxu0 %v397
    %437 = vmatpush1.msra.mxu0 %v396
    %438 = vmatprep.subr.mxu0 0.0
    %439 = vmatpush1.msra.mxu0 0.0
    %440 = vmatprep.subr.mxu0 0.0
    %441 = vmatpush1.msra.mxu0 0.0
    %442 = vmatprep.subr.mxu0 0.0
    %443 = vmatpush1.msra.mxu0 0.0
    %444 = vmatprep.subr.mxu0 0.0
    %445 = vmatpush1.msra.mxu0 0.0
    %446 = vmatprep.subr.mxu0 0.0
    %447 = vmatpush1.msra.mxu0 0.0
    %448 = vmatprep.subr.mxu0 0.0
    %449 = vmatpush1.msra.mxu0 0.0
    %450 = vmatprep.subr.mxu0 0.0
    %451 = vmatpush1.msra.mxu0 0.0
    %452 = vmatprep.subr.mxu0 0.0
    %453 = vmatpush1.msra.mxu0 0.0
    %454 = vmatprep.subr.mxu0 0.0
    %455 = vmatpush1.msra.mxu0 0.0
    %456 = vmatprep.subr.mxu0 0.0
    %457 = vmatpush1.msra.mxu0 0.0
    %458 = vmatprep.subr.mxu0 0.0
    %459 = vmatpush1.msra.mxu0 0.0
    %460 = vmatprep.subr.mxu0 0.0
    %461 = vmatpush1.msra.mxu0 0.0
    %462 = vmatprep.subr.mxu0 0.0
    %463 = vmatpush1.msra.mxu0 0.0
    %464 = vmatprep.subr.mxu0 0.0
    %465 = vmatpush1.msra.mxu0 0.0
    %466 = vmatprep.subr.mxu0 0.0
    %467 = vmatpush1.msra.mxu0 0.0
    %468 = vmatprep.subr.mxu0 0.0
    %469 = vmatpush1.msra.mxu0 0.0
    %470 = vmatprep.mubr.f32.mxu0 0.0
    %471 = vmatmul.mubr.f32.gmra.mrb[0].mxu0 %v398
    %v472 = vpop.f32.mrb[0].mxu0
    %v473 = vadd.f32 0.0, %v472
    %v474 = vpop.f32.mrb[0].mxu0
    %v475 = vadd.f32 0.0, %v474
    %476 = vmatprep.mubr.f32.mxu0 0.0
    %477 = vmatmul.mubr.f32.gmra.mrb[0].mxu0 %v399
    %v478 = vpop.f32.mrb[0].mxu0
    %v479 = vadd.f32 0.0, %v478
    %v480 = vpop.f32.mrb[0].mxu0
    %v481 = vadd.f32 0.0, %v480
    %482 = vmatprep.mubr.f32.mxu0 0.0
    %483 = vmatmul.mubr.f32.gmra.mrb[0].mxu0 %v400
    %v484 = vpop.f32.mrb[0].mxu0
    %v485 = vadd.f32 0.0, %v484
    %v486 = vpop.f32.mrb[0].mxu0
    %v487 = vadd.f32 0.0, %v486
    %488 = vmatprep.mubr.f32.mxu0 0.0
    %489 = vmatmul.mubr.f32.gmra.mrb[0].mxu0 %v401
    %v490 = vpop.f32.mrb[0].mxu0
    %v491 = vadd.f32 0.0, %v490
    %v492 = vpop.f32.mrb[0].mxu0
    %v493 = vadd.f32 0.0, %v492
    %494 = vmatprep.mubr.f32.mxu0 0.0
    %495 = vmatmul.mubr.f32.gmra.mrb[0].mxu0 %v402
    %v496 = vpop.f32.mrb[0].mxu0
    %v497 = vadd.f32 0.0, %v496
    %v498 = vpop.f32.mrb[0].mxu0
    %v499 = vadd.f32 0.0, %v498
    %500 = vmatprep.mubr.f32.mxu0 0.0
    %501 = vmatmul.mubr.f32.gmra.mrb[0].mxu0 %v403
    %v502 = vpop.f32.mrb[0].mxu0
    %v503 = vadd.f32 0.0, %v502
    %v504 = vpop.f32.mrb[0].mxu0
    %v505 = vadd.f32 0.0, %v504
    %506 = vmatprep.mubr.f32.mxu0 0.0
    %507 = vmatmul.mubr.f32.gmra.mrb[0].mxu0 %v404
    %v508 = vpop.f32.mrb[0].mxu0
    %v509 = vadd.f32 0.0, %v508
    %v510 = vpop.f32.mrb[0].mxu0
    %v511 = vadd.f32 0.0, %v510
    %512 = vmatprep.mubr.f32.mxu0 0.0
    %513 = vmatmul.mubr.f32.gmra.mrb[0].mxu0 %v405
    %v514 = vpop.f32.mrb[0].mxu0
    %v515 = vadd.f32 0.0, %v514
    %v516 = vpop.f32.mrb[0].mxu0
    %v517 = vadd.f32 0.0, %v516
    %518 = vdwg.mxu0
    %v519 = vpack.c.bf16 %v479, %v473
    %v520 = vpack.c.bf16 %v481, %v475
    %v521 = vpack.c.bf16 %v491, %v485
    %v522 = vpack.c.bf16 %v493, %v487
    %v523 = vpack.c.bf16 %v503, %v497
    %v524 = vpack.c.bf16 %v505, %v499
    %v525 = vpack.c.bf16 %v515, %v509
    %v526 = vpack.c.bf16 %v517, %v511
    %v527 = vld [vmem:[%s5] sm:$0xff]
    %v528 = vld [vmem:[%s5 + $0x8] sm:$0xff]
    %v529 = vld [vmem:[%s5 + $0x10] sm:$0xff]
    %v530 = vld [vmem:[%s5 + $0x18] sm:$0xff]
    %v531 = vld [vmem:[%s5 + $0x20] sm:$0xff]
    %v532 = vld [vmem:[%s5 + $0x28] sm:$0xff]
    %v533 = vld [vmem:[%s5 + $0x30] sm:$0xff]
    %v534 = vld [vmem:[%s5 + $0x38] sm:$0xff]
    %v535 = vld [vmem:[%s5 + $0x40] sm:$0xff]
    %v536 = vld [vmem:[%s5 + $0x48] sm:$0xff]
    %v537 = vld [vmem:[%s5 + $0x50] sm:$0xff]
    %v538 = vld [vmem:[%s5 + $0x58] sm:$0xff]
    %v539 = vld [vmem:[%s5 + $0x60] sm:$0xff]
    %v540 = vld [vmem:[%s5 + $0x68] sm:$0xff]
    %v541 = vld [vmem:[%s5 + $0x70] sm:$0xff]
    %v542 = vld [vmem:[%s5 + $0x78] sm:$0xff]
    %v543 = vld [vmem:[%s5 + $0x80] sm:$0xff]
    %v544 = vld [vmem:[%s5 + $0x88] sm:$0xff]
    %v545 = vld [vmem:[%s5 + $0x90] sm:$0xff]
    %v546 = vld [vmem:[%s5 + $0x98] sm:$0xff]
    %v547 = vld [vmem:[%s5 + $0xa0] sm:$0xff]
    %v548 = vld [vmem:[%s5 + $0xa8] sm:$0xff]
    %v549 = vld [vmem:[%s5 + $0xb0] sm:$0xff]
    %v550 = vld [vmem:[%s5 + $0xb8] sm:$0xff]
    %s551 = scalar_lea.vmem [#allocation4], 64
    %v552 = vld [vmem:[%s551] sm:$0xff]
    %v553 = vld [vmem:[%s551 + $0x8] sm:$0xff]
    %v554 = vld [vmem:[%s551 + $0x10] sm:$0xff]
    %v555 = vld [vmem:[%s551 + $0x18] sm:$0xff]
    %v556 = vld [vmem:[%s551 + $0x20] sm:$0xff]
    %v557 = vld [vmem:[%s551 + $0x28] sm:$0xff]
    %v558 = vld [vmem:[%s551 + $0x30] sm:$0xff]
    %v559 = vld [vmem:[%s551 + $0x38] sm:$0xff]
    %560 = vmatprep.subr.mxu0 %v367
    %561 = vmatpush1.msra.mxu0 %v366
    %562 = vmatprep.subr.mxu0 %v369
    %563 = vmatpush1.msra.mxu0 %v368
    %564 = vmatprep.subr.mxu0 %v371
    %565 = vmatpush1.msra.mxu0 %v370
    %566 = vmatprep.subr.mxu0 %v373
    %567 = vmatpush1.msra.mxu0 %v372
    %568 = vmatprep.subr.mxu0 %v375
    %569 = vmatpush1.msra.mxu0 %v374
    %570 = vmatprep.subr.mxu0 %v377
    %571 = vmatpush1.msra.mxu0 %v376
    %572 = vmatprep.subr.mxu0 %v379
    %573 = vmatpush1.msra.mxu0 %v378
    %574 = vmatprep.subr.mxu0 %v381
    %575 = vmatpush1.msra.mxu0 %v380
    %576 = vmatprep.subr.mxu0 %v383
    %577 = vmatpush1.msra.mxu0 %v382
    %578 = vmatprep.subr.mxu0 %v385
    %579 = vmatpush1.msra.mxu0 %v384
    %580 = vmatprep.subr.mxu0 %v387
    %581 = vmatpush1.msra.mxu0 %v386
    %582 = vmatprep.subr.mxu0 %v389
    %583 = vmatpush1.msra.mxu0 %v388
    %584 = vmatprep.subr.mxu0 %v391
    %585 = vmatpush1.msra.mxu0 %v390
    %586 = vmatprep.subr.mxu0 %v393
    %587 = vmatpush1.msra.mxu0 %v392
    %588 = vmatprep.subr.mxu0 %v395
    %589 = vmatpush1.msra.mxu0 %v394
    %590 = vmatprep.subr.mxu0 %v397
    %591 = vmatpush1.msra.mxu0 %v396
    %592 = vmatprep.subr.mxu0 0.0
    %593 = vmatpush1.msra.mxu0 0.0
    %594 = vmatprep.subr.mxu0 0.0
    %595 = vmatpush1.msra.mxu0 0.0
    %596 = vmatprep.subr.mxu0 0.0
    %597 = vmatpush1.msra.mxu0 0.0
    %598 = vmatprep.subr.mxu0 0.0
    %599 = vmatpush1.msra.mxu0 0.0
    %600 = vmatprep.subr.mxu0 0.0
    %601 = vmatpush1.msra.mxu0 0.0
    %602 = vmatprep.subr.mxu0 0.0
    %603 = vmatpush1.msra.mxu0 0.0
    %604 = vmatprep.subr.mxu0 0.0
    %605 = vmatpush1.msra.mxu0 0.0
    %606 = vmatprep.subr.mxu0 0.0
    %607 = vmatpush1.msra.mxu0 0.0
    %608 = vmatprep.subr.mxu0 0.0
    %609 = vmatpush1.msra.mxu0 0.0
    %610 = vmatprep.subr.mxu0 0.0
    %611 = vmatpush1.msra.mxu0 0.0
    %612 = vmatprep.subr.mxu0 0.0
    %613 = vmatpush1.msra.mxu0 0.0
    %614 = vmatprep.subr.mxu0 0.0
    %615 = vmatpush1.msra.mxu0 0.0
    %616 = vmatprep.subr.mxu0 0.0
    %617 = vmatpush1.msra.mxu0 0.0
    %618 = vmatprep.subr.mxu0 0.0
    %619 = vmatpush1.msra.mxu0 0.0
    %620 = vmatprep.subr.mxu0 0.0
    %621 = vmatpush1.msra.mxu0 0.0
    %622 = vmatprep.subr.mxu0 0.0
    %623 = vmatpush1.msra.mxu0 0.0
    %624 = vmatprep.mubr.f32.mxu0 0.0
    %625 = vmatmul.mubr.f32.gmra.mrb[0].mxu0 %v552
    %v626 = vpop.f32.mrb[0].mxu0
    %v627 = vadd.f32 0.0, %v626
    %v628 = vpop.f32.mrb[0].mxu0
    %v629 = vadd.f32 0.0, %v628
    %630 = vmatprep.mubr.f32.mxu0 0.0
    %631 = vmatmul.mubr.f32.gmra.mrb[0].mxu0 %v553
    %v632 = vpop.f32.mrb[0].mxu0
    %v633 = vadd.f32 0.0, %v632
    %v634 = vpop.f32.mrb[0].mxu0
    %v635 = vadd.f32 0.0, %v634
    %636 = vmatprep.mubr.f32.mxu0 0.0
    %637 = vmatmul.mubr.f32.gmra.mrb[0].mxu0 %v554
    %v638 = vpop.f32.mrb[0].mxu0
    %v639 = vadd.f32 0.0, %v638
    %v640 = vpop.f32.mrb[0].mxu0
    %v641 = vadd.f32 0.0, %v640
    %642 = vmatprep.mubr.f32.mxu0 0.0
    %643 = vmatmul.mubr.f32.gmra.mrb[0].mxu0 %v555
    %v644 = vpop.f32.mrb[0].mxu0
    %v645 = vadd.f32 0.0, %v644
    %v646 = vpop.f32.mrb[0].mxu0
    %v647 = vadd.f32 0.0, %v646
    %648 = vmatprep.mubr.f32.mxu0 0.0
    %649 = vmatmul.mubr.f32.gmra.mrb[0].mxu0 %v556
    %v650 = vpop.f32.mrb[0].mxu0
    %v651 = vadd.f32 0.0, %v650
    %v652 = vpop.f32.mrb[0].mxu0
    %v653 = vadd.f32 0.0, %v652
    %654 = vmatprep.mubr.f32.mxu0 0.0
    %655 = vmatmul.mubr.f32.gmra.mrb[0].mxu0 %v557
    %v656 = vpop.f32.mrb[0].mxu0
    %v657 = vadd.f32 0.0, %v656
    %v658 = vpop.f32.mrb[0].mxu0
    %v659 = vadd.f32 0.0, %v658
    %660 = vmatprep.mubr.f32.mxu0 0.0
    %661 = vmatmul.mubr.f32.gmra.mrb[0].mxu0 %v558
    %v662 = vpop.f32.mrb[0].mxu0
    %v663 = vadd.f32 0.0, %v662
    %v664 = vpop.f32.mrb[0].mxu0
    %v665 = vadd.f32 0.0, %v664
    %666 = vmatprep.mubr.f32.mxu0 0.0
    %667 = vmatmul.mubr.f32.gmra.mrb[0].mxu0 %v559
    %v668 = vpop.f32.mrb[0].mxu0
    %v669 = vadd.f32 0.0, %v668
    %v670 = vpop.f32.mrb[0].mxu0
    %v671 = vadd.f32 0.0, %v670
    %672 = vdwg.mxu0
    %v673 = vpack.c.bf16 %v633, %v627
    %v674 = vpack.c.bf16 %v635, %v629
    %v675 = vpack.c.bf16 %v645, %v639
    %v676 = vpack.c.bf16 %v647, %v641
    %v677 = vpack.c.bf16 %v657, %v651
    %v678 = vpack.c.bf16 %v659, %v653
    %v679 = vpack.c.bf16 %v669, %v663
    %v680 = vpack.c.bf16 %v671, %v665
    %s681 = scalar_lea.vmem %s5, 192
    %v682 = vld [vmem:[%s681] sm:$0xff]
    %v683 = vld [vmem:[%s681 + $0x8] sm:$0xff]
    %v684 = vld [vmem:[%s681 + $0x10] sm:$0xff]
    %v685 = vld [vmem:[%s681 + $0x18] sm:$0xff]
    %v686 = vld [vmem:[%s681 + $0x20] sm:$0xff]
    %v687 = vld [vmem:[%s681 + $0x28] sm:$0xff]
    %v688 = vld [vmem:[%s681 + $0x30] sm:$0xff]
    %v689 = vld [vmem:[%s681 + $0x38] sm:$0xff]
    %v690 = vld [vmem:[%s681 + $0x40] sm:$0xff]
    %v691 = vld [vmem:[%s681 + $0x48] sm:$0xff]
    %v692 = vld [vmem:[%s681 + $0x50] sm:$0xff]
    %v693 = vld [vmem:[%s681 + $0x58] sm:$0xff]
    %v694 = vld [vmem:[%s681 + $0x60] sm:$0xff]
    %v695 = vld [vmem:[%s681 + $0x68] sm:$0xff]
    %v696 = vld [vmem:[%s681 + $0x70] sm:$0xff]
    %v697 = vld [vmem:[%s681 + $0x78] sm:$0xff]
    %v698 = vld [vmem:[%s681 + $0x80] sm:$0xff]
    %v699 = vld [vmem:[%s681 + $0x88] sm:$0xff]
    %v700 = vld [vmem:[%s681 + $0x90] sm:$0xff]
    %v701 = vld [vmem:[%s681 + $0x98] sm:$0xff]
    %v702 = vld [vmem:[%s681 + $0xa0] sm:$0xff]
    %v703 = vld [vmem:[%s681 + $0xa8] sm:$0xff]
    %v704 = vld [vmem:[%s681 + $0xb0] sm:$0xff]
    %v705 = vld [vmem:[%s681 + $0xb8] sm:$0xff]
    %v730 = vunpack.c.l.b16 %v682
    %v731 = vunpack.c.h.b16 %v682
    %v732 = vunpack.c.l.b16 %v683
    %v733 = vunpack.c.h.b16 %v683
    %v734 = vunpack.c.l.b16 %v684
    %v735 = vunpack.c.h.b16 %v684
    %v736 = vunpack.c.l.b16 %v685
    %v737 = vunpack.c.h.b16 %v685
    %v738 = vunpack.c.l.b16 %v686
    %v739 = vunpack.c.h.b16 %v686
    %v740 = vunpack.c.l.b16 %v687
    %v741 = vunpack.c.h.b16 %v687
    %v742 = vunpack.c.l.b16 %v688
    %v743 = vunpack.c.h.b16 %v688
    %v744 = vunpack.c.l.b16 %v689
    %v745 = vunpack.c.h.b16 %v689
    %v746 = vunpack.c.l.b16 %v690
    %v747 = vunpack.c.h.b16 %v690
    %v748 = vunpack.c.l.b16 %v691
    %v749 = vunpack.c.h.b16 %v691
    %v750 = vunpack.c.l.b16 %v692
    %v751 = vunpack.c.h.b16 %v692
    %v752 = vunpack.c.l.b16 %v693
    %v753 = vunpack.c.h.b16 %v693
    %v754 = vunpack.c.l.b16 %v694
    %v755 = vunpack.c.h.b16 %v694
    %v756 = vunpack.c.l.b16 %v695
    %v757 = vunpack.c.h.b16 %v695
    %v758 = vunpack.c.l.b16 %v696
    %v759 = vunpack.c.h.b16 %v696
    %v760 = vunpack.c.l.b16 %v697
    %v761 = vunpack.c.h.b16 %v697
    %v762 = vunpack.c.l.b16 %v698
    %v763 = vunpack.c.h.b16 %v698
    %v764 = vunpack.c.l.b16 %v699
    %v765 = vunpack.c.h.b16 %v699
    %v766 = vunpack.c.l.b16 %v700
    %v767 = vunpack.c.h.b16 %v700
    %v768 = vunpack.c.l.b16 %v701
    %v769 = vunpack.c.h.b16 %v701
    %v770 = vunpack.c.l.b16 %v702
    %v771 = vunpack.c.h.b16 %v702
    %v772 = vunpack.c.l.b16 %v703
    %v773 = vunpack.c.h.b16 %v703
    %v774 = vunpack.c.l.b16 %v704
    %v775 = vunpack.c.h.b16 %v704
    %v776 = vunpack.c.l.b16 %v705
    %v777 = vunpack.c.h.b16 %v705
    %v778 = vpack.c.b16 %v732, %v730
    %v779 = vpack.c.b16 %v733, %v731
    %v780 = vpack.c.b16 %v736, %v734
    %v781 = vpack.c.b16 %v737, %v735
    %v782 = vpack.c.b16 %v740, %v738
    %v783 = vpack.c.b16 %v741, %v739
    %v784 = vpack.c.b16 %v744, %v742
    %v785 = vpack.c.b16 %v745, %v743
    %v786 = vpack.c.b16 %v748, %v746
    %v787 = vpack.c.b16 %v749, %v747
    %v788 = vpack.c.b16 %v752, %v750
    %v789 = vpack.c.b16 %v753, %v751
    %v790 = vpack.c.b16 %v756, %v754
    %v791 = vpack.c.b16 %v757, %v755
    %v792 = vpack.c.b16 %v760, %v758
    %v793 = vpack.c.b16 %v761, %v759
    %v794 = vpack.c.b16 %v764, %v762
    %v795 = vpack.c.b16 %v765, %v763
    %v796 = vpack.c.b16 %v768, %v766
    %v797 = vpack.c.b16 %v769, %v767
    %v798 = vpack.c.b16 %v772, %v770
    %v799 = vpack.c.b16 %v773, %v771
    %v800 = vpack.c.b16 %v776, %v774
    %v801 = vpack.c.b16 %v777, %v775
    %vm826 = vcmask 523264
    %v828 = vsel %vm826, %v674, 0
    %v831 = vsel %vm826, %v676, 0
    %v834 = vsel %vm826, %v678, 0
    %v837 = vsel %vm826, %v680, 0
    %839 = vmatprep.subr.bf16.mxu0 %v779
    %840 = vmatpush1.bf16.msra.mxu0 %v778
    %841 = vmatprep.subr.bf16.mxu0 %v781
    %842 = vmatpush1.bf16.msra.mxu0 %v780
    %843 = vmatprep.subr.bf16.mxu0 %v783
    %844 = vmatpush1.bf16.msra.mxu0 %v782
    %845 = vmatprep.subr.bf16.mxu0 %v785
    %846 = vmatpush1.bf16.msra.mxu0 %v784
    %847 = vmatprep.subr.bf16.mxu0 %v787
    %848 = vmatpush1.bf16.msra.mxu0 %v786
    %849 = vmatprep.subr.bf16.mxu0 %v789
    %850 = vmatpush1.bf16.msra.mxu0 %v788
    %851 = vmatprep.subr.bf16.mxu0 %v791
    %852 = vmatpush1.bf16.msra.mxu0 %v790
    %853 = vmatprep.subr.bf16.mxu0 %v793
    %854 = vmatpush1.bf16.msra.mxu0 %v792
    %855 = vmatprep.subr.bf16.mxu0 %v795
    %856 = vmatpush1.bf16.msra.mxu0 %v794
    %857 = vmatprep.subr.bf16.mxu0 %v797
    %858 = vmatpush1.bf16.msra.mxu0 %v796
    %859 = vmatprep.subr.bf16.mxu0 %v799
    %860 = vmatpush1.bf16.msra.mxu0 %v798
    %861 = vmatprep.subr.bf16.mxu0 %v801
    %862 = vmatpush1.bf16.msra.mxu0 %v800
    %863 = vmatprep.subr.bf16.mxu0 0
    %864 = vmatpush1.bf16.msra.mxu0 0
    %865 = vmatprep.subr.bf16.mxu0 0
    %866 = vmatpush1.bf16.msra.mxu0 0
    %867 = vmatprep.subr.bf16.mxu0 0
    %868 = vmatpush1.bf16.msra.mxu0 0
    %869 = vmatprep.subr.bf16.mxu0 0
    %870 = vmatpush1.bf16.msra.mxu0 0
    %871 = vmatprep.mubr.bf16.mxu0 %v828
    %872 = vmatmul.mubr.bf16.gmra.mrb[0].mxu0 %v673
    %v873 = vpop.f32.mrb[0].mxu0
    %v874 = vadd.f32 0.0, %v873
    %v875 = vpop.f32.mrb[0].mxu0
    %v876 = vadd.f32 0.0, %v875
    %v877 = vpop.f32.mrb[0].mxu0
    %v878 = vadd.f32 0.0, %v877
    %v879 = vpop.f32.mrb[0].mxu0
    %v880 = vadd.f32 0.0, %v879
    %881 = vmatprep.mubr.bf16.mxu0 %v831
    %882 = vmatmul.mubr.bf16.gmra.mrb[0].mxu0 %v675
    %v883 = vpop.f32.mrb[0].mxu0
    %v884 = vadd.f32 0.0, %v883
    %v885 = vpop.f32.mrb[0].mxu0
    %v886 = vadd.f32 0.0, %v885
    %v887 = vpop.f32.mrb[0].mxu0
    %v888 = vadd.f32 0.0, %v887
    %v889 = vpop.f32.mrb[0].mxu0
    %v890 = vadd.f32 0.0, %v889
    %891 = vmatprep.mubr.bf16.mxu0 %v834
    %892 = vmatmul.mubr.bf16.gmra.mrb[0].mxu0 %v677
    %v893 = vpop.f32.mrb[0].mxu0
    %v894 = vadd.f32 0.0, %v893
    %v895 = vpop.f32.mrb[0].mxu0
    %v896 = vadd.f32 0.0, %v895
    %v897 = vpop.f32.mrb[0].mxu0
    %v898 = vadd.f32 0.0, %v897
    %v899 = vpop.f32.mrb[0].mxu0
    %v900 = vadd.f32 0.0, %v899
    %901 = vmatprep.mubr.bf16.mxu0 %v837
    %902 = vmatmul.mubr.bf16.gmra.mrb[0].mxu0 %v679
    %v903 = vpop.f32.mrb[0].mxu0
    %v904 = vadd.f32 0.0, %v903
    %v905 = vpop.f32.mrb[0].mxu0
    %v906 = vadd.f32 0.0, %v905
    %v907 = vpop.f32.mrb[0].mxu0
    %v908 = vadd.f32 0.0, %v907
    %v909 = vpop.f32.mrb[0].mxu0
    %v910 = vadd.f32 0.0, %v909
    %911 = vdwg.mxu0
    %v936 = vunpack.c.l.b16 %v527
    %v937 = vunpack.c.h.b16 %v527
    %v938 = vunpack.c.l.b16 %v528
    %v939 = vunpack.c.h.b16 %v528
    %v940 = vunpack.c.l.b16 %v529
    %v941 = vunpack.c.h.b16 %v529
    %v942 = vunpack.c.l.b16 %v530
    %v943 = vunpack.c.h.b16 %v530
    %v944 = vunpack.c.l.b16 %v531
    %v945 = vunpack.c.h.b16 %v531
    %v946 = vunpack.c.l.b16 %v532
    %v947 = vunpack.c.h.b16 %v532
    %v948 = vunpack.c.l.b16 %v533
    %v949 = vunpack.c.h.b16 %v533
    %v950 = vunpack.c.l.b16 %v534
    %v951 = vunpack.c.h.b16 %v534
    %v952 = vunpack.c.l.b16 %v535
    %v953 = vunpack.c.h.b16 %v535
    %v954 = vunpack.c.l.b16 %v536
    %v955 = vunpack.c.h.b16 %v536
    %v956 = vunpack.c.l.b16 %v537
    %v957 = vunpack.c.h.b16 %v537
    %v958 = vunpack.c.l.b16 %v538
    %v959 = vunpack.c.h.b16 %v538
    %v960 = vunpack.c.l.b16 %v539
    %v961 = vunpack.c.h.b16 %v539
    %v962 = vunpack.c.l.b16 %v540
    %v963 = vunpack.c.h.b16 %v540
    %v964 = vunpack.c.l.b16 %v541
    %v965 = vunpack.c.h.b16 %v541
    %v966 = vunpack.c.l.b16 %v542
    %v967 = vunpack.c.h.b16 %v542
    %v968 = vunpack.c.l.b16 %v543
    %v969 = vunpack.c.h.b16 %v543
    %v970 = vunpack.c.l.b16 %v544
    %v971 = vunpack.c.h.b16 %v544
    %v972 = vunpack.c.l.b16 %v545
    %v973 = vunpack.c.h.b16 %v545
    %v974 = vunpack.c.l.b16 %v546
    %v975 = vunpack.c.h.b16 %v546
    %v976 = vunpack.c.l.b16 %v547
    %v977 = vunpack.c.h.b16 %v547
    %v978 = vunpack.c.l.b16 %v548
    %v979 = vunpack.c.h.b16 %v548
    %v980 = vunpack.c.l.b16 %v549
    %v981 = vunpack.c.h.b16 %v549
    %v982 = vunpack.c.l.b16 %v550
    %v983 = vunpack.c.h.b16 %v550
    %v984 = vpack.c.b16 %v938, %v936
    %v985 = vpack.c.b16 %v939, %v937
    %v986 = vpack.c.b16 %v942, %v940
    %v987 = vpack.c.b16 %v943, %v941
    %v988 = vpack.c.b16 %v946, %v944
    %v989 = vpack.c.b16 %v947, %v945
    %v990 = vpack.c.b16 %v950, %v948
    %v991 = vpack.c.b16 %v951, %v949
    %v992 = vpack.c.b16 %v954, %v952
    %v993 = vpack.c.b16 %v955, %v953
    %v994 = vpack.c.b16 %v958, %v956
    %v995 = vpack.c.b16 %v959, %v957
    %v996 = vpack.c.b16 %v962, %v960
    %v997 = vpack.c.b16 %v963, %v961
    %v998 = vpack.c.b16 %v966, %v964
    %v999 = vpack.c.b16 %v967, %v965
    %v1000 = vpack.c.b16 %v970, %v968
    %v1001 = vpack.c.b16 %v971, %v969
    %v1002 = vpack.c.b16 %v974, %v972
    %v1003 = vpack.c.b16 %v975, %v973
    %v1004 = vpack.c.b16 %v978, %v976
    %v1005 = vpack.c.b16 %v979, %v977
    %v1006 = vpack.c.b16 %v982, %v980
    %v1007 = vpack.c.b16 %v983, %v981
    %v1033 = vsel %vm826, %v520, 0
    %v1036 = vsel %vm826, %v522, 0
    %v1039 = vsel %vm826, %v524, 0
    %v1042 = vsel %vm826, %v526, 0
    %1044 = vmatprep.subr.bf16.mxu0 %v985
    %1045 = vmatpush1.bf16.msra.mxu0 %v984
    %1046 = vmatprep.subr.bf16.mxu0 %v987
    %1047 = vmatpush1.bf16.msra.mxu0 %v986
    %1048 = vmatprep.subr.bf16.mxu0 %v989
    %1049 = vmatpush1.bf16.msra.mxu0 %v988
    %1050 = vmatprep.subr.bf16.mxu0 %v991
    %1051 = vmatpush1.bf16.msra.mxu0 %v990
    %1052 = vmatprep.subr.bf16.mxu0 %v993
    %1053 = vmatpush1.bf16.msra.mxu0 %v992
    %1054 = vmatprep.subr.bf16.mxu0 %v995
    %1055 = vmatpush1.bf16.msra.mxu0 %v994
    %1056 = vmatprep.subr.bf16.mxu0 %v997
    %1057 = vmatpush1.bf16.msra.mxu0 %v996
    %1058 = vmatprep.subr.bf16.mxu0 %v999
    %1059 = vmatpush1.bf16.msra.mxu0 %v998
    %1060 = vmatprep.subr.bf16.mxu0 %v1001
    %1061 = vmatpush1.bf16.msra.mxu0 %v1000
    %1062 = vmatprep.subr.bf16.mxu0 %v1003
    %1063 = vmatpush1.bf16.msra.mxu0 %v1002
    %1064 = vmatprep.subr.bf16.mxu0 %v1005
    %1065 = vmatpush1.bf16.msra.mxu0 %v1004
    %1066 = vmatprep.subr.bf16.mxu0 %v1007
    %1067 = vmatpush1.bf16.msra.mxu0 %v1006
    %1068 = vmatprep.subr.bf16.mxu0 0
    %1069 = vmatpush1.bf16.msra.mxu0 0
    %1070 = vmatprep.subr.bf16.mxu0 0
    %1071 = vmatpush1.bf16.msra.mxu0 0
    %1072 = vmatprep.subr.bf16.mxu0 0
    %1073 = vmatpush1.bf16.msra.mxu0 0
    %1074 = vmatprep.subr.bf16.mxu0 0
    %1075 = vmatpush1.bf16.msra.mxu0 0
    %1076 = vmatprep.mubr.bf16.mxu0 %v1033
    %1077 = vmatmul.mubr.bf16.gmra.mrb[0].mxu0 %v519
    %v1078 = vpop.f32.mrb[0].mxu0
    %v1079 = vadd.f32 %v874, %v1078
    %v1080 = vpop.f32.mrb[0].mxu0
    %v1081 = vadd.f32 %v876, %v1080
    %v1082 = vpop.f32.mrb[0].mxu0
    %v1083 = vadd.f32 %v878, %v1082
    %v1084 = vpop.f32.mrb[0].mxu0
    %v1085 = vadd.f32 %v880, %v1084
    %1086 = vmatprep.mubr.bf16.mxu0 %v1036
    %1087 = vmatmul.mubr.bf16.gmra.mrb[0].mxu0 %v521
    %v1088 = vpop.f32.mrb[0].mxu0
    %v1089 = vadd.f32 %v884, %v1088
    %v1090 = vpop.f32.mrb[0].mxu0
    %v1091 = vadd.f32 %v886, %v1090
    %v1092 = vpop.f32.mrb[0].mxu0
    %v1093 = vadd.f32 %v888, %v1092
    %v1094 = vpop.f32.mrb[0].mxu0
    %v1095 = vadd.f32 %v890, %v1094
    %1096 = vmatprep.mubr.bf16.mxu0 %v1039
    %1097 = vmatmul.mubr.bf16.gmra.mrb[0].mxu0 %v523
    %v1098 = vpop.f32.mrb[0].mxu0
    %v1099 = vadd.f32 %v894, %v1098
    %v1100 = vpop.f32.mrb[0].mxu0
    %v1101 = vadd.f32 %v896, %v1100
    %v1102 = vpop.f32.mrb[0].mxu0
    %v1103 = vadd.f32 %v898, %v1102
    %v1104 = vpop.f32.mrb[0].mxu0
    %v1105 = vadd.f32 %v900, %v1104
    %1106 = vmatprep.mubr.bf16.mxu0 %v1042
    %1107 = vmatmul.mubr.bf16.gmra.mrb[0].mxu0 %v525
    %v1108 = vpop.f32.mrb[0].mxu0
    %v1109 = vadd.f32 %v904, %v1108
    %v1110 = vpop.f32.mrb[0].mxu0
    %v1111 = vadd.f32 %v906, %v1110
    %v1112 = vpop.f32.mrb[0].mxu0
    %v1113 = vadd.f32 %v908, %v1112
    %v1114 = vpop.f32.mrb[0].mxu0
    %v1115 = vadd.f32 %v910, %v1114
    %1116 = vdwg.mxu0
    %s1117 = scalar_lea.vmem [#allocation4], 128
    %v1118 = vld [vmem:[%s1117] sm:$0xff]
    %v1119 = vld [vmem:[%s1117 + $0x8] sm:$0xff]
    %v1120 = vld [vmem:[%s1117 + $0x10] sm:$0xff]
    %v1121 = vld [vmem:[%s1117 + $0x18] sm:$0xff]
    %v1122 = vld [vmem:[%s1117 + $0x20] sm:$0xff]
    %v1123 = vld [vmem:[%s1117 + $0x28] sm:$0xff]
    %v1124 = vld [vmem:[%s1117 + $0x30] sm:$0xff]
    %v1125 = vld [vmem:[%s1117 + $0x38] sm:$0xff]
    %1126 = vmatprep.subr.mxu0 %v367
    %1127 = vmatpush1.msra.mxu0 %v366
    %1128 = vmatprep.subr.mxu0 %v369
    %1129 = vmatpush1.msra.mxu0 %v368
    %1130 = vmatprep.subr.mxu0 %v371
    %1131 = vmatpush1.msra.mxu0 %v370
    %1132 = vmatprep.subr.mxu0 %v373
    %1133 = vmatpush1.msra.mxu0 %v372
    %1134 = vmatprep.subr.mxu0 %v375
    %1135 = vmatpush1.msra.mxu0 %v374
    %1136 = vmatprep.subr.mxu0 %v377
    %1137 = vmatpush1.msra.mxu0 %v376
    %1138 = vmatprep.subr.mxu0 %v379
    %1139 = vmatpush1.msra.mxu0 %v378
    %1140 = vmatprep.subr.mxu0 %v381
    %1141 = vmatpush1.msra.mxu0 %v380
    %1142 = vmatprep.subr.mxu0 %v383
    %1143 = vmatpush1.msra.mxu0 %v382
    %1144 = vmatprep.subr.mxu0 %v385
    %1145 = vmatpush1.msra.mxu0 %v384
    %1146 = vmatprep.subr.mxu0 %v387
    %1147 = vmatpush1.msra.mxu0 %v386
    %1148 = vmatprep.subr.mxu0 %v389
    %1149 = vmatpush1.msra.mxu0 %v388
    %1150 = vmatprep.subr.mxu0 %v391
    %1151 = vmatpush1.msra.mxu0 %v390
    %1152 = vmatprep.subr.mxu0 %v393
    %1153 = vmatpush1.msra.mxu0 %v392
    %1154 = vmatprep.subr.mxu0 %v395
    %1155 = vmatpush1.msra.mxu0 %v394
    %1156 = vmatprep.subr.mxu0 %v397
    %1157 = vmatpush1.msra.mxu0 %v396
    %1158 = vmatprep.subr.mxu0 0.0
    %1159 = vmatpush1.msra.mxu0 0.0
    %1160 = vmatprep.subr.mxu0 0.0
    %1161 = vmatpush1.msra.mxu0 0.0
    %1162 = vmatprep.subr.mxu0 0.0
    %1163 = vmatpush1.msra.mxu0 0.0
    %1164 = vmatprep.subr.mxu0 0.0
    %1165 = vmatpush1.msra.mxu0 0.0
    %1166 = vmatprep.subr.mxu0 0.0
    %1167 = vmatpush1.msra.mxu0 0.0
    %1168 = vmatprep.subr.mxu0 0.0
    %1169 = vmatpush1.msra.mxu0 0.0
    %1170 = vmatprep.subr.mxu0 0.0
    %1171 = vmatpush1.msra.mxu0 0.0
    %1172 = vmatprep.subr.mxu0 0.0
    %1173 = vmatpush1.msra.mxu0 0.0
    %1174 = vmatprep.subr.mxu0 0.0
    %1175 = vmatpush1.msra.mxu0 0.0
    %1176 = vmatprep.subr.mxu0 0.0
    %1177 = vmatpush1.msra.mxu0 0.0
    %1178 = vmatprep.subr.mxu0 0.0
    %1179 = vmatpush1.msra.mxu0 0.0
    %1180 = vmatprep.subr.mxu0 0.0
    %1181 = vmatpush1.msra.mxu0 0.0
    %1182 = vmatprep.subr.mxu0 0.0
    %1183 = vmatpush1.msra.mxu0 0.0
    %1184 = vmatprep.subr.mxu0 0.0
    %1185 = vmatpush1.msra.mxu0 0.0
    %1186 = vmatprep.subr.mxu0 0.0
    %1187 = vmatpush1.msra.mxu0 0.0
    %1188 = vmatprep.subr.mxu0 0.0
    %1189 = vmatpush1.msra.mxu0 0.0
    %1190 = vmatprep.mubr.f32.mxu0 0.0
    %1191 = vmatmul.mubr.f32.gmra.mrb[0].mxu0 %v1118
    %v1192 = vpop.f32.mrb[0].mxu0
    %v1193 = vadd.f32 0.0, %v1192
    %v1194 = vpop.f32.mrb[0].mxu0
    %v1195 = vadd.f32 0.0, %v1194
    %1196 = vmatprep.mubr.f32.mxu0 0.0
    %1197 = vmatmul.mubr.f32.gmra.mrb[0].mxu0 %v1119
    %v1198 = vpop.f32.mrb[0].mxu0
    %v1199 = vadd.f32 0.0, %v1198
    %v1200 = vpop.f32.mrb[0].mxu0
    %v1201 = vadd.f32 0.0, %v1200
    %1202 = vmatprep.mubr.f32.mxu0 0.0
    %1203 = vmatmul.mubr.f32.gmra.mrb[0].mxu0 %v1120
    %v1204 = vpop.f32.mrb[0].mxu0
    %v1205 = vadd.f32 0.0, %v1204
    %v1206 = vpop.f32.mrb[0].mxu0
    %v1207 = vadd.f32 0.0, %v1206
    %1208 = vmatprep.mubr.f32.mxu0 0.0
    %1209 = vmatmul.mubr.f32.gmra.mrb[0].mxu0 %v1121
    %v1210 = vpop.f32.mrb[0].mxu0
    %v1211 = vadd.f32 0.0, %v1210
    %v1212 = vpop.f32.mrb[0].mxu0
    %v1213 = vadd.f32 0.0, %v1212
    %1214 = vmatprep.mubr.f32.mxu0 0.0
    %1215 = vmatmul.mubr.f32.gmra.mrb[0].mxu0 %v1122
    %v1216 = vpop.f32.mrb[0].mxu0
    %v1217 = vadd.f32 0.0, %v1216
    %v1218 = vpop.f32.mrb[0].mxu0
    %v1219 = vadd.f32 0.0, %v1218
    %1220 = vmatprep.mubr.f32.mxu0 0.0
    %1221 = vmatmul.mubr.f32.gmra.mrb[0].mxu0 %v1123
    %v1222 = vpop.f32.mrb[0].mxu0
    %v1223 = vadd.f32 0.0, %v1222
    %v1224 = vpop.f32.mrb[0].mxu0
    %v1225 = vadd.f32 0.0, %v1224
    %1226 = vmatprep.mubr.f32.mxu0 0.0
    %1227 = vmatmul.mubr.f32.gmra.mrb[0].mxu0 %v1124
    %v1228 = vpop.f32.mrb[0].mxu0
    %v1229 = vadd.f32 0.0, %v1228
    %v1230 = vpop.f32.mrb[0].mxu0
    %v1231 = vadd.f32 0.0, %v1230
    %1232 = vmatprep.mubr.f32.mxu0 0.0
    %1233 = vmatmul.mubr.f32.gmra.mrb[0].mxu0 %v1125
    %v1234 = vpop.f32.mrb[0].mxu0
    %v1235 = vadd.f32 0.0, %v1234
    %v1236 = vpop.f32.mrb[0].mxu0
    %v1237 = vadd.f32 0.0, %v1236
    %1238 = vdwg.mxu0
    %v1239 = vpack.c.bf16 %v1199, %v1193
    %v1240 = vpack.c.bf16 %v1201, %v1195
    %v1241 = vpack.c.bf16 %v1211, %v1205
    %v1242 = vpack.c.bf16 %v1213, %v1207
    %v1243 = vpack.c.bf16 %v1223, %v1217
    %v1244 = vpack.c.bf16 %v1225, %v1219
    %v1245 = vpack.c.bf16 %v1235, %v1229
    %v1246 = vpack.c.bf16 %v1237, %v1231
    %s1247 = scalar_lea.vmem %s5, 384
    %v1248 = vld [vmem:[%s1247] sm:$0xff]
    %v1249 = vld [vmem:[%s1247 + $0x8] sm:$0xff]
    %v1250 = vld [vmem:[%s1247 + $0x10] sm:$0xff]
    %v1251 = vld [vmem:[%s1247 + $0x18] sm:$0xff]
    %v1252 = vld [vmem:[%s1247 + $0x20] sm:$0xff]
    %v1253 = vld [vmem:[%s1247 + $0x28] sm:$0xff]
    %v1254 = vld [vmem:[%s1247 + $0x30] sm:$0xff]
    %v1255 = vld [vmem:[%s1247 + $0x38] sm:$0xff]
    %v1256 = vld [vmem:[%s1247 + $0x40] sm:$0xff]
    %v1257 = vld [vmem:[%s1247 + $0x48] sm:$0xff]
    %v1258 = vld [vmem:[%s1247 + $0x50] sm:$0xff]
    %v1259 = vld [vmem:[%s1247 + $0x58] sm:$0xff]
    %v1260 = vld [vmem:[%s1247 + $0x60] sm:$0xff]
    %v1261 = vld [vmem:[%s1247 + $0x68] sm:$0xff]
    %v1262 = vld [vmem:[%s1247 + $0x70] sm:$0xff]
    %v1263 = vld [vmem:[%s1247 + $0x78] sm:$0xff]
    %v1264 = vld [vmem:[%s1247 + $0x80] sm:$0xff]
    %v1265 = vld [vmem:[%s1247 + $0x88] sm:$0xff]
    %v1266 = vld [vmem:[%s1247 + $0x90] sm:$0xff]
    %v1267 = vld [vmem:[%s1247 + $0x98] sm:$0xff]
    %v1268 = vld [vmem:[%s1247 + $0xa0] sm:$0xff]
    %v1269 = vld [vmem:[%s1247 + $0xa8] sm:$0xff]
    %v1270 = vld [vmem:[%s1247 + $0xb0] sm:$0xff]
    %v1271 = vld [vmem:[%s1247 + $0xb8] sm:$0xff]
    %v1296 = vunpack.c.l.b16 %v1248
    %v1297 = vunpack.c.h.b16 %v1248
    %v1298 = vunpack.c.l.b16 %v1249
    %v1299 = vunpack.c.h.b16 %v1249
    %v1300 = vunpack.c.l.b16 %v1250
    %v1301 = vunpack.c.h.b16 %v1250
    %v1302 = vunpack.c.l.b16 %v1251
    %v1303 = vunpack.c.h.b16 %v1251
    %v1304 = vunpack.c.l.b16 %v1252
    %v1305 = vunpack.c.h.b16 %v1252
    %v1306 = vunpack.c.l.b16 %v1253
    %v1307 = vunpack.c.h.b16 %v1253
    %v1308 = vunpack.c.l.b16 %v1254
    %v1309 = vunpack.c.h.b16 %v1254
    %v1310 = vunpack.c.l.b16 %v1255
    %v1311 = vunpack.c.h.b16 %v1255
    %v1312 = vunpack.c.l.b16 %v1256
    %v1313 = vunpack.c.h.b16 %v1256
    %v1314 = vunpack.c.l.b16 %v1257
    %v1315 = vunpack.c.h.b16 %v1257
    %v1316 = vunpack.c.l.b16 %v1258
    %v1317 = vunpack.c.h.b16 %v1258
    %v1318 = vunpack.c.l.b16 %v1259
    %v1319 = vunpack.c.h.b16 %v1259
    %v1320 = vunpack.c.l.b16 %v1260
    %v1321 = vunpack.c.h.b16 %v1260
    %v1322 = vunpack.c.l.b16 %v1261
    %v1323 = vunpack.c.h.b16 %v1261
    %v1324 = vunpack.c.l.b16 %v1262
    %v1325 = vunpack.c.h.b16 %v1262
    %v1326 = vunpack.c.l.b16 %v1263
    %v1327 = vunpack.c.h.b16 %v1263
    %v1328 = vunpack.c.l.b16 %v1264
    %v1329 = vunpack.c.h.b16 %v1264
    %v1330 = vunpack.c.l.b16 %v1265
    %v1331 = vunpack.c.h.b16 %v1265
    %v1332 = vunpack.c.l.b16 %v1266
    %v1333 = vunpack.c.h.b16 %v1266
    %v1334 = vunpack.c.l.b16 %v1267
    %v1335 = vunpack.c.h.b16 %v1267
    %v1336 = vunpack.c.l.b16 %v1268
    %v1337 = vunpack.c.h.b16 %v1268
    %v1338 = vunpack.c.l.b16 %v1269
    %v1339 = vunpack.c.h.b16 %v1269
    %v1340 = vunpack.c.l.b16 %v1270
    %v1341 = vunpack.c.h.b16 %v1270
    %v1342 = vunpack.c.l.b16 %v1271
    %v1343 = vunpack.c.h.b16 %v1271
    %v1344 = vpack.c.b16 %v1298, %v1296
    %v1345 = vpack.c.b16 %v1299, %v1297
    %v1346 = vpack.c.b16 %v1302, %v1300
    %v1347 = vpack.c.b16 %v1303, %v1301
    %v1348 = vpack.c.b16 %v1306, %v1304
    %v1349 = vpack.c.b16 %v1307, %v1305
    %v1350 = vpack.c.b16 %v1310, %v1308
    %v1351 = vpack.c.b16 %v1311, %v1309
    %v1352 = vpack.c.b16 %v1314, %v1312
    %v1353 = vpack.c.b16 %v1315, %v1313
    %v1354 = vpack.c.b16 %v1318, %v1316
    %v1355 = vpack.c.b16 %v1319, %v1317
    %v1356 = vpack.c.b16 %v1322, %v1320
    %v1357 = vpack.c.b16 %v1323, %v1321
    %v1358 = vpack.c.b16 %v1326, %v1324
    %v1359 = vpack.c.b16 %v1327, %v1325
    %v1360 = vpack.c.b16 %v1330, %v1328
    %v1361 = vpack.c.b16 %v1331, %v1329
    %v1362 = vpack.c.b16 %v1334, %v1332
    %v1363 = vpack.c.b16 %v1335, %v1333
    %v1364 = vpack.c.b16 %v1338, %v1336
    %v1365 = vpack.c.b16 %v1339, %v1337
    %v1366 = vpack.c.b16 %v1342, %v1340
    %v1367 = vpack.c.b16 %v1343, %v1341
    %v1393 = vsel %vm826, %v1240, 0
    %v1396 = vsel %vm826, %v1242, 0
    %v1399 = vsel %vm826, %v1244, 0
    %v1402 = vsel %vm826, %v1246, 0
    %1404 = vmatprep.subr.bf16.mxu0 %v1345
    %1405 = vmatpush1.bf16.msra.mxu0 %v1344
    %1406 = vmatprep.subr.bf16.mxu0 %v1347
    %1407 = vmatpush1.bf16.msra.mxu0 %v1346
    %1408 = vmatprep.subr.bf16.mxu0 %v1349
    %1409 = vmatpush1.bf16.msra.mxu0 %v1348
    %1410 = vmatprep.subr.bf16.mxu0 %v1351
    %1411 = vmatpush1.bf16.msra.mxu0 %v1350
    %1412 = vmatprep.subr.bf16.mxu0 %v1353
    %1413 = vmatpush1.bf16.msra.mxu0 %v1352
    %1414 = vmatprep.subr.bf16.mxu0 %v1355
    %1415 = vmatpush1.bf16.msra.mxu0 %v1354
    %1416 = vmatprep.subr.bf16.mxu0 %v1357
    %1417 = vmatpush1.bf16.msra.mxu0 %v1356
    %1418 = vmatprep.subr.bf16.mxu0 %v1359
    %1419 = vmatpush1.bf16.msra.mxu0 %v1358
    %1420 = vmatprep.subr.bf16.mxu0 %v1361
    %1421 = vmatpush1.bf16.msra.mxu0 %v1360
    %1422 = vmatprep.subr.bf16.mxu0 %v1363
    %1423 = vmatpush1.bf16.msra.mxu0 %v1362
    %1424 = vmatprep.subr.bf16.mxu0 %v1365
    %1425 = vmatpush1.bf16.msra.mxu0 %v1364
    %1426 = vmatprep.subr.bf16.mxu0 %v1367
    %1427 = vmatpush1.bf16.msra.mxu0 %v1366
    %1428 = vmatprep.subr.bf16.mxu0 0
    %1429 = vmatpush1.bf16.msra.mxu0 0
    %1430 = vmatprep.subr.bf16.mxu0 0
    %1431 = vmatpush1.bf16.msra.mxu0 0
    %1432 = vmatprep.subr.bf16.mxu0 0
    %1433 = vmatpush1.bf16.msra.mxu0 0
    %1434 = vmatprep.subr.bf16.mxu0 0
    %1435 = vmatpush1.bf16.msra.mxu0 0
    %1436 = vmatprep.mubr.bf16.mxu0 %v1393
    %1437 = vmatmul.mubr.bf16.gmra.mrb[0].mxu0 %v1239
    %v1438 = vpop.f32.mrb[0].mxu0
    %v1439 = vadd.f32 0.0, %v1438
    %v1440 = vpop.f32.mrb[0].mxu0
    %v1441 = vadd.f32 0.0, %v1440
    %v1442 = vpop.f32.mrb[0].mxu0
    %v1443 = vadd.f32 0.0, %v1442
    %v1444 = vpop.f32.mrb[0].mxu0
    %v1445 = vadd.f32 0.0, %v1444
    %1446 = vmatprep.mubr.bf16.mxu0 %v1396
    %1447 = vmatmul.mubr.bf16.gmra.mrb[0].mxu0 %v1241
    %v1448 = vpop.f32.mrb[0].mxu0
    %v1449 = vadd.f32 0.0, %v1448
    %v1450 = vpop.f32.mrb[0].mxu0
    %v1451 = vadd.f32 0.0, %v1450
    %v1452 = vpop.f32.mrb[0].mxu0
    %v1453 = vadd.f32 0.0, %v1452
    %v1454 = vpop.f32.mrb[0].mxu0
    %v1455 = vadd.f32 0.0, %v1454
    %1456 = vmatprep.mubr.bf16.mxu0 %v1399
    %1457 = vmatmul.mubr.bf16.gmra.mrb[0].mxu0 %v1243
    %v1458 = vpop.f32.mrb[0].mxu0
    %v1459 = vadd.f32 0.0, %v1458
    %v1460 = vpop.f32.mrb[0].mxu0
    %v1461 = vadd.f32 0.0, %v1460
    %v1462 = vpop.f32.mrb[0].mxu0
    %v1463 = vadd.f32 0.0, %v1462
    %v1464 = vpop.f32.mrb[0].mxu0
    %v1465 = vadd.f32 0.0, %v1464
    %1466 = vmatprep.mubr.bf16.mxu0 %v1402
    %1467 = vmatmul.mubr.bf16.gmra.mrb[0].mxu0 %v1245
    %v1468 = vpop.f32.mrb[0].mxu0
    %v1469 = vadd.f32 0.0, %v1468
    %v1470 = vpop.f32.mrb[0].mxu0
    %v1471 = vadd.f32 0.0, %v1470
    %v1472 = vpop.f32.mrb[0].mxu0
    %v1473 = vadd.f32 0.0, %v1472
    %v1474 = vpop.f32.mrb[0].mxu0
    %v1475 = vadd.f32 0.0, %v1474
    %1476 = vdwg.mxu0
    %v1477 = vadd.f32 %v1079, %v1439
    %v1478 = vadd.f32 %v1081, %v1441
    %v1479 = vadd.f32 %v1083, %v1443
    %v1480 = vadd.f32 %v1085, %v1445
    %v1481 = vadd.f32 %v1089, %v1449
    %v1482 = vadd.f32 %v1091, %v1451
    %v1483 = vadd.f32 %v1093, %v1453
    %v1484 = vadd.f32 %v1095, %v1455
    %v1485 = vadd.f32 %v1099, %v1459
    %v1486 = vadd.f32 %v1101, %v1461
    %v1487 = vadd.f32 %v1103, %v1463
    %v1488 = vadd.f32 %v1105, %v1465
    %v1489 = vadd.f32 %v1109, %v1469
    %v1490 = vadd.f32 %v1111, %v1471
    %v1491 = vadd.f32 %v1113, %v1473
    %v1492 = vadd.f32 %v1115, %v1475
    %s1493 = scalar_lea.vmem [#allocation4], 192
    %v1494 = vld [vmem:[%s1493] sm:$0xff]
    %v1495 = vld [vmem:[%s1493 + $0x8] sm:$0xff]
    %v1496 = vld [vmem:[%s1493 + $0x10] sm:$0xff]
    %v1497 = vld [vmem:[%s1493 + $0x18] sm:$0xff]
    %v1498 = vld [vmem:[%s1493 + $0x20] sm:$0xff]
    %v1499 = vld [vmem:[%s1493 + $0x28] sm:$0xff]
    %v1500 = vld [vmem:[%s1493 + $0x30] sm:$0xff]
    %v1501 = vld [vmem:[%s1493 + $0x38] sm:$0xff]
    %1502 = vmatprep.subr.mxu0 %v367
    %1503 = vmatpush1.msra.mxu0 %v366
    %1504 = vmatprep.subr.mxu0 %v369
    %1505 = vmatpush1.msra.mxu0 %v368
    %1506 = vmatprep.subr.mxu0 %v371
    %1507 = vmatpush1.msra.mxu0 %v370
    %1508 = vmatprep.subr.mxu0 %v373
    %1509 = vmatpush1.msra.mxu0 %v372
    %1510 = vmatprep.subr.mxu0 %v375
    %1511 = vmatpush1.msra.mxu0 %v374
    %1512 = vmatprep.subr.mxu0 %v377
    %1513 = vmatpush1.msra.mxu0 %v376
    %1514 = vmatprep.subr.mxu0 %v379
    %1515 = vmatpush1.msra.mxu0 %v378
    %1516 = vmatprep.subr.mxu0 %v381
    %1517 = vmatpush1.msra.mxu0 %v380
    %1518 = vmatprep.subr.mxu0 %v383
    %1519 = vmatpush1.msra.mxu0 %v382
    %1520 = vmatprep.subr.mxu0 %v385
    %1521 = vmatpush1.msra.mxu0 %v384
    %1522 = vmatprep.subr.mxu0 %v387
    %1523 = vmatpush1.msra.mxu0 %v386
    %1524 = vmatprep.subr.mxu0 %v389
    %1525 = vmatpush1.msra.mxu0 %v388
    %1526 = vmatprep.subr.mxu0 %v391
    %1527 = vmatpush1.msra.mxu0 %v390
    %1528 = vmatprep.subr.mxu0 %v393
    %1529 = vmatpush1.msra.mxu0 %v392
    %1530 = vmatprep.subr.mxu0 %v395
    %1531 = vmatpush1.msra.mxu0 %v394
    %1532 = vmatprep.subr.mxu0 %v397
    %1533 = vmatpush1.msra.mxu0 %v396
    %1534 = vmatprep.subr.mxu0 0.0
    %1535 = vmatpush1.msra.mxu0 0.0
    %1536 = vmatprep.subr.mxu0 0.0
    %1537 = vmatpush1.msra.mxu0 0.0
    %1538 = vmatprep.subr.mxu0 0.0
    %1539 = vmatpush1.msra.mxu0 0.0
    %1540 = vmatprep.subr.mxu0 0.0
    %1541 = vmatpush1.msra.mxu0 0.0
    %1542 = vmatprep.subr.mxu0 0.0
    %1543 = vmatpush1.msra.mxu0 0.0
    %1544 = vmatprep.subr.mxu0 0.0
    %1545 = vmatpush1.msra.mxu0 0.0
    %1546 = vmatprep.subr.mxu0 0.0
    %1547 = vmatpush1.msra.mxu0 0.0
    %1548 = vmatprep.subr.mxu0 0.0
    %1549 = vmatpush1.msra.mxu0 0.0
    %1550 = vmatprep.subr.mxu0 0.0
    %1551 = vmatpush1.msra.mxu0 0.0
    %1552 = vmatprep.subr.mxu0 0.0
    %1553 = vmatpush1.msra.mxu0 0.0
    %1554 = vmatprep.subr.mxu0 0.0
    %1555 = vmatpush1.msra.mxu0 0.0
    %1556 = vmatprep.subr.mxu0 0.0
    %1557 = vmatpush1.msra.mxu0 0.0
    %1558 = vmatprep.subr.mxu0 0.0
    %1559 = vmatpush1.msra.mxu0 0.0
    %1560 = vmatprep.subr.mxu0 0.0
    %1561 = vmatpush1.msra.mxu0 0.0
    %1562 = vmatprep.subr.mxu0 0.0
    %1563 = vmatpush1.msra.mxu0 0.0
    %1564 = vmatprep.subr.mxu0 0.0
    %1565 = vmatpush1.msra.mxu0 0.0
    %1566 = vmatprep.mubr.f32.mxu0 0.0
    %1567 = vmatmul.mubr.f32.gmra.mrb[0].mxu0 %v1494
    %v1568 = vpop.f32.mrb[0].mxu0
    %v1569 = vadd.f32 0.0, %v1568
    %v1570 = vpop.f32.mrb[0].mxu0
    %v1571 = vadd.f32 0.0, %v1570
    %1572 = vmatprep.mubr.f32.mxu0 0.0
    %1573 = vmatmul.mubr.f32.gmra.mrb[0].mxu0 %v1495
    %v1574 = vpop.f32.mrb[0].mxu0
    %v1575 = vadd.f32 0.0, %v1574
    %v1576 = vpop.f32.mrb[0].mxu0
    %v1577 = vadd.f32 0.0, %v1576
    %1578 = vmatprep.mubr.f32.mxu0 0.0
    %1579 = vmatmul.mubr.f32.gmra.mrb[0].mxu0 %v1496
    %v1580 = vpop.f32.mrb[0].mxu0
    %v1581 = vadd.f32 0.0, %v1580
    %v1582 = vpop.f32.mrb[0].mxu0
    %v1583 = vadd.f32 0.0, %v1582
    %1584 = vmatprep.mubr.f32.mxu0 0.0
    %1585 = vmatmul.mubr.f32.gmra.mrb[0].mxu0 %v1497
    %v1586 = vpop.f32.mrb[0].mxu0
    %v1587 = vadd.f32 0.0, %v1586
    %v1588 = vpop.f32.mrb[0].mxu0
    %v1589 = vadd.f32 0.0, %v1588
    %1590 = vmatprep.mubr.f32.mxu0 0.0
    %1591 = vmatmul.mubr.f32.gmra.mrb[0].mxu0 %v1498
    %v1592 = vpop.f32.mrb[0].mxu0
    %v1593 = vadd.f32 0.0, %v1592
    %v1594 = vpop.f32.mrb[0].mxu0
    %v1595 = vadd.f32 0.0, %v1594
    %1596 = vmatprep.mubr.f32.mxu0 0.0
    %1597 = vmatmul.mubr.f32.gmra.mrb[0].mxu0 %v1499
    %v1598 = vpop.f32.mrb[0].mxu0
    %v1599 = vadd.f32 0.0, %v1598
    %v1600 = vpop.f32.mrb[0].mxu0
    %v1601 = vadd.f32 0.0, %v1600
    %1602 = vmatprep.mubr.f32.mxu0 0.0
    %1603 = vmatmul.mubr.f32.gmra.mrb[0].mxu0 %v1500
    %v1604 = vpop.f32.mrb[0].mxu0
    %v1605 = vadd.f32 0.0, %v1604
    %v1606 = vpop.f32.mrb[0].mxu0
    %v1607 = vadd.f32 0.0, %v1606
    %1608 = vmatprep.mubr.f32.mxu0 0.0
    %1609 = vmatmul.mubr.f32.gmra.mrb[0].mxu0 %v1501
    %v1610 = vpop.f32.mrb[0].mxu0
    %v1611 = vadd.f32 0.0, %v1610
    %v1612 = vpop.f32.mrb[0].mxu0
    %v1613 = vadd.f32 0.0, %v1612
    %1614 = vdwg.mxu0
    %v1615 = vpack.c.bf16 %v1575, %v1569
    %v1616 = vpack.c.bf16 %v1577, %v1571
    %v1617 = vpack.c.bf16 %v1587, %v1581
    %v1618 = vpack.c.bf16 %v1589, %v1583
    %v1619 = vpack.c.bf16 %v1599, %v1593
    %v1620 = vpack.c.bf16 %v1601, %v1595
    %v1621 = vpack.c.bf16 %v1611, %v1605
    %v1622 = vpack.c.bf16 %v1613, %v1607
    %s1623 = scalar_lea.vmem %s5, 576
    %v1624 = vld [vmem:[%s1623] sm:$0xff]
    %v1625 = vld [vmem:[%s1623 + $0x8] sm:$0xff]
    %v1626 = vld [vmem:[%s1623 + $0x10] sm:$0xff]
    %v1627 = vld [vmem:[%s1623 + $0x18] sm:$0xff]
    %v1628 = vld [vmem:[%s1623 + $0x20] sm:$0xff]
    %v1629 = vld [vmem:[%s1623 + $0x28] sm:$0xff]
    %v1630 = vld [vmem:[%s1623 + $0x30] sm:$0xff]
    %v1631 = vld [vmem:[%s1623 + $0x38] sm:$0xff]
    %v1632 = vld [vmem:[%s1623 + $0x40] sm:$0xff]
    %v1633 = vld [vmem:[%s1623 + $0x48] sm:$0xff]
    %v1634 = vld [vmem:[%s1623 + $0x50] sm:$0xff]
    %v1635 = vld [vmem:[%s1623 + $0x58] sm:$0xff]
    %v1636 = vld [vmem:[%s1623 + $0x60] sm:$0xff]
    %v1637 = vld [vmem:[%s1623 + $0x68] sm:$0xff]
    %v1638 = vld [vmem:[%s1623 + $0x70] sm:$0xff]
    %v1639 = vld [vmem:[%s1623 + $0x78] sm:$0xff]
    %v1640 = vld [vmem:[%s1623 + $0x80] sm:$0xff]
    %v1641 = vld [vmem:[%s1623 + $0x88] sm:$0xff]
    %v1642 = vld [vmem:[%s1623 + $0x90] sm:$0xff]
    %v1643 = vld [vmem:[%s1623 + $0x98] sm:$0xff]
    %v1644 = vld [vmem:[%s1623 + $0xa0] sm:$0xff]
    %v1645 = vld [vmem:[%s1623 + $0xa8] sm:$0xff]
    %v1646 = vld [vmem:[%s1623 + $0xb0] sm:$0xff]
    %v1647 = vld [vmem:[%s1623 + $0xb8] sm:$0xff]
    %v1672 = vunpack.c.l.b16 %v1624
    %v1673 = vunpack.c.h.b16 %v1624
    %v1674 = vunpack.c.l.b16 %v1625
    %v1675 = vunpack.c.h.b16 %v1625
    %v1676 = vunpack.c.l.b16 %v1626
    %v1677 = vunpack.c.h.b16 %v1626
    %v1678 = vunpack.c.l.b16 %v1627
    %v1679 = vunpack.c.h.b16 %v1627
    %v1680 = vunpack.c.l.b16 %v1628
    %v1681 = vunpack.c.h.b16 %v1628
    %v1682 = vunpack.c.l.b16 %v1629
    %v1683 = vunpack.c.h.b16 %v1629
    %v1684 = vunpack.c.l.b16 %v1630
    %v1685 = vunpack.c.h.b16 %v1630
    %v1686 = vunpack.c.l.b16 %v1631
    %v1687 = vunpack.c.h.b16 %v1631
    %v1688 = vunpack.c.l.b16 %v1632
    %v1689 = vunpack.c.h.b16 %v1632
    %v1690 = vunpack.c.l.b16 %v1633
    %v1691 = vunpack.c.h.b16 %v1633
    %v1692 = vunpack.c.l.b16 %v1634
    %v1693 = vunpack.c.h.b16 %v1634
    %v1694 = vunpack.c.l.b16 %v1635
    %v1695 = vunpack.c.h.b16 %v1635
    %v1696 = vunpack.c.l.b16 %v1636
    %v1697 = vunpack.c.h.b16 %v1636
    %v1698 = vunpack.c.l.b16 %v1637
    %v1699 = vunpack.c.h.b16 %v1637
    %v1700 = vunpack.c.l.b16 %v1638
    %v1701 = vunpack.c.h.b16 %v1638
    %v1702 = vunpack.c.l.b16 %v1639
    %v1703 = vunpack.c.h.b16 %v1639
    %v1704 = vunpack.c.l.b16 %v1640
    %v1705 = vunpack.c.h.b16 %v1640
    %v1706 = vunpack.c.l.b16 %v1641
    %v1707 = vunpack.c.h.b16 %v1641
    %v1708 = vunpack.c.l.b16 %v1642
    %v1709 = vunpack.c.h.b16 %v1642
    %v1710 = vunpack.c.l.b16 %v1643
    %v1711 = vunpack.c.h.b16 %v1643
    %v1712 = vunpack.c.l.b16 %v1644
    %v1713 = vunpack.c.h.b16 %v1644
    %v1714 = vunpack.c.l.b16 %v1645
    %v1715 = vunpack.c.h.b16 %v1645
    %v1716 = vunpack.c.l.b16 %v1646
    %v1717 = vunpack.c.h.b16 %v1646
    %v1718 = vunpack.c.l.b16 %v1647
    %v1719 = vunpack.c.h.b16 %v1647
    %v1720 = vpack.c.b16 %v1674, %v1672
    %v1721 = vpack.c.b16 %v1675, %v1673
    %v1722 = vpack.c.b16 %v1678, %v1676
    %v1723 = vpack.c.b16 %v1679, %v1677
    %v1724 = vpack.c.b16 %v1682, %v1680
    %v1725 = vpack.c.b16 %v1683, %v1681
    %v1726 = vpack.c.b16 %v1686, %v1684
    %v1727 = vpack.c.b16 %v1687, %v1685
    %v1728 = vpack.c.b16 %v1690, %v1688
    %v1729 = vpack.c.b16 %v1691, %v1689
    %v1730 = vpack.c.b16 %v1694, %v1692
    %v1731 = vpack.c.b16 %v1695, %v1693
    %v1732 = vpack.c.b16 %v1698, %v1696
    %v1733 = vpack.c.b16 %v1699, %v1697
    %v1734 = vpack.c.b16 %v1702, %v1700
    %v1735 = vpack.c.b16 %v1703, %v1701
    %v1736 = vpack.c.b16 %v1706, %v1704
    %v1737 = vpack.c.b16 %v1707, %v1705
    %v1738 = vpack.c.b16 %v1710, %v1708
    %v1739 = vpack.c.b16 %v1711, %v1709
    %v1740 = vpack.c.b16 %v1714, %v1712
    %v1741 = vpack.c.b16 %v1715, %v1713
    %v1742 = vpack.c.b16 %v1718, %v1716
    %v1743 = vpack.c.b16 %v1719, %v1717
    %v1769 = vsel %vm826, %v1616, 0
    %v1772 = vsel %vm826, %v1618, 0
    %v1775 = vsel %vm826, %v1620, 0
    %v1778 = vsel %vm826, %v1622, 0
    %1780 = vmatprep.subr.bf16.mxu0 %v1721
    %1781 = vmatpush1.bf16.msra.mxu0 %v1720
    %1782 = vmatprep.subr.bf16.mxu0 %v1723
    %1783 = vmatpush1.bf16.msra.mxu0 %v1722
    %1784 = vmatprep.subr.bf16.mxu0 %v1725
    %1785 = vmatpush1.bf16.msra.mxu0 %v1724
    %1786 = vmatprep.subr.bf16.mxu0 %v1727
    %1787 = vmatpush1.bf16.msra.mxu0 %v1726
    %1788 = vmatprep.subr.bf16.mxu0 %v1729
    %1789 = vmatpush1.bf16.msra.mxu0 %v1728
    %1790 = vmatprep.subr.bf16.mxu0 %v1731
    %1791 = vmatpush1.bf16.msra.mxu0 %v1730
    %1792 = vmatprep.subr.bf16.mxu0 %v1733
    %1793 = vmatpush1.bf16.msra.mxu0 %v1732
    %1794 = vmatprep.subr.bf16.mxu0 %v1735
    %1795 = vmatpush1.bf16.msra.mxu0 %v1734
    %1796 = vmatprep.subr.bf16.mxu0 %v1737
    %1797 = vmatpush1.bf16.msra.mxu0 %v1736
    %1798 = vmatprep.subr.bf16.mxu0 %v1739
    %1799 = vmatpush1.bf16.msra.mxu0 %v1738
    %1800 = vmatprep.subr.bf16.mxu0 %v1741
    %1801 = vmatpush1.bf16.msra.mxu0 %v1740
    %1802 = vmatprep.subr.bf16.mxu0 %v1743
    %1803 = vmatpush1.bf16.msra.mxu0 %v1742
    %1804 = vmatprep.subr.bf16.mxu0 0
    %1805 = vmatpush1.bf16.msra.mxu0 0
    %1806 = vmatprep.subr.bf16.mxu0 0
    %1807 = vmatpush1.bf16.msra.mxu0 0
    %1808 = vmatprep.subr.bf16.mxu0 0
    %1809 = vmatpush1.bf16.msra.mxu0 0
    %1810 = vmatprep.subr.bf16.mxu0 0
    %1811 = vmatpush1.bf16.msra.mxu0 0
    %1812 = vmatprep.mubr.bf16.mxu0 %v1769
    %1813 = vmatmul.mubr.bf16.gmra.mrb[0].mxu0 %v1615
    %v1814 = vpop.f32.mrb[0].mxu0
    %v1815 = vadd.f32 0.0, %v1814
    %v1816 = vpop.f32.mrb[0].mxu0
    %v1817 = vadd.f32 0.0, %v1816
    %v1818 = vpop.f32.mrb[0].mxu0
    %v1819 = vadd.f32 0.0, %v1818
    %v1820 = vpop.f32.mrb[0].mxu0
    %v1821 = vadd.f32 0.0, %v1820
    %1822 = vmatprep.mubr.bf16.mxu0 %v1772
    %1823 = vmatmul.mubr.bf16.gmra.mrb[0].mxu0 %v1617
    %v1824 = vpop.f32.mrb[0].mxu0
    %v1825 = vadd.f32 0.0, %v1824
    %v1826 = vpop.f32.mrb[0].mxu0
    %v1827 = vadd.f32 0.0, %v1826
    %v1828 = vpop.f32.mrb[0].mxu0
    %v1829 = vadd.f32 0.0, %v1828
    %v1830 = vpop.f32.mrb[0].mxu0
    %v1831 = vadd.f32 0.0, %v1830
    %1832 = vmatprep.mubr.bf16.mxu0 %v1775
    %1833 = vmatmul.mubr.bf16.gmra.mrb[0].mxu0 %v1619
    %v1834 = vpop.f32.mrb[0].mxu0
    %v1835 = vadd.f32 0.0, %v1834
    %v1836 = vpop.f32.mrb[0].mxu0
    %v1837 = vadd.f32 0.0, %v1836
    %v1838 = vpop.f32.mrb[0].mxu0
    %v1839 = vadd.f32 0.0, %v1838
    %v1840 = vpop.f32.mrb[0].mxu0
    %v1841 = vadd.f32 0.0, %v1840
    %1842 = vmatprep.mubr.bf16.mxu0 %v1778
    %1843 = vmatmul.mubr.bf16.gmra.mrb[0].mxu0 %v1621
    %v1844 = vpop.f32.mrb[0].mxu0
    %v1845 = vadd.f32 0.0, %v1844
    %v1846 = vpop.f32.mrb[0].mxu0
    %v1847 = vadd.f32 0.0, %v1846
    %v1848 = vpop.f32.mrb[0].mxu0
    %v1849 = vadd.f32 0.0, %v1848
    %v1850 = vpop.f32.mrb[0].mxu0
    %v1851 = vadd.f32 0.0, %v1850
    %1852 = vdwg.mxu0
    %v1853 = vadd.f32 %v1477, %v1815
    %v1854 = vadd.f32 %v1478, %v1817
    %v1855 = vadd.f32 %v1479, %v1819
    %v1856 = vadd.f32 %v1480, %v1821
    %v1857 = vadd.f32 %v1481, %v1825
    %v1858 = vadd.f32 %v1482, %v1827
    %v1859 = vadd.f32 %v1483, %v1829
    %v1860 = vadd.f32 %v1484, %v1831
    %v1861 = vadd.f32 %v1485, %v1835
    %v1862 = vadd.f32 %v1486, %v1837
    %v1863 = vadd.f32 %v1487, %v1839
    %v1864 = vadd.f32 %v1488, %v1841
    %v1865 = vadd.f32 %v1489, %v1845
    %v1866 = vadd.f32 %v1490, %v1847
    %v1867 = vadd.f32 %v1491, %v1849
    %v1868 = vadd.f32 %v1492, %v1851
    %v1869 = vmul.f32 %v1853, 0.2
    %v1870 = vmul.f32 %v1854, 0.2
    %v1871 = vmul.f32 %v1855, 0.2
    %v1872 = vmul.f32 %v1856, 0.2
    %v1873 = vmul.f32 %v1857, 0.2
    %v1874 = vmul.f32 %v1858, 0.2
    %v1875 = vmul.f32 %v1859, 0.2
    %v1876 = vmul.f32 %v1860, 0.2
    %v1877 = vmul.f32 %v1861, 0.2
    %v1878 = vmul.f32 %v1862, 0.2
    %v1879 = vmul.f32 %v1863, 0.2
    %v1880 = vmul.f32 %v1864, 0.2
    %v1881 = vmul.f32 %v1865, 0.2
    %v1882 = vmul.f32 %v1866, 0.2
    %v1883 = vmul.f32 %v1867, 0.2
    %v1884 = vmul.f32 %v1868, 0.2
    %v1885 = vmax.f32 %v1853, %v1869
    %v1886 = vmax.f32 %v1854, %v1870
    %v1887 = vmax.f32 %v1855, %v1871
    %v1888 = vmax.f32 %v1856, %v1872
    %v1889 = vmax.f32 %v1857, %v1873
    %v1890 = vmax.f32 %v1858, %v1874
    %v1891 = vmax.f32 %v1859, %v1875
    %v1892 = vmax.f32 %v1860, %v1876
    %v1893 = vmax.f32 %v1861, %v1877
    %v1894 = vmax.f32 %v1862, %v1878
    %v1895 = vmax.f32 %v1863, %v1879
    %v1896 = vmax.f32 %v1864, %v1880
    %v1897 = vmax.f32 %v1865, %v1881
    %v1898 = vmax.f32 %v1866, %v1882
    %v1899 = vmax.f32 %v1867, %v1883
    %v1900 = vmax.f32 %v1868, %v1884
    %v1901 = vld [vmem:[#allocation6] sm:$0xff]
    %v1902 = vld [vmem:[#allocation6 + $0x8] sm:$0xff]
    %v1903 = vld [vmem:[#allocation6 + $0x10] sm:$0xff]
    %v1904 = vld [vmem:[#allocation6 + $0x18] sm:$0xff]
    %v1906 = vsel %vm826, %v1901, 0
    %v1909 = vsel %vm826, %v1902, 0
    %v1912 = vsel %vm826, %v1903, 0
    %v1915 = vsel %vm826, %v1904, 0
    %1917 = vmatprep.subr.mxu0 %v1886
    %1918 = vmatpush1.msra.mxu0 %v1885
    %1919 = vmatprep.subr.mxu0 %v1888
    %1920 = vmatpush1.msra.mxu0 %v1887
    %1921 = vmatprep.subr.mxu0 %v1890
    %1922 = vmatpush1.msra.mxu0 %v1889
    %1923 = vmatprep.subr.mxu0 %v1892
    %1924 = vmatpush1.msra.mxu0 %v1891
    %1925 = vmatprep.subr.mxu0 %v1894
    %1926 = vmatpush1.msra.mxu0 %v1893
    %1927 = vmatprep.subr.mxu0 %v1896
    %1928 = vmatpush1.msra.mxu0 %v1895
    %1929 = vmatprep.subr.mxu0 %v1898
    %1930 = vmatpush1.msra.mxu0 %v1897
    %1931 = vmatprep.subr.mxu0 %v1900
    %1932 = vmatpush1.msra.mxu0 %v1899
    %1933 = vmatprep.subr.mxu0 0.0
    %1934 = vmatpush1.msra.mxu0 0.0
    %1935 = vmatprep.subr.mxu0 0.0
    %1936 = vmatpush1.msra.mxu0 0.0
    %1937 = vmatprep.subr.mxu0 0.0
    %1938 = vmatpush1.msra.mxu0 0.0
    %1939 = vmatprep.subr.mxu0 0.0
    %1940 = vmatpush1.msra.mxu0 0.0
    %1941 = vmatprep.subr.mxu0 0.0
    %1942 = vmatpush1.msra.mxu0 0.0
    %1943 = vmatprep.subr.mxu0 0.0
    %1944 = vmatpush1.msra.mxu0 0.0
    %1945 = vmatprep.subr.mxu0 0.0
    %1946 = vmatpush1.msra.mxu0 0.0
    %1947 = vmatprep.subr.mxu0 0.0
    %1948 = vmatpush1.msra.mxu0 0.0
    %1949 = vmatprep.subr.mxu0 0.0
    %1950 = vmatpush1.msra.mxu0 0.0
    %1951 = vmatprep.subr.mxu0 0.0
    %1952 = vmatpush1.msra.mxu0 0.0
    %1953 = vmatprep.subr.mxu0 0.0
    %1954 = vmatpush1.msra.mxu0 0.0
    %1955 = vmatprep.subr.mxu0 0.0
    %1956 = vmatpush1.msra.mxu0 0.0
    %1957 = vmatprep.subr.mxu0 0.0
    %1958 = vmatpush1.msra.mxu0 0.0
    %1959 = vmatprep.subr.mxu0 0.0
    %1960 = vmatpush1.msra.mxu0 0.0
    %1961 = vmatprep.subr.mxu0 0.0
    %1962 = vmatpush1.msra.mxu0 0.0
    %1963 = vmatprep.subr.mxu0 0.0
    %1964 = vmatpush1.msra.mxu0 0.0
    %1965 = vmatprep.subr.mxu0 0.0
    %1966 = vmatpush1.msra.mxu0 0.0
    %1967 = vmatprep.subr.mxu0 0.0
    %1968 = vmatpush1.msra.mxu0 0.0
    %1969 = vmatprep.subr.mxu0 0.0
    %1970 = vmatpush1.msra.mxu0 0.0
    %1971 = vmatprep.subr.mxu0 0.0
    %1972 = vmatpush1.msra.mxu0 0.0
    %1973 = vmatprep.subr.mxu0 0.0
    %1974 = vmatpush1.msra.mxu0 0.0
    %1975 = vmatprep.subr.mxu0 0.0
    %1976 = vmatpush1.msra.mxu0 0.0
    %1977 = vmatprep.subr.mxu0 0.0
    %1978 = vmatpush1.msra.mxu0 0.0
    %1979 = vmatprep.subr.mxu0 0.0
    %1980 = vmatpush1.msra.mxu0 0.0
    %1981 = vmatprep.mubr.f32.mxu0 0.0
    %1982 = vmatmul.mubr.f32.gmra.mrb[0].mxu0 %v1906
    %v1983 = vpop.f32.mrb[0].mxu0
    %v1984 = vadd.f32 0.0, %v1983
    %v1985 = vpop.f32.mrb[0].mxu0
    %v1986 = vadd.f32 0.0, %v1985
    %1987 = vmatprep.mubr.f32.mxu0 0.0
    %1988 = vmatmul.mubr.f32.gmra.mrb[0].mxu0 %v1909
    %v1989 = vpop.f32.mrb[0].mxu0
    %v1990 = vadd.f32 0.0, %v1989
    %v1991 = vpop.f32.mrb[0].mxu0
    %v1992 = vadd.f32 0.0, %v1991
    %1993 = vmatprep.mubr.f32.mxu0 0.0
    %1994 = vmatmul.mubr.f32.gmra.mrb[0].mxu0 %v1912
    %v1995 = vpop.f32.mrb[0].mxu0
    %v1996 = vadd.f32 0.0, %v1995
    %v1997 = vpop.f32.mrb[0].mxu0
    %v1998 = vadd.f32 0.0, %v1997
    %1999 = vmatprep.mubr.f32.mxu0 0.0
    %2000 = vmatmul.mubr.f32.gmra.mrb[0].mxu0 %v1915
    %v2001 = vpop.f32.mrb[0].mxu0
    %v2002 = vadd.f32 0.0, %v2001
    %v2003 = vpop.f32.mrb[0].mxu0
    %v2004 = vadd.f32 0.0, %v2003
    %2005 = vdwg.mxu0
    %v2006 = vpack.c.bf16 %v1990, %v1984
    %v2007 = vpack.c.bf16 %v1992, %v1986
    %v2008 = vpack.c.bf16 %v2002, %v1996
    %v2009 = vpack.c.bf16 %v2004, %v1998
    %v2010 = vld [vmem:[%s9] sm:$0xff]
    %v2011 = vld [vmem:[%s9 + $0x8] sm:$0xff]
    %v2012 = vld [vmem:[%s9 + $0x10] sm:$0xff]
    %v2013 = vld [vmem:[%s9 + $0x18] sm:$0xff]
    %v2014 = vld [vmem:[%s9 + $0x20] sm:$0xff]
    %v2015 = vld [vmem:[%s9 + $0x28] sm:$0xff]
    %v2016 = vld [vmem:[%s9 + $0x30] sm:$0xff]
    %v2017 = vld [vmem:[%s9 + $0x38] sm:$0xff]
    %v2018 = vld [vmem:[%s9 + $0x40] sm:$0xff]
    %v2019 = vld [vmem:[%s9 + $0x48] sm:$0xff]
    %v2020 = vld [vmem:[%s9 + $0x50] sm:$0xff]
    %v2021 = vld [vmem:[%s9 + $0x58] sm:$0xff]
    %v2022 = vld [vmem:[%s9 + $0x60] sm:$0xff]
    %v2023 = vld [vmem:[%s9 + $0x68] sm:$0xff]
    %v2024 = vld [vmem:[%s9 + $0x70] sm:$0xff]
    %v2025 = vld [vmem:[%s9 + $0x78] sm:$0xff]
    %v2026 = vld [vmem:[%s9 + $0x80] sm:$0xff]
    %v2027 = vld [vmem:[%s9 + $0x88] sm:$0xff]
    %v2028 = vld [vmem:[%s9 + $0x90] sm:$0xff]
    %v2029 = vld [vmem:[%s9 + $0x98] sm:$0xff]
    %v2030 = vld [vmem:[%s9 + $0xa0] sm:$0xff]
    %v2031 = vld [vmem:[%s9 + $0xa8] sm:$0xff]
    %v2032 = vld [vmem:[%s9 + $0xb0] sm:$0xff]
    %v2033 = vld [vmem:[%s9 + $0xb8] sm:$0xff]
    %v2034 = vld [vmem:[%s9 + $0xc0] sm:$0xff]
    %v2035 = vld [vmem:[%s9 + $0xc8] sm:$0xff]
    %v2036 = vld [vmem:[%s9 + $0xd0] sm:$0xff]
    %v2037 = vld [vmem:[%s9 + $0xd8] sm:$0xff]
    %v2038 = vld [vmem:[%s9 + $0xe0] sm:$0xff]
    %v2039 = vld [vmem:[%s9 + $0xe8] sm:$0xff]
    %v2040 = vld [vmem:[%s9 + $0xf0] sm:$0xff]
    %v2041 = vld [vmem:[%s9 + $0xf8] sm:$0xff]
    %s2042 = scalar_lea.vmem [#allocation6], 32
    %v2043 = vld [vmem:[%s2042] sm:$0xff]
    %v2044 = vld [vmem:[%s2042 + $0x8] sm:$0xff]
    %v2045 = vld [vmem:[%s2042 + $0x10] sm:$0xff]
    %v2046 = vld [vmem:[%s2042 + $0x18] sm:$0xff]
    %v2048 = vsel %vm826, %v2043, 0
    %v2051 = vsel %vm826, %v2044, 0
    %v2054 = vsel %vm826, %v2045, 0
    %v2057 = vsel %vm826, %v2046, 0
    %2059 = vmatprep.subr.mxu0 %v1886
    %2060 = vmatpush1.msra.mxu0 %v1885
    %2061 = vmatprep.subr.mxu0 %v1888
    %2062 = vmatpush1.msra.mxu0 %v1887
    %2063 = vmatprep.subr.mxu0 %v1890
    %2064 = vmatpush1.msra.mxu0 %v1889
    %2065 = vmatprep.subr.mxu0 %v1892
    %2066 = vmatpush1.msra.mxu0 %v1891
    %2067 = vmatprep.subr.mxu0 %v1894
    %2068 = vmatpush1.msra.mxu0 %v1893
    %2069 = vmatprep.subr.mxu0 %v1896
    %2070 = vmatpush1.msra.mxu0 %v1895
    %2071 = vmatprep.subr.mxu0 %v1898
    %2072 = vmatpush1.msra.mxu0 %v1897
    %2073 = vmatprep.subr.mxu0 %v1900
    %2074 = vmatpush1.msra.mxu0 %v1899
    %2075 = vmatprep.subr.mxu0 0.0
    %2076 = vmatpush1.msra.mxu0 0.0
    %2077 = vmatprep.subr.mxu0 0.0
    %2078 = vmatpush1.msra.mxu0 0.0
    %2079 = vmatprep.subr.mxu0 0.0
    %2080 = vmatpush1.msra.mxu0 0.0
    %2081 = vmatprep.subr.mxu0 0.0
    %2082 = vmatpush1.msra.mxu0 0.0
    %2083 = vmatprep.subr.mxu0 0.0
    %2084 = vmatpush1.msra.mxu0 0.0
    %2085 = vmatprep.subr.mxu0 0.0
    %2086 = vmatpush1.msra.mxu0 0.0
    %2087 = vmatprep.subr.mxu0 0.0
    %2088 = vmatpush1.msra.mxu0 0.0
    %2089 = vmatprep.subr.mxu0 0.0
    %2090 = vmatpush1.msra.mxu0 0.0
    %2091 = vmatprep.subr.mxu0 0.0
    %2092 = vmatpush1.msra.mxu0 0.0
    %2093 = vmatprep.subr.mxu0 0.0
    %2094 = vmatpush1.msra.mxu0 0.0
    %2095 = vmatprep.subr.mxu0 0.0
    %2096 = vmatpush1.msra.mxu0 0.0
    %2097 = vmatprep.subr.mxu0 0.0
    %2098 = vmatpush1.msra.mxu0 0.0
    %2099 = vmatprep.subr.mxu0 0.0
    %2100 = vmatpush1.msra.mxu0 0.0
    %2101 = vmatprep.subr.mxu0 0.0
    %2102 = vmatpush1.msra.mxu0 0.0
    %2103 = vmatprep.subr.mxu0 0.0
    %2104 = vmatpush1.msra.mxu0 0.0
    %2105 = vmatprep.subr.mxu0 0.0
    %2106 = vmatpush1.msra.mxu0 0.0
    %2107 = vmatprep.subr.mxu0 0.0
    %2108 = vmatpush1.msra.mxu0 0.0
    %2109 = vmatprep.subr.mxu0 0.0
    %2110 = vmatpush1.msra.mxu0 0.0
    %2111 = vmatprep.subr.mxu0 0.0
    %2112 = vmatpush1.msra.mxu0 0.0
    %2113 = vmatprep.subr.mxu0 0.0
    %2114 = vmatpush1.msra.mxu0 0.0
    %2115 = vmatprep.subr.mxu0 0.0
    %2116 = vmatpush1.msra.mxu0 0.0
    %2117 = vmatprep.subr.mxu0 0.0
    %2118 = vmatpush1.msra.mxu0 0.0
    %2119 = vmatprep.subr.mxu0 0.0
    %2120 = vmatpush1.msra.mxu0 0.0
    %2121 = vmatprep.subr.mxu0 0.0
    %2122 = vmatpush1.msra.mxu0 0.0
    %2123 = vmatprep.mubr.f32.mxu0 0.0
    %2124 = vmatmul.mubr.f32.gmra.mrb[0].mxu0 %v2048
    %v2125 = vpop.f32.mrb[0].mxu0
    %v2126 = vadd.f32 0.0, %v2125
    %v2127 = vpop.f32.mrb[0].mxu0
    %v2128 = vadd.f32 0.0, %v2127
    %2129 = vmatprep.mubr.f32.mxu0 0.0
    %2130 = vmatmul.mubr.f32.gmra.mrb[0].mxu0 %v2051
    %v2131 = vpop.f32.mrb[0].mxu0
    %v2132 = vadd.f32 0.0, %v2131
    %v2133 = vpop.f32.mrb[0].mxu0
    %v2134 = vadd.f32 0.0, %v2133
    %2135 = vmatprep.mubr.f32.mxu0 0.0
    %2136 = vmatmul.mubr.f32.gmra.mrb[0].mxu0 %v2054
    %v2137 = vpop.f32.mrb[0].mxu0
    %v2138 = vadd.f32 0.0, %v2137
    %v2139 = vpop.f32.mrb[0].mxu0
    %v2140 = vadd.f32 0.0, %v2139
    %2141 = vmatprep.mubr.f32.mxu0 0.0
    %2142 = vmatmul.mubr.f32.gmra.mrb[0].mxu0 %v2057
    %v2143 = vpop.f32.mrb[0].mxu0
    %v2144 = vadd.f32 0.0, %v2143
    %v2145 = vpop.f32.mrb[0].mxu0
    %v2146 = vadd.f32 0.0, %v2145
    %2147 = vdwg.mxu0
    %v2148 = vpack.c.bf16 %v2132, %v2126
    %v2149 = vpack.c.bf16 %v2134, %v2128
    %v2150 = vpack.c.bf16 %v2144, %v2138
    %v2151 = vpack.c.bf16 %v2146, %v2140
    %s2152 = scalar_lea.vmem %s9, 256
    %v2153 = vld [vmem:[%s2152] sm:$0xff]
    %v2154 = vld [vmem:[%s2152 + $0x8] sm:$0xff]
    %v2155 = vld [vmem:[%s2152 + $0x10] sm:$0xff]
    %v2156 = vld [vmem:[%s2152 + $0x18] sm:$0xff]
    %v2157 = vld [vmem:[%s2152 + $0x20] sm:$0xff]
    %v2158 = vld [vmem:[%s2152 + $0x28] sm:$0xff]
    %v2159 = vld [vmem:[%s2152 + $0x30] sm:$0xff]
    %v2160 = vld [vmem:[%s2152 + $0x38] sm:$0xff]
    %v2161 = vld [vmem:[%s2152 + $0x40] sm:$0xff]
    %v2162 = vld [vmem:[%s2152 + $0x48] sm:$0xff]
    %v2163 = vld [vmem:[%s2152 + $0x50] sm:$0xff]
    %v2164 = vld [vmem:[%s2152 + $0x58] sm:$0xff]
    %v2165 = vld [vmem:[%s2152 + $0x60] sm:$0xff]
    %v2166 = vld [vmem:[%s2152 + $0x68] sm:$0xff]
    %v2167 = vld [vmem:[%s2152 + $0x70] sm:$0xff]
    %v2168 = vld [vmem:[%s2152 + $0x78] sm:$0xff]
    %v2169 = vld [vmem:[%s2152 + $0x80] sm:$0xff]
    %v2170 = vld [vmem:[%s2152 + $0x88] sm:$0xff]
    %v2171 = vld [vmem:[%s2152 + $0x90] sm:$0xff]
    %v2172 = vld [vmem:[%s2152 + $0x98] sm:$0xff]
    %v2173 = vld [vmem:[%s2152 + $0xa0] sm:$0xff]
    %v2174 = vld [vmem:[%s2152 + $0xa8] sm:$0xff]
    %v2175 = vld [vmem:[%s2152 + $0xb0] sm:$0xff]
    %v2176 = vld [vmem:[%s2152 + $0xb8] sm:$0xff]
    %v2177 = vld [vmem:[%s2152 + $0xc0] sm:$0xff]
    %v2178 = vld [vmem:[%s2152 + $0xc8] sm:$0xff]
    %v2179 = vld [vmem:[%s2152 + $0xd0] sm:$0xff]
    %v2180 = vld [vmem:[%s2152 + $0xd8] sm:$0xff]
    %v2181 = vld [vmem:[%s2152 + $0xe0] sm:$0xff]
    %v2182 = vld [vmem:[%s2152 + $0xe8] sm:$0xff]
    %v2183 = vld [vmem:[%s2152 + $0xf0] sm:$0xff]
    %v2184 = vld [vmem:[%s2152 + $0xf8] sm:$0xff]
    %v2217 = vunpack.c.l.b16 %v2153
    %v2218 = vunpack.c.h.b16 %v2153
    %v2219 = vunpack.c.l.b16 %v2154
    %v2220 = vunpack.c.h.b16 %v2154
    %v2221 = vunpack.c.l.b16 %v2155
    %v2222 = vunpack.c.h.b16 %v2155
    %v2223 = vunpack.c.l.b16 %v2156
    %v2224 = vunpack.c.h.b16 %v2156
    %v2225 = vunpack.c.l.b16 %v2157
    %v2226 = vunpack.c.h.b16 %v2157
    %v2227 = vunpack.c.l.b16 %v2158
    %v2228 = vunpack.c.h.b16 %v2158
    %v2229 = vunpack.c.l.b16 %v2159
    %v2230 = vunpack.c.h.b16 %v2159
    %v2231 = vunpack.c.l.b16 %v2160
    %v2232 = vunpack.c.h.b16 %v2160
    %v2233 = vunpack.c.l.b16 %v2161
    %v2234 = vunpack.c.h.b16 %v2161
    %v2235 = vunpack.c.l.b16 %v2162
    %v2236 = vunpack.c.h.b16 %v2162
    %v2237 = vunpack.c.l.b16 %v2163
    %v2238 = vunpack.c.h.b16 %v2163
    %v2239 = vunpack.c.l.b16 %v2164
    %v2240 = vunpack.c.h.b16 %v2164
    %v2241 = vunpack.c.l.b16 %v2165
    %v2242 = vunpack.c.h.b16 %v2165
    %v2243 = vunpack.c.l.b16 %v2166
    %v2244 = vunpack.c.h.b16 %v2166
    %v2245 = vunpack.c.l.b16 %v2167
    %v2246 = vunpack.c.h.b16 %v2167
    %v2247 = vunpack.c.l.b16 %v2168
    %v2248 = vunpack.c.h.b16 %v2168
    %v2249 = vunpack.c.l.b16 %v2169
    %v2250 = vunpack.c.h.b16 %v2169
    %v2251 = vunpack.c.l.b16 %v2170
    %v2252 = vunpack.c.h.b16 %v2170
    %v2253 = vunpack.c.l.b16 %v2171
    %v2254 = vunpack.c.h.b16 %v2171
    %v2255 = vunpack.c.l.b16 %v2172
    %v2256 = vunpack.c.h.b16 %v2172
    %v2257 = vunpack.c.l.b16 %v2173
    %v2258 = vunpack.c.h.b16 %v2173
    %v2259 = vunpack.c.l.b16 %v2174
    %v2260 = vunpack.c.h.b16 %v2174
    %v2261 = vunpack.c.l.b16 %v2175
    %v2262 = vunpack.c.h.b16 %v2175
    %v2263 = vunpack.c.l.b16 %v2176
    %v2264 = vunpack.c.h.b16 %v2176
    %v2265 = vunpack.c.l.b16 %v2177
    %v2266 = vunpack.c.h.b16 %v2177
    %v2267 = vunpack.c.l.b16 %v2178
    %v2268 = vunpack.c.h.b16 %v2178
    %v2269 = vunpack.c.l.b16 %v2179
    %v2270 = vunpack.c.h.b16 %v2179
    %v2271 = vunpack.c.l.b16 %v2180
    %v2272 = vunpack.c.h.b16 %v2180
    %v2273 = vunpack.c.l.b16 %v2181
    %v2274 = vunpack.c.h.b16 %v2181
    %v2275 = vunpack.c.l.b16 %v2182
    %v2276 = vunpack.c.h.b16 %v2182
    %v2277 = vunpack.c.l.b16 %v2183
    %v2278 = vunpack.c.h.b16 %v2183
    %v2279 = vunpack.c.l.b16 %v2184
    %v2280 = vunpack.c.h.b16 %v2184
    %v2281 = vpack.c.b16 %v2219, %v2217
    %v2282 = vpack.c.b16 %v2220, %v2218
    %v2283 = vpack.c.b16 %v2223, %v2221
    %v2284 = vpack.c.b16 %v2224, %v2222
    %v2285 = vpack.c.b16 %v2227, %v2225
    %v2286 = vpack.c.b16 %v2228, %v2226
    %v2287 = vpack.c.b16 %v2231, %v2229
    %v2288 = vpack.c.b16 %v2232, %v2230
    %v2289 = vpack.c.b16 %v2235, %v2233
    %v2290 = vpack.c.b16 %v2236, %v2234
    %v2291 = vpack.c.b16 %v2239, %v2237
    %v2292 = vpack.c.b16 %v2240, %v2238
    %v2293 = vpack.c.b16 %v2243, %v2241
    %v2294 = vpack.c.b16 %v2244, %v2242
    %v2295 = vpack.c.b16 %v2247, %v2245
    %v2296 = vpack.c.b16 %v2248, %v2246
    %v2297 = vpack.c.b16 %v2251, %v2249
    %v2298 = vpack.c.b16 %v2252, %v2250
    %v2299 = vpack.c.b16 %v2255, %v2253
    %v2300 = vpack.c.b16 %v2256, %v2254
    %v2301 = vpack.c.b16 %v2259, %v2257
    %v2302 = vpack.c.b16 %v2260, %v2258
    %v2303 = vpack.c.b16 %v2263, %v2261
    %v2304 = vpack.c.b16 %v2264, %v2262
    %v2305 = vpack.c.b16 %v2267, %v2265
    %v2306 = vpack.c.b16 %v2268, %v2266
    %v2307 = vpack.c.b16 %v2271, %v2269
    %v2308 = vpack.c.b16 %v2272, %v2270
    %v2309 = vpack.c.b16 %v2275, %v2273
    %v2310 = vpack.c.b16 %v2276, %v2274
    %v2311 = vpack.c.b16 %v2279, %v2277
    %v2312 = vpack.c.b16 %v2280, %v2278
    %2345 = vmatprep.subr.bf16.mxu0 %v2282
    %2346 = vmatpush1.bf16.msra.mxu0 %v2281
    %2347 = vmatprep.subr.bf16.mxu0 %v2284
    %2348 = vmatpush1.bf16.msra.mxu0 %v2283
    %2349 = vmatprep.subr.bf16.mxu0 %v2286
    %2350 = vmatpush1.bf16.msra.mxu0 %v2285
    %2351 = vmatprep.subr.bf16.mxu0 %v2288
    %2352 = vmatpush1.bf16.msra.mxu0 %v2287
    %2353 = vmatprep.subr.bf16.mxu0 %v2290
    %2354 = vmatpush1.bf16.msra.mxu0 %v2289
    %2355 = vmatprep.subr.bf16.mxu0 %v2292
    %2356 = vmatpush1.bf16.msra.mxu0 %v2291
    %2357 = vmatprep.subr.bf16.mxu0 %v2294
    %2358 = vmatpush1.bf16.msra.mxu0 %v2293
    %2359 = vmatprep.subr.bf16.mxu0 %v2296
    %2360 = vmatpush1.bf16.msra.mxu0 %v2295
    %2361 = vmatprep.subr.bf16.mxu0 %v2298
    %2362 = vmatpush1.bf16.msra.mxu0 %v2297
    %2363 = vmatprep.subr.bf16.mxu0 %v2300
    %2364 = vmatpush1.bf16.msra.mxu0 %v2299
    %2365 = vmatprep.subr.bf16.mxu0 %v2302
    %2366 = vmatpush1.bf16.msra.mxu0 %v2301
    %2367 = vmatprep.subr.bf16.mxu0 %v2304
    %2368 = vmatpush1.bf16.msra.mxu0 %v2303
    %2369 = vmatprep.subr.bf16.mxu0 %v2306
    %2370 = vmatpush1.bf16.msra.mxu0 %v2305
    %2371 = vmatprep.subr.bf16.mxu0 %v2308
    %2372 = vmatpush1.bf16.msra.mxu0 %v2307
    %2373 = vmatprep.subr.bf16.mxu0 %v2310
    %2374 = vmatpush1.bf16.msra.mxu0 %v2309
    %2375 = vmatprep.subr.bf16.mxu0 %v2312
    %2376 = vmatpush1.bf16.msra.mxu0 %v2311
    %2377 = vmatprep.mubr.bf16.mxu0 %v2149
    %2378 = vmatmul.mubr.bf16.gmra.mrb[0].mxu0 %v2148
    %v2379 = vpop.f32.mrb[0].mxu0
    %v2380 = vadd.f32 0.0, %v2379
    %v2381 = vpop.f32.mrb[0].mxu0
    %v2382 = vadd.f32 0.0, %v2381
    %v2383 = vpop.f32.mrb[0].mxu0
    %v2384 = vadd.f32 0.0, %v2383
    %v2385 = vpop.f32.mrb[0].mxu0
    %v2386 = vadd.f32 0.0, %v2385
    %2387 = vmatprep.mubr.bf16.mxu0 %v2151
    %2388 = vmatmul.mubr.bf16.gmra.mrb[0].mxu0 %v2150
    %v2389 = vpop.f32.mrb[0].mxu0
    %v2390 = vadd.f32 0.0, %v2389
    %v2391 = vpop.f32.mrb[0].mxu0
    %v2392 = vadd.f32 0.0, %v2391
    %v2393 = vpop.f32.mrb[0].mxu0
    %v2394 = vadd.f32 0.0, %v2393
    %v2395 = vpop.f32.mrb[0].mxu0
    %v2396 = vadd.f32 0.0, %v2395
    %2397 = vdwg.mxu0
    %v2430 = vunpack.c.l.b16 %v2010
    %v2431 = vunpack.c.h.b16 %v2010
    %v2432 = vunpack.c.l.b16 %v2011
    %v2433 = vunpack.c.h.b16 %v2011
    %v2434 = vunpack.c.l.b16 %v2012
    %v2435 = vunpack.c.h.b16 %v2012
    %v2436 = vunpack.c.l.b16 %v2013
    %v2437 = vunpack.c.h.b16 %v2013
    %v2438 = vunpack.c.l.b16 %v2014
    %v2439 = vunpack.c.h.b16 %v2014
    %v2440 = vunpack.c.l.b16 %v2015
    %v2441 = vunpack.c.h.b16 %v2015
    %v2442 = vunpack.c.l.b16 %v2016
    %v2443 = vunpack.c.h.b16 %v2016
    %v2444 = vunpack.c.l.b16 %v2017
    %v2445 = vunpack.c.h.b16 %v2017
    %v2446 = vunpack.c.l.b16 %v2018
    %v2447 = vunpack.c.h.b16 %v2018
    %v2448 = vunpack.c.l.b16 %v2019
    %v2449 = vunpack.c.h.b16 %v2019
    %v2450 = vunpack.c.l.b16 %v2020
    %v2451 = vunpack.c.h.b16 %v2020
    %v2452 = vunpack.c.l.b16 %v2021
    %v2453 = vunpack.c.h.b16 %v2021
    %v2454 = vunpack.c.l.b16 %v2022
    %v2455 = vunpack.c.h.b16 %v2022
    %v2456 = vunpack.c.l.b16 %v2023
    %v2457 = vunpack.c.h.b16 %v2023
    %v2458 = vunpack.c.l.b16 %v2024
    %v2459 = vunpack.c.h.b16 %v2024
    %v2460 = vunpack.c.l.b16 %v2025
    %v2461 = vunpack.c.h.b16 %v2025
    %v2462 = vunpack.c.l.b16 %v2026
    %v2463 = vunpack.c.h.b16 %v2026
    %v2464 = vunpack.c.l.b16 %v2027
    %v2465 = vunpack.c.h.b16 %v2027
    %v2466 = vunpack.c.l.b16 %v2028
    %v2467 = vunpack.c.h.b16 %v2028
    %v2468 = vunpack.c.l.b16 %v2029
    %v2469 = vunpack.c.h.b16 %v2029
    %v2470 = vunpack.c.l.b16 %v2030
    %v2471 = vunpack.c.h.b16 %v2030
    %v2472 = vunpack.c.l.b16 %v2031
    %v2473 = vunpack.c.h.b16 %v2031
    %v2474 = vunpack.c.l.b16 %v2032
    %v2475 = vunpack.c.h.b16 %v2032
    %v2476 = vunpack.c.l.b16 %v2033
    %v2477 = vunpack.c.h.b16 %v2033
    %v2478 = vunpack.c.l.b16 %v2034
    %v2479 = vunpack.c.h.b16 %v2034
    %v2480 = vunpack.c.l.b16 %v2035
    %v2481 = vunpack.c.h.b16 %v2035
    %v2482 = vunpack.c.l.b16 %v2036
    %v2483 = vunpack.c.h.b16 %v2036
    %v2484 = vunpack.c.l.b16 %v2037
    %v2485 = vunpack.c.h.b16 %v2037
    %v2486 = vunpack.c.l.b16 %v2038
    %v2487 = vunpack.c.h.b16 %v2038
    %v2488 = vunpack.c.l.b16 %v2039
    %v2489 = vunpack.c.h.b16 %v2039
    %v2490 = vunpack.c.l.b16 %v2040
    %v2491 = vunpack.c.h.b16 %v2040
    %v2492 = vunpack.c.l.b16 %v2041
    %v2493 = vunpack.c.h.b16 %v2041
    %v2494 = vpack.c.b16 %v2432, %v2430
    %v2495 = vpack.c.b16 %v2433, %v2431
    %v2496 = vpack.c.b16 %v2436, %v2434
    %v2497 = vpack.c.b16 %v2437, %v2435
    %v2498 = vpack.c.b16 %v2440, %v2438
    %v2499 = vpack.c.b16 %v2441, %v2439
    %v2500 = vpack.c.b16 %v2444, %v2442
    %v2501 = vpack.c.b16 %v2445, %v2443
    %v2502 = vpack.c.b16 %v2448, %v2446
    %v2503 = vpack.c.b16 %v2449, %v2447
    %v2504 = vpack.c.b16 %v2452, %v2450
    %v2505 = vpack.c.b16 %v2453, %v2451
    %v2506 = vpack.c.b16 %v2456, %v2454
    %v2507 = vpack.c.b16 %v2457, %v2455
    %v2508 = vpack.c.b16 %v2460, %v2458
    %v2509 = vpack.c.b16 %v2461, %v2459
    %v2510 = vpack.c.b16 %v2464, %v2462
    %v2511 = vpack.c.b16 %v2465, %v2463
    %v2512 = vpack.c.b16 %v2468, %v2466
    %v2513 = vpack.c.b16 %v2469, %v2467
    %v2514 = vpack.c.b16 %v2472, %v2470
    %v2515 = vpack.c.b16 %v2473, %v2471
    %v2516 = vpack.c.b16 %v2476, %v2474
    %v2517 = vpack.c.b16 %v2477, %v2475
    %v2518 = vpack.c.b16 %v2480, %v2478
    %v2519 = vpack.c.b16 %v2481, %v2479
    %v2520 = vpack.c.b16 %v2484, %v2482
    %v2521 = vpack.c.b16 %v2485, %v2483
    %v2522 = vpack.c.b16 %v2488, %v2486
    %v2523 = vpack.c.b16 %v2489, %v2487
    %v2524 = vpack.c.b16 %v2492, %v2490
    %v2525 = vpack.c.b16 %v2493, %v2491
    %2558 = vmatprep.subr.bf16.mxu0 %v2495
    %2559 = vmatpush1.bf16.msra.mxu0 %v2494
    %2560 = vmatprep.subr.bf16.mxu0 %v2497
    %2561 = vmatpush1.bf16.msra.mxu0 %v2496
    %2562 = vmatprep.subr.bf16.mxu0 %v2499
    %2563 = vmatpush1.bf16.msra.mxu0 %v2498
    %2564 = vmatprep.subr.bf16.mxu0 %v2501
    %2565 = vmatpush1.bf16.msra.mxu0 %v2500
    %2566 = vmatprep.subr.bf16.mxu0 %v2503
    %2567 = vmatpush1.bf16.msra.mxu0 %v2502
    %2568 = vmatprep.subr.bf16.mxu0 %v2505
    %2569 = vmatpush1.bf16.msra.mxu0 %v2504
    %2570 = vmatprep.subr.bf16.mxu0 %v2507
    %2571 = vmatpush1.bf16.msra.mxu0 %v2506
    %2572 = vmatprep.subr.bf16.mxu0 %v2509
    %2573 = vmatpush1.bf16.msra.mxu0 %v2508
    %2574 = vmatprep.subr.bf16.mxu0 %v2511
    %2575 = vmatpush1.bf16.msra.mxu0 %v2510
    %2576 = vmatprep.subr.bf16.mxu0 %v2513
    %2577 = vmatpush1.bf16.msra.mxu0 %v2512
    %2578 = vmatprep.subr.bf16.mxu0 %v2515
    %2579 = vmatpush1.bf16.msra.mxu0 %v2514
    %2580 = vmatprep.subr.bf16.mxu0 %v2517
    %2581 = vmatpush1.bf16.msra.mxu0 %v2516
    %2582 = vmatprep.subr.bf16.mxu0 %v2519
    %2583 = vmatpush1.bf16.msra.mxu0 %v2518
    %2584 = vmatprep.subr.bf16.mxu0 %v2521
    %2585 = vmatpush1.bf16.msra.mxu0 %v2520
    %2586 = vmatprep.subr.bf16.mxu0 %v2523
    %2587 = vmatpush1.bf16.msra.mxu0 %v2522
    %2588 = vmatprep.subr.bf16.mxu0 %v2525
    %2589 = vmatpush1.bf16.msra.mxu0 %v2524
    %2590 = vmatprep.mubr.bf16.mxu0 %v2007
    %2591 = vmatmul.mubr.bf16.gmra.mrb[0].mxu0 %v2006
    %v2592 = vpop.f32.mrb[0].mxu0
    %v2593 = vadd.f32 %v2380, %v2592
    %v2594 = vpop.f32.mrb[0].mxu0
    %v2595 = vadd.f32 %v2382, %v2594
    %v2596 = vpop.f32.mrb[0].mxu0
    %v2597 = vadd.f32 %v2384, %v2596
    %v2598 = vpop.f32.mrb[0].mxu0
    %v2599 = vadd.f32 %v2386, %v2598
    %2600 = vmatprep.mubr.bf16.mxu0 %v2009
    %2601 = vmatmul.mubr.bf16.gmra.mrb[0].mxu0 %v2008
    %v2602 = vpop.f32.mrb[0].mxu0
    %v2603 = vadd.f32 %v2390, %v2602
    %v2604 = vpop.f32.mrb[0].mxu0
    %v2605 = vadd.f32 %v2392, %v2604
    %v2606 = vpop.f32.mrb[0].mxu0
    %v2607 = vadd.f32 %v2394, %v2606
    %v2608 = vpop.f32.mrb[0].mxu0
    %v2609 = vadd.f32 %v2396, %v2608
    %2610 = vdwg.mxu0
    %s2611 = scalar_lea.vmem [#allocation6], 64
    %v2612 = vld [vmem:[%s2611] sm:$0xff]
    %v2613 = vld [vmem:[%s2611 + $0x8] sm:$0xff]
    %v2614 = vld [vmem:[%s2611 + $0x10] sm:$0xff]
    %v2615 = vld [vmem:[%s2611 + $0x18] sm:$0xff]
    %v2617 = vsel %vm826, %v2612, 0
    %v2620 = vsel %vm826, %v2613, 0
    %v2623 = vsel %vm826, %v2614, 0
    %v2626 = vsel %vm826, %v2615, 0
    %2628 = vmatprep.subr.mxu0 %v1886
    %2629 = vmatpush1.msra.mxu0 %v1885
    %2630 = vmatprep.subr.mxu0 %v1888
    %2631 = vmatpush1.msra.mxu0 %v1887
    %2632 = vmatprep.subr.mxu0 %v1890
    %2633 = vmatpush1.msra.mxu0 %v1889
    %2634 = vmatprep.subr.mxu0 %v1892
    %2635 = vmatpush1.msra.mxu0 %v1891
    %2636 = vmatprep.subr.mxu0 %v1894
    %2637 = vmatpush1.msra.mxu0 %v1893
    %2638 = vmatprep.subr.mxu0 %v1896
    %2639 = vmatpush1.msra.mxu0 %v1895
    %2640 = vmatprep.subr.mxu0 %v1898
    %2641 = vmatpush1.msra.mxu0 %v1897
    %2642 = vmatprep.subr.mxu0 %v1900
    %2643 = vmatpush1.msra.mxu0 %v1899
    %2644 = vmatprep.subr.mxu0 0.0
    %2645 = vmatpush1.msra.mxu0 0.0
    %2646 = vmatprep.subr.mxu0 0.0
    %2647 = vmatpush1.msra.mxu0 0.0
    %2648 = vmatprep.subr.mxu0 0.0
    %2649 = vmatpush1.msra.mxu0 0.0
    %2650 = vmatprep.subr.mxu0 0.0
    %2651 = vmatpush1.msra.mxu0 0.0
    %2652 = vmatprep.subr.mxu0 0.0
    %2653 = vmatpush1.msra.mxu0 0.0
    %2654 = vmatprep.subr.mxu0 0.0
    %2655 = vmatpush1.msra.mxu0 0.0
    %2656 = vmatprep.subr.mxu0 0.0
    %2657 = vmatpush1.msra.mxu0 0.0
    %2658 = vmatprep.subr.mxu0 0.0
    %2659 = vmatpush1.msra.mxu0 0.0
    %2660 = vmatprep.subr.mxu0 0.0
    %2661 = vmatpush1.msra.mxu0 0.0
    %2662 = vmatprep.subr.mxu0 0.0
    %2663 = vmatpush1.msra.mxu0 0.0
    %2664 = vmatprep.subr.mxu0 0.0
    %2665 = vmatpush1.msra.mxu0 0.0
    %2666 = vmatprep.subr.mxu0 0.0
    %2667 = vmatpush1.msra.mxu0 0.0
    %2668 = vmatprep.subr.mxu0 0.0
    %2669 = vmatpush1.msra.mxu0 0.0
    %2670 = vmatprep.subr.mxu0 0.0
    %2671 = vmatpush1.msra.mxu0 0.0
    %2672 = vmatprep.subr.mxu0 0.0
    %2673 = vmatpush1.msra.mxu0 0.0
    %2674 = vmatprep.subr.mxu0 0.0
    %2675 = vmatpush1.msra.mxu0 0.0
    %2676 = vmatprep.subr.mxu0 0.0
    %2677 = vmatpush1.msra.mxu0 0.0
    %2678 = vmatprep.subr.mxu0 0.0
    %2679 = vmatpush1.msra.mxu0 0.0
    %2680 = vmatprep.subr.mxu0 0.0
    %2681 = vmatpush1.msra.mxu0 0.0
    %2682 = vmatprep.subr.mxu0 0.0
    %2683 = vmatpush1.msra.mxu0 0.0
    %2684 = vmatprep.subr.mxu0 0.0
    %2685 = vmatpush1.msra.mxu0 0.0
    %2686 = vmatprep.subr.mxu0 0.0
    %2687 = vmatpush1.msra.mxu0 0.0
    %2688 = vmatprep.subr.mxu0 0.0
    %2689 = vmatpush1.msra.mxu0 0.0
    %2690 = vmatprep.subr.mxu0 0.0
    %2691 = vmatpush1.msra.mxu0 0.0
    %2692 = vmatprep.mubr.f32.mxu0 0.0
    %2693 = vmatmul.mubr.f32.gmra.mrb[0].mxu0 %v2617
    %v2694 = vpop.f32.mrb[0].mxu0
    %v2695 = vadd.f32 0.0, %v2694
    %v2696 = vpop.f32.mrb[0].mxu0
    %v2697 = vadd.f32 0.0, %v2696
    %2698 = vmatprep.mubr.f32.mxu0 0.0
    %2699 = vmatmul.mubr.f32.gmra.mrb[0].mxu0 %v2620
    %v2700 = vpop.f32.mrb[0].mxu0
    %v2701 = vadd.f32 0.0, %v2700
    %v2702 = vpop.f32.mrb[0].mxu0
    %v2703 = vadd.f32 0.0, %v2702
    %2704 = vmatprep.mubr.f32.mxu0 0.0
    %2705 = vmatmul.mubr.f32.gmra.mrb[0].mxu0 %v2623
    %v2706 = vpop.f32.mrb[0].mxu0
    %v2707 = vadd.f32 0.0, %v2706
    %v2708 = vpop.f32.mrb[0].mxu0
    %v2709 = vadd.f32 0.0, %v2708
    %2710 = vmatprep.mubr.f32.mxu0 0.0
    %2711 = vmatmul.mubr.f32.gmra.mrb[0].mxu0 %v2626
    %v2712 = vpop.f32.mrb[0].mxu0
    %v2713 = vadd.f32 0.0, %v2712
    %v2714 = vpop.f32.mrb[0].mxu0
    %v2715 = vadd.f32 0.0, %v2714
    %2716 = vdwg.mxu0
    %v2717 = vpack.c.bf16 %v2701, %v2695
    %v2718 = vpack.c.bf16 %v2703, %v2697
    %v2719 = vpack.c.bf16 %v2713, %v2707
    %v2720 = vpack.c.bf16 %v2715, %v2709
    %s2721 = scalar_lea.vmem %s9, 512
    %v2722 = vld [vmem:[%s2721] sm:$0xff]
    %v2723 = vld [vmem:[%s2721 + $0x8] sm:$0xff]
    %v2724 = vld [vmem:[%s2721 + $0x10] sm:$0xff]
    %v2725 = vld [vmem:[%s2721 + $0x18] sm:$0xff]
    %v2726 = vld [vmem:[%s2721 + $0x20] sm:$0xff]
    %v2727 = vld [vmem:[%s2721 + $0x28] sm:$0xff]
    %v2728 = vld [vmem:[%s2721 + $0x30] sm:$0xff]
    %v2729 = vld [vmem:[%s2721 + $0x38] sm:$0xff]
    %v2730 = vld [vmem:[%s2721 + $0x40] sm:$0xff]
    %v2731 = vld [vmem:[%s2721 + $0x48] sm:$0xff]
    %v2732 = vld [vmem:[%s2721 + $0x50] sm:$0xff]
    %v2733 = vld [vmem:[%s2721 + $0x58] sm:$0xff]
    %v2734 = vld [vmem:[%s2721 + $0x60] sm:$0xff]
    %v2735 = vld [vmem:[%s2721 + $0x68] sm:$0xff]
    %v2736 = vld [vmem:[%s2721 + $0x70] sm:$0xff]
    %v2737 = vld [vmem:[%s2721 + $0x78] sm:$0xff]
    %v2738 = vld [vmem:[%s2721 + $0x80] sm:$0xff]
    %v2739 = vld [vmem:[%s2721 + $0x88] sm:$0xff]
    %v2740 = vld [vmem:[%s2721 + $0x90] sm:$0xff]
    %v2741 = vld [vmem:[%s2721 + $0x98] sm:$0xff]
    %v2742 = vld [vmem:[%s2721 + $0xa0] sm:$0xff]
    %v2743 = vld [vmem:[%s2721 + $0xa8] sm:$0xff]
    %v2744 = vld [vmem:[%s2721 + $0xb0] sm:$0xff]
    %v2745 = vld [vmem:[%s2721 + $0xb8] sm:$0xff]
    %v2746 = vld [vmem:[%s2721 + $0xc0] sm:$0xff]
    %v2747 = vld [vmem:[%s2721 + $0xc8] sm:$0xff]
    %v2748 = vld [vmem:[%s2721 + $0xd0] sm:$0xff]
    %v2749 = vld [vmem:[%s2721 + $0xd8] sm:$0xff]
    %v2750 = vld [vmem:[%s2721 + $0xe0] sm:$0xff]
    %v2751 = vld [vmem:[%s2721 + $0xe8] sm:$0xff]
    %v2752 = vld [vmem:[%s2721 + $0xf0] sm:$0xff]
    %v2753 = vld [vmem:[%s2721 + $0xf8] sm:$0xff]
    %v2786 = vunpack.c.l.b16 %v2722
    %v2787 = vunpack.c.h.b16 %v2722
    %v2788 = vunpack.c.l.b16 %v2723
    %v2789 = vunpack.c.h.b16 %v2723
    %v2790 = vunpack.c.l.b16 %v2724
    %v2791 = vunpack.c.h.b16 %v2724
    %v2792 = vunpack.c.l.b16 %v2725
    %v2793 = vunpack.c.h.b16 %v2725
    %v2794 = vunpack.c.l.b16 %v2726
    %v2795 = vunpack.c.h.b16 %v2726
    %v2796 = vunpack.c.l.b16 %v2727
    %v2797 = vunpack.c.h.b16 %v2727
    %v2798 = vunpack.c.l.b16 %v2728
    %v2799 = vunpack.c.h.b16 %v2728
    %v2800 = vunpack.c.l.b16 %v2729
    %v2801 = vunpack.c.h.b16 %v2729
    %v2802 = vunpack.c.l.b16 %v2730
    %v2803 = vunpack.c.h.b16 %v2730
    %v2804 = vunpack.c.l.b16 %v2731
    %v2805 = vunpack.c.h.b16 %v2731
    %v2806 = vunpack.c.l.b16 %v2732
    %v2807 = vunpack.c.h.b16 %v2732
    %v2808 = vunpack.c.l.b16 %v2733
    %v2809 = vunpack.c.h.b16 %v2733
    %v2810 = vunpack.c.l.b16 %v2734
    %v2811 = vunpack.c.h.b16 %v2734
    %v2812 = vunpack.c.l.b16 %v2735
    %v2813 = vunpack.c.h.b16 %v2735
    %v2814 = vunpack.c.l.b16 %v2736
    %v2815 = vunpack.c.h.b16 %v2736
    %v2816 = vunpack.c.l.b16 %v2737
    %v2817 = vunpack.c.h.b16 %v2737
    %v2818 = vunpack.c.l.b16 %v2738
    %v2819 = vunpack.c.h.b16 %v2738
    %v2820 = vunpack.c.l.b16 %v2739
    %v2821 = vunpack.c.h.b16 %v2739
    %v2822 = vunpack.c.l.b16 %v2740
    %v2823 = vunpack.c.h.b16 %v2740
    %v2824 = vunpack.c.l.b16 %v2741
    %v2825 = vunpack.c.h.b16 %v2741
    %v2826 = vunpack.c.l.b16 %v2742
    %v2827 = vunpack.c.h.b16 %v2742
    %v2828 = vunpack.c.l.b16 %v2743
    %v2829 = vunpack.c.h.b16 %v2743
    %v2830 = vunpack.c.l.b16 %v2744
    %v2831 = vunpack.c.h.b16 %v2744
    %v2832 = vunpack.c.l.b16 %v2745
    %v2833 = vunpack.c.h.b16 %v2745
    %v2834 = vunpack.c.l.b16 %v2746
    %v2835 = vunpack.c.h.b16 %v2746
    %v2836 = vunpack.c.l.b16 %v2747
    %v2837 = vunpack.c.h.b16 %v2747
    %v2838 = vunpack.c.l.b16 %v2748
    %v2839 = vunpack.c.h.b16 %v2748
    %v2840 = vunpack.c.l.b16 %v2749
    %v2841 = vunpack.c.h.b16 %v2749
    %v2842 = vunpack.c.l.b16 %v2750
    %v2843 = vunpack.c.h.b16 %v2750
    %v2844 = vunpack.c.l.b16 %v2751
    %v2845 = vunpack.c.h.b16 %v2751
    %v2846 = vunpack.c.l.b16 %v2752
    %v2847 = vunpack.c.h.b16 %v2752
    %v2848 = vunpack.c.l.b16 %v2753
    %v2849 = vunpack.c.h.b16 %v2753
    %v2850 = vpack.c.b16 %v2788, %v2786
    %v2851 = vpack.c.b16 %v2789, %v2787
    %v2852 = vpack.c.b16 %v2792, %v2790
    %v2853 = vpack.c.b16 %v2793, %v2791
    %v2854 = vpack.c.b16 %v2796, %v2794
    %v2855 = vpack.c.b16 %v2797, %v2795
    %v2856 = vpack.c.b16 %v2800, %v2798
    %v2857 = vpack.c.b16 %v2801, %v2799
    %v2858 = vpack.c.b16 %v2804, %v2802
    %v2859 = vpack.c.b16 %v2805, %v2803
    %v2860 = vpack.c.b16 %v2808, %v2806
    %v2861 = vpack.c.b16 %v2809, %v2807
    %v2862 = vpack.c.b16 %v2812, %v2810
    %v2863 = vpack.c.b16 %v2813, %v2811
    %v2864 = vpack.c.b16 %v2816, %v2814
    %v2865 = vpack.c.b16 %v2817, %v2815
    %v2866 = vpack.c.b16 %v2820, %v2818
    %v2867 = vpack.c.b16 %v2821, %v2819
    %v2868 = vpack.c.b16 %v2824, %v2822
    %v2869 = vpack.c.b16 %v2825, %v2823
    %v2870 = vpack.c.b16 %v2828, %v2826
    %v2871 = vpack.c.b16 %v2829, %v2827
    %v2872 = vpack.c.b16 %v2832, %v2830
    %v2873 = vpack.c.b16 %v2833, %v2831
    %v2874 = vpack.c.b16 %v2836, %v2834
    %v2875 = vpack.c.b16 %v2837, %v2835
    %v2876 = vpack.c.b16 %v2840, %v2838
    %v2877 = vpack.c.b16 %v2841, %v2839
    %v2878 = vpack.c.b16 %v2844, %v2842
    %v2879 = vpack.c.b16 %v2845, %v2843
    %v2880 = vpack.c.b16 %v2848, %v2846
    %v2881 = vpack.c.b16 %v2849, %v2847
    %2914 = vmatprep.subr.bf16.mxu0 %v2851
    %2915 = vmatpush1.bf16.msra.mxu0 %v2850
    %2916 = vmatprep.subr.bf16.mxu0 %v2853
    %2917 = vmatpush1.bf16.msra.mxu0 %v2852
    %2918 = vmatprep.subr.bf16.mxu0 %v2855
    %2919 = vmatpush1.bf16.msra.mxu0 %v2854
    %2920 = vmatprep.subr.bf16.mxu0 %v2857
    %2921 = vmatpush1.bf16.msra.mxu0 %v2856
    %2922 = vmatprep.subr.bf16.mxu0 %v2859
    %2923 = vmatpush1.bf16.msra.mxu0 %v2858
    %2924 = vmatprep.subr.bf16.mxu0 %v2861
    %2925 = vmatpush1.bf16.msra.mxu0 %v2860
    %2926 = vmatprep.subr.bf16.mxu0 %v2863
    %2927 = vmatpush1.bf16.msra.mxu0 %v2862
    %2928 = vmatprep.subr.bf16.mxu0 %v2865
    %2929 = vmatpush1.bf16.msra.mxu0 %v2864
    %2930 = vmatprep.subr.bf16.mxu0 %v2867
    %2931 = vmatpush1.bf16.msra.mxu0 %v2866
    %2932 = vmatprep.subr.bf16.mxu0 %v2869
    %2933 = vmatpush1.bf16.msra.mxu0 %v2868
    %2934 = vmatprep.subr.bf16.mxu0 %v2871
    %2935 = vmatpush1.bf16.msra.mxu0 %v2870
    %2936 = vmatprep.subr.bf16.mxu0 %v2873
    %2937 = vmatpush1.bf16.msra.mxu0 %v2872
    %2938 = vmatprep.subr.bf16.mxu0 %v2875
    %2939 = vmatpush1.bf16.msra.mxu0 %v2874
    %2940 = vmatprep.subr.bf16.mxu0 %v2877
    %2941 = vmatpush1.bf16.msra.mxu0 %v2876
    %2942 = vmatprep.subr.bf16.mxu0 %v2879
    %2943 = vmatpush1.bf16.msra.mxu0 %v2878
    %2944 = vmatprep.subr.bf16.mxu0 %v2881
    %2945 = vmatpush1.bf16.msra.mxu0 %v2880
    %2946 = vmatprep.mubr.bf16.mxu0 %v2718
    %2947 = vmatmul.mubr.bf16.gmra.mrb[0].mxu0 %v2717
    %v2948 = vpop.f32.mrb[0].mxu0
    %v2949 = vadd.f32 0.0, %v2948
    %v2950 = vpop.f32.mrb[0].mxu0
    %v2951 = vadd.f32 0.0, %v2950
    %v2952 = vpop.f32.mrb[0].mxu0
    %v2953 = vadd.f32 0.0, %v2952
    %v2954 = vpop.f32.mrb[0].mxu0
    %v2955 = vadd.f32 0.0, %v2954
    %2956 = vmatprep.mubr.bf16.mxu0 %v2720
    %2957 = vmatmul.mubr.bf16.gmra.mrb[0].mxu0 %v2719
    %v2958 = vpop.f32.mrb[0].mxu0
    %v2959 = vadd.f32 0.0, %v2958
    %v2960 = vpop.f32.mrb[0].mxu0
    %v2961 = vadd.f32 0.0, %v2960
    %v2962 = vpop.f32.mrb[0].mxu0
    %v2963 = vadd.f32 0.0, %v2962
    %v2964 = vpop.f32.mrb[0].mxu0
    %v2965 = vadd.f32 0.0, %v2964
    %2966 = vdwg.mxu0
    %v2967 = vadd.f32 %v2593, %v2949
    %v2968 = vadd.f32 %v2595, %v2951
    %v2969 = vadd.f32 %v2597, %v2953
    %v2970 = vadd.f32 %v2599, %v2955
    %v2971 = vadd.f32 %v2603, %v2959
    %v2972 = vadd.f32 %v2605, %v2961
    %v2973 = vadd.f32 %v2607, %v2963
    %v2974 = vadd.f32 %v2609, %v2965
    %s2975 = scalar_lea.vmem [#allocation6], 96
    %v2976 = vld [vmem:[%s2975] sm:$0xff]
    %v2977 = vld [vmem:[%s2975 + $0x8] sm:$0xff]
    %v2978 = vld [vmem:[%s2975 + $0x10] sm:$0xff]
    %v2979 = vld [vmem:[%s2975 + $0x18] sm:$0xff]
    %v2981 = vsel %vm826, %v2976, 0
    %v2984 = vsel %vm826, %v2977, 0
    %v2987 = vsel %vm826, %v2978, 0
    %v2990 = vsel %vm826, %v2979, 0
    %2992 = vmatprep.subr.mxu0 %v1886
    %2993 = vmatpush1.msra.mxu0 %v1885
    %2994 = vmatprep.subr.mxu0 %v1888
    %2995 = vmatpush1.msra.mxu0 %v1887
    %2996 = vmatprep.subr.mxu0 %v1890
    %2997 = vmatpush1.msra.mxu0 %v1889
    %2998 = vmatprep.subr.mxu0 %v1892
    %2999 = vmatpush1.msra.mxu0 %v1891
    %3000 = vmatprep.subr.mxu0 %v1894
    %3001 = vmatpush1.msra.mxu0 %v1893
    %3002 = vmatprep.subr.mxu0 %v1896
    %3003 = vmatpush1.msra.mxu0 %v1895
    %3004 = vmatprep.subr.mxu0 %v1898
    %3005 = vmatpush1.msra.mxu0 %v1897
    %3006 = vmatprep.subr.mxu0 %v1900
    %3007 = vmatpush1.msra.mxu0 %v1899
    %3008 = vmatprep.subr.mxu0 0.0
    %3009 = vmatpush1.msra.mxu0 0.0
    %3010 = vmatprep.subr.mxu0 0.0
    %3011 = vmatpush1.msra.mxu0 0.0
    %3012 = vmatprep.subr.mxu0 0.0
    %3013 = vmatpush1.msra.mxu0 0.0
    %3014 = vmatprep.subr.mxu0 0.0
    %3015 = vmatpush1.msra.mxu0 0.0
    %3016 = vmatprep.subr.mxu0 0.0
    %3017 = vmatpush1.msra.mxu0 0.0
    %3018 = vmatprep.subr.mxu0 0.0
    %3019 = vmatpush1.msra.mxu0 0.0
    %3020 = vmatprep.subr.mxu0 0.0
    %3021 = vmatpush1.msra.mxu0 0.0
    %3022 = vmatprep.subr.mxu0 0.0
    %3023 = vmatpush1.msra.mxu0 0.0
    %3024 = vmatprep.subr.mxu0 0.0
    %3025 = vmatpush1.msra.mxu0 0.0
    %3026 = vmatprep.subr.mxu0 0.0
    %3027 = vmatpush1.msra.mxu0 0.0
    %3028 = vmatprep.subr.mxu0 0.0
    %3029 = vmatpush1.msra.mxu0 0.0
    %3030 = vmatprep.subr.mxu0 0.0
    %3031 = vmatpush1.msra.mxu0 0.0
    %3032 = vmatprep.subr.mxu0 0.0
    %3033 = vmatpush1.msra.mxu0 0.0
    %3034 = vmatprep.subr.mxu0 0.0
    %3035 = vmatpush1.msra.mxu0 0.0
    %3036 = vmatprep.subr.mxu0 0.0
    %3037 = vmatpush1.msra.mxu0 0.0
    %3038 = vmatprep.subr.mxu0 0.0
    %3039 = vmatpush1.msra.mxu0 0.0
    %3040 = vmatprep.subr.mxu0 0.0
    %3041 = vmatpush1.msra.mxu0 0.0
    %3042 = vmatprep.subr.mxu0 0.0
    %3043 = vmatpush1.msra.mxu0 0.0
    %3044 = vmatprep.subr.mxu0 0.0
    %3045 = vmatpush1.msra.mxu0 0.0
    %3046 = vmatprep.subr.mxu0 0.0
    %3047 = vmatpush1.msra.mxu0 0.0
    %3048 = vmatprep.subr.mxu0 0.0
    %3049 = vmatpush1.msra.mxu0 0.0
    %3050 = vmatprep.subr.mxu0 0.0
    %3051 = vmatpush1.msra.mxu0 0.0
    %3052 = vmatprep.subr.mxu0 0.0
    %3053 = vmatpush1.msra.mxu0 0.0
    %3054 = vmatprep.subr.mxu0 0.0
    %3055 = vmatpush1.msra.mxu0 0.0
    %3056 = vmatprep.mubr.f32.mxu0 0.0
    %3057 = vmatmul.mubr.f32.gmra.mrb[0].mxu0 %v2981
    %v3058 = vpop.f32.mrb[0].mxu0
    %v3059 = vadd.f32 0.0, %v3058
    %v3060 = vpop.f32.mrb[0].mxu0
    %v3061 = vadd.f32 0.0, %v3060
    %3062 = vmatprep.mubr.f32.mxu0 0.0
    %3063 = vmatmul.mubr.f32.gmra.mrb[0].mxu0 %v2984
    %v3064 = vpop.f32.mrb[0].mxu0
    %v3065 = vadd.f32 0.0, %v3064
    %v3066 = vpop.f32.mrb[0].mxu0
    %v3067 = vadd.f32 0.0, %v3066
    %3068 = vmatprep.mubr.f32.mxu0 0.0
    %3069 = vmatmul.mubr.f32.gmra.mrb[0].mxu0 %v2987
    %v3070 = vpop.f32.mrb[0].mxu0
    %v3071 = vadd.f32 0.0, %v3070
    %v3072 = vpop.f32.mrb[0].mxu0
    %v3073 = vadd.f32 0.0, %v3072
    %3074 = vmatprep.mubr.f32.mxu0 0.0
    %3075 = vmatmul.mubr.f32.gmra.mrb[0].mxu0 %v2990
    %v3076 = vpop.f32.mrb[0].mxu0
    %v3077 = vadd.f32 0.0, %v3076
    %v3078 = vpop.f32.mrb[0].mxu0
    %v3079 = vadd.f32 0.0, %v3078
    %3080 = vdwg.mxu0
    %v3081 = vpack.c.bf16 %v3065, %v3059
    %v3082 = vpack.c.bf16 %v3067, %v3061
    %v3083 = vpack.c.bf16 %v3077, %v3071
    %v3084 = vpack.c.bf16 %v3079, %v3073
    %s3085 = scalar_lea.vmem %s9, 768
    %v3086 = vld [vmem:[%s3085] sm:$0xff]
    %v3087 = vld [vmem:[%s3085 + $0x8] sm:$0xff]
    %v3088 = vld [vmem:[%s3085 + $0x10] sm:$0xff]
    %v3089 = vld [vmem:[%s3085 + $0x18] sm:$0xff]
    %v3090 = vld [vmem:[%s3085 + $0x20] sm:$0xff]
    %v3091 = vld [vmem:[%s3085 + $0x28] sm:$0xff]
    %v3092 = vld [vmem:[%s3085 + $0x30] sm:$0xff]
    %v3093 = vld [vmem:[%s3085 + $0x38] sm:$0xff]
    %v3094 = vld [vmem:[%s3085 + $0x40] sm:$0xff]
    %v3095 = vld [vmem:[%s3085 + $0x48] sm:$0xff]
    %v3096 = vld [vmem:[%s3085 + $0x50] sm:$0xff]
    %v3097 = vld [vmem:[%s3085 + $0x58] sm:$0xff]
    %v3098 = vld [vmem:[%s3085 + $0x60] sm:$0xff]
    %v3099 = vld [vmem:[%s3085 + $0x68] sm:$0xff]
    %v3100 = vld [vmem:[%s3085 + $0x70] sm:$0xff]
    %v3101 = vld [vmem:[%s3085 + $0x78] sm:$0xff]
    %v3102 = vld [vmem:[%s3085 + $0x80] sm:$0xff]
    %v3103 = vld [vmem:[%s3085 + $0x88] sm:$0xff]
    %v3104 = vld [vmem:[%s3085 + $0x90] sm:$0xff]
    %v3105 = vld [vmem:[%s3085 + $0x98] sm:$0xff]
    %v3106 = vld [vmem:[%s3085 + $0xa0] sm:$0xff]
    %v3107 = vld [vmem:[%s3085 + $0xa8] sm:$0xff]
    %v3108 = vld [vmem:[%s3085 + $0xb0] sm:$0xff]
    %v3109 = vld [vmem:[%s3085 + $0xb8] sm:$0xff]
    %v3110 = vld [vmem:[%s3085 + $0xc0] sm:$0xff]
    %v3111 = vld [vmem:[%s3085 + $0xc8] sm:$0xff]
    %v3112 = vld [vmem:[%s3085 + $0xd0] sm:$0xff]
    %v3113 = vld [vmem:[%s3085 + $0xd8] sm:$0xff]
    %v3114 = vld [vmem:[%s3085 + $0xe0] sm:$0xff]
    %v3115 = vld [vmem:[%s3085 + $0xe8] sm:$0xff]
    %v3116 = vld [vmem:[%s3085 + $0xf0] sm:$0xff]
    %v3117 = vld [vmem:[%s3085 + $0xf8] sm:$0xff]
    %v3150 = vunpack.c.l.b16 %v3086
    %v3151 = vunpack.c.h.b16 %v3086
    %v3152 = vunpack.c.l.b16 %v3087
    %v3153 = vunpack.c.h.b16 %v3087
    %v3154 = vunpack.c.l.b16 %v3088
    %v3155 = vunpack.c.h.b16 %v3088
    %v3156 = vunpack.c.l.b16 %v3089
    %v3157 = vunpack.c.h.b16 %v3089
    %v3158 = vunpack.c.l.b16 %v3090
    %v3159 = vunpack.c.h.b16 %v3090
    %v3160 = vunpack.c.l.b16 %v3091
    %v3161 = vunpack.c.h.b16 %v3091
    %v3162 = vunpack.c.l.b16 %v3092
    %v3163 = vunpack.c.h.b16 %v3092
    %v3164 = vunpack.c.l.b16 %v3093
    %v3165 = vunpack.c.h.b16 %v3093
    %v3166 = vunpack.c.l.b16 %v3094
    %v3167 = vunpack.c.h.b16 %v3094
    %v3168 = vunpack.c.l.b16 %v3095
    %v3169 = vunpack.c.h.b16 %v3095
    %v3170 = vunpack.c.l.b16 %v3096
    %v3171 = vunpack.c.h.b16 %v3096
    %v3172 = vunpack.c.l.b16 %v3097
    %v3173 = vunpack.c.h.b16 %v3097
    %v3174 = vunpack.c.l.b16 %v3098
    %v3175 = vunpack.c.h.b16 %v3098
    %v3176 = vunpack.c.l.b16 %v3099
    %v3177 = vunpack.c.h.b16 %v3099
    %v3178 = vunpack.c.l.b16 %v3100
    %v3179 = vunpack.c.h.b16 %v3100
    %v3180 = vunpack.c.l.b16 %v3101
    %v3181 = vunpack.c.h.b16 %v3101
    %v3182 = vunpack.c.l.b16 %v3102
    %v3183 = vunpack.c.h.b16 %v3102
    %v3184 = vunpack.c.l.b16 %v3103
    %v3185 = vunpack.c.h.b16 %v3103
    %v3186 = vunpack.c.l.b16 %v3104
    %v3187 = vunpack.c.h.b16 %v3104
    %v3188 = vunpack.c.l.b16 %v3105
    %v3189 = vunpack.c.h.b16 %v3105
    %v3190 = vunpack.c.l.b16 %v3106
    %v3191 = vunpack.c.h.b16 %v3106
    %v3192 = vunpack.c.l.b16 %v3107
    %v3193 = vunpack.c.h.b16 %v3107
    %v3194 = vunpack.c.l.b16 %v3108
    %v3195 = vunpack.c.h.b16 %v3108
    %v3196 = vunpack.c.l.b16 %v3109
    %v3197 = vunpack.c.h.b16 %v3109
    %v3198 = vunpack.c.l.b16 %v3110
    %v3199 = vunpack.c.h.b16 %v3110
    %v3200 = vunpack.c.l.b16 %v3111
    %v3201 = vunpack.c.h.b16 %v3111
    %v3202 = vunpack.c.l.b16 %v3112
    %v3203 = vunpack.c.h.b16 %v3112
    %v3204 = vunpack.c.l.b16 %v3113
    %v3205 = vunpack.c.h.b16 %v3113
    %v3206 = vunpack.c.l.b16 %v3114
    %v3207 = vunpack.c.h.b16 %v3114
    %v3208 = vunpack.c.l.b16 %v3115
    %v3209 = vunpack.c.h.b16 %v3115
    %v3210 = vunpack.c.l.b16 %v3116
    %v3211 = vunpack.c.h.b16 %v3116
    %v3212 = vunpack.c.l.b16 %v3117
    %v3213 = vunpack.c.h.b16 %v3117
    %v3214 = vpack.c.b16 %v3152, %v3150
    %v3215 = vpack.c.b16 %v3153, %v3151
    %v3216 = vpack.c.b16 %v3156, %v3154
    %v3217 = vpack.c.b16 %v3157, %v3155
    %v3218 = vpack.c.b16 %v3160, %v3158
    %v3219 = vpack.c.b16 %v3161, %v3159
    %v3220 = vpack.c.b16 %v3164, %v3162
    %v3221 = vpack.c.b16 %v3165, %v3163
    %v3222 = vpack.c.b16 %v3168, %v3166
    %v3223 = vpack.c.b16 %v3169, %v3167
    %v3224 = vpack.c.b16 %v3172, %v3170
    %v3225 = vpack.c.b16 %v3173, %v3171
    %v3226 = vpack.c.b16 %v3176, %v3174
    %v3227 = vpack.c.b16 %v3177, %v3175
    %v3228 = vpack.c.b16 %v3180, %v3178
    %v3229 = vpack.c.b16 %v3181, %v3179
    %v3230 = vpack.c.b16 %v3184, %v3182
    %v3231 = vpack.c.b16 %v3185, %v3183
    %v3232 = vpack.c.b16 %v3188, %v3186
    %v3233 = vpack.c.b16 %v3189, %v3187
    %v3234 = vpack.c.b16 %v3192, %v3190
    %v3235 = vpack.c.b16 %v3193, %v3191
    %v3236 = vpack.c.b16 %v3196, %v3194
    %v3237 = vpack.c.b16 %v3197, %v3195
    %v3238 = vpack.c.b16 %v3200, %v3198
    %v3239 = vpack.c.b16 %v3201, %v3199
    %v3240 = vpack.c.b16 %v3204, %v3202
    %v3241 = vpack.c.b16 %v3205, %v3203
    %v3242 = vpack.c.b16 %v3208, %v3206
    %v3243 = vpack.c.b16 %v3209, %v3207
    %v3244 = vpack.c.b16 %v3212, %v3210
    %v3245 = vpack.c.b16 %v3213, %v3211
    %3278 = vmatprep.subr.bf16.mxu0 %v3215
    %3279 = vmatpush1.bf16.msra.mxu0 %v3214
    %3280 = vmatprep.subr.bf16.mxu0 %v3217
    %3281 = vmatpush1.bf16.msra.mxu0 %v3216
    %3282 = vmatprep.subr.bf16.mxu0 %v3219
    %3283 = vmatpush1.bf16.msra.mxu0 %v3218
    %3284 = vmatprep.subr.bf16.mxu0 %v3221
    %3285 = vmatpush1.bf16.msra.mxu0 %v3220
    %3286 = vmatprep.subr.bf16.mxu0 %v3223
    %3287 = vmatpush1.bf16.msra.mxu0 %v3222
    %3288 = vmatprep.subr.bf16.mxu0 %v3225
    %3289 = vmatpush1.bf16.msra.mxu0 %v3224
    %3290 = vmatprep.subr.bf16.mxu0 %v3227
    %3291 = vmatpush1.bf16.msra.mxu0 %v3226
    %3292 = vmatprep.subr.bf16.mxu0 %v3229
    %3293 = vmatpush1.bf16.msra.mxu0 %v3228
    %3294 = vmatprep.subr.bf16.mxu0 %v3231
    %3295 = vmatpush1.bf16.msra.mxu0 %v3230
    %3296 = vmatprep.subr.bf16.mxu0 %v3233
    %3297 = vmatpush1.bf16.msra.mxu0 %v3232
    %3298 = vmatprep.subr.bf16.mxu0 %v3235
    %3299 = vmatpush1.bf16.msra.mxu0 %v3234
    %3300 = vmatprep.subr.bf16.mxu0 %v3237
    %3301 = vmatpush1.bf16.msra.mxu0 %v3236
    %3302 = vmatprep.subr.bf16.mxu0 %v3239
    %3303 = vmatpush1.bf16.msra.mxu0 %v3238
    %3304 = vmatprep.subr.bf16.mxu0 %v3241
    %3305 = vmatpush1.bf16.msra.mxu0 %v3240
    %3306 = vmatprep.subr.bf16.mxu0 %v3243
    %3307 = vmatpush1.bf16.msra.mxu0 %v3242
    %3308 = vmatprep.subr.bf16.mxu0 %v3245
    %3309 = vmatpush1.bf16.msra.mxu0 %v3244
    %3310 = vmatprep.mubr.bf16.mxu0 %v3082
    %3311 = vmatmul.mubr.bf16.gmra.mrb[0].mxu0 %v3081
    %v3312 = vpop.f32.mrb[0].mxu0
    %v3313 = vadd.f32 0.0, %v3312
    %v3314 = vpop.f32.mrb[0].mxu0
    %v3315 = vadd.f32 0.0, %v3314
    %v3316 = vpop.f32.mrb[0].mxu0
    %v3317 = vadd.f32 0.0, %v3316
    %v3318 = vpop.f32.mrb[0].mxu0
    %v3319 = vadd.f32 0.0, %v3318
    %3320 = vmatprep.mubr.bf16.mxu0 %v3084
    %3321 = vmatmul.mubr.bf16.gmra.mrb[0].mxu0 %v3083
    %v3322 = vpop.f32.mrb[0].mxu0
    %v3323 = vadd.f32 0.0, %v3322
    %v3324 = vpop.f32.mrb[0].mxu0
    %v3325 = vadd.f32 0.0, %v3324
    %v3326 = vpop.f32.mrb[0].mxu0
    %v3327 = vadd.f32 0.0, %v3326
    %v3328 = vpop.f32.mrb[0].mxu0
    %v3329 = vadd.f32 0.0, %v3328
    %3330 = vdwg.mxu0
    %v3331 = vadd.f32 %v2967, %v3313
    %v3332 = vadd.f32 %v2968, %v3315
    %v3333 = vadd.f32 %v2969, %v3317
    %v3334 = vadd.f32 %v2970, %v3319
    %v3335 = vadd.f32 %v2971, %v3323
    %v3336 = vadd.f32 %v2972, %v3325
    %v3337 = vadd.f32 %v2973, %v3327
    %v3338 = vadd.f32 %v2974, %v3329
    %v3339 = vadd.f32 %v3331, %v3333
    %v3340 = vadd.f32 %v3339, %v3335
    %v3341 = vadd.f32 %v3340, %v3337
    %v3342 = vrot.slane %v3341, 4
    %v3343 = vadd.f32 %v3341, %v3342
    %v3344 = vrot.slane %v3343, 2
    %v3345 = vadd.f32 %v3343, %v3344
    %v3346 = vrot.slane %v3345, 1
    %v3347 = vadd.f32 %v3345, %v3346
    %v3348 = vadd.f32 %v3332, %v3334
    %v3349 = vadd.f32 %v3348, %v3336
    %v3350 = vadd.f32 %v3349, %v3338
    %v3351 = vrot.slane %v3350, 4
    %v3352 = vadd.f32 %v3350, %v3351
    %v3353 = vrot.slane %v3352, 2
    %v3354 = vadd.f32 %v3352, %v3353
    %v3355 = vrot.slane %v3354, 1
    %v3356 = vadd.f32 %v3354, %v3355
    %v3357 = vmul.f32 %v3331, %v3331
    %v3358 = vmul.f32 %v3332, %v3332
    %v3359 = vmul.f32 %v3333, %v3333
    %v3360 = vmul.f32 %v3334, %v3334
    %v3361 = vmul.f32 %v3335, %v3335
    %v3362 = vmul.f32 %v3336, %v3336
    %v3363 = vmul.f32 %v3337, %v3337
    %v3364 = vmul.f32 %v3338, %v3338
    %v3365 = vadd.f32 %v3357, %v3359
    %v3366 = vadd.f32 %v3365, %v3361
    %v3367 = vadd.f32 %v3366, %v3363
    %v3368 = vrot.slane %v3367, 4
    %v3369 = vadd.f32 %v3367, %v3368
    %v3370 = vrot.slane %v3369, 2
    %v3371 = vadd.f32 %v3369, %v3370
    %v3372 = vrot.slane %v3371, 1
    %v3373 = vadd.f32 %v3371, %v3372
    %v3374 = vadd.f32 %v3358, %v3360
    %v3375 = vadd.f32 %v3374, %v3362
    %v3376 = vadd.f32 %v3375, %v3364
    %v3377 = vrot.slane %v3376, 4
    %v3378 = vadd.f32 %v3376, %v3377
    %v3379 = vrot.slane %v3378, 2
    %v3380 = vadd.f32 %v3378, %v3379
    %v3381 = vrot.slane %v3380, 1
    %v3382 = vadd.f32 %v3380, %v3381
    %v3383 = vld [vmem:[%s11] sm:$0xff]
    %v3384 = vld [vmem:[%s11 + $0x8] sm:$0xff]
    %v3385 = vld [vmem:[%s11 + $0x10] sm:$0xff]
    %v3386 = vld [vmem:[%s11 + $0x18] sm:$0xff]
    %v3387 = vld [vmem:[%s11 + $0x20] sm:$0xff]
    %v3388 = vld [vmem:[%s11 + $0x28] sm:$0xff]
    %v3389 = vld [vmem:[%s11 + $0x30] sm:$0xff]
    %v3390 = vld [vmem:[%s11 + $0x38] sm:$0xff]
    %v3391 = vld [vmem:[%s11 + $0x40] sm:$0xff]
    %v3392 = vld [vmem:[%s11 + $0x48] sm:$0xff]
    %v3393 = vld [vmem:[%s11 + $0x50] sm:$0xff]
    %v3394 = vld [vmem:[%s11 + $0x58] sm:$0xff]
    %v3395 = vld [vmem:[%s11 + $0x60] sm:$0xff]
    %v3396 = vld [vmem:[%s11 + $0x68] sm:$0xff]
    %v3397 = vld [vmem:[%s11 + $0x70] sm:$0xff]
    %v3398 = vld [vmem:[%s11 + $0x78] sm:$0xff]
    %v3399 = vld [vmem:[%s11 + $0x80] sm:$0xff]
    %v3400 = vld [vmem:[%s11 + $0x88] sm:$0xff]
    %v3401 = vld [vmem:[%s11 + $0x90] sm:$0xff]
    %v3402 = vld [vmem:[%s11 + $0x98] sm:$0xff]
    %v3403 = vld [vmem:[%s11 + $0xa0] sm:$0xff]
    %v3404 = vld [vmem:[%s11 + $0xa8] sm:$0xff]
    %v3405 = vld [vmem:[%s11 + $0xb0] sm:$0xff]
    %v3406 = vld [vmem:[%s11 + $0xb8] sm:$0xff]
    %v3407 = vld [vmem:[%s11 + $0xc0] sm:$0xff]
    %v3408 = vld [vmem:[%s11 + $0xc8] sm:$0xff]
    %v3409 = vld [vmem:[%s11 + $0xd0] sm:$0xff]
    %v3410 = vld [vmem:[%s11 + $0xd8] sm:$0xff]
    %v3411 = vld [vmem:[%s11 + $0xe0] sm:$0xff]
    %v3412 = vld [vmem:[%s11 + $0xe8] sm:$0xff]
    %v3413 = vld [vmem:[%s11 + $0xf0] sm:$0xff]
    %v3414 = vld [vmem:[%s11 + $0xf8] sm:$0xff]
    %3415 = vmatprep.subr.mxu0 0.0
    %3416 = vmatpush1.msra.mxu0 %v3383
    %3417 = vmatprep.subr.mxu0 0.0
    %3418 = vmatpush1.msra.mxu0 %v3384
    %3419 = vmatprep.subr.mxu0 0.0
    %3420 = vmatpush1.msra.mxu0 %v3385
    %3421 = vmatprep.subr.mxu0 0.0
    %3422 = vmatpush1.msra.mxu0 %v3386
    %3423 = vmatprep.subr.mxu0 0.0
    %3424 = vmatpush1.msra.mxu0 %v3387
    %3425 = vmatprep.subr.mxu0 0.0
    %3426 = vmatpush1.msra.mxu0 %v3388
    %3427 = vmatprep.subr.mxu0 0.0
    %3428 = vmatpush1.msra.mxu0 %v3389
    %3429 = vmatprep.subr.mxu0 0.0
    %3430 = vmatpush1.msra.mxu0 %v3390
    %3431 = vmatprep.subr.mxu0 0.0
    %3432 = vmatpush1.msra.mxu0 %v3391
    %3433 = vmatprep.subr.mxu0 0.0
    %3434 = vmatpush1.msra.mxu0 %v3392
    %3435 = vmatprep.subr.mxu0 0.0
    %3436 = vmatpush1.msra.mxu0 %v3393
    %3437 = vmatprep.subr.mxu0 0.0
    %3438 = vmatpush1.msra.mxu0 %v3394
    %3439 = vmatprep.subr.mxu0 0.0
    %3440 = vmatpush1.msra.mxu0 %v3395
    %3441 = vmatprep.subr.mxu0 0.0
    %3442 = vmatpush1.msra.mxu0 %v3396
    %3443 = vmatprep.subr.mxu0 0.0
    %3444 = vmatpush1.msra.mxu0 %v3397
    %3445 = vmatprep.subr.mxu0 0.0
    %3446 = vmatpush1.msra.mxu0 %v3398
    %3447 = vmatprep.subr.mxu0 0.0
    %3448 = vmatpush1.msra.mxu0 %v3399
    %3449 = vmatprep.subr.mxu0 0.0
    %3450 = vmatpush1.msra.mxu0 %v3400
    %3451 = vmatprep.subr.mxu0 0.0
    %3452 = vmatpush1.msra.mxu0 %v3401
    %3453 = vmatprep.subr.mxu0 0.0
    %3454 = vmatpush1.msra.mxu0 %v3402
    %3455 = vmatprep.subr.mxu0 0.0
    %3456 = vmatpush1.msra.mxu0 %v3403
    %3457 = vmatprep.subr.mxu0 0.0
    %3458 = vmatpush1.msra.mxu0 %v3404
    %3459 = vmatprep.subr.mxu0 0.0
    %3460 = vmatpush1.msra.mxu0 %v3405
    %3461 = vmatprep.subr.mxu0 0.0
    %3462 = vmatpush1.msra.mxu0 %v3406
    %3463 = vmatprep.subr.mxu0 0.0
    %3464 = vmatpush1.msra.mxu0 %v3407
    %3465 = vmatprep.subr.mxu0 0.0
    %3466 = vmatpush1.msra.mxu0 %v3408
    %3467 = vmatprep.subr.mxu0 0.0
    %3468 = vmatpush1.msra.mxu0 %v3409
    %3469 = vmatprep.subr.mxu0 0.0
    %3470 = vmatpush1.msra.mxu0 %v3410
    %3471 = vmatprep.subr.mxu0 0.0
    %3472 = vmatpush1.msra.mxu0 %v3411
    %3473 = vmatprep.subr.mxu0 0.0
    %3474 = vmatpush1.msra.mxu0 %v3412
    %3475 = vmatprep.subr.mxu0 0.0
    %3476 = vmatpush1.msra.mxu0 %v3413
    %3477 = vmatprep.subr.mxu0 0.0
    %3478 = vmatpush1.msra.mxu0 %v3414
    %3479 = vmatprep.mubr.f32.mxu0 %v3356
    %3480 = vmatmul.mubr.f32.gmra.mrb[0].mxu0 %v3347
    %v3481 = vpop.f32.mrb[0].mxu0
    %v3482 = vadd.f32 0.0, %v3481
    %v3483 = vpop.f32.mrb[0].mxu0
    %3484 = vdwg.mxu0
    %v3485 = vrcp.pop 512.0
    %v3486 = vmul.f32 %v3482, %v3485
    %3487 = vmatprep.subr.mxu0 0.0
    %3488 = vmatpush1.msra.mxu0 %v3383
    %3489 = vmatprep.subr.mxu0 0.0
    %3490 = vmatpush1.msra.mxu0 %v3384
    %3491 = vmatprep.subr.mxu0 0.0
    %3492 = vmatpush1.msra.mxu0 %v3385
    %3493 = vmatprep.subr.mxu0 0.0
    %3494 = vmatpush1.msra.mxu0 %v3386
    %3495 = vmatprep.subr.mxu0 0.0
    %3496 = vmatpush1.msra.mxu0 %v3387
    %3497 = vmatprep.subr.mxu0 0.0
    %3498 = vmatpush1.msra.mxu0 %v3388
    %3499 = vmatprep.subr.mxu0 0.0
    %3500 = vmatpush1.msra.mxu0 %v3389
    %3501 = vmatprep.subr.mxu0 0.0
    %3502 = vmatpush1.msra.mxu0 %v3390
    %3503 = vmatprep.subr.mxu0 0.0
    %3504 = vmatpush1.msra.mxu0 %v3391
    %3505 = vmatprep.subr.mxu0 0.0
    %3506 = vmatpush1.msra.mxu0 %v3392
    %3507 = vmatprep.subr.mxu0 0.0
    %3508 = vmatpush1.msra.mxu0 %v3393
    %3509 = vmatprep.subr.mxu0 0.0
    %3510 = vmatpush1.msra.mxu0 %v3394
    %3511 = vmatprep.subr.mxu0 0.0
    %3512 = vmatpush1.msra.mxu0 %v3395
    %3513 = vmatprep.subr.mxu0 0.0
    %3514 = vmatpush1.msra.mxu0 %v3396
    %3515 = vmatprep.subr.mxu0 0.0
    %3516 = vmatpush1.msra.mxu0 %v3397
    %3517 = vmatprep.subr.mxu0 0.0
    %3518 = vmatpush1.msra.mxu0 %v3398
    %3519 = vmatprep.subr.mxu0 0.0
    %3520 = vmatpush1.msra.mxu0 %v3399
    %3521 = vmatprep.subr.mxu0 0.0
    %3522 = vmatpush1.msra.mxu0 %v3400
    %3523 = vmatprep.subr.mxu0 0.0
    %3524 = vmatpush1.msra.mxu0 %v3401
    %3525 = vmatprep.subr.mxu0 0.0
    %3526 = vmatpush1.msra.mxu0 %v3402
    %3527 = vmatprep.subr.mxu0 0.0
    %3528 = vmatpush1.msra.mxu0 %v3403
    %3529 = vmatprep.subr.mxu0 0.0
    %3530 = vmatpush1.msra.mxu0 %v3404
    %3531 = vmatprep.subr.mxu0 0.0
    %3532 = vmatpush1.msra.mxu0 %v3405
    %3533 = vmatprep.subr.mxu0 0.0
    %3534 = vmatpush1.msra.mxu0 %v3406
    %3535 = vmatprep.subr.mxu0 0.0
    %3536 = vmatpush1.msra.mxu0 %v3407
    %3537 = vmatprep.subr.mxu0 0.0
    %3538 = vmatpush1.msra.mxu0 %v3408
    %3539 = vmatprep.subr.mxu0 0.0
    %3540 = vmatpush1.msra.mxu0 %v3409
    %3541 = vmatprep.subr.mxu0 0.0
    %3542 = vmatpush1.msra.mxu0 %v3410
    %3543 = vmatprep.subr.mxu0 0.0
    %3544 = vmatpush1.msra.mxu0 %v3411
    %3545 = vmatprep.subr.mxu0 0.0
    %3546 = vmatpush1.msra.mxu0 %v3412
    %3547 = vmatprep.subr.mxu0 0.0
    %3548 = vmatpush1.msra.mxu0 %v3413
    %3549 = vmatprep.subr.mxu0 0.0
    %3550 = vmatpush1.msra.mxu0 %v3414
    %3551 = vmatprep.mubr.f32.mxu0 %v3382
    %3552 = vmatmul.mubr.f32.gmra.mrb[0].mxu0 %v3373
    %v3553 = vpop.f32.mrb[0].mxu0
    %v3554 = vadd.f32 0.0, %v3553
    %v3555 = vpop.f32.mrb[0].mxu0
    %3556 = vdwg.mxu0
    %v3557 = vmul.f32 %v3554, %v3485
    %v3558 = vmul.f32 %v3486, %v3486
    %v3559 = vsub.f32 %v3557, %v3558
    %v3560 = vmax.f32 %v3559, 0.0
    %v3561 = vld [vmem:[%s15] sm:$0x1]
    %v3562 = vadd.f32 %v3560, 1e-05
    %v3563 = vrsqrt.pop %v3562
    %v3564 = vmul.f32 %v3561, %v3563
    %v3565 = vld [vmem:[#allocation9] sm:$0x1]
    %v3566 = vmul.f32 %v3486, %v3564
    %v3567 = vsub.f32 %v3565, %v3566
    %v3568 = vld [vmem:[#allocation8] sm:$0xff]
    %v3569 = vld [vmem:[#allocation8 + $0x8] sm:$0xff]
    %v3570 = vld [vmem:[#allocation8 + $0x10] sm:$0xff]
    %v3571 = vld [vmem:[#allocation8 + $0x18] sm:$0xff]
    %vm3572 = vcmask 130048
    %v3574 = vsel %vm3572, %v3564, 0
    %3576 = vmatprep.subr.mxu0 %v3569
    %3577 = vmatpush1.msra.mxu0 %v3568
    %3578 = vmatprep.subr.mxu0 %v3571
    %3579 = vmatpush1.msra.mxu0 %v3570
    %3580 = vmatprep.subr.mxu0 0.0
    %3581 = vmatpush1.msra.mxu0 0.0
    %3582 = vmatprep.subr.mxu0 0.0
    %3583 = vmatpush1.msra.mxu0 0.0
    %3584 = vmatprep.subr.mxu0 0.0
    %3585 = vmatpush1.msra.mxu0 0.0
    %3586 = vmatprep.subr.mxu0 0.0
    %3587 = vmatpush1.msra.mxu0 0.0
    %3588 = vmatprep.subr.mxu0 0.0
    %3589 = vmatpush1.msra.mxu0 0.0
    %3590 = vmatprep.subr.mxu0 0.0
    %3591 = vmatpush1.msra.mxu0 0.0
    %3592 = vmatprep.subr.mxu0 0.0
    %3593 = vmatpush1.msra.mxu0 0.0
    %3594 = vmatprep.subr.mxu0 0.0
    %3595 = vmatpush1.msra.mxu0 0.0
    %3596 = vmatprep.subr.mxu0 0.0
    %3597 = vmatpush1.msra.mxu0 0.0
    %3598 = vmatprep.subr.mxu0 0.0
    %3599 = vmatpush1.msra.mxu0 0.0
    %3600 = vmatprep.subr.mxu0 0.0
    %3601 = vmatpush1.msra.mxu0 0.0
    %3602 = vmatprep.subr.mxu0 0.0
    %3603 = vmatpush1.msra.mxu0 0.0
    %3604 = vmatprep.subr.mxu0 0.0
    %3605 = vmatpush1.msra.mxu0 0.0
    %3606 = vmatprep.subr.mxu0 0.0
    %3607 = vmatpush1.msra.mxu0 0.0
    %3608 = vmatprep.subr.mxu0 0.0
    %3609 = vmatpush1.msra.mxu0 0.0
    %3610 = vmatprep.subr.mxu0 0.0
    %3611 = vmatpush1.msra.mxu0 0.0
    %3612 = vmatprep.subr.mxu0 0.0
    %3613 = vmatpush1.msra.mxu0 0.0
    %3614 = vmatprep.subr.mxu0 0.0
    %3615 = vmatpush1.msra.mxu0 0.0
    %3616 = vmatprep.subr.mxu0 0.0
    %3617 = vmatpush1.msra.mxu0 0.0
    %3618 = vmatprep.subr.mxu0 0.0
    %3619 = vmatpush1.msra.mxu0 0.0
    %3620 = vmatprep.subr.mxu0 0.0
    %3621 = vmatpush1.msra.mxu0 0.0
    %3622 = vmatprep.subr.mxu0 0.0
    %3623 = vmatpush1.msra.mxu0 0.0
    %3624 = vmatprep.subr.mxu0 0.0
    %3625 = vmatpush1.msra.mxu0 0.0
    %3626 = vmatprep.subr.mxu0 0.0
    %3627 = vmatpush1.msra.mxu0 0.0
    %3628 = vmatprep.subr.mxu0 0.0
    %3629 = vmatpush1.msra.mxu0 0.0
    %3630 = vmatprep.subr.mxu0 0.0
    %3631 = vmatpush1.msra.mxu0 0.0
    %3632 = vmatprep.subr.mxu0 0.0
    %3633 = vmatpush1.msra.mxu0 0.0
    %3634 = vmatprep.subr.mxu0 0.0
    %3635 = vmatpush1.msra.mxu0 0.0
    %3636 = vmatprep.subr.mxu0 0.0
    %3637 = vmatpush1.msra.mxu0 0.0
    %3638 = vmatprep.subr.mxu0 0.0
    %3639 = vmatpush1.msra.mxu0 0.0
    %3640 = vmatprep.mubr.f32.mxu0 0.0
    %3641 = vmatmul.mubr.f32.gmra.mrb[0].mxu0 %v3574
    %v3642 = vpop.f32.mrb[0].mxu0
    %v3643 = vadd.f32 0.0, %v3642
    %v3644 = vpop.f32.mrb[0].mxu0
    %v3645 = vadd.f32 0.0, %v3644
    %3646 = vdwg.mxu0
    %v3648 = vsel %vm3572, %v3567, 0
    %3650 = vmatprep.subr.mxu0 %v3569
    %3651 = vmatpush1.msra.mxu0 %v3568
    %3652 = vmatprep.subr.mxu0 %v3571
    %3653 = vmatpush1.msra.mxu0 %v3570
    %3654 = vmatprep.subr.mxu0 0.0
    %3655 = vmatpush1.msra.mxu0 0.0
    %3656 = vmatprep.subr.mxu0 0.0
    %3657 = vmatpush1.msra.mxu0 0.0
    %3658 = vmatprep.subr.mxu0 0.0
    %3659 = vmatpush1.msra.mxu0 0.0
    %3660 = vmatprep.subr.mxu0 0.0
    %3661 = vmatpush1.msra.mxu0 0.0
    %3662 = vmatprep.subr.mxu0 0.0
    %3663 = vmatpush1.msra.mxu0 0.0
    %3664 = vmatprep.subr.mxu0 0.0
    %3665 = vmatpush1.msra.mxu0 0.0
    %3666 = vmatprep.subr.mxu0 0.0
    %3667 = vmatpush1.msra.mxu0 0.0
    %3668 = vmatprep.subr.mxu0 0.0
    %3669 = vmatpush1.msra.mxu0 0.0
    %3670 = vmatprep.subr.mxu0 0.0
    %3671 = vmatpush1.msra.mxu0 0.0
    %3672 = vmatprep.subr.mxu0 0.0
    %3673 = vmatpush1.msra.mxu0 0.0
    %3674 = vmatprep.subr.mxu0 0.0
    %3675 = vmatpush1.msra.mxu0 0.0
    %3676 = vmatprep.subr.mxu0 0.0
    %3677 = vmatpush1.msra.mxu0 0.0
    %3678 = vmatprep.subr.mxu0 0.0
    %3679 = vmatpush1.msra.mxu0 0.0
    %3680 = vmatprep.subr.mxu0 0.0
    %3681 = vmatpush1.msra.mxu0 0.0
    %3682 = vmatprep.subr.mxu0 0.0
    %3683 = vmatpush1.msra.mxu0 0.0
    %3684 = vmatprep.subr.mxu0 0.0
    %3685 = vmatpush1.msra.mxu0 0.0
    %3686 = vmatprep.subr.mxu0 0.0
    %3687 = vmatpush1.msra.mxu0 0.0
    %3688 = vmatprep.subr.mxu0 0.0
    %3689 = vmatpush1.msra.mxu0 0.0
    %3690 = vmatprep.subr.mxu0 0.0
    %3691 = vmatpush1.msra.mxu0 0.0
    %3692 = vmatprep.subr.mxu0 0.0
    %3693 = vmatpush1.msra.mxu0 0.0
    %3694 = vmatprep.subr.mxu0 0.0
    %3695 = vmatpush1.msra.mxu0 0.0
    %3696 = vmatprep.subr.mxu0 0.0
    %3697 = vmatpush1.msra.mxu0 0.0
    %3698 = vmatprep.subr.mxu0 0.0
    %3699 = vmatpush1.msra.mxu0 0.0
    %3700 = vmatprep.subr.mxu0 0.0
    %3701 = vmatpush1.msra.mxu0 0.0
    %3702 = vmatprep.subr.mxu0 0.0
    %3703 = vmatpush1.msra.mxu0 0.0
    %3704 = vmatprep.subr.mxu0 0.0
    %3705 = vmatpush1.msra.mxu0 0.0
    %3706 = vmatprep.subr.mxu0 0.0
    %3707 = vmatpush1.msra.mxu0 0.0
    %3708 = vmatprep.subr.mxu0 0.0
    %3709 = vmatpush1.msra.mxu0 0.0
    %3710 = vmatprep.subr.mxu0 0.0
    %3711 = vmatpush1.msra.mxu0 0.0
    %3712 = vmatprep.subr.mxu0 0.0
    %3713 = vmatpush1.msra.mxu0 0.0
    %3714 = vmatprep.mubr.f32.mxu0 0.0
    %3715 = vmatmul.mubr.f32.gmra.mrb[0].mxu0 %v3648
    %v3716 = vpop.f32.mrb[0].mxu0
    %v3717 = vadd.f32 0.0, %v3716
    %v3718 = vpop.f32.mrb[0].mxu0
    %v3719 = vadd.f32 0.0, %v3718
    %3720 = vdwg.mxu0
    %v3721 = vlaneseq
    %v3722 = vshrl.u32 %v3721, 7
    %v3723 = vsub.s32 0, %v3722
    %v3724 = vrot.slane %v3643, %v3723
    %v3725 = vlaneseq
    %v3726 = vshrl.u32 %v3725, 7
    %v3727 = vsub.s32 0, %v3726
    %v3728 = vrot.slane %v3645, %v3727
    %v3729 = vmul.f32 %v3331, %v3724
    %v3730 = vmul.f32 %v3332, %v3728
    %v3731 = vmul.f32 %v3333, %v3724
    %v3732 = vmul.f32 %v3334, %v3728
    %v3733 = vmul.f32 %v3335, %v3724
    %v3734 = vmul.f32 %v3336, %v3728
    %v3735 = vmul.f32 %v3337, %v3724
    %v3736 = vmul.f32 %v3338, %v3728
    %v3737 = vlaneseq
    %v3738 = vshrl.u32 %v3737, 7
    %v3739 = vsub.s32 0, %v3738
    %v3740 = vrot.slane %v3717, %v3739
    %v3741 = vlaneseq
    %v3742 = vshrl.u32 %v3741, 7
    %v3743 = vsub.s32 0, %v3742
    %v3744 = vrot.slane %v3719, %v3743
    %v3745 = vadd.f32 %v3729, %v3740
    %v3746 = vadd.f32 %v3730, %v3744
    %v3747 = vadd.f32 %v3731, %v3740
    %v3748 = vadd.f32 %v3732, %v3744
    %v3749 = vadd.f32 %v3733, %v3740
    %v3750 = vadd.f32 %v3734, %v3744
    %v3751 = vadd.f32 %v3735, %v3740
    %v3752 = vadd.f32 %v3736, %v3744
    %v3753 = vmul.f32 %v3745, 0.2
    %v3754 = vmul.f32 %v3746, 0.2
    %v3755 = vmul.f32 %v3747, 0.2
    %v3756 = vmul.f32 %v3748, 0.2
    %v3757 = vmul.f32 %v3749, 0.2
    %v3758 = vmul.f32 %v3750, 0.2
    %v3759 = vmul.f32 %v3751, 0.2
    %v3760 = vmul.f32 %v3752, 0.2
    %v3761 = vmax.f32 %v3745, %v3753
    %v3762 = vmax.f32 %v3746, %v3754
    %v3763 = vmax.f32 %v3747, %v3755
    %v3764 = vmax.f32 %v3748, %v3756
    %v3765 = vmax.f32 %v3749, %v3757
    %v3766 = vmax.f32 %v3750, %v3758
    %v3767 = vmax.f32 %v3751, %v3759
    %v3768 = vmax.f32 %v3752, %v3760
    %v3769 = vld [vmem:[%s19] sm:$0xff]
    %v3770 = vld [vmem:[%s19 + $0x8] sm:$0xff]
    %vm3771 = vcmask 261120
    %v3773 = vsel %vm3771, %v3769, 0
    %v3776 = vsel %vm3771, %v3770, 0
    %3778 = vmatprep.subr.mxu0 %v3762
    %3779 = vmatpush1.msra.mxu0 %v3761
    %3780 = vmatprep.subr.mxu0 %v3764
    %3781 = vmatpush1.msra.mxu0 %v3763
    %3782 = vmatprep.subr.mxu0 %v3766
    %3783 = vmatpush1.msra.mxu0 %v3765
    %3784 = vmatprep.subr.mxu0 %v3768
    %3785 = vmatpush1.msra.mxu0 %v3767
    %3786 = vmatprep.subr.mxu0 0.0
    %3787 = vmatpush1.msra.mxu0 0.0
    %3788 = vmatprep.subr.mxu0 0.0
    %3789 = vmatpush1.msra.mxu0 0.0
    %3790 = vmatprep.subr.mxu0 0.0
    %3791 = vmatpush1.msra.mxu0 0.0
    %3792 = vmatprep.subr.mxu0 0.0
    %3793 = vmatpush1.msra.mxu0 0.0
    %3794 = vmatprep.subr.mxu0 0.0
    %3795 = vmatpush1.msra.mxu0 0.0
    %3796 = vmatprep.subr.mxu0 0.0
    %3797 = vmatpush1.msra.mxu0 0.0
    %3798 = vmatprep.subr.mxu0 0.0
    %3799 = vmatpush1.msra.mxu0 0.0
    %3800 = vmatprep.subr.mxu0 0.0
    %3801 = vmatpush1.msra.mxu0 0.0
    %3802 = vmatprep.subr.mxu0 0.0
    %3803 = vmatpush1.msra.mxu0 0.0
    %3804 = vmatprep.subr.mxu0 0.0
    %3805 = vmatpush1.msra.mxu0 0.0
    %3806 = vmatprep.subr.mxu0 0.0
    %3807 = vmatpush1.msra.mxu0 0.0
    %3808 = vmatprep.subr.mxu0 0.0
    %3809 = vmatpush1.msra.mxu0 0.0
    %3810 = vmatprep.subr.mxu0 0.0
    %3811 = vmatpush1.msra.mxu0 0.0
    %3812 = vmatprep.subr.mxu0 0.0
    %3813 = vmatpush1.msra.mxu0 0.0
    %3814 = vmatprep.subr.mxu0 0.0
    %3815 = vmatpush1.msra.mxu0 0.0
    %3816 = vmatprep.subr.mxu0 0.0
    %3817 = vmatpush1.msra.mxu0 0.0
    %3818 = vmatprep.subr.mxu0 0.0
    %3819 = vmatpush1.msra.mxu0 0.0
    %3820 = vmatprep.subr.mxu0 0.0
    %3821 = vmatpush1.msra.mxu0 0.0
    %3822 = vmatprep.subr.mxu0 0.0
    %3823 = vmatpush1.msra.mxu0 0.0
    %3824 = vmatprep.subr.mxu0 0.0
    %3825 = vmatpush1.msra.mxu0 0.0
    %3826 = vmatprep.subr.mxu0 0.0
    %3827 = vmatpush1.msra.mxu0 0.0
    %3828 = vmatprep.subr.mxu0 0.0
    %3829 = vmatpush1.msra.mxu0 0.0
    %3830 = vmatprep.subr.mxu0 0.0
    %3831 = vmatpush1.msra.mxu0 0.0
    %3832 = vmatprep.subr.mxu0 0.0
    %3833 = vmatpush1.msra.mxu0 0.0
    %3834 = vmatprep.subr.mxu0 0.0
    %3835 = vmatpush1.msra.mxu0 0.0
    %3836 = vmatprep.subr.mxu0 0.0
    %3837 = vmatpush1.msra.mxu0 0.0
    %3838 = vmatprep.subr.mxu0 0.0
    %3839 = vmatpush1.msra.mxu0 0.0
    %3840 = vmatprep.subr.mxu0 0.0
    %3841 = vmatpush1.msra.mxu0 0.0
    %3842 = vmatprep.mubr.f32.mxu0 0.0
    %3843 = vmatmul.mubr.f32.gmra.mrb[0].mxu0 %v3773
    %v3844 = vpop.f32.mrb[0].mxu0
    %v3845 = vadd.f32 0.0, %v3844
    %v3846 = vpop.f32.mrb[0].mxu0
    %v3847 = vadd.f32 0.0, %v3846
    %3848 = vmatprep.mubr.f32.mxu0 0.0
    %3849 = vmatmul.mubr.f32.gmra.mrb[0].mxu0 %v3776
    %v3850 = vpop.f32.mrb[0].mxu0
    %v3851 = vadd.f32 0.0, %v3850
    %v3852 = vpop.f32.mrb[0].mxu0
    %v3853 = vadd.f32 0.0, %v3852
    %3854 = vdwg.mxu0
    %v3855 = vpack.c.bf16 %v3851, %v3845
    %v3856 = vpack.c.bf16 %v3853, %v3847
    %v3857 = vld [vmem:[%s21] sm:$0xff]
    %v3858 = vld [vmem:[%s21 + $0x8] sm:$0xff]
    %v3859 = vld [vmem:[%s21 + $0x10] sm:$0xff]
    %v3860 = vld [vmem:[%s21 + $0x18] sm:$0xff]
    %v3861 = vld [vmem:[%s21 + $0x20] sm:$0xff]
    %v3862 = vld [vmem:[%s21 + $0x28] sm:$0xff]
    %v3863 = vld [vmem:[%s21 + $0x30] sm:$0xff]
    %v3864 = vld [vmem:[%s21 + $0x38] sm:$0xff]
    %v3865 = vld [vmem:[%s21 + $0x40] sm:$0xff]
    %v3866 = vld [vmem:[%s21 + $0x48] sm:$0xff]
    %v3867 = vld [vmem:[%s21 + $0x50] sm:$0xff]
    %v3868 = vld [vmem:[%s21 + $0x58] sm:$0xff]
    %v3869 = vld [vmem:[%s21 + $0x60] sm:$0xff]
    %v3870 = vld [vmem:[%s21 + $0x68] sm:$0xff]
    %v3871 = vld [vmem:[%s21 + $0x70] sm:$0xff]
    %v3872 = vld [vmem:[%s21 + $0x78] sm:$0xff]
    %v3873 = vld [vmem:[%s21 + $0x80] sm:$0xff]
    %v3874 = vld [vmem:[%s21 + $0x88] sm:$0xff]
    %v3875 = vld [vmem:[%s21 + $0x90] sm:$0xff]
    %v3876 = vld [vmem:[%s21 + $0x98] sm:$0xff]
    %v3877 = vld [vmem:[%s21 + $0xa0] sm:$0xff]
    %v3878 = vld [vmem:[%s21 + $0xa8] sm:$0xff]
    %v3879 = vld [vmem:[%s21 + $0xb0] sm:$0xff]
    %v3880 = vld [vmem:[%s21 + $0xb8] sm:$0xff]
    %v3881 = vld [vmem:[%s21 + $0xc0] sm:$0xff]
    %v3882 = vld [vmem:[%s21 + $0xc8] sm:$0xff]
    %v3883 = vld [vmem:[%s21 + $0xd0] sm:$0xff]
    %v3884 = vld [vmem:[%s21 + $0xd8] sm:$0xff]
    %v3885 = vld [vmem:[%s21 + $0xe0] sm:$0xff]
    %v3886 = vld [vmem:[%s21 + $0xe8] sm:$0xff]
    %v3887 = vld [vmem:[%s21 + $0xf0] sm:$0xff]
    %v3888 = vld [vmem:[%s21 + $0xf8] sm:$0xff]
    %s3889 = scalar_lea.vmem %s19, 16
    %v3890 = vld [vmem:[%s3889] sm:$0xff]
    %v3891 = vld [vmem:[%s3889 + $0x8] sm:$0xff]
    %v3893 = vsel %vm3771, %v3890, 0
    %v3896 = vsel %vm3771, %v3891, 0
    %3898 = vmatprep.subr.mxu0 %v3762
    %3899 = vmatpush1.msra.mxu0 %v3761
    %3900 = vmatprep.subr.mxu0 %v3764
    %3901 = vmatpush1.msra.mxu0 %v3763
    %3902 = vmatprep.subr.mxu0 %v3766
    %3903 = vmatpush1.msra.mxu0 %v3765
    %3904 = vmatprep.subr.mxu0 %v3768
    %3905 = vmatpush1.msra.mxu0 %v3767
    %3906 = vmatprep.subr.mxu0 0.0
    %3907 = vmatpush1.msra.mxu0 0.0
    %3908 = vmatprep.subr.mxu0 0.0
    %3909 = vmatpush1.msra.mxu0 0.0
    %3910 = vmatprep.subr.mxu0 0.0
    %3911 = vmatpush1.msra.mxu0 0.0
    %3912 = vmatprep.subr.mxu0 0.0
    %3913 = vmatpush1.msra.mxu0 0.0
    %3914 = vmatprep.subr.mxu0 0.0
    %3915 = vmatpush1.msra.mxu0 0.0
    %3916 = vmatprep.subr.mxu0 0.0
    %3917 = vmatpush1.msra.mxu0 0.0
    %3918 = vmatprep.subr.mxu0 0.0
    %3919 = vmatpush1.msra.mxu0 0.0
    %3920 = vmatprep.subr.mxu0 0.0
    %3921 = vmatpush1.msra.mxu0 0.0
    %3922 = vmatprep.subr.mxu0 0.0
    %3923 = vmatpush1.msra.mxu0 0.0
    %3924 = vmatprep.subr.mxu0 0.0
    %3925 = vmatpush1.msra.mxu0 0.0
    %3926 = vmatprep.subr.mxu0 0.0
    %3927 = vmatpush1.msra.mxu0 0.0
    %3928 = vmatprep.subr.mxu0 0.0
    %3929 = vmatpush1.msra.mxu0 0.0
    %3930 = vmatprep.subr.mxu0 0.0
    %3931 = vmatpush1.msra.mxu0 0.0
    %3932 = vmatprep.subr.mxu0 0.0
    %3933 = vmatpush1.msra.mxu0 0.0
    %3934 = vmatprep.subr.mxu0 0.0
    %3935 = vmatpush1.msra.mxu0 0.0
    %3936 = vmatprep.subr.mxu0 0.0
    %3937 = vmatpush1.msra.mxu0 0.0
    %3938 = vmatprep.subr.mxu0 0.0
    %3939 = vmatpush1.msra.mxu0 0.0
    %3940 = vmatprep.subr.mxu0 0.0
    %3941 = vmatpush1.msra.mxu0 0.0
    %3942 = vmatprep.subr.mxu0 0.0
    %3943 = vmatpush1.msra.mxu0 0.0
    %3944 = vmatprep.subr.mxu0 0.0
    %3945 = vmatpush1.msra.mxu0 0.0
    %3946 = vmatprep.subr.mxu0 0.0
    %3947 = vmatpush1.msra.mxu0 0.0
    %3948 = vmatprep.subr.mxu0 0.0
    %3949 = vmatpush1.msra.mxu0 0.0
    %3950 = vmatprep.subr.mxu0 0.0
    %3951 = vmatpush1.msra.mxu0 0.0
    %3952 = vmatprep.subr.mxu0 0.0
    %3953 = vmatpush1.msra.mxu0 0.0
    %3954 = vmatprep.subr.mxu0 0.0
    %3955 = vmatpush1.msra.mxu0 0.0
    %3956 = vmatprep.subr.mxu0 0.0
    %3957 = vmatpush1.msra.mxu0 0.0
    %3958 = vmatprep.subr.mxu0 0.0
    %3959 = vmatpush1.msra.mxu0 0.0
    %3960 = vmatprep.subr.mxu0 0.0
    %3961 = vmatpush1.msra.mxu0 0.0
    %3962 = vmatprep.mubr.f32.mxu0 0.0
    %3963 = vmatmul.mubr.f32.gmra.mrb[0].mxu0 %v3893
    %v3964 = vpop.f32.mrb[0].mxu0
    %v3965 = vadd.f32 0.0, %v3964
    %v3966 = vpop.f32.mrb[0].mxu0
    %v3967 = vadd.f32 0.0, %v3966
    %3968 = vmatprep.mubr.f32.mxu0 0.0
    %3969 = vmatmul.mubr.f32.gmra.mrb[0].mxu0 %v3896
    %v3970 = vpop.f32.mrb[0].mxu0
    %v3971 = vadd.f32 0.0, %v3970
    %v3972 = vpop.f32.mrb[0].mxu0
    %v3973 = vadd.f32 0.0, %v3972
    %3974 = vdwg.mxu0
    %v3975 = vpack.c.bf16 %v3971, %v3965
    %v3976 = vpack.c.bf16 %v3973, %v3967
    %s3977 = scalar_lea.vmem %s21, 256
    %v3978 = vld [vmem:[%s3977] sm:$0xff]
    %v3979 = vld [vmem:[%s3977 + $0x8] sm:$0xff]
    %v3980 = vld [vmem:[%s3977 + $0x10] sm:$0xff]
    %v3981 = vld [vmem:[%s3977 + $0x18] sm:$0xff]
    %v3982 = vld [vmem:[%s3977 + $0x20] sm:$0xff]
    %v3983 = vld [vmem:[%s3977 + $0x28] sm:$0xff]
    %v3984 = vld [vmem:[%s3977 + $0x30] sm:$0xff]
    %v3985 = vld [vmem:[%s3977 + $0x38] sm:$0xff]
    %v3986 = vld [vmem:[%s3977 + $0x40] sm:$0xff]
    %v3987 = vld [vmem:[%s3977 + $0x48] sm:$0xff]
    %v3988 = vld [vmem:[%s3977 + $0x50] sm:$0xff]
    %v3989 = vld [vmem:[%s3977 + $0x58] sm:$0xff]
    %v3990 = vld [vmem:[%s3977 + $0x60] sm:$0xff]
    %v3991 = vld [vmem:[%s3977 + $0x68] sm:$0xff]
    %v3992 = vld [vmem:[%s3977 + $0x70] sm:$0xff]
    %v3993 = vld [vmem:[%s3977 + $0x78] sm:$0xff]
    %v3994 = vld [vmem:[%s3977 + $0x80] sm:$0xff]
    %v3995 = vld [vmem:[%s3977 + $0x88] sm:$0xff]
    %v3996 = vld [vmem:[%s3977 + $0x90] sm:$0xff]
    %v3997 = vld [vmem:[%s3977 + $0x98] sm:$0xff]
    %v3998 = vld [vmem:[%s3977 + $0xa0] sm:$0xff]
    %v3999 = vld [vmem:[%s3977 + $0xa8] sm:$0xff]
    %v4000 = vld [vmem:[%s3977 + $0xb0] sm:$0xff]
    %v4001 = vld [vmem:[%s3977 + $0xb8] sm:$0xff]
    %v4002 = vld [vmem:[%s3977 + $0xc0] sm:$0xff]
    %v4003 = vld [vmem:[%s3977 + $0xc8] sm:$0xff]
    %v4004 = vld [vmem:[%s3977 + $0xd0] sm:$0xff]
    %v4005 = vld [vmem:[%s3977 + $0xd8] sm:$0xff]
    %v4006 = vld [vmem:[%s3977 + $0xe0] sm:$0xff]
    %v4007 = vld [vmem:[%s3977 + $0xe8] sm:$0xff]
    %v4008 = vld [vmem:[%s3977 + $0xf0] sm:$0xff]
    %v4009 = vld [vmem:[%s3977 + $0xf8] sm:$0xff]
    %v4042 = vunpack.c.l.b16 %v3978
    %v4043 = vunpack.c.h.b16 %v3978
    %v4044 = vunpack.c.l.b16 %v3979
    %v4045 = vunpack.c.h.b16 %v3979
    %v4046 = vunpack.c.l.b16 %v3980
    %v4047 = vunpack.c.h.b16 %v3980
    %v4048 = vunpack.c.l.b16 %v3981
    %v4049 = vunpack.c.h.b16 %v3981
    %v4050 = vunpack.c.l.b16 %v3982
    %v4051 = vunpack.c.h.b16 %v3982
    %v4052 = vunpack.c.l.b16 %v3983
    %v4053 = vunpack.c.h.b16 %v3983
    %v4054 = vunpack.c.l.b16 %v3984
    %v4055 = vunpack.c.h.b16 %v3984
    %v4056 = vunpack.c.l.b16 %v3985
    %v4057 = vunpack.c.h.b16 %v3985
    %v4058 = vunpack.c.l.b16 %v3986
    %v4059 = vunpack.c.h.b16 %v3986
    %v4060 = vunpack.c.l.b16 %v3987
    %v4061 = vunpack.c.h.b16 %v3987
    %v4062 = vunpack.c.l.b16 %v3988
    %v4063 = vunpack.c.h.b16 %v3988
    %v4064 = vunpack.c.l.b16 %v3989
    %v4065 = vunpack.c.h.b16 %v3989
    %v4066 = vunpack.c.l.b16 %v3990
    %v4067 = vunpack.c.h.b16 %v3990
    %v4068 = vunpack.c.l.b16 %v3991
    %v4069 = vunpack.c.h.b16 %v3991
    %v4070 = vunpack.c.l.b16 %v3992
    %v4071 = vunpack.c.h.b16 %v3992
    %v4072 = vunpack.c.l.b16 %v3993
    %v4073 = vunpack.c.h.b16 %v3993
    %v4074 = vunpack.c.l.b16 %v3994
    %v4075 = vunpack.c.h.b16 %v3994
    %v4076 = vunpack.c.l.b16 %v3995
    %v4077 = vunpack.c.h.b16 %v3995
    %v4078 = vunpack.c.l.b16 %v3996
    %v4079 = vunpack.c.h.b16 %v3996
    %v4080 = vunpack.c.l.b16 %v3997
    %v4081 = vunpack.c.h.b16 %v3997
    %v4082 = vunpack.c.l.b16 %v3998
    %v4083 = vunpack.c.h.b16 %v3998
    %v4084 = vunpack.c.l.b16 %v3999
    %v4085 = vunpack.c.h.b16 %v3999
    %v4086 = vunpack.c.l.b16 %v4000
    %v4087 = vunpack.c.h.b16 %v4000
    %v4088 = vunpack.c.l.b16 %v4001
    %v4089 = vunpack.c.h.b16 %v4001
    %v4090 = vunpack.c.l.b16 %v4002
    %v4091 = vunpack.c.h.b16 %v4002
    %v4092 = vunpack.c.l.b16 %v4003
    %v4093 = vunpack.c.h.b16 %v4003
    %v4094 = vunpack.c.l.b16 %v4004
    %v4095 = vunpack.c.h.b16 %v4004
    %v4096 = vunpack.c.l.b16 %v4005
    %v4097 = vunpack.c.h.b16 %v4005
    %v4098 = vunpack.c.l.b16 %v4006
    %v4099 = vunpack.c.h.b16 %v4006
    %v4100 = vunpack.c.l.b16 %v4007
    %v4101 = vunpack.c.h.b16 %v4007
    %v4102 = vunpack.c.l.b16 %v4008
    %v4103 = vunpack.c.h.b16 %v4008
    %v4104 = vunpack.c.l.b16 %v4009
    %v4105 = vunpack.c.h.b16 %v4009
    %v4106 = vpack.c.b16 %v4044, %v4042
    %v4107 = vpack.c.b16 %v4045, %v4043
    %v4108 = vpack.c.b16 %v4048, %v4046
    %v4109 = vpack.c.b16 %v4049, %v4047
    %v4110 = vpack.c.b16 %v4052, %v4050
    %v4111 = vpack.c.b16 %v4053, %v4051
    %v4112 = vpack.c.b16 %v4056, %v4054
    %v4113 = vpack.c.b16 %v4057, %v4055
    %v4114 = vpack.c.b16 %v4060, %v4058
    %v4115 = vpack.c.b16 %v4061, %v4059
    %v4116 = vpack.c.b16 %v4064, %v4062
    %v4117 = vpack.c.b16 %v4065, %v4063
    %v4118 = vpack.c.b16 %v4068, %v4066
    %v4119 = vpack.c.b16 %v4069, %v4067
    %v4120 = vpack.c.b16 %v4072, %v4070
    %v4121 = vpack.c.b16 %v4073, %v4071
    %v4122 = vpack.c.b16 %v4076, %v4074
    %v4123 = vpack.c.b16 %v4077, %v4075
    %v4124 = vpack.c.b16 %v4080, %v4078
    %v4125 = vpack.c.b16 %v4081, %v4079
    %v4126 = vpack.c.b16 %v4084, %v4082
    %v4127 = vpack.c.b16 %v4085, %v4083
    %v4128 = vpack.c.b16 %v4088, %v4086
    %v4129 = vpack.c.b16 %v4089, %v4087
    %v4130 = vpack.c.b16 %v4092, %v4090
    %v4131 = vpack.c.b16 %v4093, %v4091
    %v4132 = vpack.c.b16 %v4096, %v4094
    %v4133 = vpack.c.b16 %v4097, %v4095
    %v4134 = vpack.c.b16 %v4100, %v4098
    %v4135 = vpack.c.b16 %v4101, %v4099
    %v4136 = vpack.c.b16 %v4104, %v4102
    %v4137 = vpack.c.b16 %v4105, %v4103
    %4170 = vmatprep.subr.bf16.mxu0 %v4107
    %4171 = vmatpush1.bf16.msra.mxu0 %v4106
    %4172 = vmatprep.subr.bf16.mxu0 %v4109
    %4173 = vmatpush1.bf16.msra.mxu0 %v4108
    %4174 = vmatprep.subr.bf16.mxu0 %v4111
    %4175 = vmatpush1.bf16.msra.mxu0 %v4110
    %4176 = vmatprep.subr.bf16.mxu0 %v4113
    %4177 = vmatpush1.bf16.msra.mxu0 %v4112
    %4178 = vmatprep.subr.bf16.mxu0 %v4115
    %4179 = vmatpush1.bf16.msra.mxu0 %v4114
    %4180 = vmatprep.subr.bf16.mxu0 %v4117
    %4181 = vmatpush1.bf16.msra.mxu0 %v4116
    %4182 = vmatprep.subr.bf16.mxu0 %v4119
    %4183 = vmatpush1.bf16.msra.mxu0 %v4118
    %4184 = vmatprep.subr.bf16.mxu0 %v4121
    %4185 = vmatpush1.bf16.msra.mxu0 %v4120
    %4186 = vmatprep.subr.bf16.mxu0 %v4123
    %4187 = vmatpush1.bf16.msra.mxu0 %v4122
    %4188 = vmatprep.subr.bf16.mxu0 %v4125
    %4189 = vmatpush1.bf16.msra.mxu0 %v4124
    %4190 = vmatprep.subr.bf16.mxu0 %v4127
    %4191 = vmatpush1.bf16.msra.mxu0 %v4126
    %4192 = vmatprep.subr.bf16.mxu0 %v4129
    %4193 = vmatpush1.bf16.msra.mxu0 %v4128
    %4194 = vmatprep.subr.bf16.mxu0 %v4131
    %4195 = vmatpush1.bf16.msra.mxu0 %v4130
    %4196 = vmatprep.subr.bf16.mxu0 %v4133
    %4197 = vmatpush1.bf16.msra.mxu0 %v4132
    %4198 = vmatprep.subr.bf16.mxu0 %v4135
    %4199 = vmatpush1.bf16.msra.mxu0 %v4134
    %4200 = vmatprep.subr.bf16.mxu0 %v4137
    %4201 = vmatpush1.bf16.msra.mxu0 %v4136
    %4202 = vmatprep.mubr.bf16.mxu0 %v3976
    %4203 = vmatmul.mubr.bf16.gmra.mrb[0].mxu0 %v3975
    %v4204 = vpop.f32.mrb[0].mxu0
    %v4205 = vadd.f32 0.0, %v4204
    %v4206 = vpop.f32.mrb[0].mxu0
    %v4207 = vadd.f32 0.0, %v4206
    %v4208 = vpop.f32.mrb[0].mxu0
    %v4209 = vadd.f32 0.0, %v4208
    %v4210 = vpop.f32.mrb[0].mxu0
    %v4211 = vadd.f32 0.0, %v4210
    %4212 = vdwg.mxu0
    %v4245 = vunpack.c.l.b16 %v3857
    %v4246 = vunpack.c.h.b16 %v3857
    %v4247 = vunpack.c.l.b16 %v3858
    %v4248 = vunpack.c.h.b16 %v3858
    %v4249 = vunpack.c.l.b16 %v3859
    %v4250 = vunpack.c.h.b16 %v3859
    %v4251 = vunpack.c.l.b16 %v3860
    %v4252 = vunpack.c.h.b16 %v3860
    %v4253 = vunpack.c.l.b16 %v3861
    %v4254 = vunpack.c.h.b16 %v3861
    %v4255 = vunpack.c.l.b16 %v3862
    %v4256 = vunpack.c.h.b16 %v3862
    %v4257 = vunpack.c.l.b16 %v3863
    %v4258 = vunpack.c.h.b16 %v3863
    %v4259 = vunpack.c.l.b16 %v3864
    %v4260 = vunpack.c.h.b16 %v3864
    %v4261 = vunpack.c.l.b16 %v3865
    %v4262 = vunpack.c.h.b16 %v3865
    %v4263 = vunpack.c.l.b16 %v3866
    %v4264 = vunpack.c.h.b16 %v3866
    %v4265 = vunpack.c.l.b16 %v3867
    %v4266 = vunpack.c.h.b16 %v3867
    %v4267 = vunpack.c.l.b16 %v3868
    %v4268 = vunpack.c.h.b16 %v3868
    %v4269 = vunpack.c.l.b16 %v3869
    %v4270 = vunpack.c.h.b16 %v3869
    %v4271 = vunpack.c.l.b16 %v3870
    %v4272 = vunpack.c.h.b16 %v3870
    %v4273 = vunpack.c.l.b16 %v3871
    %v4274 = vunpack.c.h.b16 %v3871
    %v4275 = vunpack.c.l.b16 %v3872
    %v4276 = vunpack.c.h.b16 %v3872
    %v4277 = vunpack.c.l.b16 %v3873
    %v4278 = vunpack.c.h.b16 %v3873
    %v4279 = vunpack.c.l.b16 %v3874
    %v4280 = vunpack.c.h.b16 %v3874
    %v4281 = vunpack.c.l.b16 %v3875
    %v4282 = vunpack.c.h.b16 %v3875
    %v4283 = vunpack.c.l.b16 %v3876
    %v4284 = vunpack.c.h.b16 %v3876
    %v4285 = vunpack.c.l.b16 %v3877
    %v4286 = vunpack.c.h.b16 %v3877
    %v4287 = vunpack.c.l.b16 %v3878
    %v4288 = vunpack.c.h.b16 %v3878
    %v4289 = vunpack.c.l.b16 %v3879
    %v4290 = vunpack.c.h.b16 %v3879
    %v4291 = vunpack.c.l.b16 %v3880
    %v4292 = vunpack.c.h.b16 %v3880
    %v4293 = vunpack.c.l.b16 %v3881
    %v4294 = vunpack.c.h.b16 %v3881
    %v4295 = vunpack.c.l.b16 %v3882
    %v4296 = vunpack.c.h.b16 %v3882
    %v4297 = vunpack.c.l.b16 %v3883
    %v4298 = vunpack.c.h.b16 %v3883
    %v4299 = vunpack.c.l.b16 %v3884
    %v4300 = vunpack.c.h.b16 %v3884
    %v4301 = vunpack.c.l.b16 %v3885
    %v4302 = vunpack.c.h.b16 %v3885
    %v4303 = vunpack.c.l.b16 %v3886
    %v4304 = vunpack.c.h.b16 %v3886
    %v4305 = vunpack.c.l.b16 %v3887
    %v4306 = vunpack.c.h.b16 %v3887
    %v4307 = vunpack.c.l.b16 %v3888
    %v4308 = vunpack.c.h.b16 %v3888
    %v4309 = vpack.c.b16 %v4247, %v4245
    %v4310 = vpack.c.b16 %v4248, %v4246
    %v4311 = vpack.c.b16 %v4251, %v4249
    %v4312 = vpack.c.b16 %v4252, %v4250
    %v4313 = vpack.c.b16 %v4255, %v4253
    %v4314 = vpack.c.b16 %v4256, %v4254
    %v4315 = vpack.c.b16 %v4259, %v4257
    %v4316 = vpack.c.b16 %v4260, %v4258
    %v4317 = vpack.c.b16 %v4263, %v4261
    %v4318 = vpack.c.b16 %v4264, %v4262
    %v4319 = vpack.c.b16 %v4267, %v4265
    %v4320 = vpack.c.b16 %v4268, %v4266
    %v4321 = vpack.c.b16 %v4271, %v4269
    %v4322 = vpack.c.b16 %v4272, %v4270
    %v4323 = vpack.c.b16 %v4275, %v4273
    %v4324 = vpack.c.b16 %v4276, %v4274
    %v4325 = vpack.c.b16 %v4279, %v4277
    %v4326 = vpack.c.b16 %v4280, %v4278
    %v4327 = vpack.c.b16 %v4283, %v4281
    %v4328 = vpack.c.b16 %v4284, %v4282
    %v4329 = vpack.c.b16 %v4287, %v4285
    %v4330 = vpack.c.b16 %v4288, %v4286
    %v4331 = vpack.c.b16 %v4291, %v4289
    %v4332 = vpack.c.b16 %v4292, %v4290
    %v4333 = vpack.c.b16 %v4295, %v4293
    %v4334 = vpack.c.b16 %v4296, %v4294
    %v4335 = vpack.c.b16 %v4299, %v4297
    %v4336 = vpack.c.b16 %v4300, %v4298
    %v4337 = vpack.c.b16 %v4303, %v4301
    %v4338 = vpack.c.b16 %v4304, %v4302
    %v4339 = vpack.c.b16 %v4307, %v4305
    %v4340 = vpack.c.b16 %v4308, %v4306
    %4373 = vmatprep.subr.bf16.mxu0 %v4310
    %4374 = vmatpush1.bf16.msra.mxu0 %v4309
    %4375 = vmatprep.subr.bf16.mxu0 %v4312
    %4376 = vmatpush1.bf16.msra.mxu0 %v4311
    %4377 = vmatprep.subr.bf16.mxu0 %v4314
    %4378 = vmatpush1.bf16.msra.mxu0 %v4313
    %4379 = vmatprep.subr.bf16.mxu0 %v4316
    %4380 = vmatpush1.bf16.msra.mxu0 %v4315
    %4381 = vmatprep.subr.bf16.mxu0 %v4318
    %4382 = vmatpush1.bf16.msra.mxu0 %v4317
    %4383 = vmatprep.subr.bf16.mxu0 %v4320
    %4384 = vmatpush1.bf16.msra.mxu0 %v4319
    %4385 = vmatprep.subr.bf16.mxu0 %v4322
    %4386 = vmatpush1.bf16.msra.mxu0 %v4321
    %4387 = vmatprep.subr.bf16.mxu0 %v4324
    %4388 = vmatpush1.bf16.msra.mxu0 %v4323
    %4389 = vmatprep.subr.bf16.mxu0 %v4326
    %4390 = vmatpush1.bf16.msra.mxu0 %v4325
    %4391 = vmatprep.subr.bf16.mxu0 %v4328
    %4392 = vmatpush1.bf16.msra.mxu0 %v4327
    %4393 = vmatprep.subr.bf16.mxu0 %v4330
    %4394 = vmatpush1.bf16.msra.mxu0 %v4329
    %4395 = vmatprep.subr.bf16.mxu0 %v4332
    %4396 = vmatpush1.bf16.msra.mxu0 %v4331
    %4397 = vmatprep.subr.bf16.mxu0 %v4334
    %4398 = vmatpush1.bf16.msra.mxu0 %v4333
    %4399 = vmatprep.subr.bf16.mxu0 %v4336
    %4400 = vmatpush1.bf16.msra.mxu0 %v4335
    %4401 = vmatprep.subr.bf16.mxu0 %v4338
    %4402 = vmatpush1.bf16.msra.mxu0 %v4337
    %4403 = vmatprep.subr.bf16.mxu0 %v4340
    %4404 = vmatpush1.bf16.msra.mxu0 %v4339
    %4405 = vmatprep.mubr.bf16.mxu0 %v3856
    %4406 = vmatmul.mubr.bf16.gmra.mrb[0].mxu0 %v3855
    %v4407 = vpop.f32.mrb[0].mxu0
    %v4408 = vadd.f32 %v4205, %v4407
    %v4409 = vpop.f32.mrb[0].mxu0
    %v4410 = vadd.f32 %v4207, %v4409
    %v4411 = vpop.f32.mrb[0].mxu0
    %v4412 = vadd.f32 %v4209, %v4411
    %v4413 = vpop.f32.mrb[0].mxu0
    %v4414 = vadd.f32 %v4211, %v4413
    %4415 = vdwg.mxu0
    %s4416 = scalar_lea.vmem %s19, 32
    %v4417 = vld [vmem:[%s4416] sm:$0xff]
    %v4418 = vld [vmem:[%s4416 + $0x8] sm:$0xff]
    %v4420 = vsel %vm3771, %v4417, 0
    %v4423 = vsel %vm3771, %v4418, 0
    %4425 = vmatprep.subr.mxu0 %v3762
    %4426 = vmatpush1.msra.mxu0 %v3761
    %4427 = vmatprep.subr.mxu0 %v3764
    %4428 = vmatpush1.msra.mxu0 %v3763
    %4429 = vmatprep.subr.mxu0 %v3766
    %4430 = vmatpush1.msra.mxu0 %v3765
    %4431 = vmatprep.subr.mxu0 %v3768
    %4432 = vmatpush1.msra.mxu0 %v3767
    %4433 = vmatprep.subr.mxu0 0.0
    %4434 = vmatpush1.msra.mxu0 0.0
    %4435 = vmatprep.subr.mxu0 0.0
    %4436 = vmatpush1.msra.mxu0 0.0
    %4437 = vmatprep.subr.mxu0 0.0
    %4438 = vmatpush1.msra.mxu0 0.0
    %4439 = vmatprep.subr.mxu0 0.0
    %4440 = vmatpush1.msra.mxu0 0.0
    %4441 = vmatprep.subr.mxu0 0.0
    %4442 = vmatpush1.msra.mxu0 0.0
    %4443 = vmatprep.subr.mxu0 0.0
    %4444 = vmatpush1.msra.mxu0 0.0
    %4445 = vmatprep.subr.mxu0 0.0
    %4446 = vmatpush1.msra.mxu0 0.0
    %4447 = vmatprep.subr.mxu0 0.0
    %4448 = vmatpush1.msra.mxu0 0.0
    %4449 = vmatprep.subr.mxu0 0.0
    %4450 = vmatpush1.msra.mxu0 0.0
    %4451 = vmatprep.subr.mxu0 0.0
    %4452 = vmatpush1.msra.mxu0 0.0
    %4453 = vmatprep.subr.mxu0 0.0
    %4454 = vmatpush1.msra.mxu0 0.0
    %4455 = vmatprep.subr.mxu0 0.0
    %4456 = vmatpush1.msra.mxu0 0.0
    %4457 = vmatprep.subr.mxu0 0.0
    %4458 = vmatpush1.msra.mxu0 0.0
    %4459 = vmatprep.subr.mxu0 0.0
    %4460 = vmatpush1.msra.mxu0 0.0
    %4461 = vmatprep.subr.mxu0 0.0
    %4462 = vmatpush1.msra.mxu0 0.0
    %4463 = vmatprep.subr.mxu0 0.0
    %4464 = vmatpush1.msra.mxu0 0.0
    %4465 = vmatprep.subr.mxu0 0.0
    %4466 = vmatpush1.msra.mxu0 0.0
    %4467 = vmatprep.subr.mxu0 0.0
    %4468 = vmatpush1.msra.mxu0 0.0
    %4469 = vmatprep.subr.mxu0 0.0
    %4470 = vmatpush1.msra.mxu0 0.0
    %4471 = vmatprep.subr.mxu0 0.0
    %4472 = vmatpush1.msra.mxu0 0.0
    %4473 = vmatprep.subr.mxu0 0.0
    %4474 = vmatpush1.msra.mxu0 0.0
    %4475 = vmatprep.subr.mxu0 0.0
    %4476 = vmatpush1.msra.mxu0 0.0
    %4477 = vmatprep.subr.mxu0 0.0
    %4478 = vmatpush1.msra.mxu0 0.0
    %4479 = vmatprep.subr.mxu0 0.0
    %4480 = vmatpush1.msra.mxu0 0.0
    %4481 = vmatprep.subr.mxu0 0.0
    %4482 = vmatpush1.msra.mxu0 0.0
    %4483 = vmatprep.subr.mxu0 0.0
    %4484 = vmatpush1.msra.mxu0 0.0
    %4485 = vmatprep.subr.mxu0 0.0
    %4486 = vmatpush1.msra.mxu0 0.0
    %4487 = vmatprep.subr.mxu0 0.0
    %4488 = vmatpush1.msra.mxu0 0.0
    %4489 = vmatprep.mubr.f32.mxu0 0.0
    %4490 = vmatmul.mubr.f32.gmra.mrb[0].mxu0 %v4420
    %v4491 = vpop.f32.mrb[0].mxu0
    %v4492 = vadd.f32 0.0, %v4491
    %v4493 = vpop.f32.mrb[0].mxu0
    %v4494 = vadd.f32 0.0, %v4493
    %4495 = vmatprep.mubr.f32.mxu0 0.0
    %4496 = vmatmul.mubr.f32.gmra.mrb[0].mxu0 %v4423
    %v4497 = vpop.f32.mrb[0].mxu0
    %v4498 = vadd.f32 0.0, %v4497
    %v4499 = vpop.f32.mrb[0].mxu0
    %v4500 = vadd.f32 0.0, %v4499
    %4501 = vdwg.mxu0
    %v4502 = vpack.c.bf16 %v4498, %v4492
    %v4503 = vpack.c.bf16 %v4500, %v4494
    %s4504 = scalar_lea.vmem %s21, 512
    %v4505 = vld [vmem:[%s4504] sm:$0xff]
    %v4506 = vld [vmem:[%s4504 + $0x8] sm:$0xff]
    %v4507 = vld [vmem:[%s4504 + $0x10] sm:$0xff]
    %v4508 = vld [vmem:[%s4504 + $0x18] sm:$0xff]
    %v4509 = vld [vmem:[%s4504 + $0x20] sm:$0xff]
    %v4510 = vld [vmem:[%s4504 + $0x28] sm:$0xff]
    %v4511 = vld [vmem:[%s4504 + $0x30] sm:$0xff]
    %v4512 = vld [vmem:[%s4504 + $0x38] sm:$0xff]
    %v4513 = vld [vmem:[%s4504 + $0x40] sm:$0xff]
    %v4514 = vld [vmem:[%s4504 + $0x48] sm:$0xff]
    %v4515 = vld [vmem:[%s4504 + $0x50] sm:$0xff]
    %v4516 = vld [vmem:[%s4504 + $0x58] sm:$0xff]
    %v4517 = vld [vmem:[%s4504 + $0x60] sm:$0xff]
    %v4518 = vld [vmem:[%s4504 + $0x68] sm:$0xff]
    %v4519 = vld [vmem:[%s4504 + $0x70] sm:$0xff]
    %v4520 = vld [vmem:[%s4504 + $0x78] sm:$0xff]
    %v4521 = vld [vmem:[%s4504 + $0x80] sm:$0xff]
    %v4522 = vld [vmem:[%s4504 + $0x88] sm:$0xff]
    %v4523 = vld [vmem:[%s4504 + $0x90] sm:$0xff]
    %v4524 = vld [vmem:[%s4504 + $0x98] sm:$0xff]
    %v4525 = vld [vmem:[%s4504 + $0xa0] sm:$0xff]
    %v4526 = vld [vmem:[%s4504 + $0xa8] sm:$0xff]
    %v4527 = vld [vmem:[%s4504 + $0xb0] sm:$0xff]
    %v4528 = vld [vmem:[%s4504 + $0xb8] sm:$0xff]
    %v4529 = vld [vmem:[%s4504 + $0xc0] sm:$0xff]
    %v4530 = vld [vmem:[%s4504 + $0xc8] sm:$0xff]
    %v4531 = vld [vmem:[%s4504 + $0xd0] sm:$0xff]
    %v4532 = vld [vmem:[%s4504 + $0xd8] sm:$0xff]
    %v4533 = vld [vmem:[%s4504 + $0xe0] sm:$0xff]
    %v4534 = vld [vmem:[%s4504 + $0xe8] sm:$0xff]
    %v4535 = vld [vmem:[%s4504 + $0xf0] sm:$0xff]
    %v4536 = vld [vmem:[%s4504 + $0xf8] sm:$0xff]
    %v4569 = vunpack.c.l.b16 %v4505
    %v4570 = vunpack.c.h.b16 %v4505
    %v4571 = vunpack.c.l.b16 %v4506
    %v4572 = vunpack.c.h.b16 %v4506
    %v4573 = vunpack.c.l.b16 %v4507
    %v4574 = vunpack.c.h.b16 %v4507
    %v4575 = vunpack.c.l.b16 %v4508
    %v4576 = vunpack.c.h.b16 %v4508
    %v4577 = vunpack.c.l.b16 %v4509
    %v4578 = vunpack.c.h.b16 %v4509
    %v4579 = vunpack.c.l.b16 %v4510
    %v4580 = vunpack.c.h.b16 %v4510
    %v4581 = vunpack.c.l.b16 %v4511
    %v4582 = vunpack.c.h.b16 %v4511
    %v4583 = vunpack.c.l.b16 %v4512
    %v4584 = vunpack.c.h.b16 %v4512
    %v4585 = vunpack.c.l.b16 %v4513
    %v4586 = vunpack.c.h.b16 %v4513
    %v4587 = vunpack.c.l.b16 %v4514
    %v4588 = vunpack.c.h.b16 %v4514
    %v4589 = vunpack.c.l.b16 %v4515
    %v4590 = vunpack.c.h.b16 %v4515
    %v4591 = vunpack.c.l.b16 %v4516
    %v4592 = vunpack.c.h.b16 %v4516
    %v4593 = vunpack.c.l.b16 %v4517
    %v4594 = vunpack.c.h.b16 %v4517
    %v4595 = vunpack.c.l.b16 %v4518
    %v4596 = vunpack.c.h.b16 %v4518
    %v4597 = vunpack.c.l.b16 %v4519
    %v4598 = vunpack.c.h.b16 %v4519
    %v4599 = vunpack.c.l.b16 %v4520
    %v4600 = vunpack.c.h.b16 %v4520
    %v4601 = vunpack.c.l.b16 %v4521
    %v4602 = vunpack.c.h.b16 %v4521
    %v4603 = vunpack.c.l.b16 %v4522
    %v4604 = vunpack.c.h.b16 %v4522
    %v4605 = vunpack.c.l.b16 %v4523
    %v4606 = vunpack.c.h.b16 %v4523
    %v4607 = vunpack.c.l.b16 %v4524
    %v4608 = vunpack.c.h.b16 %v4524
    %v4609 = vunpack.c.l.b16 %v4525
    %v4610 = vunpack.c.h.b16 %v4525
    %v4611 = vunpack.c.l.b16 %v4526
    %v4612 = vunpack.c.h.b16 %v4526
    %v4613 = vunpack.c.l.b16 %v4527
    %v4614 = vunpack.c.h.b16 %v4527
    %v4615 = vunpack.c.l.b16 %v4528
    %v4616 = vunpack.c.h.b16 %v4528
    %v4617 = vunpack.c.l.b16 %v4529
    %v4618 = vunpack.c.h.b16 %v4529
    %v4619 = vunpack.c.l.b16 %v4530
    %v4620 = vunpack.c.h.b16 %v4530
    %v4621 = vunpack.c.l.b16 %v4531
    %v4622 = vunpack.c.h.b16 %v4531
    %v4623 = vunpack.c.l.b16 %v4532
    %v4624 = vunpack.c.h.b16 %v4532
    %v4625 = vunpack.c.l.b16 %v4533
    %v4626 = vunpack.c.h.b16 %v4533
    %v4627 = vunpack.c.l.b16 %v4534
    %v4628 = vunpack.c.h.b16 %v4534
    %v4629 = vunpack.c.l.b16 %v4535
    %v4630 = vunpack.c.h.b16 %v4535
    %v4631 = vunpack.c.l.b16 %v4536
    %v4632 = vunpack.c.h.b16 %v4536
    %v4633 = vpack.c.b16 %v4571, %v4569
    %v4634 = vpack.c.b16 %v4572, %v4570
    %v4635 = vpack.c.b16 %v4575, %v4573
    %v4636 = vpack.c.b16 %v4576, %v4574
    %v4637 = vpack.c.b16 %v4579, %v4577
    %v4638 = vpack.c.b16 %v4580, %v4578
    %v4639 = vpack.c.b16 %v4583, %v4581
    %v4640 = vpack.c.b16 %v4584, %v4582
    %v4641 = vpack.c.b16 %v4587, %v4585
    %v4642 = vpack.c.b16 %v4588, %v4586
    %v4643 = vpack.c.b16 %v4591, %v4589
    %v4644 = vpack.c.b16 %v4592, %v4590
    %v4645 = vpack.c.b16 %v4595, %v4593
    %v4646 = vpack.c.b16 %v4596, %v4594
    %v4647 = vpack.c.b16 %v4599, %v4597
    %v4648 = vpack.c.b16 %v4600, %v4598
    %v4649 = vpack.c.b16 %v4603, %v4601
    %v4650 = vpack.c.b16 %v4604, %v4602
    %v4651 = vpack.c.b16 %v4607, %v4605
    %v4652 = vpack.c.b16 %v4608, %v4606
    %v4653 = vpack.c.b16 %v4611, %v4609
    %v4654 = vpack.c.b16 %v4612, %v4610
    %v4655 = vpack.c.b16 %v4615, %v4613
    %v4656 = vpack.c.b16 %v4616, %v4614
    %v4657 = vpack.c.b16 %v4619, %v4617
    %v4658 = vpack.c.b16 %v4620, %v4618
    %v4659 = vpack.c.b16 %v4623, %v4621
    %v4660 = vpack.c.b16 %v4624, %v4622
    %v4661 = vpack.c.b16 %v4627, %v4625
    %v4662 = vpack.c.b16 %v4628, %v4626
    %v4663 = vpack.c.b16 %v4631, %v4629
    %v4664 = vpack.c.b16 %v4632, %v4630
    %4697 = vmatprep.subr.bf16.mxu0 %v4634
    %4698 = vmatpush1.bf16.msra.mxu0 %v4633
    %4699 = vmatprep.subr.bf16.mxu0 %v4636
    %4700 = vmatpush1.bf16.msra.mxu0 %v4635
    %4701 = vmatprep.subr.bf16.mxu0 %v4638
    %4702 = vmatpush1.bf16.msra.mxu0 %v4637
    %4703 = vmatprep.subr.bf16.mxu0 %v4640
    %4704 = vmatpush1.bf16.msra.mxu0 %v4639
    %4705 = vmatprep.subr.bf16.mxu0 %v4642
    %4706 = vmatpush1.bf16.msra.mxu0 %v4641
    %4707 = vmatprep.subr.bf16.mxu0 %v4644
    %4708 = vmatpush1.bf16.msra.mxu0 %v4643
    %4709 = vmatprep.subr.bf16.mxu0 %v4646
    %4710 = vmatpush1.bf16.msra.mxu0 %v4645
    %4711 = vmatprep.subr.bf16.mxu0 %v4648
    %4712 = vmatpush1.bf16.msra.mxu0 %v4647
    %4713 = vmatprep.subr.bf16.mxu0 %v4650
    %4714 = vmatpush1.bf16.msra.mxu0 %v4649
    %4715 = vmatprep.subr.bf16.mxu0 %v4652
    %4716 = vmatpush1.bf16.msra.mxu0 %v4651
    %4717 = vmatprep.subr.bf16.mxu0 %v4654
    %4718 = vmatpush1.bf16.msra.mxu0 %v4653
    %4719 = vmatprep.subr.bf16.mxu0 %v4656
    %4720 = vmatpush1.bf16.msra.mxu0 %v4655
    %4721 = vmatprep.subr.bf16.mxu0 %v4658
    %4722 = vmatpush1.bf16.msra.mxu0 %v4657
    %4723 = vmatprep.subr.bf16.mxu0 %v4660
    %4724 = vmatpush1.bf16.msra.mxu0 %v4659
    %4725 = vmatprep.subr.bf16.mxu0 %v4662
    %4726 = vmatpush1.bf16.msra.mxu0 %v4661
    %4727 = vmatprep.subr.bf16.mxu0 %v4664
    %4728 = vmatpush1.bf16.msra.mxu0 %v4663
    %4729 = vmatprep.mubr.bf16.mxu0 %v4503
    %4730 = vmatmul.mubr.bf16.gmra.mrb[0].mxu0 %v4502
    %v4731 = vpop.f32.mrb[0].mxu0
    %v4732 = vadd.f32 0.0, %v4731
    %v4733 = vpop.f32.mrb[0].mxu0
    %v4734 = vadd.f32 0.0, %v4733
    %v4735 = vpop.f32.mrb[0].mxu0
    %v4736 = vadd.f32 0.0, %v4735
    %v4737 = vpop.f32.mrb[0].mxu0
    %v4738 = vadd.f32 0.0, %v4737
    %4739 = vdwg.mxu0
    %v4740 = vadd.f32 %v4408, %v4732
    %v4741 = vadd.f32 %v4410, %v4734
    %v4742 = vadd.f32 %v4412, %v4736
    %v4743 = vadd.f32 %v4414, %v4738
    %s4744 = scalar_lea.vmem %s19, 48
    %v4745 = vld [vmem:[%s4744] sm:$0xff]
    %v4746 = vld [vmem:[%s4744 + $0x8] sm:$0xff]
    %v4748 = vsel %vm3771, %v4745, 0
    %v4751 = vsel %vm3771, %v4746, 0
    %4753 = vmatprep.subr.mxu0 %v3762
    %4754 = vmatpush1.msra.mxu0 %v3761
    %4755 = vmatprep.subr.mxu0 %v3764
    %4756 = vmatpush1.msra.mxu0 %v3763
    %4757 = vmatprep.subr.mxu0 %v3766
    %4758 = vmatpush1.msra.mxu0 %v3765
    %4759 = vmatprep.subr.mxu0 %v3768
    %4760 = vmatpush1.msra.mxu0 %v3767
    %4761 = vmatprep.subr.mxu0 0.0
    %4762 = vmatpush1.msra.mxu0 0.0
    %4763 = vmatprep.subr.mxu0 0.0
    %4764 = vmatpush1.msra.mxu0 0.0
    %4765 = vmatprep.subr.mxu0 0.0
    %4766 = vmatpush1.msra.mxu0 0.0
    %4767 = vmatprep.subr.mxu0 0.0
    %4768 = vmatpush1.msra.mxu0 0.0
    %4769 = vmatprep.subr.mxu0 0.0
    %4770 = vmatpush1.msra.mxu0 0.0
    %4771 = vmatprep.subr.mxu0 0.0
    %4772 = vmatpush1.msra.mxu0 0.0
    %4773 = vmatprep.subr.mxu0 0.0
    %4774 = vmatpush1.msra.mxu0 0.0
    %4775 = vmatprep.subr.mxu0 0.0
    %4776 = vmatpush1.msra.mxu0 0.0
    %4777 = vmatprep.subr.mxu0 0.0
    %4778 = vmatpush1.msra.mxu0 0.0
    %4779 = vmatprep.subr.mxu0 0.0
    %4780 = vmatpush1.msra.mxu0 0.0
    %4781 = vmatprep.subr.mxu0 0.0
    %4782 = vmatpush1.msra.mxu0 0.0
    %4783 = vmatprep.subr.mxu0 0.0
    %4784 = vmatpush1.msra.mxu0 0.0
    %4785 = vmatprep.subr.mxu0 0.0
    %4786 = vmatpush1.msra.mxu0 0.0
    %4787 = vmatprep.subr.mxu0 0.0
    %4788 = vmatpush1.msra.mxu0 0.0
    %4789 = vmatprep.subr.mxu0 0.0
    %4790 = vmatpush1.msra.mxu0 0.0
    %4791 = vmatprep.subr.mxu0 0.0
    %4792 = vmatpush1.msra.mxu0 0.0
    %4793 = vmatprep.subr.mxu0 0.0
    %4794 = vmatpush1.msra.mxu0 0.0
    %4795 = vmatprep.subr.mxu0 0.0
    %4796 = vmatpush1.msra.mxu0 0.0
    %4797 = vmatprep.subr.mxu0 0.0
    %4798 = vmatpush1.msra.mxu0 0.0
    %4799 = vmatprep.subr.mxu0 0.0
    %4800 = vmatpush1.msra.mxu0 0.0
    %4801 = vmatprep.subr.mxu0 0.0
    %4802 = vmatpush1.msra.mxu0 0.0
    %4803 = vmatprep.subr.mxu0 0.0
    %4804 = vmatpush1.msra.mxu0 0.0
    %4805 = vmatprep.subr.mxu0 0.0
    %4806 = vmatpush1.msra.mxu0 0.0
    %4807 = vmatprep.subr.mxu0 0.0
    %4808 = vmatpush1.msra.mxu0 0.0
    %4809 = vmatprep.subr.mxu0 0.0
    %4810 = vmatpush1.msra.mxu0 0.0
    %4811 = vmatprep.subr.mxu0 0.0
    %4812 = vmatpush1.msra.mxu0 0.0
    %4813 = vmatprep.subr.mxu0 0.0
    %4814 = vmatpush1.msra.mxu0 0.0
    %4815 = vmatprep.subr.mxu0 0.0
    %4816 = vmatpush1.msra.mxu0 0.0
    %4817 = vmatprep.mubr.f32.mxu0 0.0
    %4818 = vmatmul.mubr.f32.gmra.mrb[0].mxu0 %v4748
    %v4819 = vpop.f32.mrb[0].mxu0
    %v4820 = vadd.f32 0.0, %v4819
    %v4821 = vpop.f32.mrb[0].mxu0
    %v4822 = vadd.f32 0.0, %v4821
    %4823 = vmatprep.mubr.f32.mxu0 0.0
    %4824 = vmatmul.mubr.f32.gmra.mrb[0].mxu0 %v4751
    %v4825 = vpop.f32.mrb[0].mxu0
    %v4826 = vadd.f32 0.0, %v4825
    %v4827 = vpop.f32.mrb[0].mxu0
    %v4828 = vadd.f32 0.0, %v4827
    %4829 = vdwg.mxu0
    %v4830 = vpack.c.bf16 %v4826, %v4820
    %v4831 = vpack.c.bf16 %v4828, %v4822
    %s4832 = scalar_lea.vmem %s21, 768
    %v4833 = vld [vmem:[%s4832] sm:$0xff]
    %v4834 = vld [vmem:[%s4832 + $0x8] sm:$0xff]
    %v4835 = vld [vmem:[%s4832 + $0x10] sm:$0xff]
    %v4836 = vld [vmem:[%s4832 + $0x18] sm:$0xff]
    %v4837 = vld [vmem:[%s4832 + $0x20] sm:$0xff]
    %v4838 = vld [vmem:[%s4832 + $0x28] sm:$0xff]
    %v4839 = vld [vmem:[%s4832 + $0x30] sm:$0xff]
    %v4840 = vld [vmem:[%s4832 + $0x38] sm:$0xff]
    %v4841 = vld [vmem:[%s4832 + $0x40] sm:$0xff]
    %v4842 = vld [vmem:[%s4832 + $0x48] sm:$0xff]
    %v4843 = vld [vmem:[%s4832 + $0x50] sm:$0xff]
    %v4844 = vld [vmem:[%s4832 + $0x58] sm:$0xff]
    %v4845 = vld [vmem:[%s4832 + $0x60] sm:$0xff]
    %v4846 = vld [vmem:[%s4832 + $0x68] sm:$0xff]
    %v4847 = vld [vmem:[%s4832 + $0x70] sm:$0xff]
    %v4848 = vld [vmem:[%s4832 + $0x78] sm:$0xff]
    %v4849 = vld [vmem:[%s4832 + $0x80] sm:$0xff]
    %v4850 = vld [vmem:[%s4832 + $0x88] sm:$0xff]
    %v4851 = vld [vmem:[%s4832 + $0x90] sm:$0xff]
    %v4852 = vld [vmem:[%s4832 + $0x98] sm:$0xff]
    %v4853 = vld [vmem:[%s4832 + $0xa0] sm:$0xff]
    %v4854 = vld [vmem:[%s4832 + $0xa8] sm:$0xff]
    %v4855 = vld [vmem:[%s4832 + $0xb0] sm:$0xff]
    %v4856 = vld [vmem:[%s4832 + $0xb8] sm:$0xff]
    %v4857 = vld [vmem:[%s4832 + $0xc0] sm:$0xff]
    %v4858 = vld [vmem:[%s4832 + $0xc8] sm:$0xff]
    %v4859 = vld [vmem:[%s4832 + $0xd0] sm:$0xff]
    %v4860 = vld [vmem:[%s4832 + $0xd8] sm:$0xff]
    %v4861 = vld [vmem:[%s4832 + $0xe0] sm:$0xff]
    %v4862 = vld [vmem:[%s4832 + $0xe8] sm:$0xff]
    %v4863 = vld [vmem:[%s4832 + $0xf0] sm:$0xff]
    %v4864 = vld [vmem:[%s4832 + $0xf8] sm:$0xff]
    %v4897 = vunpack.c.l.b16 %v4833
    %v4898 = vunpack.c.h.b16 %v4833
    %v4899 = vunpack.c.l.b16 %v4834
    %v4900 = vunpack.c.h.b16 %v4834
    %v4901 = vunpack.c.l.b16 %v4835
    %v4902 = vunpack.c.h.b16 %v4835
    %v4903 = vunpack.c.l.b16 %v4836
    %v4904 = vunpack.c.h.b16 %v4836
    %v4905 = vunpack.c.l.b16 %v4837
    %v4906 = vunpack.c.h.b16 %v4837
    %v4907 = vunpack.c.l.b16 %v4838
    %v4908 = vunpack.c.h.b16 %v4838
    %v4909 = vunpack.c.l.b16 %v4839
    %v4910 = vunpack.c.h.b16 %v4839
    %v4911 = vunpack.c.l.b16 %v4840
    %v4912 = vunpack.c.h.b16 %v4840
    %v4913 = vunpack.c.l.b16 %v4841
    %v4914 = vunpack.c.h.b16 %v4841
    %v4915 = vunpack.c.l.b16 %v4842
    %v4916 = vunpack.c.h.b16 %v4842
    %v4917 = vunpack.c.l.b16 %v4843
    %v4918 = vunpack.c.h.b16 %v4843
    %v4919 = vunpack.c.l.b16 %v4844
    %v4920 = vunpack.c.h.b16 %v4844
    %v4921 = vunpack.c.l.b16 %v4845
    %v4922 = vunpack.c.h.b16 %v4845
    %v4923 = vunpack.c.l.b16 %v4846
    %v4924 = vunpack.c.h.b16 %v4846
    %v4925 = vunpack.c.l.b16 %v4847
    %v4926 = vunpack.c.h.b16 %v4847
    %v4927 = vunpack.c.l.b16 %v4848
    %v4928 = vunpack.c.h.b16 %v4848
    %v4929 = vunpack.c.l.b16 %v4849
    %v4930 = vunpack.c.h.b16 %v4849
    %v4931 = vunpack.c.l.b16 %v4850
    %v4932 = vunpack.c.h.b16 %v4850
    %v4933 = vunpack.c.l.b16 %v4851
    %v4934 = vunpack.c.h.b16 %v4851
    %v4935 = vunpack.c.l.b16 %v4852
    %v4936 = vunpack.c.h.b16 %v4852
    %v4937 = vunpack.c.l.b16 %v4853
    %v4938 = vunpack.c.h.b16 %v4853
    %v4939 = vunpack.c.l.b16 %v4854
    %v4940 = vunpack.c.h.b16 %v4854
    %v4941 = vunpack.c.l.b16 %v4855
    %v4942 = vunpack.c.h.b16 %v4855
    %v4943 = vunpack.c.l.b16 %v4856
    %v4944 = vunpack.c.h.b16 %v4856
    %v4945 = vunpack.c.l.b16 %v4857
    %v4946 = vunpack.c.h.b16 %v4857
    %v4947 = vunpack.c.l.b16 %v4858
    %v4948 = vunpack.c.h.b16 %v4858
    %v4949 = vunpack.c.l.b16 %v4859
    %v4950 = vunpack.c.h.b16 %v4859
    %v4951 = vunpack.c.l.b16 %v4860
    %v4952 = vunpack.c.h.b16 %v4860
    %v4953 = vunpack.c.l.b16 %v4861
    %v4954 = vunpack.c.h.b16 %v4861
    %v4955 = vunpack.c.l.b16 %v4862
    %v4956 = vunpack.c.h.b16 %v4862
    %v4957 = vunpack.c.l.b16 %v4863
    %v4958 = vunpack.c.h.b16 %v4863
    %v4959 = vunpack.c.l.b16 %v4864
    %v4960 = vunpack.c.h.b16 %v4864
    %v4961 = vpack.c.b16 %v4899, %v4897
    %v4962 = vpack.c.b16 %v4900, %v4898
    %v4963 = vpack.c.b16 %v4903, %v4901
    %v4964 = vpack.c.b16 %v4904, %v4902
    %v4965 = vpack.c.b16 %v4907, %v4905
    %v4966 = vpack.c.b16 %v4908, %v4906
    %v4967 = vpack.c.b16 %v4911, %v4909
    %v4968 = vpack.c.b16 %v4912, %v4910
    %v4969 = vpack.c.b16 %v4915, %v4913
    %v4970 = vpack.c.b16 %v4916, %v4914
    %v4971 = vpack.c.b16 %v4919, %v4917
    %v4972 = vpack.c.b16 %v4920, %v4918
    %v4973 = vpack.c.b16 %v4923, %v4921
    %v4974 = vpack.c.b16 %v4924, %v4922
    %v4975 = vpack.c.b16 %v4927, %v4925
    %v4976 = vpack.c.b16 %v4928, %v4926
    %v4977 = vpack.c.b16 %v4931, %v4929
    %v4978 = vpack.c.b16 %v4932, %v4930
    %v4979 = vpack.c.b16 %v4935, %v4933
    %v4980 = vpack.c.b16 %v4936, %v4934
    %v4981 = vpack.c.b16 %v4939, %v4937
    %v4982 = vpack.c.b16 %v4940, %v4938
    %v4983 = vpack.c.b16 %v4943, %v4941
    %v4984 = vpack.c.b16 %v4944, %v4942
    %v4985 = vpack.c.b16 %v4947, %v4945
    %v4986 = vpack.c.b16 %v4948, %v4946
    %v4987 = vpack.c.b16 %v4951, %v4949
    %v4988 = vpack.c.b16 %v4952, %v4950
    %v4989 = vpack.c.b16 %v4955, %v4953
    %v4990 = vpack.c.b16 %v4956, %v4954
    %v4991 = vpack.c.b16 %v4959, %v4957
    %v4992 = vpack.c.b16 %v4960, %v4958
    %5025 = vmatprep.subr.bf16.mxu0 %v4962
    %5026 = vmatpush1.bf16.msra.mxu0 %v4961
    %5027 = vmatprep.subr.bf16.mxu0 %v4964
    %5028 = vmatpush1.bf16.msra.mxu0 %v4963
    %5029 = vmatprep.subr.bf16.mxu0 %v4966
    %5030 = vmatpush1.bf16.msra.mxu0 %v4965
    %5031 = vmatprep.subr.bf16.mxu0 %v4968
    %5032 = vmatpush1.bf16.msra.mxu0 %v4967
    %5033 = vmatprep.subr.bf16.mxu0 %v4970
    %5034 = vmatpush1.bf16.msra.mxu0 %v4969
    %5035 = vmatprep.subr.bf16.mxu0 %v4972
    %5036 = vmatpush1.bf16.msra.mxu0 %v4971
    %5037 = vmatprep.subr.bf16.mxu0 %v4974
    %5038 = vmatpush1.bf16.msra.mxu0 %v4973
    %5039 = vmatprep.subr.bf16.mxu0 %v4976
    %5040 = vmatpush1.bf16.msra.mxu0 %v4975
    %5041 = vmatprep.subr.bf16.mxu0 %v4978
    %5042 = vmatpush1.bf16.msra.mxu0 %v4977
    %5043 = vmatprep.subr.bf16.mxu0 %v4980
    %5044 = vmatpush1.bf16.msra.mxu0 %v4979
    %5045 = vmatprep.subr.bf16.mxu0 %v4982
    %5046 = vmatpush1.bf16.msra.mxu0 %v4981
    %5047 = vmatprep.subr.bf16.mxu0 %v4984
    %5048 = vmatpush1.bf16.msra.mxu0 %v4983
    %5049 = vmatprep.subr.bf16.mxu0 %v4986
    %5050 = vmatpush1.bf16.msra.mxu0 %v4985
    %5051 = vmatprep.subr.bf16.mxu0 %v4988
    %5052 = vmatpush1.bf16.msra.mxu0 %v4987
    %5053 = vmatprep.subr.bf16.mxu0 %v4990
    %5054 = vmatpush1.bf16.msra.mxu0 %v4989
    %5055 = vmatprep.subr.bf16.mxu0 %v4992
    %5056 = vmatpush1.bf16.msra.mxu0 %v4991
    %5057 = vmatprep.mubr.bf16.mxu0 %v4831
    %5058 = vmatmul.mubr.bf16.gmra.mrb[0].mxu0 %v4830
    %v5059 = vpop.f32.mrb[0].mxu0
    %v5060 = vadd.f32 0.0, %v5059
    %v5061 = vpop.f32.mrb[0].mxu0
    %v5062 = vadd.f32 0.0, %v5061
    %v5063 = vpop.f32.mrb[0].mxu0
    %v5064 = vadd.f32 0.0, %v5063
    %v5065 = vpop.f32.mrb[0].mxu0
    %v5066 = vadd.f32 0.0, %v5065
    %5067 = vdwg.mxu0
    %v5068 = vadd.f32 %v4740, %v5060
    %v5069 = vadd.f32 %v4741, %v5062
    %v5070 = vadd.f32 %v4742, %v5064
    %v5071 = vadd.f32 %v4743, %v5066
    %v5072 = vadd.f32 %v5068, %v5070
    %v5073 = vrot.slane %v5072, 4
    %v5074 = vadd.f32 %v5072, %v5073
    %v5075 = vrot.slane %v5074, 2
    %v5076 = vadd.f32 %v5074, %v5075
    %v5077 = vrot.slane %v5076, 1
    %v5078 = vadd.f32 %v5076, %v5077
    %v5079 = vadd.f32 %v5069, %v5071
    %v5080 = vrot.slane %v5079, 4
    %v5081 = vadd.f32 %v5079, %v5080
    %v5082 = vrot.slane %v5081, 2
    %v5083 = vadd.f32 %v5081, %v5082
    %v5084 = vrot.slane %v5083, 1
    %v5085 = vadd.f32 %v5083, %v5084
    %v5086 = vmul.f32 %v5068, %v5068
    %v5087 = vmul.f32 %v5069, %v5069
    %v5088 = vmul.f32 %v5070, %v5070
    %v5089 = vmul.f32 %v5071, %v5071
    %v5090 = vadd.f32 %v5086, %v5088
    %v5091 = vrot.slane %v5090, 4
    %v5092 = vadd.f32 %v5090, %v5091
    %v5093 = vrot.slane %v5092, 2
    %v5094 = vadd.f32 %v5092, %v5093
    %v5095 = vrot.slane %v5094, 1
    %v5096 = vadd.f32 %v5094, %v5095
    %v5097 = vadd.f32 %v5087, %v5089
    %v5098 = vrot.slane %v5097, 4
    %v5099 = vadd.f32 %v5097, %v5098
    %v5100 = vrot.slane %v5099, 2
    %v5101 = vadd.f32 %v5099, %v5100
    %v5102 = vrot.slane %v5101, 1
    %v5103 = vadd.f32 %v5101, %v5102
    %v5104 = vld [vmem:[%s23] sm:$0xff]
    %v5105 = vld [vmem:[%s23 + $0x8] sm:$0xff]
    %v5106 = vld [vmem:[%s23 + $0x10] sm:$0xff]
    %v5107 = vld [vmem:[%s23 + $0x18] sm:$0xff]
    %v5108 = vld [vmem:[%s23 + $0x20] sm:$0xff]
    %v5109 = vld [vmem:[%s23 + $0x28] sm:$0xff]
    %v5110 = vld [vmem:[%s23 + $0x30] sm:$0xff]
    %v5111 = vld [vmem:[%s23 + $0x38] sm:$0xff]
    %v5112 = vld [vmem:[%s23 + $0x40] sm:$0xff]
    %v5113 = vld [vmem:[%s23 + $0x48] sm:$0xff]
    %v5114 = vld [vmem:[%s23 + $0x50] sm:$0xff]
    %v5115 = vld [vmem:[%s23 + $0x58] sm:$0xff]
    %v5116 = vld [vmem:[%s23 + $0x60] sm:$0xff]
    %v5117 = vld [vmem:[%s23 + $0x68] sm:$0xff]
    %v5118 = vld [vmem:[%s23 + $0x70] sm:$0xff]
    %v5119 = vld [vmem:[%s23 + $0x78] sm:$0xff]
    %v5120 = vld [vmem:[%s23 + $0x80] sm:$0xff]
    %v5121 = vld [vmem:[%s23 + $0x88] sm:$0xff]
    %v5122 = vld [vmem:[%s23 + $0x90] sm:$0xff]
    %v5123 = vld [vmem:[%s23 + $0x98] sm:$0xff]
    %v5124 = vld [vmem:[%s23 + $0xa0] sm:$0xff]
    %v5125 = vld [vmem:[%s23 + $0xa8] sm:$0xff]
    %v5126 = vld [vmem:[%s23 + $0xb0] sm:$0xff]
    %v5127 = vld [vmem:[%s23 + $0xb8] sm:$0xff]
    %v5128 = vld [vmem:[%s23 + $0xc0] sm:$0xff]
    %v5129 = vld [vmem:[%s23 + $0xc8] sm:$0xff]
    %v5130 = vld [vmem:[%s23 + $0xd0] sm:$0xff]
    %v5131 = vld [vmem:[%s23 + $0xd8] sm:$0xff]
    %v5132 = vld [vmem:[%s23 + $0xe0] sm:$0xff]
    %v5133 = vld [vmem:[%s23 + $0xe8] sm:$0xff]
    %v5134 = vld [vmem:[%s23 + $0xf0] sm:$0xff]
    %v5135 = vld [vmem:[%s23 + $0xf8] sm:$0xff]
    %5136 = vmatprep.subr.mxu0 0.0
    %5137 = vmatpush1.msra.mxu0 %v5104
    %5138 = vmatprep.subr.mxu0 0.0
    %5139 = vmatpush1.msra.mxu0 %v5105
    %5140 = vmatprep.subr.mxu0 0.0
    %5141 = vmatpush1.msra.mxu0 %v5106
    %5142 = vmatprep.subr.mxu0 0.0
    %5143 = vmatpush1.msra.mxu0 %v5107
    %5144 = vmatprep.subr.mxu0 0.0
    %5145 = vmatpush1.msra.mxu0 %v5108
    %5146 = vmatprep.subr.mxu0 0.0
    %5147 = vmatpush1.msra.mxu0 %v5109
    %5148 = vmatprep.subr.mxu0 0.0
    %5149 = vmatpush1.msra.mxu0 %v5110
    %5150 = vmatprep.subr.mxu0 0.0
    %5151 = vmatpush1.msra.mxu0 %v5111
    %5152 = vmatprep.subr.mxu0 0.0
    %5153 = vmatpush1.msra.mxu0 %v5112
    %5154 = vmatprep.subr.mxu0 0.0
    %5155 = vmatpush1.msra.mxu0 %v5113
    %5156 = vmatprep.subr.mxu0 0.0
    %5157 = vmatpush1.msra.mxu0 %v5114
    %5158 = vmatprep.subr.mxu0 0.0
    %5159 = vmatpush1.msra.mxu0 %v5115
    %5160 = vmatprep.subr.mxu0 0.0
    %5161 = vmatpush1.msra.mxu0 %v5116
    %5162 = vmatprep.subr.mxu0 0.0
    %5163 = vmatpush1.msra.mxu0 %v5117
    %5164 = vmatprep.subr.mxu0 0.0
    %5165 = vmatpush1.msra.mxu0 %v5118
    %5166 = vmatprep.subr.mxu0 0.0
    %5167 = vmatpush1.msra.mxu0 %v5119
    %5168 = vmatprep.subr.mxu0 0.0
    %5169 = vmatpush1.msra.mxu0 %v5120
    %5170 = vmatprep.subr.mxu0 0.0
    %5171 = vmatpush1.msra.mxu0 %v5121
    %5172 = vmatprep.subr.mxu0 0.0
    %5173 = vmatpush1.msra.mxu0 %v5122
    %5174 = vmatprep.subr.mxu0 0.0
    %5175 = vmatpush1.msra.mxu0 %v5123
    %5176 = vmatprep.subr.mxu0 0.0
    %5177 = vmatpush1.msra.mxu0 %v5124
    %5178 = vmatprep.subr.mxu0 0.0
    %5179 = vmatpush1.msra.mxu0 %v5125
    %5180 = vmatprep.subr.mxu0 0.0
    %5181 = vmatpush1.msra.mxu0 %v5126
    %5182 = vmatprep.subr.mxu0 0.0
    %5183 = vmatpush1.msra.mxu0 %v5127
    %5184 = vmatprep.subr.mxu0 0.0
    %5185 = vmatpush1.msra.mxu0 %v5128
    %5186 = vmatprep.subr.mxu0 0.0
    %5187 = vmatpush1.msra.mxu0 %v5129
    %5188 = vmatprep.subr.mxu0 0.0
    %5189 = vmatpush1.msra.mxu0 %v5130
    %5190 = vmatprep.subr.mxu0 0.0
    %5191 = vmatpush1.msra.mxu0 %v5131
    %5192 = vmatprep.subr.mxu0 0.0
    %5193 = vmatpush1.msra.mxu0 %v5132
    %5194 = vmatprep.subr.mxu0 0.0
    %5195 = vmatpush1.msra.mxu0 %v5133
    %5196 = vmatprep.subr.mxu0 0.0
    %5197 = vmatpush1.msra.mxu0 %v5134
    %5198 = vmatprep.subr.mxu0 0.0
    %5199 = vmatpush1.msra.mxu0 %v5135
    %5200 = vmatprep.mubr.f32.mxu0 %v5085
    %5201 = vmatmul.mubr.f32.gmra.mrb[0].mxu0 %v5078
    %v5202 = vpop.f32.mrb[0].mxu0
    %v5203 = vadd.f32 0.0, %v5202
    %v5204 = vpop.f32.mrb[0].mxu0
    %5205 = vdwg.mxu0
    %v5206 = vrcp.pop 128.0
    %v5207 = vmul.f32 %v5203, %v5206
    %5208 = vmatprep.subr.mxu0 0.0
    %5209 = vmatpush1.msra.mxu0 %v5104
    %5210 = vmatprep.subr.mxu0 0.0
    %5211 = vmatpush1.msra.mxu0 %v5105
    %5212 = vmatprep.subr.mxu0 0.0
    %5213 = vmatpush1.msra.mxu0 %v5106
    %5214 = vmatprep.subr.mxu0 0.0
    %5215 = vmatpush1.msra.mxu0 %v5107
    %5216 = vmatprep.subr.mxu0 0.0
    %5217 = vmatpush1.msra.mxu0 %v5108
    %5218 = vmatprep.subr.mxu0 0.0
    %5219 = vmatpush1.msra.mxu0 %v5109
    %5220 = vmatprep.subr.mxu0 0.0
    %5221 = vmatpush1.msra.mxu0 %v5110
    %5222 = vmatprep.subr.mxu0 0.0
    %5223 = vmatpush1.msra.mxu0 %v5111
    %5224 = vmatprep.subr.mxu0 0.0
    %5225 = vmatpush1.msra.mxu0 %v5112
    %5226 = vmatprep.subr.mxu0 0.0
    %5227 = vmatpush1.msra.mxu0 %v5113
    %5228 = vmatprep.subr.mxu0 0.0
    %5229 = vmatpush1.msra.mxu0 %v5114
    %5230 = vmatprep.subr.mxu0 0.0
    %5231 = vmatpush1.msra.mxu0 %v5115
    %5232 = vmatprep.subr.mxu0 0.0
    %5233 = vmatpush1.msra.mxu0 %v5116
    %5234 = vmatprep.subr.mxu0 0.0
    %5235 = vmatpush1.msra.mxu0 %v5117
    %5236 = vmatprep.subr.mxu0 0.0
    %5237 = vmatpush1.msra.mxu0 %v5118
    %5238 = vmatprep.subr.mxu0 0.0
    %5239 = vmatpush1.msra.mxu0 %v5119
    %5240 = vmatprep.subr.mxu0 0.0
    %5241 = vmatpush1.msra.mxu0 %v5120
    %5242 = vmatprep.subr.mxu0 0.0
    %5243 = vmatpush1.msra.mxu0 %v5121
    %5244 = vmatprep.subr.mxu0 0.0
    %5245 = vmatpush1.msra.mxu0 %v5122
    %5246 = vmatprep.subr.mxu0 0.0
    %5247 = vmatpush1.msra.mxu0 %v5123
    %5248 = vmatprep.subr.mxu0 0.0
    %5249 = vmatpush1.msra.mxu0 %v5124
    %5250 = vmatprep.subr.mxu0 0.0
    %5251 = vmatpush1.msra.mxu0 %v5125
    %5252 = vmatprep.subr.mxu0 0.0
    %5253 = vmatpush1.msra.mxu0 %v5126
    %5254 = vmatprep.subr.mxu0 0.0
    %5255 = vmatpush1.msra.mxu0 %v5127
    %5256 = vmatprep.subr.mxu0 0.0
    %5257 = vmatpush1.msra.mxu0 %v5128
    %5258 = vmatprep.subr.mxu0 0.0
    %5259 = vmatpush1.msra.mxu0 %v5129
    %5260 = vmatprep.subr.mxu0 0.0
    %5261 = vmatpush1.msra.mxu0 %v5130
    %5262 = vmatprep.subr.mxu0 0.0
    %5263 = vmatpush1.msra.mxu0 %v5131
    %5264 = vmatprep.subr.mxu0 0.0
    %5265 = vmatpush1.msra.mxu0 %v5132
    %5266 = vmatprep.subr.mxu0 0.0
    %5267 = vmatpush1.msra.mxu0 %v5133
    %5268 = vmatprep.subr.mxu0 0.0
    %5269 = vmatpush1.msra.mxu0 %v5134
    %5270 = vmatprep.subr.mxu0 0.0
    %5271 = vmatpush1.msra.mxu0 %v5135
    %5272 = vmatprep.mubr.f32.mxu0 %v5103
    %5273 = vmatmul.mubr.f32.gmra.mrb[0].mxu0 %v5096
    %v5274 = vpop.f32.mrb[0].mxu0
    %v5275 = vadd.f32 0.0, %v5274
    %v5276 = vpop.f32.mrb[0].mxu0
    %5277 = vdwg.mxu0
    %v5278 = vmul.f32 %v5275, %v5206
    %v5279 = vmul.f32 %v5207, %v5207
    %v5280 = vsub.f32 %v5278, %v5279
    %v5281 = vmax.f32 %v5280, 0.0
    %v5282 = vld [vmem:[#allocation12] sm:$0x1]
    %v5283 = vadd.f32 %v5281, 1e-05
    %v5284 = vrsqrt.pop %v5283
    %v5285 = vmul.f32 %v5282, %v5284
    %v5286 = vld [vmem:[#allocation14] sm:$0x1]
    %v5287 = vmul.f32 %v5207, %v5285
    %v5288 = vsub.f32 %v5286, %v5287
    %v5289 = vld [vmem:[#allocation11] sm:$0xff]
    %v5290 = vld [vmem:[#allocation11 + $0x8] sm:$0xff]
    %v5291 = vld [vmem:[#allocation11 + $0x10] sm:$0xff]
    %v5292 = vld [vmem:[#allocation11 + $0x18] sm:$0xff]
    %v5293 = vld [vmem:[#allocation11 + $0x20] sm:$0xff]
    %v5294 = vld [vmem:[#allocation11 + $0x28] sm:$0xff]
    %v5295 = vld [vmem:[#allocation11 + $0x30] sm:$0xff]
    %v5296 = vld [vmem:[#allocation11 + $0x38] sm:$0xff]
    %v5298 = vsel %vm3771, %v5285, 0
    %5300 = vmatprep.subr.mxu0 %v5290
    %5301 = vmatpush1.msra.mxu0 %v5289
    %5302 = vmatprep.subr.mxu0 %v5292
    %5303 = vmatpush1.msra.mxu0 %v5291
    %5304 = vmatprep.subr.mxu0 %v5294
    %5305 = vmatpush1.msra.mxu0 %v5293
    %5306 = vmatprep.subr.mxu0 %v5296
    %5307 = vmatpush1.msra.mxu0 %v5295
    %5308 = vmatprep.subr.mxu0 0.0
    %5309 = vmatpush1.msra.mxu0 0.0
    %5310 = vmatprep.subr.mxu0 0.0
    %5311 = vmatpush1.msra.mxu0 0.0
    %5312 = vmatprep.subr.mxu0 0.0
    %5313 = vmatpush1.msra.mxu0 0.0
    %5314 = vmatprep.subr.mxu0 0.0
    %5315 = vmatpush1.msra.mxu0 0.0
    %5316 = vmatprep.subr.mxu0 0.0
    %5317 = vmatpush1.msra.mxu0 0.0
    %5318 = vmatprep.subr.mxu0 0.0
    %5319 = vmatpush1.msra.mxu0 0.0
    %5320 = vmatprep.subr.mxu0 0.0
    %5321 = vmatpush1.msra.mxu0 0.0
    %5322 = vmatprep.subr.mxu0 0.0
    %5323 = vmatpush1.msra.mxu0 0.0
    %5324 = vmatprep.subr.mxu0 0.0
    %5325 = vmatpush1.msra.mxu0 0.0
    %5326 = vmatprep.subr.mxu0 0.0
    %5327 = vmatpush1.msra.mxu0 0.0
    %5328 = vmatprep.subr.mxu0 0.0
    %5329 = vmatpush1.msra.mxu0 0.0
    %5330 = vmatprep.subr.mxu0 0.0
    %5331 = vmatpush1.msra.mxu0 0.0
    %5332 = vmatprep.subr.mxu0 0.0
    %5333 = vmatpush1.msra.mxu0 0.0
    %5334 = vmatprep.subr.mxu0 0.0
    %5335 = vmatpush1.msra.mxu0 0.0
    %5336 = vmatprep.subr.mxu0 0.0
    %5337 = vmatpush1.msra.mxu0 0.0
    %5338 = vmatprep.subr.mxu0 0.0
    %5339 = vmatpush1.msra.mxu0 0.0
    %5340 = vmatprep.subr.mxu0 0.0
    %5341 = vmatpush1.msra.mxu0 0.0
    %5342 = vmatprep.subr.mxu0 0.0
    %5343 = vmatpush1.msra.mxu0 0.0
    %5344 = vmatprep.subr.mxu0 0.0
    %5345 = vmatpush1.msra.mxu0 0.0
    %5346 = vmatprep.subr.mxu0 0.0
    %5347 = vmatpush1.msra.mxu0 0.0
    %5348 = vmatprep.subr.mxu0 0.0
    %5349 = vmatpush1.msra.mxu0 0.0
    %5350 = vmatprep.subr.mxu0 0.0
    %5351 = vmatpush1.msra.mxu0 0.0
    %5352 = vmatprep.subr.mxu0 0.0
    %5353 = vmatpush1.msra.mxu0 0.0
    %5354 = vmatprep.subr.mxu0 0.0
    %5355 = vmatpush1.msra.mxu0 0.0
    %5356 = vmatprep.subr.mxu0 0.0
    %5357 = vmatpush1.msra.mxu0 0.0
    %5358 = vmatprep.subr.mxu0 0.0
    %5359 = vmatpush1.msra.mxu0 0.0
    %5360 = vmatprep.subr.mxu0 0.0
    %5361 = vmatpush1.msra.mxu0 0.0
    %5362 = vmatprep.subr.mxu0 0.0
    %5363 = vmatpush1.msra.mxu0 0.0
    %5364 = vmatprep.mubr.f32.mxu0 0.0
    %5365 = vmatmul.mubr.f32.gmra.mrb[0].mxu0 %v5298
    %v5366 = vpop.f32.mrb[0].mxu0
    %v5367 = vadd.f32 0.0, %v5366
    %v5368 = vpop.f32.mrb[0].mxu0
    %v5369 = vadd.f32 0.0, %v5368
    %5370 = vdwg.mxu0
    %v5372 = vsel %vm3771, %v5288, 0
    %5374 = vmatprep.subr.mxu0 %v5290
    %5375 = vmatpush1.msra.mxu0 %v5289
    %5376 = vmatprep.subr.mxu0 %v5292
    %5377 = vmatpush1.msra.mxu0 %v5291
    %5378 = vmatprep.subr.mxu0 %v5294
    %5379 = vmatpush1.msra.mxu0 %v5293
    %5380 = vmatprep.subr.mxu0 %v5296
    %5381 = vmatpush1.msra.mxu0 %v5295
    %5382 = vmatprep.subr.mxu0 0.0
    %5383 = vmatpush1.msra.mxu0 0.0
    %5384 = vmatprep.subr.mxu0 0.0
    %5385 = vmatpush1.msra.mxu0 0.0
    %5386 = vmatprep.subr.mxu0 0.0
    %5387 = vmatpush1.msra.mxu0 0.0
    %5388 = vmatprep.subr.mxu0 0.0
    %5389 = vmatpush1.msra.mxu0 0.0
    %5390 = vmatprep.subr.mxu0 0.0
    %5391 = vmatpush1.msra.mxu0 0.0
    %5392 = vmatprep.subr.mxu0 0.0
    %5393 = vmatpush1.msra.mxu0 0.0
    %5394 = vmatprep.subr.mxu0 0.0
    %5395 = vmatpush1.msra.mxu0 0.0
    %5396 = vmatprep.subr.mxu0 0.0
    %5397 = vmatpush1.msra.mxu0 0.0
    %5398 = vmatprep.subr.mxu0 0.0
    %5399 = vmatpush1.msra.mxu0 0.0
    %5400 = vmatprep.subr.mxu0 0.0
    %5401 = vmatpush1.msra.mxu0 0.0
    %5402 = vmatprep.subr.mxu0 0.0
    %5403 = vmatpush1.msra.mxu0 0.0
    %5404 = vmatprep.subr.mxu0 0.0
    %5405 = vmatpush1.msra.mxu0 0.0
    %5406 = vmatprep.subr.mxu0 0.0
    %5407 = vmatpush1.msra.mxu0 0.0
    %5408 = vmatprep.subr.mxu0 0.0
    %5409 = vmatpush1.msra.mxu0 0.0
    %5410 = vmatprep.subr.mxu0 0.0
    %5411 = vmatpush1.msra.mxu0 0.0
    %5412 = vmatprep.subr.mxu0 0.0
    %5413 = vmatpush1.msra.mxu0 0.0
    %5414 = vmatprep.subr.mxu0 0.0
    %5415 = vmatpush1.msra.mxu0 0.0
    %5416 = vmatprep.subr.mxu0 0.0
    %5417 = vmatpush1.msra.mxu0 0.0
    %5418 = vmatprep.subr.mxu0 0.0
    %5419 = vmatpush1.msra.mxu0 0.0
    %5420 = vmatprep.subr.mxu0 0.0
    %5421 = vmatpush1.msra.mxu0 0.0
    %5422 = vmatprep.subr.mxu0 0.0
    %5423 = vmatpush1.msra.mxu0 0.0
    %5424 = vmatprep.subr.mxu0 0.0
    %5425 = vmatpush1.msra.mxu0 0.0
    %5426 = vmatprep.subr.mxu0 0.0
    %5427 = vmatpush1.msra.mxu0 0.0
    %5428 = vmatprep.subr.mxu0 0.0
    %5429 = vmatpush1.msra.mxu0 0.0
    %5430 = vmatprep.subr.mxu0 0.0
    %5431 = vmatpush1.msra.mxu0 0.0
    %5432 = vmatprep.subr.mxu0 0.0
    %5433 = vmatpush1.msra.mxu0 0.0
    %5434 = vmatprep.subr.mxu0 0.0
    %5435 = vmatpush1.msra.mxu0 0.0
    %5436 = vmatprep.subr.mxu0 0.0
    %5437 = vmatpush1.msra.mxu0 0.0
    %5438 = vmatprep.mubr.f32.mxu0 0.0
    %5439 = vmatmul.mubr.f32.gmra.mrb[0].mxu0 %v5372
    %v5440 = vpop.f32.mrb[0].mxu0
    %v5441 = vadd.f32 0.0, %v5440
    %v5442 = vpop.f32.mrb[0].mxu0
    %v5443 = vadd.f32 0.0, %v5442
    %5444 = vdwg.mxu0
    %v5445 = vlaneseq
    %v5446 = vshrl.u32 %v5445, 7
    %v5447 = vsub.s32 0, %v5446
    %v5448 = vrot.slane %v5367, %v5447
    %v5449 = vlaneseq
    %v5450 = vshrl.u32 %v5449, 7
    %v5451 = vsub.s32 0, %v5450
    %v5452 = vrot.slane %v5369, %v5451
    %v5453 = vmul.f32 %v5068, %v5448
    %v5454 = vmul.f32 %v5069, %v5452
    %v5455 = vmul.f32 %v5070, %v5448
    %v5456 = vmul.f32 %v5071, %v5452
    %v5457 = vlaneseq
    %v5458 = vshrl.u32 %v5457, 7
    %v5459 = vsub.s32 0, %v5458
    %v5460 = vrot.slane %v5441, %v5459
    %v5461 = vlaneseq
    %v5462 = vshrl.u32 %v5461, 7
    %v5463 = vsub.s32 0, %v5462
    %v5464 = vrot.slane %v5443, %v5463
    %v5465 = vadd.f32 %v5453, %v5460
    %v5466 = vadd.f32 %v5454, %v5464
    %v5467 = vadd.f32 %v5455, %v5460
    %v5468 = vadd.f32 %v5456, %v5464
    %v5469 = vmul.f32 %v5465, 0.2
    %v5470 = vmul.f32 %v5466, 0.2
    %v5471 = vmul.f32 %v5467, 0.2
    %v5472 = vmul.f32 %v5468, 0.2
    %v5473 = vmax.f32 %v5465, %v5469
    %v5474 = vmax.f32 %v5466, %v5470
    %v5475 = vmax.f32 %v5467, %v5471
    %v5476 = vmax.f32 %v5468, %v5472
    %v5477 = vld [vmem:[#allocation15] sm:$0xff]
    %v5479 = vsel %vm3572, %v5477, 0
    %5481 = vmatprep.subr.mxu0 %v5474
    %5482 = vmatpush1.msra.mxu0 %v5473
    %5483 = vmatprep.subr.mxu0 %v5476
    %5484 = vmatpush1.msra.mxu0 %v5475
    %5485 = vmatprep.subr.mxu0 0.0
    %5486 = vmatpush1.msra.mxu0 0.0
    %5487 = vmatprep.subr.mxu0 0.0
    %5488 = vmatpush1.msra.mxu0 0.0
    %5489 = vmatprep.subr.mxu0 0.0
    %5490 = vmatpush1.msra.mxu0 0.0
    %5491 = vmatprep.subr.mxu0 0.0
    %5492 = vmatpush1.msra.mxu0 0.0
    %5493 = vmatprep.subr.mxu0 0.0
    %5494 = vmatpush1.msra.mxu0 0.0
    %5495 = vmatprep.subr.mxu0 0.0
    %5496 = vmatpush1.msra.mxu0 0.0
    %5497 = vmatprep.subr.mxu0 0.0
    %5498 = vmatpush1.msra.mxu0 0.0
    %5499 = vmatprep.subr.mxu0 0.0
    %5500 = vmatpush1.msra.mxu0 0.0
    %5501 = vmatprep.subr.mxu0 0.0
    %5502 = vmatpush1.msra.mxu0 0.0
    %5503 = vmatprep.subr.mxu0 0.0
    %5504 = vmatpush1.msra.mxu0 0.0
    %5505 = vmatprep.subr.mxu0 0.0
    %5506 = vmatpush1.msra.mxu0 0.0
    %5507 = vmatprep.subr.mxu0 0.0
    %5508 = vmatpush1.msra.mxu0 0.0
    %5509 = vmatprep.subr.mxu0 0.0
    %5510 = vmatpush1.msra.mxu0 0.0
    %5511 = vmatprep.subr.mxu0 0.0
    %5512 = vmatpush1.msra.mxu0 0.0
    %5513 = vmatprep.subr.mxu0 0.0
    %5514 = vmatpush1.msra.mxu0 0.0
    %5515 = vmatprep.subr.mxu0 0.0
    %5516 = vmatpush1.msra.mxu0 0.0
    %5517 = vmatprep.subr.mxu0 0.0
    %5518 = vmatpush1.msra.mxu0 0.0
    %5519 = vmatprep.subr.mxu0 0.0
    %5520 = vmatpush1.msra.mxu0 0.0
    %5521 = vmatprep.subr.mxu0 0.0
    %5522 = vmatpush1.msra.mxu0 0.0
    %5523 = vmatprep.subr.mxu0 0.0
    %5524 = vmatpush1.msra.mxu0 0.0
    %5525 = vmatprep.subr.mxu0 0.0
    %5526 = vmatpush1.msra.mxu0 0.0
    %5527 = vmatprep.subr.mxu0 0.0
    %5528 = vmatpush1.msra.mxu0 0.0
    %5529 = vmatprep.subr.mxu0 0.0
    %5530 = vmatpush1.msra.mxu0 0.0
    %5531 = vmatprep.subr.mxu0 0.0
    %5532 = vmatpush1.msra.mxu0 0.0
    %5533 = vmatprep.subr.mxu0 0.0
    %5534 = vmatpush1.msra.mxu0 0.0
    %5535 = vmatprep.subr.mxu0 0.0
    %5536 = vmatpush1.msra.mxu0 0.0
    %5537 = vmatprep.subr.mxu0 0.0
    %5538 = vmatpush1.msra.mxu0 0.0
    %5539 = vmatprep.subr.mxu0 0.0
    %5540 = vmatpush1.msra.mxu0 0.0
    %5541 = vmatprep.subr.mxu0 0.0
    %5542 = vmatpush1.msra.mxu0 0.0
    %5543 = vmatprep.subr.mxu0 0.0
    %5544 = vmatpush1.msra.mxu0 0.0
    %5545 = vmatprep.mubr.f32.mxu0 0.0
    %5546 = vmatmul.mubr.f32.gmra.mrb[0].mxu0 %v5479
    %v5547 = vpop.f32.mrb[0].mxu0
    %v5548 = vadd.f32 0.0, %v5547
    %v5549 = vpop.f32.mrb[0].mxu0
    %v5550 = vadd.f32 0.0, %v5549
    %5551 = vdwg.mxu0
    %v5552 = vpack.c.bf16 %v5548, %v5548
    %v5553 = vpack.c.bf16 %v5550, %v5550
    %v5554 = vld [vmem:[%s33] sm:$0xff]
    %v5555 = vld [vmem:[%s33 + $0x8] sm:$0xff]
    %v5556 = vld [vmem:[%s33 + $0x10] sm:$0xff]
    %v5557 = vld [vmem:[%s33 + $0x18] sm:$0xff]
    %v5558 = vld [vmem:[%s33 + $0x20] sm:$0xff]
    %v5559 = vld [vmem:[%s33 + $0x28] sm:$0xff]
    %v5560 = vld [vmem:[%s33 + $0x30] sm:$0xff]
    %v5561 = vld [vmem:[%s33 + $0x38] sm:$0xff]
    %v5562 = vld [vmem:[%s33 + $0x40] sm:$0xff]
    %v5563 = vld [vmem:[%s33 + $0x48] sm:$0xff]
    %v5564 = vld [vmem:[%s33 + $0x50] sm:$0xff]
    %v5565 = vld [vmem:[%s33 + $0x58] sm:$0xff]
    %v5566 = vld [vmem:[%s33 + $0x60] sm:$0xff]
    %v5567 = vld [vmem:[%s33 + $0x68] sm:$0xff]
    %v5568 = vld [vmem:[%s33 + $0x70] sm:$0xff]
    %v5569 = vld [vmem:[%s33 + $0x78] sm:$0xff]
    %v5570 = vld [vmem:[%s33 + $0x80] sm:$0xff]
    %v5571 = vld [vmem:[%s33 + $0x88] sm:$0xff]
    %v5572 = vld [vmem:[%s33 + $0x90] sm:$0xff]
    %v5573 = vld [vmem:[%s33 + $0x98] sm:$0xff]
    %v5574 = vld [vmem:[%s33 + $0xa0] sm:$0xff]
    %v5575 = vld [vmem:[%s33 + $0xa8] sm:$0xff]
    %v5576 = vld [vmem:[%s33 + $0xb0] sm:$0xff]
    %v5577 = vld [vmem:[%s33 + $0xb8] sm:$0xff]
    %v5578 = vld [vmem:[%s33 + $0xc0] sm:$0xff]
    %v5579 = vld [vmem:[%s33 + $0xc8] sm:$0xff]
    %v5580 = vld [vmem:[%s33 + $0xd0] sm:$0xff]
    %v5581 = vld [vmem:[%s33 + $0xd8] sm:$0xff]
    %v5582 = vld [vmem:[%s33 + $0xe0] sm:$0xff]
    %v5583 = vld [vmem:[%s33 + $0xe8] sm:$0xff]
    %v5584 = vld [vmem:[%s33 + $0xf0] sm:$0xff]
    %v5585 = vld [vmem:[%s33 + $0xf8] sm:$0xff]
    %s5586 = scalar_lea.vmem [#allocation15], 8
    %v5587 = vld [vmem:[%s5586] sm:$0xff]
    %v5589 = vsel %vm3572, %v5587, 0
    %5591 = vmatprep.subr.mxu0 %v5474
    %5592 = vmatpush1.msra.mxu0 %v5473
    %5593 = vmatprep.subr.mxu0 %v5476
    %5594 = vmatpush1.msra.mxu0 %v5475
    %5595 = vmatprep.subr.mxu0 0.0
    %5596 = vmatpush1.msra.mxu0 0.0
    %5597 = vmatprep.subr.mxu0 0.0
    %5598 = vmatpush1.msra.mxu0 0.0
    %5599 = vmatprep.subr.mxu0 0.0
    %5600 = vmatpush1.msra.mxu0 0.0
    %5601 = vmatprep.subr.mxu0 0.0
    %5602 = vmatpush1.msra.mxu0 0.0
    %5603 = vmatprep.subr.mxu0 0.0
    %5604 = vmatpush1.msra.mxu0 0.0
    %5605 = vmatprep.subr.mxu0 0.0
    %5606 = vmatpush1.msra.mxu0 0.0
    %5607 = vmatprep.subr.mxu0 0.0
    %5608 = vmatpush1.msra.mxu0 0.0
    %5609 = vmatprep.subr.mxu0 0.0
    %5610 = vmatpush1.msra.mxu0 0.0
    %5611 = vmatprep.subr.mxu0 0.0
    %5612 = vmatpush1.msra.mxu0 0.0
    %5613 = vmatprep.subr.mxu0 0.0
    %5614 = vmatpush1.msra.mxu0 0.0
    %5615 = vmatprep.subr.mxu0 0.0
    %5616 = vmatpush1.msra.mxu0 0.0
    %5617 = vmatprep.subr.mxu0 0.0
    %5618 = vmatpush1.msra.mxu0 0.0
    %5619 = vmatprep.subr.mxu0 0.0
    %5620 = vmatpush1.msra.mxu0 0.0
    %5621 = vmatprep.subr.mxu0 0.0
    %5622 = vmatpush1.msra.mxu0 0.0
    %5623 = vmatprep.subr.mxu0 0.0
    %5624 = vmatpush1.msra.mxu0 0.0
    %5625 = vmatprep.subr.mxu0 0.0
    %5626 = vmatpush1.msra.mxu0 0.0
    %5627 = vmatprep.subr.mxu0 0.0
    %5628 = vmatpush1.msra.mxu0 0.0
    %5629 = vmatprep.subr.mxu0 0.0
    %5630 = vmatpush1.msra.mxu0 0.0
    %5631 = vmatprep.subr.mxu0 0.0
    %5632 = vmatpush1.msra.mxu0 0.0
    %5633 = vmatprep.subr.mxu0 0.0
    %5634 = vmatpush1.msra.mxu0 0.0
    %5635 = vmatprep.subr.mxu0 0.0
    %5636 = vmatpush1.msra.mxu0 0.0
    %5637 = vmatprep.subr.mxu0 0.0
    %5638 = vmatpush1.msra.mxu0 0.0
    %5639 = vmatprep.subr.mxu0 0.0
    %5640 = vmatpush1.msra.mxu0 0.0
    %5641 = vmatprep.subr.mxu0 0.0
    %5642 = vmatpush1.msra.mxu0 0.0
    %5643 = vmatprep.subr.mxu0 0.0
    %5644 = vmatpush1.msra.mxu0 0.0
    %5645 = vmatprep.subr.mxu0 0.0
    %5646 = vmatpush1.msra.mxu0 0.0
    %5647 = vmatprep.subr.mxu0 0.0
    %5648 = vmatpush1.msra.mxu0 0.0
    %5649 = vmatprep.subr.mxu0 0.0
    %5650 = vmatpush1.msra.mxu0 0.0
    %5651 = vmatprep.subr.mxu0 0.0
    %5652 = vmatpush1.msra.mxu0 0.0
    %5653 = vmatprep.subr.mxu0 0.0
    %5654 = vmatpush1.msra.mxu0 0.0
    %5655 = vmatprep.mubr.f32.mxu0 0.0
    %5656 = vmatmul.mubr.f32.gmra.mrb[0].mxu0 %v5589
    %v5657 = vpop.f32.mrb[0].mxu0
    %v5658 = vadd.f32 0.0, %v5657
    %v5659 = vpop.f32.mrb[0].mxu0
    %v5660 = vadd.f32 0.0, %v5659
    %5661 = vdwg.mxu0
    %v5662 = vpack.c.bf16 %v5658, %v5658
    %v5663 = vpack.c.bf16 %v5660, %v5660
    %s5664 = scalar_lea.vmem %s33, 256
    %v5665 = vld [vmem:[%s5664] sm:$0xff]
    %v5666 = vld [vmem:[%s5664 + $0x8] sm:$0xff]
    %v5667 = vld [vmem:[%s5664 + $0x10] sm:$0xff]
    %v5668 = vld [vmem:[%s5664 + $0x18] sm:$0xff]
    %v5669 = vld [vmem:[%s5664 + $0x20] sm:$0xff]
    %v5670 = vld [vmem:[%s5664 + $0x28] sm:$0xff]
    %v5671 = vld [vmem:[%s5664 + $0x30] sm:$0xff]
    %v5672 = vld [vmem:[%s5664 + $0x38] sm:$0xff]
    %v5673 = vld [vmem:[%s5664 + $0x40] sm:$0xff]
    %v5674 = vld [vmem:[%s5664 + $0x48] sm:$0xff]
    %v5675 = vld [vmem:[%s5664 + $0x50] sm:$0xff]
    %v5676 = vld [vmem:[%s5664 + $0x58] sm:$0xff]
    %v5677 = vld [vmem:[%s5664 + $0x60] sm:$0xff]
    %v5678 = vld [vmem:[%s5664 + $0x68] sm:$0xff]
    %v5679 = vld [vmem:[%s5664 + $0x70] sm:$0xff]
    %v5680 = vld [vmem:[%s5664 + $0x78] sm:$0xff]
    %v5681 = vld [vmem:[%s5664 + $0x80] sm:$0xff]
    %v5682 = vld [vmem:[%s5664 + $0x88] sm:$0xff]
    %v5683 = vld [vmem:[%s5664 + $0x90] sm:$0xff]
    %v5684 = vld [vmem:[%s5664 + $0x98] sm:$0xff]
    %v5685 = vld [vmem:[%s5664 + $0xa0] sm:$0xff]
    %v5686 = vld [vmem:[%s5664 + $0xa8] sm:$0xff]
    %v5687 = vld [vmem:[%s5664 + $0xb0] sm:$0xff]
    %v5688 = vld [vmem:[%s5664 + $0xb8] sm:$0xff]
    %v5689 = vld [vmem:[%s5664 + $0xc0] sm:$0xff]
    %v5690 = vld [vmem:[%s5664 + $0xc8] sm:$0xff]
    %v5691 = vld [vmem:[%s5664 + $0xd0] sm:$0xff]
    %v5692 = vld [vmem:[%s5664 + $0xd8] sm:$0xff]
    %v5693 = vld [vmem:[%s5664 + $0xe0] sm:$0xff]
    %v5694 = vld [vmem:[%s5664 + $0xe8] sm:$0xff]
    %v5695 = vld [vmem:[%s5664 + $0xf0] sm:$0xff]
    %v5696 = vld [vmem:[%s5664 + $0xf8] sm:$0xff]
    %v5729 = vunpack.c.l.b16 %v5665
    %v5730 = vunpack.c.h.b16 %v5665
    %v5731 = vunpack.c.l.b16 %v5666
    %v5732 = vunpack.c.h.b16 %v5666
    %v5733 = vunpack.c.l.b16 %v5667
    %v5734 = vunpack.c.h.b16 %v5667
    %v5735 = vunpack.c.l.b16 %v5668
    %v5736 = vunpack.c.h.b16 %v5668
    %v5737 = vunpack.c.l.b16 %v5669
    %v5738 = vunpack.c.h.b16 %v5669
    %v5739 = vunpack.c.l.b16 %v5670
    %v5740 = vunpack.c.h.b16 %v5670
    %v5741 = vunpack.c.l.b16 %v5671
    %v5742 = vunpack.c.h.b16 %v5671
    %v5743 = vunpack.c.l.b16 %v5672
    %v5744 = vunpack.c.h.b16 %v5672
    %v5745 = vunpack.c.l.b16 %v5673
    %v5746 = vunpack.c.h.b16 %v5673
    %v5747 = vunpack.c.l.b16 %v5674
    %v5748 = vunpack.c.h.b16 %v5674
    %v5749 = vunpack.c.l.b16 %v5675
    %v5750 = vunpack.c.h.b16 %v5675
    %v5751 = vunpack.c.l.b16 %v5676
    %v5752 = vunpack.c.h.b16 %v5676
    %v5753 = vunpack.c.l.b16 %v5677
    %v5754 = vunpack.c.h.b16 %v5677
    %v5755 = vunpack.c.l.b16 %v5678
    %v5756 = vunpack.c.h.b16 %v5678
    %v5757 = vunpack.c.l.b16 %v5679
    %v5758 = vunpack.c.h.b16 %v5679
    %v5759 = vunpack.c.l.b16 %v5680
    %v5760 = vunpack.c.h.b16 %v5680
    %v5761 = vunpack.c.l.b16 %v5681
    %v5762 = vunpack.c.h.b16 %v5681
    %v5763 = vunpack.c.l.b16 %v5682
    %v5764 = vunpack.c.h.b16 %v5682
    %v5765 = vunpack.c.l.b16 %v5683
    %v5766 = vunpack.c.h.b16 %v5683
    %v5767 = vunpack.c.l.b16 %v5684
    %v5768 = vunpack.c.h.b16 %v5684
    %v5769 = vunpack.c.l.b16 %v5685
    %v5770 = vunpack.c.h.b16 %v5685
    %v5771 = vunpack.c.l.b16 %v5686
    %v5772 = vunpack.c.h.b16 %v5686
    %v5773 = vunpack.c.l.b16 %v5687
    %v5774 = vunpack.c.h.b16 %v5687
    %v5775 = vunpack.c.l.b16 %v5688
    %v5776 = vunpack.c.h.b16 %v5688
    %v5777 = vunpack.c.l.b16 %v5689
    %v5778 = vunpack.c.h.b16 %v5689
    %v5779 = vunpack.c.l.b16 %v5690
    %v5780 = vunpack.c.h.b16 %v5690
    %v5781 = vunpack.c.l.b16 %v5691
    %v5782 = vunpack.c.h.b16 %v5691
    %v5783 = vunpack.c.l.b16 %v5692
    %v5784 = vunpack.c.h.b16 %v5692
    %v5785 = vunpack.c.l.b16 %v5693
    %v5786 = vunpack.c.h.b16 %v5693
    %v5787 = vunpack.c.l.b16 %v5694
    %v5788 = vunpack.c.h.b16 %v5694
    %v5789 = vunpack.c.l.b16 %v5695
    %v5790 = vunpack.c.h.b16 %v5695
    %v5791 = vunpack.c.l.b16 %v5696
    %v5792 = vunpack.c.h.b16 %v5696
    %v5793 = vpack.c.b16 %v5731, %v5729
    %v5794 = vpack.c.b16 %v5732, %v5730
    %v5795 = vpack.c.b16 %v5735, %v5733
    %v5796 = vpack.c.b16 %v5736, %v5734
    %v5797 = vpack.c.b16 %v5739, %v5737
    %v5798 = vpack.c.b16 %v5740, %v5738
    %v5799 = vpack.c.b16 %v5743, %v5741
    %v5800 = vpack.c.b16 %v5744, %v5742
    %v5801 = vpack.c.b16 %v5747, %v5745
    %v5802 = vpack.c.b16 %v5748, %v5746
    %v5803 = vpack.c.b16 %v5751, %v5749
    %v5804 = vpack.c.b16 %v5752, %v5750
    %v5805 = vpack.c.b16 %v5755, %v5753
    %v5806 = vpack.c.b16 %v5756, %v5754
    %v5807 = vpack.c.b16 %v5759, %v5757
    %v5808 = vpack.c.b16 %v5760, %v5758
    %v5809 = vpack.c.b16 %v5763, %v5761
    %v5810 = vpack.c.b16 %v5764, %v5762
    %v5811 = vpack.c.b16 %v5767, %v5765
    %v5812 = vpack.c.b16 %v5768, %v5766
    %v5813 = vpack.c.b16 %v5771, %v5769
    %v5814 = vpack.c.b16 %v5772, %v5770
    %v5815 = vpack.c.b16 %v5775, %v5773
    %v5816 = vpack.c.b16 %v5776, %v5774
    %v5817 = vpack.c.b16 %v5779, %v5777
    %v5818 = vpack.c.b16 %v5780, %v5778
    %v5819 = vpack.c.b16 %v5783, %v5781
    %v5820 = vpack.c.b16 %v5784, %v5782
    %v5821 = vpack.c.b16 %v5787, %v5785
    %v5822 = vpack.c.b16 %v5788, %v5786
    %v5823 = vpack.c.b16 %v5791, %v5789
    %v5824 = vpack.c.b16 %v5792, %v5790
    %5857 = vmatprep.subr.bf16.mxu0 %v5794
    %5858 = vmatpush1.bf16.msra.mxu0 %v5793
    %5859 = vmatprep.subr.bf16.mxu0 %v5796
    %5860 = vmatpush1.bf16.msra.mxu0 %v5795
    %5861 = vmatprep.subr.bf16.mxu0 %v5798
    %5862 = vmatpush1.bf16.msra.mxu0 %v5797
    %5863 = vmatprep.subr.bf16.mxu0 %v5800
    %5864 = vmatpush1.bf16.msra.mxu0 %v5799
    %5865 = vmatprep.subr.bf16.mxu0 %v5802
    %5866 = vmatpush1.bf16.msra.mxu0 %v5801
    %5867 = vmatprep.subr.bf16.mxu0 %v5804
    %5868 = vmatpush1.bf16.msra.mxu0 %v5803
    %5869 = vmatprep.subr.bf16.mxu0 %v5806
    %5870 = vmatpush1.bf16.msra.mxu0 %v5805
    %5871 = vmatprep.subr.bf16.mxu0 %v5808
    %5872 = vmatpush1.bf16.msra.mxu0 %v5807
    %5873 = vmatprep.subr.bf16.mxu0 %v5810
    %5874 = vmatpush1.bf16.msra.mxu0 %v5809
    %5875 = vmatprep.subr.bf16.mxu0 %v5812
    %5876 = vmatpush1.bf16.msra.mxu0 %v5811
    %5877 = vmatprep.subr.bf16.mxu0 %v5814
    %5878 = vmatpush1.bf16.msra.mxu0 %v5813
    %5879 = vmatprep.subr.bf16.mxu0 %v5816
    %5880 = vmatpush1.bf16.msra.mxu0 %v5815
    %5881 = vmatprep.subr.bf16.mxu0 %v5818
    %5882 = vmatpush1.bf16.msra.mxu0 %v5817
    %5883 = vmatprep.subr.bf16.mxu0 %v5820
    %5884 = vmatpush1.bf16.msra.mxu0 %v5819
    %5885 = vmatprep.subr.bf16.mxu0 %v5822
    %5886 = vmatpush1.bf16.msra.mxu0 %v5821
    %5887 = vmatprep.subr.bf16.mxu0 %v5824
    %5888 = vmatpush1.bf16.msra.mxu0 %v5823
    %5889 = vmatprep.mubr.bf16.mxu0 %v5663
    %5890 = vmatmul.mubr.bf16.gmra.mrb[0].mxu0 %v5662
    %v5891 = vpop.f32.mrb[0].mxu0
    %v5892 = vadd.f32 0.0, %v5891
    %v5893 = vpop.f32.mrb[0].mxu0
    %v5894 = vadd.f32 0.0, %v5893
    %v5895 = vpop.f32.mrb[0].mxu0
    %v5896 = vpop.f32.mrb[0].mxu0
    %5897 = vdwg.mxu0
    %v5930 = vunpack.c.l.b16 %v5554
    %v5931 = vunpack.c.h.b16 %v5554
    %v5932 = vunpack.c.l.b16 %v5555
    %v5933 = vunpack.c.h.b16 %v5555
    %v5934 = vunpack.c.l.b16 %v5556
    %v5935 = vunpack.c.h.b16 %v5556
    %v5936 = vunpack.c.l.b16 %v5557
    %v5937 = vunpack.c.h.b16 %v5557
    %v5938 = vunpack.c.l.b16 %v5558
    %v5939 = vunpack.c.h.b16 %v5558
    %v5940 = vunpack.c.l.b16 %v5559
    %v5941 = vunpack.c.h.b16 %v5559
    %v5942 = vunpack.c.l.b16 %v5560
    %v5943 = vunpack.c.h.b16 %v5560
    %v5944 = vunpack.c.l.b16 %v5561
    %v5945 = vunpack.c.h.b16 %v5561
    %v5946 = vunpack.c.l.b16 %v5562
    %v5947 = vunpack.c.h.b16 %v5562
    %v5948 = vunpack.c.l.b16 %v5563
    %v5949 = vunpack.c.h.b16 %v5563
    %v5950 = vunpack.c.l.b16 %v5564
    %v5951 = vunpack.c.h.b16 %v5564
    %v5952 = vunpack.c.l.b16 %v5565
    %v5953 = vunpack.c.h.b16 %v5565
    %v5954 = vunpack.c.l.b16 %v5566
    %v5955 = vunpack.c.h.b16 %v5566
    %v5956 = vunpack.c.l.b16 %v5567
    %v5957 = vunpack.c.h.b16 %v5567
    %v5958 = vunpack.c.l.b16 %v5568
    %v5959 = vunpack.c.h.b16 %v5568
    %v5960 = vunpack.c.l.b16 %v5569
    %v5961 = vunpack.c.h.b16 %v5569
    %v5962 = vunpack.c.l.b16 %v5570
    %v5963 = vunpack.c.h.b16 %v5570
    %v5964 = vunpack.c.l.b16 %v5571
    %v5965 = vunpack.c.h.b16 %v5571
    %v5966 = vunpack.c.l.b16 %v5572
    %v5967 = vunpack.c.h.b16 %v5572
    %v5968 = vunpack.c.l.b16 %v5573
    %v5969 = vunpack.c.h.b16 %v5573
    %v5970 = vunpack.c.l.b16 %v5574
    %v5971 = vunpack.c.h.b16 %v5574
    %v5972 = vunpack.c.l.b16 %v5575
    %v5973 = vunpack.c.h.b16 %v5575
    %v5974 = vunpack.c.l.b16 %v5576
    %v5975 = vunpack.c.h.b16 %v5576
    %v5976 = vunpack.c.l.b16 %v5577
    %v5977 = vunpack.c.h.b16 %v5577
    %v5978 = vunpack.c.l.b16 %v5578
    %v5979 = vunpack.c.h.b16 %v5578
    %v5980 = vunpack.c.l.b16 %v5579
    %v5981 = vunpack.c.h.b16 %v5579
    %v5982 = vunpack.c.l.b16 %v5580
    %v5983 = vunpack.c.h.b16 %v5580
    %v5984 = vunpack.c.l.b16 %v5581
    %v5985 = vunpack.c.h.b16 %v5581
    %v5986 = vunpack.c.l.b16 %v5582
    %v5987 = vunpack.c.h.b16 %v5582
    %v5988 = vunpack.c.l.b16 %v5583
    %v5989 = vunpack.c.h.b16 %v5583
    %v5990 = vunpack.c.l.b16 %v5584
    %v5991 = vunpack.c.h.b16 %v5584
    %v5992 = vunpack.c.l.b16 %v5585
    %v5993 = vunpack.c.h.b16 %v5585
    %v5994 = vpack.c.b16 %v5932, %v5930
    %v5995 = vpack.c.b16 %v5933, %v5931
    %v5996 = vpack.c.b16 %v5936, %v5934
    %v5997 = vpack.c.b16 %v5937, %v5935
    %v5998 = vpack.c.b16 %v5940, %v5938
    %v5999 = vpack.c.b16 %v5941, %v5939
    %v6000 = vpack.c.b16 %v5944, %v5942
    %v6001 = vpack.c.b16 %v5945, %v5943
    %v6002 = vpack.c.b16 %v5948, %v5946
    %v6003 = vpack.c.b16 %v5949, %v5947
    %v6004 = vpack.c.b16 %v5952, %v5950
    %v6005 = vpack.c.b16 %v5953, %v5951
    %v6006 = vpack.c.b16 %v5956, %v5954
    %v6007 = vpack.c.b16 %v5957, %v5955
    %v6008 = vpack.c.b16 %v5960, %v5958
    %v6009 = vpack.c.b16 %v5961, %v5959
    %v6010 = vpack.c.b16 %v5964, %v5962
    %v6011 = vpack.c.b16 %v5965, %v5963
    %v6012 = vpack.c.b16 %v5968, %v5966
    %v6013 = vpack.c.b16 %v5969, %v5967
    %v6014 = vpack.c.b16 %v5972, %v5970
    %v6015 = vpack.c.b16 %v5973, %v5971
    %v6016 = vpack.c.b16 %v5976, %v5974
    %v6017 = vpack.c.b16 %v5977, %v5975
    %v6018 = vpack.c.b16 %v5980, %v5978
    %v6019 = vpack.c.b16 %v5981, %v5979
    %v6020 = vpack.c.b16 %v5984, %v5982
    %v6021 = vpack.c.b16 %v5985, %v5983
    %v6022 = vpack.c.b16 %v5988, %v5986
    %v6023 = vpack.c.b16 %v5989, %v5987
    %v6024 = vpack.c.b16 %v5992, %v5990
    %v6025 = vpack.c.b16 %v5993, %v5991
    %6058 = vmatprep.subr.bf16.mxu0 %v5995
    %6059 = vmatpush1.bf16.msra.mxu0 %v5994
    %6060 = vmatprep.subr.bf16.mxu0 %v5997
    %6061 = vmatpush1.bf16.msra.mxu0 %v5996
    %6062 = vmatprep.subr.bf16.mxu0 %v5999
    %6063 = vmatpush1.bf16.msra.mxu0 %v5998
    %6064 = vmatprep.subr.bf16.mxu0 %v6001
    %6065 = vmatpush1.bf16.msra.mxu0 %v6000
    %6066 = vmatprep.subr.bf16.mxu0 %v6003
    %6067 = vmatpush1.bf16.msra.mxu0 %v6002
    %6068 = vmatprep.subr.bf16.mxu0 %v6005
    %6069 = vmatpush1.bf16.msra.mxu0 %v6004
    %6070 = vmatprep.subr.bf16.mxu0 %v6007
    %6071 = vmatpush1.bf16.msra.mxu0 %v6006
    %6072 = vmatprep.subr.bf16.mxu0 %v6009
    %6073 = vmatpush1.bf16.msra.mxu0 %v6008
    %6074 = vmatprep.subr.bf16.mxu0 %v6011
    %6075 = vmatpush1.bf16.msra.mxu0 %v6010
    %6076 = vmatprep.subr.bf16.mxu0 %v6013
    %6077 = vmatpush1.bf16.msra.mxu0 %v6012
    %6078 = vmatprep.subr.bf16.mxu0 %v6015
    %6079 = vmatpush1.bf16.msra.mxu0 %v6014
    %6080 = vmatprep.subr.bf16.mxu0 %v6017
    %6081 = vmatpush1.bf16.msra.mxu0 %v6016
    %6082 = vmatprep.subr.bf16.mxu0 %v6019
    %6083 = vmatpush1.bf16.msra.mxu0 %v6018
    %6084 = vmatprep.subr.bf16.mxu0 %v6021
    %6085 = vmatpush1.bf16.msra.mxu0 %v6020
    %6086 = vmatprep.subr.bf16.mxu0 %v6023
    %6087 = vmatpush1.bf16.msra.mxu0 %v6022
    %6088 = vmatprep.subr.bf16.mxu0 %v6025
    %6089 = vmatpush1.bf16.msra.mxu0 %v6024
    %6090 = vmatprep.mubr.bf16.mxu0 %v5553
    %6091 = vmatmul.mubr.bf16.gmra.mrb[0].mxu0 %v5552
    %v6092 = vpop.f32.mrb[0].mxu0
    %v6093 = vadd.f32 %v5892, %v6092
    %v6094 = vpop.f32.mrb[0].mxu0
    %v6095 = vadd.f32 %v5894, %v6094
    %v6096 = vpop.f32.mrb[0].mxu0
    %v6097 = vpop.f32.mrb[0].mxu0
    %6098 = vdwg.mxu0
    %s6099 = scalar_lea.vmem [#allocation15], 16
    %v6100 = vld [vmem:[%s6099] sm:$0xff]
    %v6102 = vsel %vm3572, %v6100, 0
    %6104 = vmatprep.subr.mxu0 %v5474
    %6105 = vmatpush1.msra.mxu0 %v5473
    %6106 = vmatprep.subr.mxu0 %v5476
    %6107 = vmatpush1.msra.mxu0 %v5475
    %6108 = vmatprep.subr.mxu0 0.0
    %6109 = vmatpush1.msra.mxu0 0.0
    %6110 = vmatprep.subr.mxu0 0.0
    %6111 = vmatpush1.msra.mxu0 0.0
    %6112 = vmatprep.subr.mxu0 0.0
    %6113 = vmatpush1.msra.mxu0 0.0
    %6114 = vmatprep.subr.mxu0 0.0
    %6115 = vmatpush1.msra.mxu0 0.0
    %6116 = vmatprep.subr.mxu0 0.0
    %6117 = vmatpush1.msra.mxu0 0.0
    %6118 = vmatprep.subr.mxu0 0.0
    %6119 = vmatpush1.msra.mxu0 0.0
    %6120 = vmatprep.subr.mxu0 0.0
    %6121 = vmatpush1.msra.mxu0 0.0
    %6122 = vmatprep.subr.mxu0 0.0
    %6123 = vmatpush1.msra.mxu0 0.0
    %6124 = vmatprep.subr.mxu0 0.0
    %6125 = vmatpush1.msra.mxu0 0.0
    %6126 = vmatprep.subr.mxu0 0.0
    %6127 = vmatpush1.msra.mxu0 0.0
    %6128 = vmatprep.subr.mxu0 0.0
    %6129 = vmatpush1.msra.mxu0 0.0
    %6130 = vmatprep.subr.mxu0 0.0
    %6131 = vmatpush1.msra.mxu0 0.0
    %6132 = vmatprep.subr.mxu0 0.0
    %6133 = vmatpush1.msra.mxu0 0.0
    %6134 = vmatprep.subr.mxu0 0.0
    %6135 = vmatpush1.msra.mxu0 0.0
    %6136 = vmatprep.subr.mxu0 0.0
    %6137 = vmatpush1.msra.mxu0 0.0
    %6138 = vmatprep.subr.mxu0 0.0
    %6139 = vmatpush1.msra.mxu0 0.0
    %6140 = vmatprep.subr.mxu0 0.0
    %6141 = vmatpush1.msra.mxu0 0.0
    %6142 = vmatprep.subr.mxu0 0.0
    %6143 = vmatpush1.msra.mxu0 0.0
    %6144 = vmatprep.subr.mxu0 0.0
    %6145 = vmatpush1.msra.mxu0 0.0
    %6146 = vmatprep.subr.mxu0 0.0
    %6147 = vmatpush1.msra.mxu0 0.0
    %6148 = vmatprep.subr.mxu0 0.0
    %6149 = vmatpush1.msra.mxu0 0.0
    %6150 = vmatprep.subr.mxu0 0.0
    %6151 = vmatpush1.msra.mxu0 0.0
    %6152 = vmatprep.subr.mxu0 0.0
    %6153 = vmatpush1.msra.mxu0 0.0
    %6154 = vmatprep.subr.mxu0 0.0
    %6155 = vmatpush1.msra.mxu0 0.0
    %6156 = vmatprep.subr.mxu0 0.0
    %6157 = vmatpush1.msra.mxu0 0.0
    %6158 = vmatprep.subr.mxu0 0.0
    %6159 = vmatpush1.msra.mxu0 0.0
    %6160 = vmatprep.subr.mxu0 0.0
    %6161 = vmatpush1.msra.mxu0 0.0
    %6162 = vmatprep.subr.mxu0 0.0
    %6163 = vmatpush1.msra.mxu0 0.0
    %6164 = vmatprep.subr.mxu0 0.0
    %6165 = vmatpush1.msra.mxu0 0.0
    %6166 = vmatprep.subr.mxu0 0.0
    %6167 = vmatpush1.msra.mxu0 0.0
    %6168 = vmatprep.mubr.f32.mxu0 0.0
    %6169 = vmatmul.mubr.f32.gmra.mrb[0].mxu0 %v6102
    %v6170 = vpop.f32.mrb[0].mxu0
    %v6171 = vadd.f32 0.0, %v6170
    %v6172 = vpop.f32.mrb[0].mxu0
    %v6173 = vadd.f32 0.0, %v6172
    %6174 = vdwg.mxu0
    %v6175 = vpack.c.bf16 %v6171, %v6171
    %v6176 = vpack.c.bf16 %v6173, %v6173
    %s6177 = scalar_lea.vmem %s33, 512
    %v6178 = vld [vmem:[%s6177] sm:$0xff]
    %v6179 = vld [vmem:[%s6177 + $0x8] sm:$0xff]
    %v6180 = vld [vmem:[%s6177 + $0x10] sm:$0xff]
    %v6181 = vld [vmem:[%s6177 + $0x18] sm:$0xff]
    %v6182 = vld [vmem:[%s6177 + $0x20] sm:$0xff]
    %v6183 = vld [vmem:[%s6177 + $0x28] sm:$0xff]
    %v6184 = vld [vmem:[%s6177 + $0x30] sm:$0xff]
    %v6185 = vld [vmem:[%s6177 + $0x38] sm:$0xff]
    %v6186 = vld [vmem:[%s6177 + $0x40] sm:$0xff]
    %v6187 = vld [vmem:[%s6177 + $0x48] sm:$0xff]
    %v6188 = vld [vmem:[%s6177 + $0x50] sm:$0xff]
    %v6189 = vld [vmem:[%s6177 + $0x58] sm:$0xff]
    %v6190 = vld [vmem:[%s6177 + $0x60] sm:$0xff]
    %v6191 = vld [vmem:[%s6177 + $0x68] sm:$0xff]
    %v6192 = vld [vmem:[%s6177 + $0x70] sm:$0xff]
    %v6193 = vld [vmem:[%s6177 + $0x78] sm:$0xff]
    %v6194 = vld [vmem:[%s6177 + $0x80] sm:$0xff]
    %v6195 = vld [vmem:[%s6177 + $0x88] sm:$0xff]
    %v6196 = vld [vmem:[%s6177 + $0x90] sm:$0xff]
    %v6197 = vld [vmem:[%s6177 + $0x98] sm:$0xff]
    %v6198 = vld [vmem:[%s6177 + $0xa0] sm:$0xff]
    %v6199 = vld [vmem:[%s6177 + $0xa8] sm:$0xff]
    %v6200 = vld [vmem:[%s6177 + $0xb0] sm:$0xff]
    %v6201 = vld [vmem:[%s6177 + $0xb8] sm:$0xff]
    %v6202 = vld [vmem:[%s6177 + $0xc0] sm:$0xff]
    %v6203 = vld [vmem:[%s6177 + $0xc8] sm:$0xff]
    %v6204 = vld [vmem:[%s6177 + $0xd0] sm:$0xff]
    %v6205 = vld [vmem:[%s6177 + $0xd8] sm:$0xff]
    %v6206 = vld [vmem:[%s6177 + $0xe0] sm:$0xff]
    %v6207 = vld [vmem:[%s6177 + $0xe8] sm:$0xff]
    %v6208 = vld [vmem:[%s6177 + $0xf0] sm:$0xff]
    %v6209 = vld [vmem:[%s6177 + $0xf8] sm:$0xff]
    %v6242 = vunpack.c.l.b16 %v6178
    %v6243 = vunpack.c.h.b16 %v6178
    %v6244 = vunpack.c.l.b16 %v6179
    %v6245 = vunpack.c.h.b16 %v6179
    %v6246 = vunpack.c.l.b16 %v6180
    %v6247 = vunpack.c.h.b16 %v6180
    %v6248 = vunpack.c.l.b16 %v6181
    %v6249 = vunpack.c.h.b16 %v6181
    %v6250 = vunpack.c.l.b16 %v6182
    %v6251 = vunpack.c.h.b16 %v6182
    %v6252 = vunpack.c.l.b16 %v6183
    %v6253 = vunpack.c.h.b16 %v6183
    %v6254 = vunpack.c.l.b16 %v6184
    %v6255 = vunpack.c.h.b16 %v6184
    %v6256 = vunpack.c.l.b16 %v6185
    %v6257 = vunpack.c.h.b16 %v6185
    %v6258 = vunpack.c.l.b16 %v6186
    %v6259 = vunpack.c.h.b16 %v6186
    %v6260 = vunpack.c.l.b16 %v6187
    %v6261 = vunpack.c.h.b16 %v6187
    %v6262 = vunpack.c.l.b16 %v6188
    %v6263 = vunpack.c.h.b16 %v6188
    %v6264 = vunpack.c.l.b16 %v6189
    %v6265 = vunpack.c.h.b16 %v6189
    %v6266 = vunpack.c.l.b16 %v6190
    %v6267 = vunpack.c.h.b16 %v6190
    %v6268 = vunpack.c.l.b16 %v6191
    %v6269 = vunpack.c.h.b16 %v6191
    %v6270 = vunpack.c.l.b16 %v6192
    %v6271 = vunpack.c.h.b16 %v6192
    %v6272 = vunpack.c.l.b16 %v6193
    %v6273 = vunpack.c.h.b16 %v6193
    %v6274 = vunpack.c.l.b16 %v6194
    %v6275 = vunpack.c.h.b16 %v6194
    %v6276 = vunpack.c.l.b16 %v6195
    %v6277 = vunpack.c.h.b16 %v6195
    %v6278 = vunpack.c.l.b16 %v6196
    %v6279 = vunpack.c.h.b16 %v6196
    %v6280 = vunpack.c.l.b16 %v6197
    %v6281 = vunpack.c.h.b16 %v6197
    %v6282 = vunpack.c.l.b16 %v6198
    %v6283 = vunpack.c.h.b16 %v6198
    %v6284 = vunpack.c.l.b16 %v6199
    %v6285 = vunpack.c.h.b16 %v6199
    %v6286 = vunpack.c.l.b16 %v6200
    %v6287 = vunpack.c.h.b16 %v6200
    %v6288 = vunpack.c.l.b16 %v6201
    %v6289 = vunpack.c.h.b16 %v6201
    %v6290 = vunpack.c.l.b16 %v6202
    %v6291 = vunpack.c.h.b16 %v6202
    %v6292 = vunpack.c.l.b16 %v6203
    %v6293 = vunpack.c.h.b16 %v6203
    %v6294 = vunpack.c.l.b16 %v6204
    %v6295 = vunpack.c.h.b16 %v6204
    %v6296 = vunpack.c.l.b16 %v6205
    %v6297 = vunpack.c.h.b16 %v6205
    %v6298 = vunpack.c.l.b16 %v6206
    %v6299 = vunpack.c.h.b16 %v6206
    %v6300 = vunpack.c.l.b16 %v6207
    %v6301 = vunpack.c.h.b16 %v6207
    %v6302 = vunpack.c.l.b16 %v6208
    %v6303 = vunpack.c.h.b16 %v6208
    %v6304 = vunpack.c.l.b16 %v6209
    %v6305 = vunpack.c.h.b16 %v6209
    %v6306 = vpack.c.b16 %v6244, %v6242
    %v6307 = vpack.c.b16 %v6245, %v6243
    %v6308 = vpack.c.b16 %v6248, %v6246
    %v6309 = vpack.c.b16 %v6249, %v6247
    %v6310 = vpack.c.b16 %v6252, %v6250
    %v6311 = vpack.c.b16 %v6253, %v6251
    %v6312 = vpack.c.b16 %v6256, %v6254
    %v6313 = vpack.c.b16 %v6257, %v6255
    %v6314 = vpack.c.b16 %v6260, %v6258
    %v6315 = vpack.c.b16 %v6261, %v6259
    %v6316 = vpack.c.b16 %v6264, %v6262
    %v6317 = vpack.c.b16 %v6265, %v6263
    %v6318 = vpack.c.b16 %v6268, %v6266
    %v6319 = vpack.c.b16 %v6269, %v6267
    %v6320 = vpack.c.b16 %v6272, %v6270
    %v6321 = vpack.c.b16 %v6273, %v6271
    %v6322 = vpack.c.b16 %v6276, %v6274
    %v6323 = vpack.c.b16 %v6277, %v6275
    %v6324 = vpack.c.b16 %v6280, %v6278
    %v6325 = vpack.c.b16 %v6281, %v6279
    %v6326 = vpack.c.b16 %v6284, %v6282
    %v6327 = vpack.c.b16 %v6285, %v6283
    %v6328 = vpack.c.b16 %v6288, %v6286
    %v6329 = vpack.c.b16 %v6289, %v6287
    %v6330 = vpack.c.b16 %v6292, %v6290
    %v6331 = vpack.c.b16 %v6293, %v6291
    %v6332 = vpack.c.b16 %v6296, %v6294
    %v6333 = vpack.c.b16 %v6297, %v6295
    %v6334 = vpack.c.b16 %v6300, %v6298
    %v6335 = vpack.c.b16 %v6301, %v6299
    %v6336 = vpack.c.b16 %v6304, %v6302
    %v6337 = vpack.c.b16 %v6305, %v6303
    %6370 = vmatprep.subr.bf16.mxu0 %v6307
    %6371 = vmatpush1.bf16.msra.mxu0 %v6306
    %6372 = vmatprep.subr.bf16.mxu0 %v6309
    %6373 = vmatpush1.bf16.msra.mxu0 %v6308
    %6374 = vmatprep.subr.bf16.mxu0 %v6311
    %6375 = vmatpush1.bf16.msra.mxu0 %v6310
    %6376 = vmatprep.subr.bf16.mxu0 %v6313
    %6377 = vmatpush1.bf16.msra.mxu0 %v6312
    %6378 = vmatprep.subr.bf16.mxu0 %v6315
    %6379 = vmatpush1.bf16.msra.mxu0 %v6314
    %6380 = vmatprep.subr.bf16.mxu0 %v6317
    %6381 = vmatpush1.bf16.msra.mxu0 %v6316
    %6382 = vmatprep.subr.bf16.mxu0 %v6319
    %6383 = vmatpush1.bf16.msra.mxu0 %v6318
    %6384 = vmatprep.subr.bf16.mxu0 %v6321
    %6385 = vmatpush1.bf16.msra.mxu0 %v6320
    %6386 = vmatprep.subr.bf16.mxu0 %v6323
    %6387 = vmatpush1.bf16.msra.mxu0 %v6322
    %6388 = vmatprep.subr.bf16.mxu0 %v6325
    %6389 = vmatpush1.bf16.msra.mxu0 %v6324
    %6390 = vmatprep.subr.bf16.mxu0 %v6327
    %6391 = vmatpush1.bf16.msra.mxu0 %v6326
    %6392 = vmatprep.subr.bf16.mxu0 %v6329
    %6393 = vmatpush1.bf16.msra.mxu0 %v6328
    %6394 = vmatprep.subr.bf16.mxu0 %v6331
    %6395 = vmatpush1.bf16.msra.mxu0 %v6330
    %6396 = vmatprep.subr.bf16.mxu0 %v6333
    %6397 = vmatpush1.bf16.msra.mxu0 %v6332
    %6398 = vmatprep.subr.bf16.mxu0 %v6335
    %6399 = vmatpush1.bf16.msra.mxu0 %v6334
    %6400 = vmatprep.subr.bf16.mxu0 %v6337
    %6401 = vmatpush1.bf16.msra.mxu0 %v6336
    %6402 = vmatprep.mubr.bf16.mxu0 %v6176
    %6403 = vmatmul.mubr.bf16.gmra.mrb[0].mxu0 %v6175
    %v6404 = vpop.f32.mrb[0].mxu0
    %v6405 = vadd.f32 0.0, %v6404
    %v6406 = vpop.f32.mrb[0].mxu0
    %v6407 = vadd.f32 0.0, %v6406
    %v6408 = vpop.f32.mrb[0].mxu0
    %v6409 = vpop.f32.mrb[0].mxu0
    %6410 = vdwg.mxu0
    %v6411 = vadd.f32 %v6093, %v6405
    %v6412 = vadd.f32 %v6095, %v6407
    %s6413 = scalar_lea.vmem [#allocation15], 24
    %v6414 = vld [vmem:[%s6413] sm:$0xff]
    %v6416 = vsel %vm3572, %v6414, 0
    %6418 = vmatprep.subr.mxu0 %v5474
    %6419 = vmatpush1.msra.mxu0 %v5473
    %6420 = vmatprep.subr.mxu0 %v5476
    %6421 = vmatpush1.msra.mxu0 %v5475
    %6422 = vmatprep.subr.mxu0 0.0
    %6423 = vmatpush1.msra.mxu0 0.0
    %6424 = vmatprep.subr.mxu0 0.0
    %6425 = vmatpush1.msra.mxu0 0.0
    %6426 = vmatprep.subr.mxu0 0.0
    %6427 = vmatpush1.msra.mxu0 0.0
    %6428 = vmatprep.subr.mxu0 0.0
    %6429 = vmatpush1.msra.mxu0 0.0
    %6430 = vmatprep.subr.mxu0 0.0
    %6431 = vmatpush1.msra.mxu0 0.0
    %6432 = vmatprep.subr.mxu0 0.0
    %6433 = vmatpush1.msra.mxu0 0.0
    %6434 = vmatprep.subr.mxu0 0.0
    %6435 = vmatpush1.msra.mxu0 0.0
    %6436 = vmatprep.subr.mxu0 0.0
    %6437 = vmatpush1.msra.mxu0 0.0
    %6438 = vmatprep.subr.mxu0 0.0
    %6439 = vmatpush1.msra.mxu0 0.0
    %6440 = vmatprep.subr.mxu0 0.0
    %6441 = vmatpush1.msra.mxu0 0.0
    %6442 = vmatprep.subr.mxu0 0.0
    %6443 = vmatpush1.msra.mxu0 0.0
    %6444 = vmatprep.subr.mxu0 0.0
    %6445 = vmatpush1.msra.mxu0 0.0
    %6446 = vmatprep.subr.mxu0 0.0
    %6447 = vmatpush1.msra.mxu0 0.0
    %6448 = vmatprep.subr.mxu0 0.0
    %6449 = vmatpush1.msra.mxu0 0.0
    %6450 = vmatprep.subr.mxu0 0.0
    %6451 = vmatpush1.msra.mxu0 0.0
    %6452 = vmatprep.subr.mxu0 0.0
    %6453 = vmatpush1.msra.mxu0 0.0
    %6454 = vmatprep.subr.mxu0 0.0
    %6455 = vmatpush1.msra.mxu0 0.0
    %6456 = vmatprep.subr.mxu0 0.0
    %6457 = vmatpush1.msra.mxu0 0.0
    %6458 = vmatprep.subr.mxu0 0.0
    %6459 = vmatpush1.msra.mxu0 0.0
    %6460 = vmatprep.subr.mxu0 0.0
    %6461 = vmatpush1.msra.mxu0 0.0
    %6462 = vmatprep.subr.mxu0 0.0
    %6463 = vmatpush1.msra.mxu0 0.0
    %6464 = vmatprep.subr.mxu0 0.0
    %6465 = vmatpush1.msra.mxu0 0.0
    %6466 = vmatprep.subr.mxu0 0.0
    %6467 = vmatpush1.msra.mxu0 0.0
    %6468 = vmatprep.subr.mxu0 0.0
    %6469 = vmatpush1.msra.mxu0 0.0
    %6470 = vmatprep.subr.mxu0 0.0
    %6471 = vmatpush1.msra.mxu0 0.0
    %6472 = vmatprep.subr.mxu0 0.0
    %6473 = vmatpush1.msra.mxu0 0.0
    %6474 = vmatprep.subr.mxu0 0.0
    %6475 = vmatpush1.msra.mxu0 0.0
    %6476 = vmatprep.subr.mxu0 0.0
    %6477 = vmatpush1.msra.mxu0 0.0
    %6478 = vmatprep.subr.mxu0 0.0
    %6479 = vmatpush1.msra.mxu0 0.0
    %6480 = vmatprep.subr.mxu0 0.0
    %6481 = vmatpush1.msra.mxu0 0.0
    %6482 = vmatprep.mubr.f32.mxu0 0.0
    %6483 = vmatmul.mubr.f32.gmra.mrb[0].mxu0 %v6416
    %v6484 = vpop.f32.mrb[0].mxu0
    %v6485 = vadd.f32 0.0, %v6484
    %v6486 = vpop.f32.mrb[0].mxu0
    %v6487 = vadd.f32 0.0, %v6486
    %6488 = vdwg.mxu0
    %v6489 = vpack.c.bf16 %v6485, %v6485
    %v6490 = vpack.c.bf16 %v6487, %v6487
    %s6491 = scalar_lea.vmem %s33, 768
    %v6492 = vld [vmem:[%s6491] sm:$0xff]
    %v6493 = vld [vmem:[%s6491 + $0x8] sm:$0xff]
    %v6494 = vld [vmem:[%s6491 + $0x10] sm:$0xff]
    %v6495 = vld [vmem:[%s6491 + $0x18] sm:$0xff]
    %v6496 = vld [vmem:[%s6491 + $0x20] sm:$0xff]
    %v6497 = vld [vmem:[%s6491 + $0x28] sm:$0xff]
    %v6498 = vld [vmem:[%s6491 + $0x30] sm:$0xff]
    %v6499 = vld [vmem:[%s6491 + $0x38] sm:$0xff]
    %v6500 = vld [vmem:[%s6491 + $0x40] sm:$0xff]
    %v6501 = vld [vmem:[%s6491 + $0x48] sm:$0xff]
    %v6502 = vld [vmem:[%s6491 + $0x50] sm:$0xff]
    %v6503 = vld [vmem:[%s6491 + $0x58] sm:$0xff]
    %v6504 = vld [vmem:[%s6491 + $0x60] sm:$0xff]
    %v6505 = vld [vmem:[%s6491 + $0x68] sm:$0xff]
    %v6506 = vld [vmem:[%s6491 + $0x70] sm:$0xff]
    %v6507 = vld [vmem:[%s6491 + $0x78] sm:$0xff]
    %v6508 = vld [vmem:[%s6491 + $0x80] sm:$0xff]
    %v6509 = vld [vmem:[%s6491 + $0x88] sm:$0xff]
    %v6510 = vld [vmem:[%s6491 + $0x90] sm:$0xff]
    %v6511 = vld [vmem:[%s6491 + $0x98] sm:$0xff]
    %v6512 = vld [vmem:[%s6491 + $0xa0] sm:$0xff]
    %v6513 = vld [vmem:[%s6491 + $0xa8] sm:$0xff]
    %v6514 = vld [vmem:[%s6491 + $0xb0] sm:$0xff]
    %v6515 = vld [vmem:[%s6491 + $0xb8] sm:$0xff]
    %v6516 = vld [vmem:[%s6491 + $0xc0] sm:$0xff]
    %v6517 = vld [vmem:[%s6491 + $0xc8] sm:$0xff]
    %v6518 = vld [vmem:[%s6491 + $0xd0] sm:$0xff]
    %v6519 = vld [vmem:[%s6491 + $0xd8] sm:$0xff]
    %v6520 = vld [vmem:[%s6491 + $0xe0] sm:$0xff]
    %v6521 = vld [vmem:[%s6491 + $0xe8] sm:$0xff]
    %v6522 = vld [vmem:[%s6491 + $0xf0] sm:$0xff]
    %v6523 = vld [vmem:[%s6491 + $0xf8] sm:$0xff]
    %v6556 = vunpack.c.l.b16 %v6492
    %v6557 = vunpack.c.h.b16 %v6492
    %v6558 = vunpack.c.l.b16 %v6493
    %v6559 = vunpack.c.h.b16 %v6493
    %v6560 = vunpack.c.l.b16 %v6494
    %v6561 = vunpack.c.h.b16 %v6494
    %v6562 = vunpack.c.l.b16 %v6495
    %v6563 = vunpack.c.h.b16 %v6495
    %v6564 = vunpack.c.l.b16 %v6496
    %v6565 = vunpack.c.h.b16 %v6496
    %v6566 = vunpack.c.l.b16 %v6497
    %v6567 = vunpack.c.h.b16 %v6497
    %v6568 = vunpack.c.l.b16 %v6498
    %v6569 = vunpack.c.h.b16 %v6498
    %v6570 = vunpack.c.l.b16 %v6499
    %v6571 = vunpack.c.h.b16 %v6499
    %v6572 = vunpack.c.l.b16 %v6500
    %v6573 = vunpack.c.h.b16 %v6500
    %v6574 = vunpack.c.l.b16 %v6501
    %v6575 = vunpack.c.h.b16 %v6501
    %v6576 = vunpack.c.l.b16 %v6502
    %v6577 = vunpack.c.h.b16 %v6502
    %v6578 = vunpack.c.l.b16 %v6503
    %v6579 = vunpack.c.h.b16 %v6503
    %v6580 = vunpack.c.l.b16 %v6504
    %v6581 = vunpack.c.h.b16 %v6504
    %v6582 = vunpack.c.l.b16 %v6505
    %v6583 = vunpack.c.h.b16 %v6505
    %v6584 = vunpack.c.l.b16 %v6506
    %v6585 = vunpack.c.h.b16 %v6506
    %v6586 = vunpack.c.l.b16 %v6507
    %v6587 = vunpack.c.h.b16 %v6507
    %v6588 = vunpack.c.l.b16 %v6508
    %v6589 = vunpack.c.h.b16 %v6508
    %v6590 = vunpack.c.l.b16 %v6509
    %v6591 = vunpack.c.h.b16 %v6509
    %v6592 = vunpack.c.l.b16 %v6510
    %v6593 = vunpack.c.h.b16 %v6510
    %v6594 = vunpack.c.l.b16 %v6511
    %v6595 = vunpack.c.h.b16 %v6511
    %v6596 = vunpack.c.l.b16 %v6512
    %v6597 = vunpack.c.h.b16 %v6512
    %v6598 = vunpack.c.l.b16 %v6513
    %v6599 = vunpack.c.h.b16 %v6513
    %v6600 = vunpack.c.l.b16 %v6514
    %v6601 = vunpack.c.h.b16 %v6514
    %v6602 = vunpack.c.l.b16 %v6515
    %v6603 = vunpack.c.h.b16 %v6515
    %v6604 = vunpack.c.l.b16 %v6516
    %v6605 = vunpack.c.h.b16 %v6516
    %v6606 = vunpack.c.l.b16 %v6517
    %v6607 = vunpack.c.h.b16 %v6517
    %v6608 = vunpack.c.l.b16 %v6518
    %v6609 = vunpack.c.h.b16 %v6518
    %v6610 = vunpack.c.l.b16 %v6519
    %v6611 = vunpack.c.h.b16 %v6519
    %v6612 = vunpack.c.l.b16 %v6520
    %v6613 = vunpack.c.h.b16 %v6520
    %v6614 = vunpack.c.l.b16 %v6521
    %v6615 = vunpack.c.h.b16 %v6521
    %v6616 = vunpack.c.l.b16 %v6522
    %v6617 = vunpack.c.h.b16 %v6522
    %v6618 = vunpack.c.l.b16 %v6523
    %v6619 = vunpack.c.h.b16 %v6523
    %v6620 = vpack.c.b16 %v6558, %v6556
    %v6621 = vpack.c.b16 %v6559, %v6557
    %v6622 = vpack.c.b16 %v6562, %v6560
    %v6623 = vpack.c.b16 %v6563, %v6561
    %v6624 = vpack.c.b16 %v6566, %v6564
    %v6625 = vpack.c.b16 %v6567, %v6565
    %v6626 = vpack.c.b16 %v6570, %v6568
    %v6627 = vpack.c.b16 %v6571, %v6569
    %v6628 = vpack.c.b16 %v6574, %v6572
    %v6629 = vpack.c.b16 %v6575, %v6573
    %v6630 = vpack.c.b16 %v6578, %v6576
    %v6631 = vpack.c.b16 %v6579, %v6577
    %v6632 = vpack.c.b16 %v6582, %v6580
    %v6633 = vpack.c.b16 %v6583, %v6581
    %v6634 = vpack.c.b16 %v6586, %v6584
    %v6635 = vpack.c.b16 %v6587, %v6585
    %v6636 = vpack.c.b16 %v6590, %v6588
    %v6637 = vpack.c.b16 %v6591, %v6589
    %v6638 = vpack.c.b16 %v6594, %v6592
    %v6639 = vpack.c.b16 %v6595, %v6593
    %v6640 = vpack.c.b16 %v6598, %v6596
    %v6641 = vpack.c.b16 %v6599, %v6597
    %v6642 = vpack.c.b16 %v6602, %v6600
    %v6643 = vpack.c.b16 %v6603, %v6601
    %v6644 = vpack.c.b16 %v6606, %v6604
    %v6645 = vpack.c.b16 %v6607, %v6605
    %v6646 = vpack.c.b16 %v6610, %v6608
    %v6647 = vpack.c.b16 %v6611, %v6609
    %v6648 = vpack.c.b16 %v6614, %v6612
    %v6649 = vpack.c.b16 %v6615, %v6613
    %v6650 = vpack.c.b16 %v6618, %v6616
    %v6651 = vpack.c.b16 %v6619, %v6617
    %6684 = vmatprep.subr.bf16.mxu0 %v6621
    %6685 = vmatpush1.bf16.msra.mxu0 %v6620
    %6686 = vmatprep.subr.bf16.mxu0 %v6623
    %6687 = vmatpush1.bf16.msra.mxu0 %v6622
    %6688 = vmatprep.subr.bf16.mxu0 %v6625
    %6689 = vmatpush1.bf16.msra.mxu0 %v6624
    %6690 = vmatprep.subr.bf16.mxu0 %v6627
    %6691 = vmatpush1.bf16.msra.mxu0 %v6626
    %6692 = vmatprep.subr.bf16.mxu0 %v6629
    %6693 = vmatpush1.bf16.msra.mxu0 %v6628
    %6694 = vmatprep.subr.bf16.mxu0 %v6631
    %6695 = vmatpush1.bf16.msra.mxu0 %v6630
    %6696 = vmatprep.subr.bf16.mxu0 %v6633
    %6697 = vmatpush1.bf16.msra.mxu0 %v6632
    %6698 = vmatprep.subr.bf16.mxu0 %v6635
    %6699 = vmatpush1.bf16.msra.mxu0 %v6634
    %6700 = vmatprep.subr.bf16.mxu0 %v6637
    %6701 = vmatpush1.bf16.msra.mxu0 %v6636
    %6702 = vmatprep.subr.bf16.mxu0 %v6639
    %6703 = vmatpush1.bf16.msra.mxu0 %v6638
    %6704 = vmatprep.subr.bf16.mxu0 %v6641
    %6705 = vmatpush1.bf16.msra.mxu0 %v6640
    %6706 = vmatprep.subr.bf16.mxu0 %v6643
    %6707 = vmatpush1.bf16.msra.mxu0 %v6642
    %6708 = vmatprep.subr.bf16.mxu0 %v6645
    %6709 = vmatpush1.bf16.msra.mxu0 %v6644
    %6710 = vmatprep.subr.bf16.mxu0 %v6647
    %6711 = vmatpush1.bf16.msra.mxu0 %v6646
    %6712 = vmatprep.subr.bf16.mxu0 %v6649
    %6713 = vmatpush1.bf16.msra.mxu0 %v6648
    %6714 = vmatprep.subr.bf16.mxu0 %v6651
    %6715 = vmatpush1.bf16.msra.mxu0 %v6650
    %6716 = vmatprep.mubr.bf16.mxu0 %v6490
    %6717 = vmatmul.mubr.bf16.gmra.mrb[0].mxu0 %v6489
    %v6718 = vpop.f32.mrb[0].mxu0
    %v6719 = vadd.f32 0.0, %v6718
    %v6720 = vpop.f32.mrb[0].mxu0
    %v6721 = vadd.f32 0.0, %v6720
    %v6722 = vpop.f32.mrb[0].mxu0
    %v6723 = vpop.f32.mrb[0].mxu0
    %6724 = vdwg.mxu0
    %v6725 = vadd.f32 %v6411, %v6719
    %v6726 = vadd.f32 %v6412, %v6721
    %v6727 = vrot.slane %v6725, 4
    %v6728 = vadd.f32 %v6725, %v6727
    %v6729 = vrot.slane %v6728, 2
    %v6730 = vadd.f32 %v6728, %v6729
    %v6731 = vrot.slane %v6730, 1
    %v6732 = vadd.f32 %v6730, %v6731
    %v6733 = vrot.slane %v6726, 4
    %v6734 = vadd.f32 %v6726, %v6733
    %v6735 = vrot.slane %v6734, 2
    %v6736 = vadd.f32 %v6734, %v6735
    %v6737 = vrot.slane %v6736, 1
    %v6738 = vadd.f32 %v6736, %v6737
    %v6739 = vmul.f32 %v6725, %v6725
    %v6740 = vmul.f32 %v6726, %v6726
    %v6741 = vrot.slane %v6739, 4
    %v6742 = vadd.f32 %v6739, %v6741
    %v6743 = vrot.slane %v6742, 2
    %v6744 = vadd.f32 %v6742, %v6743
    %v6745 = vrot.slane %v6744, 1
    %v6746 = vadd.f32 %v6744, %v6745
    %v6747 = vrot.slane %v6740, 4
    %v6748 = vadd.f32 %v6740, %v6747
    %v6749 = vrot.slane %v6748, 2
    %v6750 = vadd.f32 %v6748, %v6749
    %v6751 = vrot.slane %v6750, 1
    %v6752 = vadd.f32 %v6750, %v6751
    %v6753 = vld [vmem:[%s35] sm:$0xff]
    %v6754 = vld [vmem:[%s35 + $0x8] sm:$0xff]
    %v6755 = vld [vmem:[%s35 + $0x10] sm:$0xff]
    %v6756 = vld [vmem:[%s35 + $0x18] sm:$0xff]
    %v6757 = vld [vmem:[%s35 + $0x20] sm:$0xff]
    %v6758 = vld [vmem:[%s35 + $0x28] sm:$0xff]
    %v6759 = vld [vmem:[%s35 + $0x30] sm:$0xff]
    %v6760 = vld [vmem:[%s35 + $0x38] sm:$0xff]
    %v6761 = vld [vmem:[%s35 + $0x40] sm:$0xff]
    %v6762 = vld [vmem:[%s35 + $0x48] sm:$0xff]
    %v6763 = vld [vmem:[%s35 + $0x50] sm:$0xff]
    %v6764 = vld [vmem:[%s35 + $0x58] sm:$0xff]
    %v6765 = vld [vmem:[%s35 + $0x60] sm:$0xff]
    %v6766 = vld [vmem:[%s35 + $0x68] sm:$0xff]
    %v6767 = vld [vmem:[%s35 + $0x70] sm:$0xff]
    %v6768 = vld [vmem:[%s35 + $0x78] sm:$0xff]
    %v6769 = vld [vmem:[%s35 + $0x80] sm:$0xff]
    %v6770 = vld [vmem:[%s35 + $0x88] sm:$0xff]
    %v6771 = vld [vmem:[%s35 + $0x90] sm:$0xff]
    %v6772 = vld [vmem:[%s35 + $0x98] sm:$0xff]
    %v6773 = vld [vmem:[%s35 + $0xa0] sm:$0xff]
    %v6774 = vld [vmem:[%s35 + $0xa8] sm:$0xff]
    %v6775 = vld [vmem:[%s35 + $0xb0] sm:$0xff]
    %v6776 = vld [vmem:[%s35 + $0xb8] sm:$0xff]
    %v6777 = vld [vmem:[%s35 + $0xc0] sm:$0xff]
    %v6778 = vld [vmem:[%s35 + $0xc8] sm:$0xff]
    %v6779 = vld [vmem:[%s35 + $0xd0] sm:$0xff]
    %v6780 = vld [vmem:[%s35 + $0xd8] sm:$0xff]
    %v6781 = vld [vmem:[%s35 + $0xe0] sm:$0xff]
    %v6782 = vld [vmem:[%s35 + $0xe8] sm:$0xff]
    %v6783 = vld [vmem:[%s35 + $0xf0] sm:$0xff]
    %v6784 = vld [vmem:[%s35 + $0xf8] sm:$0xff]
    %6785 = vmatprep.subr.mxu0 0.0
    %6786 = vmatpush1.msra.mxu0 %v6753
    %6787 = vmatprep.subr.mxu0 0.0
    %6788 = vmatpush1.msra.mxu0 %v6754
    %6789 = vmatprep.subr.mxu0 0.0
    %6790 = vmatpush1.msra.mxu0 %v6755
    %6791 = vmatprep.subr.mxu0 0.0
    %6792 = vmatpush1.msra.mxu0 %v6756
    %6793 = vmatprep.subr.mxu0 0.0
    %6794 = vmatpush1.msra.mxu0 %v6757
    %6795 = vmatprep.subr.mxu0 0.0
    %6796 = vmatpush1.msra.mxu0 %v6758
    %6797 = vmatprep.subr.mxu0 0.0
    %6798 = vmatpush1.msra.mxu0 %v6759
    %6799 = vmatprep.subr.mxu0 0.0
    %6800 = vmatpush1.msra.mxu0 %v6760
    %6801 = vmatprep.subr.mxu0 0.0
    %6802 = vmatpush1.msra.mxu0 %v6761
    %6803 = vmatprep.subr.mxu0 0.0
    %6804 = vmatpush1.msra.mxu0 %v6762
    %6805 = vmatprep.subr.mxu0 0.0
    %6806 = vmatpush1.msra.mxu0 %v6763
    %6807 = vmatprep.subr.mxu0 0.0
    %6808 = vmatpush1.msra.mxu0 %v6764
    %6809 = vmatprep.subr.mxu0 0.0
    %6810 = vmatpush1.msra.mxu0 %v6765
    %6811 = vmatprep.subr.mxu0 0.0
    %6812 = vmatpush1.msra.mxu0 %v6766
    %6813 = vmatprep.subr.mxu0 0.0
    %6814 = vmatpush1.msra.mxu0 %v6767
    %6815 = vmatprep.subr.mxu0 0.0
    %6816 = vmatpush1.msra.mxu0 %v6768
    %6817 = vmatprep.subr.mxu0 0.0
    %6818 = vmatpush1.msra.mxu0 %v6769
    %6819 = vmatprep.subr.mxu0 0.0
    %6820 = vmatpush1.msra.mxu0 %v6770
    %6821 = vmatprep.subr.mxu0 0.0
    %6822 = vmatpush1.msra.mxu0 %v6771
    %6823 = vmatprep.subr.mxu0 0.0
    %6824 = vmatpush1.msra.mxu0 %v6772
    %6825 = vmatprep.subr.mxu0 0.0
    %6826 = vmatpush1.msra.mxu0 %v6773
    %6827 = vmatprep.subr.mxu0 0.0
    %6828 = vmatpush1.msra.mxu0 %v6774
    %6829 = vmatprep.subr.mxu0 0.0
    %6830 = vmatpush1.msra.mxu0 %v6775
    %6831 = vmatprep.subr.mxu0 0.0
    %6832 = vmatpush1.msra.mxu0 %v6776
    %6833 = vmatprep.subr.mxu0 0.0
    %6834 = vmatpush1.msra.mxu0 %v6777
    %6835 = vmatprep.subr.mxu0 0.0
    %6836 = vmatpush1.msra.mxu0 %v6778
    %6837 = vmatprep.subr.mxu0 0.0
    %6838 = vmatpush1.msra.mxu0 %v6779
    %6839 = vmatprep.subr.mxu0 0.0
    %6840 = vmatpush1.msra.mxu0 %v6780
    %6841 = vmatprep.subr.mxu0 0.0
    %6842 = vmatpush1.msra.mxu0 %v6781
    %6843 = vmatprep.subr.mxu0 0.0
    %6844 = vmatpush1.msra.mxu0 %v6782
    %6845 = vmatprep.subr.mxu0 0.0
    %6846 = vmatpush1.msra.mxu0 %v6783
    %6847 = vmatprep.subr.mxu0 0.0
    %6848 = vmatpush1.msra.mxu0 %v6784
    %6849 = vmatprep.mubr.f32.mxu0 %v6738
    %6850 = vmatmul.mubr.f32.gmra.mrb[0].mxu0 %v6732
    %v6851 = vpop.f32.mrb[0].mxu0
    %v6852 = vadd.f32 0.0, %v6851
    %v6853 = vpop.f32.mrb[0].mxu0
    %6854 = vdwg.mxu0
    %v6855 = vrcp.pop 32.0
    %v6856 = vmul.f32 %v6852, %v6855
    %6857 = vmatprep.subr.mxu0 0.0
    %6858 = vmatpush1.msra.mxu0 %v6753
    %6859 = vmatprep.subr.mxu0 0.0
    %6860 = vmatpush1.msra.mxu0 %v6754
    %6861 = vmatprep.subr.mxu0 0.0
    %6862 = vmatpush1.msra.mxu0 %v6755
    %6863 = vmatprep.subr.mxu0 0.0
    %6864 = vmatpush1.msra.mxu0 %v6756
    %6865 = vmatprep.subr.mxu0 0.0
    %6866 = vmatpush1.msra.mxu0 %v6757
    %6867 = vmatprep.subr.mxu0 0.0
    %6868 = vmatpush1.msra.mxu0 %v6758
    %6869 = vmatprep.subr.mxu0 0.0
    %6870 = vmatpush1.msra.mxu0 %v6759
    %6871 = vmatprep.subr.mxu0 0.0
    %6872 = vmatpush1.msra.mxu0 %v6760
    %6873 = vmatprep.subr.mxu0 0.0
    %6874 = vmatpush1.msra.mxu0 %v6761
    %6875 = vmatprep.subr.mxu0 0.0
    %6876 = vmatpush1.msra.mxu0 %v6762
    %6877 = vmatprep.subr.mxu0 0.0
    %6878 = vmatpush1.msra.mxu0 %v6763
    %6879 = vmatprep.subr.mxu0 0.0
    %6880 = vmatpush1.msra.mxu0 %v6764
    %6881 = vmatprep.subr.mxu0 0.0
    %6882 = vmatpush1.msra.mxu0 %v6765
    %6883 = vmatprep.subr.mxu0 0.0
    %6884 = vmatpush1.msra.mxu0 %v6766
    %6885 = vmatprep.subr.mxu0 0.0
    %6886 = vmatpush1.msra.mxu0 %v6767
    %6887 = vmatprep.subr.mxu0 0.0
    %6888 = vmatpush1.msra.mxu0 %v6768
    %6889 = vmatprep.subr.mxu0 0.0
    %6890 = vmatpush1.msra.mxu0 %v6769
    %6891 = vmatprep.subr.mxu0 0.0
    %6892 = vmatpush1.msra.mxu0 %v6770
    %6893 = vmatprep.subr.mxu0 0.0
    %6894 = vmatpush1.msra.mxu0 %v6771
    %6895 = vmatprep.subr.mxu0 0.0
    %6896 = vmatpush1.msra.mxu0 %v6772
    %6897 = vmatprep.subr.mxu0 0.0
    %6898 = vmatpush1.msra.mxu0 %v6773
    %6899 = vmatprep.subr.mxu0 0.0
    %6900 = vmatpush1.msra.mxu0 %v6774
    %6901 = vmatprep.subr.mxu0 0.0
    %6902 = vmatpush1.msra.mxu0 %v6775
    %6903 = vmatprep.subr.mxu0 0.0
    %6904 = vmatpush1.msra.mxu0 %v6776
    %6905 = vmatprep.subr.mxu0 0.0
    %6906 = vmatpush1.msra.mxu0 %v6777
    %6907 = vmatprep.subr.mxu0 0.0
    %6908 = vmatpush1.msra.mxu0 %v6778
    %6909 = vmatprep.subr.mxu0 0.0
    %6910 = vmatpush1.msra.mxu0 %v6779
    %6911 = vmatprep.subr.mxu0 0.0
    %6912 = vmatpush1.msra.mxu0 %v6780
    %6913 = vmatprep.subr.mxu0 0.0
    %6914 = vmatpush1.msra.mxu0 %v6781
    %6915 = vmatprep.subr.mxu0 0.0
    %6916 = vmatpush1.msra.mxu0 %v6782
    %6917 = vmatprep.subr.mxu0 0.0
    %6918 = vmatpush1.msra.mxu0 %v6783
    %6919 = vmatprep.subr.mxu0 0.0
    %6920 = vmatpush1.msra.mxu0 %v6784
    %6921 = vmatprep.mubr.f32.mxu0 %v6752
    %6922 = vmatmul.mubr.f32.gmra.mrb[0].mxu0 %v6746
    %v6923 = vpop.f32.mrb[0].mxu0
    %v6924 = vadd.f32 0.0, %v6923
    %v6925 = vpop.f32.mrb[0].mxu0
    %6926 = vdwg.mxu0
    %v6927 = vmul.f32 %v6924, %v6855
    %v6928 = vmul.f32 %v6856, %v6856
    %v6929 = vsub.f32 %v6927, %v6928
    %v6930 = vmax.f32 %v6929, 0.0
    %v6931 = vld [vmem:[#allocation18] sm:$0x1]
    %v6932 = vadd.f32 %v6930, 1e-05
    %v6933 = vrsqrt.pop %v6932
    %v6934 = vmul.f32 %v6931, %v6933
    %v6935 = vld [vmem:[#allocation20] sm:$0x1]
    %v6936 = vmul.f32 %v6856, %v6934
    %v6937 = vsub.f32 %v6935, %v6936
    %v6938 = vld [vmem:[#allocation17] sm:$0xff]
    %v6939 = vld [vmem:[#allocation17 + $0x8] sm:$0xff]
    %v6940 = vld [vmem:[#allocation17 + $0x10] sm:$0xff]
    %v6941 = vld [vmem:[#allocation17 + $0x18] sm:$0xff]
    %v6942 = vld [vmem:[#allocation17 + $0x20] sm:$0xff]
    %v6943 = vld [vmem:[#allocation17 + $0x28] sm:$0xff]
    %v6944 = vld [vmem:[#allocation17 + $0x30] sm:$0xff]
    %v6945 = vld [vmem:[#allocation17 + $0x38] sm:$0xff]
    %v6946 = vld [vmem:[#allocation17 + $0x40] sm:$0xff]
    %v6947 = vld [vmem:[#allocation17 + $0x48] sm:$0xff]
    %v6948 = vld [vmem:[#allocation17 + $0x50] sm:$0xff]
    %v6949 = vld [vmem:[#allocation17 + $0x58] sm:$0xff]
    %v6950 = vld [vmem:[#allocation17 + $0x60] sm:$0xff]
    %v6951 = vld [vmem:[#allocation17 + $0x68] sm:$0xff]
    %v6952 = vld [vmem:[#allocation17 + $0x70] sm:$0xff]
    %v6953 = vld [vmem:[#allocation17 + $0x78] sm:$0xff]
    %v6955 = vsel %vm826, %v6934, 0
    %6957 = vmatprep.subr.mxu0 %v6939
    %6958 = vmatpush1.msra.mxu0 %v6938
    %6959 = vmatprep.subr.mxu0 %v6941
    %6960 = vmatpush1.msra.mxu0 %v6940
    %6961 = vmatprep.subr.mxu0 %v6943
    %6962 = vmatpush1.msra.mxu0 %v6942
    %6963 = vmatprep.subr.mxu0 %v6945
    %6964 = vmatpush1.msra.mxu0 %v6944
    %6965 = vmatprep.subr.mxu0 %v6947
    %6966 = vmatpush1.msra.mxu0 %v6946
    %6967 = vmatprep.subr.mxu0 %v6949
    %6968 = vmatpush1.msra.mxu0 %v6948
    %6969 = vmatprep.subr.mxu0 %v6951
    %6970 = vmatpush1.msra.mxu0 %v6950
    %6971 = vmatprep.subr.mxu0 %v6953
    %6972 = vmatpush1.msra.mxu0 %v6952
    %6973 = vmatprep.subr.mxu0 0.0
    %6974 = vmatpush1.msra.mxu0 0.0
    %6975 = vmatprep.subr.mxu0 0.0
    %6976 = vmatpush1.msra.mxu0 0.0
    %6977 = vmatprep.subr.mxu0 0.0
    %6978 = vmatpush1.msra.mxu0 0.0
    %6979 = vmatprep.subr.mxu0 0.0
    %6980 = vmatpush1.msra.mxu0 0.0
    %6981 = vmatprep.subr.mxu0 0.0
    %6982 = vmatpush1.msra.mxu0 0.0
    %6983 = vmatprep.subr.mxu0 0.0
    %6984 = vmatpush1.msra.mxu0 0.0
    %6985 = vmatprep.subr.mxu0 0.0
    %6986 = vmatpush1.msra.mxu0 0.0
    %6987 = vmatprep.subr.mxu0 0.0
    %6988 = vmatpush1.msra.mxu0 0.0
    %6989 = vmatprep.subr.mxu0 0.0
    %6990 = vmatpush1.msra.mxu0 0.0
    %6991 = vmatprep.subr.mxu0 0.0
    %6992 = vmatpush1.msra.mxu0 0.0
    %6993 = vmatprep.subr.mxu0 0.0
    %6994 = vmatpush1.msra.mxu0 0.0
    %6995 = vmatprep.subr.mxu0 0.0
    %6996 = vmatpush1.msra.mxu0 0.0
    %6997 = vmatprep.subr.mxu0 0.0
    %6998 = vmatpush1.msra.mxu0 0.0
    %6999 = vmatprep.subr.mxu0 0.0
    %7000 = vmatpush1.msra.mxu0 0.0
    %7001 = vmatprep.subr.mxu0 0.0
    %7002 = vmatpush1.msra.mxu0 0.0
    %7003 = vmatprep.subr.mxu0 0.0
    %7004 = vmatpush1.msra.mxu0 0.0
    %7005 = vmatprep.subr.mxu0 0.0
    %7006 = vmatpush1.msra.mxu0 0.0
    %7007 = vmatprep.subr.mxu0 0.0
    %7008 = vmatpush1.msra.mxu0 0.0
    %7009 = vmatprep.subr.mxu0 0.0
    %7010 = vmatpush1.msra.mxu0 0.0
    %7011 = vmatprep.subr.mxu0 0.0
    %7012 = vmatpush1.msra.mxu0 0.0
    %7013 = vmatprep.subr.mxu0 0.0
    %7014 = vmatpush1.msra.mxu0 0.0
    %7015 = vmatprep.subr.mxu0 0.0
    %7016 = vmatpush1.msra.mxu0 0.0
    %7017 = vmatprep.subr.mxu0 0.0
    %7018 = vmatpush1.msra.mxu0 0.0
    %7019 = vmatprep.subr.mxu0 0.0
    %7020 = vmatpush1.msra.mxu0 0.0
    %7021 = vmatprep.mubr.f32.mxu0 0.0
    %7022 = vmatmul.mubr.f32.gmra.mrb[0].mxu0 %v6955
    %v7023 = vpop.f32.mrb[0].mxu0
    %v7024 = vadd.f32 0.0, %v7023
    %v7025 = vpop.f32.mrb[0].mxu0
    %v7026 = vadd.f32 0.0, %v7025
    %7027 = vdwg.mxu0
    %v7029 = vsel %vm826, %v6937, 0
    %7031 = vmatprep.subr.mxu0 %v6939
    %7032 = vmatpush1.msra.mxu0 %v6938
    %7033 = vmatprep.subr.mxu0 %v6941
    %7034 = vmatpush1.msra.mxu0 %v6940
    %7035 = vmatprep.subr.mxu0 %v6943
    %7036 = vmatpush1.msra.mxu0 %v6942
    %7037 = vmatprep.subr.mxu0 %v6945
    %7038 = vmatpush1.msra.mxu0 %v6944
    %7039 = vmatprep.subr.mxu0 %v6947
    %7040 = vmatpush1.msra.mxu0 %v6946
    %7041 = vmatprep.subr.mxu0 %v6949
    %7042 = vmatpush1.msra.mxu0 %v6948
    %7043 = vmatprep.subr.mxu0 %v6951
    %7044 = vmatpush1.msra.mxu0 %v6950
    %7045 = vmatprep.subr.mxu0 %v6953
    %7046 = vmatpush1.msra.mxu0 %v6952
    %7047 = vmatprep.subr.mxu0 0.0
    %7048 = vmatpush1.msra.mxu0 0.0
    %7049 = vmatprep.subr.mxu0 0.0
    %7050 = vmatpush1.msra.mxu0 0.0
    %7051 = vmatprep.subr.mxu0 0.0
    %7052 = vmatpush1.msra.mxu0 0.0
    %7053 = vmatprep.subr.mxu0 0.0
    %7054 = vmatpush1.msra.mxu0 0.0
    %7055 = vmatprep.subr.mxu0 0.0
    %7056 = vmatpush1.msra.mxu0 0.0
    %7057 = vmatprep.subr.mxu0 0.0
    %7058 = vmatpush1.msra.mxu0 0.0
    %7059 = vmatprep.subr.mxu0 0.0
    %7060 = vmatpush1.msra.mxu0 0.0
    %7061 = vmatprep.subr.mxu0 0.0
    %7062 = vmatpush1.msra.mxu0 0.0
    %7063 = vmatprep.subr.mxu0 0.0
    %7064 = vmatpush1.msra.mxu0 0.0
    %7065 = vmatprep.subr.mxu0 0.0
    %7066 = vmatpush1.msra.mxu0 0.0
    %7067 = vmatprep.subr.mxu0 0.0
    %7068 = vmatpush1.msra.mxu0 0.0
    %7069 = vmatprep.subr.mxu0 0.0
    %7070 = vmatpush1.msra.mxu0 0.0
    %7071 = vmatprep.subr.mxu0 0.0
    %7072 = vmatpush1.msra.mxu0 0.0
    %7073 = vmatprep.subr.mxu0 0.0
    %7074 = vmatpush1.msra.mxu0 0.0
    %7075 = vmatprep.subr.mxu0 0.0
    %7076 = vmatpush1.msra.mxu0 0.0
    %7077 = vmatprep.subr.mxu0 0.0
    %7078 = vmatpush1.msra.mxu0 0.0
    %7079 = vmatprep.subr.mxu0 0.0
    %7080 = vmatpush1.msra.mxu0 0.0
    %7081 = vmatprep.subr.mxu0 0.0
    %7082 = vmatpush1.msra.mxu0 0.0
    %7083 = vmatprep.subr.mxu0 0.0
    %7084 = vmatpush1.msra.mxu0 0.0
    %7085 = vmatprep.subr.mxu0 0.0
    %7086 = vmatpush1.msra.mxu0 0.0
    %7087 = vmatprep.subr.mxu0 0.0
    %7088 = vmatpush1.msra.mxu0 0.0
    %7089 = vmatprep.subr.mxu0 0.0
    %7090 = vmatpush1.msra.mxu0 0.0
    %7091 = vmatprep.subr.mxu0 0.0
    %7092 = vmatpush1.msra.mxu0 0.0
    %7093 = vmatprep.subr.mxu0 0.0
    %7094 = vmatpush1.msra.mxu0 0.0
    %7095 = vmatprep.mubr.f32.mxu0 0.0
    %7096 = vmatmul.mubr.f32.gmra.mrb[0].mxu0 %v7029
    %v7097 = vpop.f32.mrb[0].mxu0
    %v7098 = vadd.f32 0.0, %v7097
    %v7099 = vpop.f32.mrb[0].mxu0
    %v7100 = vadd.f32 0.0, %v7099
    %7101 = vdwg.mxu0
    %v7102 = vlaneseq
    %v7103 = vshrl.u32 %v7102, 7
    %v7104 = vsub.s32 0, %v7103
    %v7105 = vrot.slane %v7024, %v7104
    %v7106 = vlaneseq
    %v7107 = vshrl.u32 %v7106, 7
    %v7108 = vsub.s32 0, %v7107
    %v7109 = vrot.slane %v7026, %v7108
    %v7110 = vmul.f32 %v6725, %v7105
    %v7111 = vmul.f32 %v6726, %v7109
    %v7112 = vlaneseq
    %v7113 = vshrl.u32 %v7112, 7
    %v7114 = vsub.s32 0, %v7113
    %v7115 = vrot.slane %v7098, %v7114
    %v7116 = vlaneseq
    %v7117 = vshrl.u32 %v7116, 7
    %v7118 = vsub.s32 0, %v7117
    %v7119 = vrot.slane %v7100, %v7118
    %v7120 = vadd.f32 %v7110, %v7115
    %v7121 = vadd.f32 %v7111, %v7119
    %v7122 = vmul.f32 %v7120, 0.2
    %v7123 = vmul.f32 %v7121, 0.2
    %v7124 = vmax.f32 %v7120, %v7122
    %v7125 = vmax.f32 %v7121, %v7123
    %v7126 = vld [vmem:[%s45] sm:$0xff]
    %vm7127 = vcmask 64512
    %v7129 = vsel %vm7127, %v7126, 0
    %7131 = vmatprep.subr.mxu0 %v7125
    %7132 = vmatpush1.msra.mxu0 %v7124
    %7133 = vmatprep.subr.mxu0 0.0
    %7134 = vmatpush1.msra.mxu0 0.0
    %7135 = vmatprep.subr.mxu0 0.0
    %7136 = vmatpush1.msra.mxu0 0.0
    %7137 = vmatprep.subr.mxu0 0.0
    %7138 = vmatpush1.msra.mxu0 0.0
    %7139 = vmatprep.subr.mxu0 0.0
    %7140 = vmatpush1.msra.mxu0 0.0
    %7141 = vmatprep.subr.mxu0 0.0
    %7142 = vmatpush1.msra.mxu0 0.0
    %7143 = vmatprep.subr.mxu0 0.0
    %7144 = vmatpush1.msra.mxu0 0.0
    %7145 = vmatprep.subr.mxu0 0.0
    %7146 = vmatpush1.msra.mxu0 0.0
    %7147 = vmatprep.subr.mxu0 0.0
    %7148 = vmatpush1.msra.mxu0 0.0
    %7149 = vmatprep.subr.mxu0 0.0
    %7150 = vmatpush1.msra.mxu0 0.0
    %7151 = vmatprep.subr.mxu0 0.0
    %7152 = vmatpush1.msra.mxu0 0.0
    %7153 = vmatprep.subr.mxu0 0.0
    %7154 = vmatpush1.msra.mxu0 0.0
    %7155 = vmatprep.subr.mxu0 0.0
    %7156 = vmatpush1.msra.mxu0 0.0
    %7157 = vmatprep.subr.mxu0 0.0
    %7158 = vmatpush1.msra.mxu0 0.0
    %7159 = vmatprep.subr.mxu0 0.0
    %7160 = vmatpush1.msra.mxu0 0.0
    %7161 = vmatprep.subr.mxu0 0.0
    %7162 = vmatpush1.msra.mxu0 0.0
    %7163 = vmatprep.subr.mxu0 0.0
    %7164 = vmatpush1.msra.mxu0 0.0
    %7165 = vmatprep.subr.mxu0 0.0
    %7166 = vmatpush1.msra.mxu0 0.0
    %7167 = vmatprep.subr.mxu0 0.0
    %7168 = vmatpush1.msra.mxu0 0.0
    %7169 = vmatprep.subr.mxu0 0.0
    %7170 = vmatpush1.msra.mxu0 0.0
    %7171 = vmatprep.subr.mxu0 0.0
    %7172 = vmatpush1.msra.mxu0 0.0
    %7173 = vmatprep.subr.mxu0 0.0
    %7174 = vmatpush1.msra.mxu0 0.0
    %7175 = vmatprep.subr.mxu0 0.0
    %7176 = vmatpush1.msra.mxu0 0.0
    %7177 = vmatprep.subr.mxu0 0.0
    %7178 = vmatpush1.msra.mxu0 0.0
    %7179 = vmatprep.subr.mxu0 0.0
    %7180 = vmatpush1.msra.mxu0 0.0
    %7181 = vmatprep.subr.mxu0 0.0
    %7182 = vmatpush1.msra.mxu0 0.0
    %7183 = vmatprep.subr.mxu0 0.0
    %7184 = vmatpush1.msra.mxu0 0.0
    %7185 = vmatprep.subr.mxu0 0.0
    %7186 = vmatpush1.msra.mxu0 0.0
    %7187 = vmatprep.subr.mxu0 0.0
    %7188 = vmatpush1.msra.mxu0 0.0
    %7189 = vmatprep.subr.mxu0 0.0
    %7190 = vmatpush1.msra.mxu0 0.0
    %7191 = vmatprep.subr.mxu0 0.0
    %7192 = vmatpush1.msra.mxu0 0.0
    %7193 = vmatprep.subr.mxu0 0.0
    %7194 = vmatpush1.msra.mxu0 0.0
    %7195 = vmatprep.mubr.f32.mxu0 0.0
    %7196 = vmatmul.mubr.f32.gmra.mrb[0].mxu0 %v7129
    %v7197 = vpop.f32.mrb[0].mxu0
    %v7198 = vadd.f32 0.0, %v7197
    %v7199 = vpop.f32.mrb[0].mxu0
    %v7200 = vadd.f32 0.0, %v7199
    %7201 = vdwg.mxu0
    %v7202 = vpack.c.bf16 %v7198, %v7198
    %v7203 = vpack.c.bf16 %v7200, %v7200
    %v7204 = vld [vmem:[#allocation21] sm:$0xff]
    %v7205 = vld [vmem:[#allocation21 + $0x8] sm:$0xff]
    %v7206 = vld [vmem:[#allocation21 + $0x10] sm:$0xff]
    %v7207 = vld [vmem:[#allocation21 + $0x18] sm:$0xff]
    %v7208 = vld [vmem:[#allocation21 + $0x20] sm:$0xff]
    %v7209 = vld [vmem:[#allocation21 + $0x28] sm:$0xff]
    %v7210 = vld [vmem:[#allocation21 + $0x30] sm:$0xff]
    %v7211 = vld [vmem:[#allocation21 + $0x38] sm:$0xff]
    %v7212 = vld [vmem:[#allocation21 + $0x40] sm:$0xff]
    %v7213 = vld [vmem:[#allocation21 + $0x48] sm:$0xff]
    %v7214 = vld [vmem:[#allocation21 + $0x50] sm:$0xff]
    %v7215 = vld [vmem:[#allocation21 + $0x58] sm:$0xff]
    %v7216 = vld [vmem:[#allocation21 + $0x60] sm:$0xff]
    %v7217 = vld [vmem:[#allocation21 + $0x68] sm:$0xff]
    %v7218 = vld [vmem:[#allocation21 + $0x70] sm:$0xff]
    %v7219 = vld [vmem:[#allocation21 + $0x78] sm:$0xff]
    %v7220 = vld [vmem:[#allocation21 + $0x80] sm:$0xff]
    %v7221 = vld [vmem:[#allocation21 + $0x88] sm:$0xff]
    %v7222 = vld [vmem:[#allocation21 + $0x90] sm:$0xff]
    %v7223 = vld [vmem:[#allocation21 + $0x98] sm:$0xff]
    %v7224 = vld [vmem:[#allocation21 + $0xa0] sm:$0xff]
    %v7225 = vld [vmem:[#allocation21 + $0xa8] sm:$0xff]
    %v7226 = vld [vmem:[#allocation21 + $0xb0] sm:$0xff]
    %v7227 = vld [vmem:[#allocation21 + $0xb8] sm:$0xff]
    %v7228 = vld [vmem:[#allocation21 + $0xc0] sm:$0xff]
    %v7229 = vld [vmem:[#allocation21 + $0xc8] sm:$0xff]
    %v7230 = vld [vmem:[#allocation21 + $0xd0] sm:$0xff]
    %v7231 = vld [vmem:[#allocation21 + $0xd8] sm:$0xff]
    %v7232 = vld [vmem:[#allocation21 + $0xe0] sm:$0xff]
    %v7233 = vld [vmem:[#allocation21 + $0xe8] sm:$0xff]
    %v7234 = vld [vmem:[#allocation21 + $0xf0] sm:$0xff]
    %v7235 = vld [vmem:[#allocation21 + $0xf8] sm:$0xff]
    %s7236 = scalar_lea.vmem %s45, 8
    %v7237 = vld [vmem:[%s7236] sm:$0xff]
    %v7239 = vsel %vm7127, %v7237, 0
    %7241 = vmatprep.subr.mxu0 %v7125
    %7242 = vmatpush1.msra.mxu0 %v7124
    %7243 = vmatprep.subr.mxu0 0.0
    %7244 = vmatpush1.msra.mxu0 0.0
    %7245 = vmatprep.subr.mxu0 0.0
    %7246 = vmatpush1.msra.mxu0 0.0
    %7247 = vmatprep.subr.mxu0 0.0
    %7248 = vmatpush1.msra.mxu0 0.0
    %7249 = vmatprep.subr.mxu0 0.0
    %7250 = vmatpush1.msra.mxu0 0.0
    %7251 = vmatprep.subr.mxu0 0.0
    %7252 = vmatpush1.msra.mxu0 0.0
    %7253 = vmatprep.subr.mxu0 0.0
    %7254 = vmatpush1.msra.mxu0 0.0
    %7255 = vmatprep.subr.mxu0 0.0
    %7256 = vmatpush1.msra.mxu0 0.0
    %7257 = vmatprep.subr.mxu0 0.0
    %7258 = vmatpush1.msra.mxu0 0.0
    %7259 = vmatprep.subr.mxu0 0.0
    %7260 = vmatpush1.msra.mxu0 0.0
    %7261 = vmatprep.subr.mxu0 0.0
    %7262 = vmatpush1.msra.mxu0 0.0
    %7263 = vmatprep.subr.mxu0 0.0
    %7264 = vmatpush1.msra.mxu0 0.0
    %7265 = vmatprep.subr.mxu0 0.0
    %7266 = vmatpush1.msra.mxu0 0.0
    %7267 = vmatprep.subr.mxu0 0.0
    %7268 = vmatpush1.msra.mxu0 0.0
    %7269 = vmatprep.subr.mxu0 0.0
    %7270 = vmatpush1.msra.mxu0 0.0
    %7271 = vmatprep.subr.mxu0 0.0
    %7272 = vmatpush1.msra.mxu0 0.0
    %7273 = vmatprep.subr.mxu0 0.0
    %7274 = vmatpush1.msra.mxu0 0.0
    %7275 = vmatprep.subr.mxu0 0.0
    %7276 = vmatpush1.msra.mxu0 0.0
    %7277 = vmatprep.subr.mxu0 0.0
    %7278 = vmatpush1.msra.mxu0 0.0
    %7279 = vmatprep.subr.mxu0 0.0
    %7280 = vmatpush1.msra.mxu0 0.0
    %7281 = vmatprep.subr.mxu0 0.0
    %7282 = vmatpush1.msra.mxu0 0.0
    %7283 = vmatprep.subr.mxu0 0.0
    %7284 = vmatpush1.msra.mxu0 0.0
    %7285 = vmatprep.subr.mxu0 0.0
    %7286 = vmatpush1.msra.mxu0 0.0
    %7287 = vmatprep.subr.mxu0 0.0
    %7288 = vmatpush1.msra.mxu0 0.0
    %7289 = vmatprep.subr.mxu0 0.0
    %7290 = vmatpush1.msra.mxu0 0.0
    %7291 = vmatprep.subr.mxu0 0.0
    %7292 = vmatpush1.msra.mxu0 0.0
    %7293 = vmatprep.subr.mxu0 0.0
    %7294 = vmatpush1.msra.mxu0 0.0
    %7295 = vmatprep.subr.mxu0 0.0
    %7296 = vmatpush1.msra.mxu0 0.0
    %7297 = vmatprep.subr.mxu0 0.0
    %7298 = vmatpush1.msra.mxu0 0.0
    %7299 = vmatprep.subr.mxu0 0.0
    %7300 = vmatpush1.msra.mxu0 0.0
    %7301 = vmatprep.subr.mxu0 0.0
    %7302 = vmatpush1.msra.mxu0 0.0
    %7303 = vmatprep.subr.mxu0 0.0
    %7304 = vmatpush1.msra.mxu0 0.0
    %7305 = vmatprep.mubr.f32.mxu0 0.0
    %7306 = vmatmul.mubr.f32.gmra.mrb[0].mxu0 %v7239
    %v7307 = vpop.f32.mrb[0].mxu0
    %v7308 = vadd.f32 0.0, %v7307
    %v7309 = vpop.f32.mrb[0].mxu0
    %v7310 = vadd.f32 0.0, %v7309
    %7311 = vdwg.mxu0
    %v7312 = vpack.c.bf16 %v7308, %v7308
    %v7313 = vpack.c.bf16 %v7310, %v7310
    %s7314 = scalar_lea.vmem [#allocation21], 256
    %v7315 = vld [vmem:[%s7314] sm:$0xff]
    %v7316 = vld [vmem:[%s7314 + $0x8] sm:$0xff]
    %v7317 = vld [vmem:[%s7314 + $0x10] sm:$0xff]
    %v7318 = vld [vmem:[%s7314 + $0x18] sm:$0xff]
    %v7319 = vld [vmem:[%s7314 + $0x20] sm:$0xff]
    %v7320 = vld [vmem:[%s7314 + $0x28] sm:$0xff]
    %v7321 = vld [vmem:[%s7314 + $0x30] sm:$0xff]
    %v7322 = vld [vmem:[%s7314 + $0x38] sm:$0xff]
    %v7323 = vld [vmem:[%s7314 + $0x40] sm:$0xff]
    %v7324 = vld [vmem:[%s7314 + $0x48] sm:$0xff]
    %v7325 = vld [vmem:[%s7314 + $0x50] sm:$0xff]
    %v7326 = vld [vmem:[%s7314 + $0x58] sm:$0xff]
    %v7327 = vld [vmem:[%s7314 + $0x60] sm:$0xff]
    %v7328 = vld [vmem:[%s7314 + $0x68] sm:$0xff]
    %v7329 = vld [vmem:[%s7314 + $0x70] sm:$0xff]
    %v7330 = vld [vmem:[%s7314 + $0x78] sm:$0xff]
    %v7331 = vld [vmem:[%s7314 + $0x80] sm:$0xff]
    %v7332 = vld [vmem:[%s7314 + $0x88] sm:$0xff]
    %v7333 = vld [vmem:[%s7314 + $0x90] sm:$0xff]
    %v7334 = vld [vmem:[%s7314 + $0x98] sm:$0xff]
    %v7335 = vld [vmem:[%s7314 + $0xa0] sm:$0xff]
    %v7336 = vld [vmem:[%s7314 + $0xa8] sm:$0xff]
    %v7337 = vld [vmem:[%s7314 + $0xb0] sm:$0xff]
    %v7338 = vld [vmem:[%s7314 + $0xb8] sm:$0xff]
    %v7339 = vld [vmem:[%s7314 + $0xc0] sm:$0xff]
    %v7340 = vld [vmem:[%s7314 + $0xc8] sm:$0xff]
    %v7341 = vld [vmem:[%s7314 + $0xd0] sm:$0xff]
    %v7342 = vld [vmem:[%s7314 + $0xd8] sm:$0xff]
    %v7343 = vld [vmem:[%s7314 + $0xe0] sm:$0xff]
    %v7344 = vld [vmem:[%s7314 + $0xe8] sm:$0xff]
    %v7345 = vld [vmem:[%s7314 + $0xf0] sm:$0xff]
    %v7346 = vld [vmem:[%s7314 + $0xf8] sm:$0xff]
    %v7379 = vunpack.c.l.b16 %v7315
    %v7380 = vunpack.c.h.b16 %v7315
    %v7381 = vunpack.c.l.b16 %v7316
    %v7382 = vunpack.c.h.b16 %v7316
    %v7383 = vunpack.c.l.b16 %v7317
    %v7384 = vunpack.c.h.b16 %v7317
    %v7385 = vunpack.c.l.b16 %v7318
    %v7386 = vunpack.c.h.b16 %v7318
    %v7387 = vunpack.c.l.b16 %v7319
    %v7388 = vunpack.c.h.b16 %v7319
    %v7389 = vunpack.c.l.b16 %v7320
    %v7390 = vunpack.c.h.b16 %v7320
    %v7391 = vunpack.c.l.b16 %v7321
    %v7392 = vunpack.c.h.b16 %v7321
    %v7393 = vunpack.c.l.b16 %v7322
    %v7394 = vunpack.c.h.b16 %v7322
    %v7395 = vunpack.c.l.b16 %v7323
    %v7396 = vunpack.c.h.b16 %v7323
    %v7397 = vunpack.c.l.b16 %v7324
    %v7398 = vunpack.c.h.b16 %v7324
    %v7399 = vunpack.c.l.b16 %v7325
    %v7400 = vunpack.c.h.b16 %v7325
    %v7401 = vunpack.c.l.b16 %v7326
    %v7402 = vunpack.c.h.b16 %v7326
    %v7403 = vunpack.c.l.b16 %v7327
    %v7404 = vunpack.c.h.b16 %v7327
    %v7405 = vunpack.c.l.b16 %v7328
    %v7406 = vunpack.c.h.b16 %v7328
    %v7407 = vunpack.c.l.b16 %v7329
    %v7408 = vunpack.c.h.b16 %v7329
    %v7409 = vunpack.c.l.b16 %v7330
    %v7410 = vunpack.c.h.b16 %v7330
    %v7411 = vunpack.c.l.b16 %v7331
    %v7412 = vunpack.c.h.b16 %v7331
    %v7413 = vunpack.c.l.b16 %v7332
    %v7414 = vunpack.c.h.b16 %v7332
    %v7415 = vunpack.c.l.b16 %v7333
    %v7416 = vunpack.c.h.b16 %v7333
    %v7417 = vunpack.c.l.b16 %v7334
    %v7418 = vunpack.c.h.b16 %v7334
    %v7419 = vunpack.c.l.b16 %v7335
    %v7420 = vunpack.c.h.b16 %v7335
    %v7421 = vunpack.c.l.b16 %v7336
    %v7422 = vunpack.c.h.b16 %v7336
    %v7423 = vunpack.c.l.b16 %v7337
    %v7424 = vunpack.c.h.b16 %v7337
    %v7425 = vunpack.c.l.b16 %v7338
    %v7426 = vunpack.c.h.b16 %v7338
    %v7427 = vunpack.c.l.b16 %v7339
    %v7428 = vunpack.c.h.b16 %v7339
    %v7429 = vunpack.c.l.b16 %v7340
    %v7430 = vunpack.c.h.b16 %v7340
    %v7431 = vunpack.c.l.b16 %v7341
    %v7432 = vunpack.c.h.b16 %v7341
    %v7433 = vunpack.c.l.b16 %v7342
    %v7434 = vunpack.c.h.b16 %v7342
    %v7435 = vunpack.c.l.b16 %v7343
    %v7436 = vunpack.c.h.b16 %v7343
    %v7437 = vunpack.c.l.b16 %v7344
    %v7438 = vunpack.c.h.b16 %v7344
    %v7439 = vunpack.c.l.b16 %v7345
    %v7440 = vunpack.c.h.b16 %v7345
    %v7441 = vunpack.c.l.b16 %v7346
    %v7442 = vunpack.c.h.b16 %v7346
    %v7443 = vpack.c.b16 %v7381, %v7379
    %v7444 = vpack.c.b16 %v7382, %v7380
    %v7445 = vpack.c.b16 %v7385, %v7383
    %v7446 = vpack.c.b16 %v7386, %v7384
    %v7447 = vpack.c.b16 %v7389, %v7387
    %v7448 = vpack.c.b16 %v7390, %v7388
    %v7449 = vpack.c.b16 %v7393, %v7391
    %v7450 = vpack.c.b16 %v7394, %v7392
    %v7451 = vpack.c.b16 %v7397, %v7395
    %v7452 = vpack.c.b16 %v7398, %v7396
    %v7453 = vpack.c.b16 %v7401, %v7399
    %v7454 = vpack.c.b16 %v7402, %v7400
    %v7455 = vpack.c.b16 %v7405, %v7403
    %v7456 = vpack.c.b16 %v7406, %v7404
    %v7457 = vpack.c.b16 %v7409, %v7407
    %v7458 = vpack.c.b16 %v7410, %v7408
    %v7459 = vpack.c.b16 %v7413, %v7411
    %v7460 = vpack.c.b16 %v7414, %v7412
    %v7461 = vpack.c.b16 %v7417, %v7415
    %v7462 = vpack.c.b16 %v7418, %v7416
    %v7463 = vpack.c.b16 %v7421, %v7419
    %v7464 = vpack.c.b16 %v7422, %v7420
    %v7465 = vpack.c.b16 %v7425, %v7423
    %v7466 = vpack.c.b16 %v7426, %v7424
    %v7467 = vpack.c.b16 %v7429, %v7427
    %v7468 = vpack.c.b16 %v7430, %v7428
    %v7469 = vpack.c.b16 %v7433, %v7431
    %v7470 = vpack.c.b16 %v7434, %v7432
    %v7471 = vpack.c.b16 %v7437, %v7435
    %v7472 = vpack.c.b16 %v7438, %v7436
    %v7473 = vpack.c.b16 %v7441, %v7439
    %v7474 = vpack.c.b16 %v7442, %v7440
    %7507 = vmatprep.subr.bf16.mxu0 %v7444
    %7508 = vmatpush1.bf16.msra.mxu0 %v7443
    %7509 = vmatprep.subr.bf16.mxu0 %v7446
    %7510 = vmatpush1.bf16.msra.mxu0 %v7445
    %7511 = vmatprep.subr.bf16.mxu0 %v7448
    %7512 = vmatpush1.bf16.msra.mxu0 %v7447
    %7513 = vmatprep.subr.bf16.mxu0 %v7450
    %7514 = vmatpush1.bf16.msra.mxu0 %v7449
    %7515 = vmatprep.subr.bf16.mxu0 %v7452
    %7516 = vmatpush1.bf16.msra.mxu0 %v7451
    %7517 = vmatprep.subr.bf16.mxu0 %v7454
    %7518 = vmatpush1.bf16.msra.mxu0 %v7453
    %7519 = vmatprep.subr.bf16.mxu0 %v7456
    %7520 = vmatpush1.bf16.msra.mxu0 %v7455
    %7521 = vmatprep.subr.bf16.mxu0 %v7458
    %7522 = vmatpush1.bf16.msra.mxu0 %v7457
    %7523 = vmatprep.subr.bf16.mxu0 %v7460
    %7524 = vmatpush1.bf16.msra.mxu0 %v7459
    %7525 = vmatprep.subr.bf16.mxu0 %v7462
    %7526 = vmatpush1.bf16.msra.mxu0 %v7461
    %7527 = vmatprep.subr.bf16.mxu0 %v7464
    %7528 = vmatpush1.bf16.msra.mxu0 %v7463
    %7529 = vmatprep.subr.bf16.mxu0 %v7466
    %7530 = vmatpush1.bf16.msra.mxu0 %v7465
    %7531 = vmatprep.subr.bf16.mxu0 %v7468
    %7532 = vmatpush1.bf16.msra.mxu0 %v7467
    %7533 = vmatprep.subr.bf16.mxu0 %v7470
    %7534 = vmatpush1.bf16.msra.mxu0 %v7469
    %7535 = vmatprep.subr.bf16.mxu0 %v7472
    %7536 = vmatpush1.bf16.msra.mxu0 %v7471
    %7537 = vmatprep.subr.bf16.mxu0 %v7474
    %7538 = vmatpush1.bf16.msra.mxu0 %v7473
    %7539 = vmatprep.mubr.bf16.mxu0 %v7313
    %7540 = vmatmul.mubr.bf16.gmra.mrb[0].mxu0 %v7312
    %v7541 = vpop.f32.mrb[0].mxu0
    %v7542 = vadd.f32 0.0, %v7541
    %v7543 = vpop.f32.mrb[0].mxu0
    %v7544 = vadd.f32 0.0, %v7543
    %v7545 = vpop.f32.mrb[0].mxu0
    %v7546 = vpop.f32.mrb[0].mxu0
    %7547 = vdwg.mxu0
    %v7580 = vunpack.c.l.b16 %v7204
    %v7581 = vunpack.c.h.b16 %v7204
    %v7582 = vunpack.c.l.b16 %v7205
    %v7583 = vunpack.c.h.b16 %v7205
    %v7584 = vunpack.c.l.b16 %v7206
    %v7585 = vunpack.c.h.b16 %v7206
    %v7586 = vunpack.c.l.b16 %v7207
    %v7587 = vunpack.c.h.b16 %v7207
    %v7588 = vunpack.c.l.b16 %v7208
    %v7589 = vunpack.c.h.b16 %v7208
    %v7590 = vunpack.c.l.b16 %v7209
    %v7591 = vunpack.c.h.b16 %v7209
    %v7592 = vunpack.c.l.b16 %v7210
    %v7593 = vunpack.c.h.b16 %v7210
    %v7594 = vunpack.c.l.b16 %v7211
    %v7595 = vunpack.c.h.b16 %v7211
    %v7596 = vunpack.c.l.b16 %v7212
    %v7597 = vunpack.c.h.b16 %v7212
    %v7598 = vunpack.c.l.b16 %v7213
    %v7599 = vunpack.c.h.b16 %v7213
    %v7600 = vunpack.c.l.b16 %v7214
    %v7601 = vunpack.c.h.b16 %v7214
    %v7602 = vunpack.c.l.b16 %v7215
    %v7603 = vunpack.c.h.b16 %v7215
    %v7604 = vunpack.c.l.b16 %v7216
    %v7605 = vunpack.c.h.b16 %v7216
    %v7606 = vunpack.c.l.b16 %v7217
    %v7607 = vunpack.c.h.b16 %v7217
    %v7608 = vunpack.c.l.b16 %v7218
    %v7609 = vunpack.c.h.b16 %v7218
    %v7610 = vunpack.c.l.b16 %v7219
    %v7611 = vunpack.c.h.b16 %v7219
    %v7612 = vunpack.c.l.b16 %v7220
    %v7613 = vunpack.c.h.b16 %v7220
    %v7614 = vunpack.c.l.b16 %v7221
    %v7615 = vunpack.c.h.b16 %v7221
    %v7616 = vunpack.c.l.b16 %v7222
    %v7617 = vunpack.c.h.b16 %v7222
    %v7618 = vunpack.c.l.b16 %v7223
    %v7619 = vunpack.c.h.b16 %v7223
    %v7620 = vunpack.c.l.b16 %v7224
    %v7621 = vunpack.c.h.b16 %v7224
    %v7622 = vunpack.c.l.b16 %v7225
    %v7623 = vunpack.c.h.b16 %v7225
    %v7624 = vunpack.c.l.b16 %v7226
    %v7625 = vunpack.c.h.b16 %v7226
    %v7626 = vunpack.c.l.b16 %v7227
    %v7627 = vunpack.c.h.b16 %v7227
    %v7628 = vunpack.c.l.b16 %v7228
    %v7629 = vunpack.c.h.b16 %v7228
    %v7630 = vunpack.c.l.b16 %v7229
    %v7631 = vunpack.c.h.b16 %v7229
    %v7632 = vunpack.c.l.b16 %v7230
    %v7633 = vunpack.c.h.b16 %v7230
    %v7634 = vunpack.c.l.b16 %v7231
    %v7635 = vunpack.c.h.b16 %v7231
    %v7636 = vunpack.c.l.b16 %v7232
    %v7637 = vunpack.c.h.b16 %v7232
    %v7638 = vunpack.c.l.b16 %v7233
    %v7639 = vunpack.c.h.b16 %v7233
    %v7640 = vunpack.c.l.b16 %v7234
    %v7641 = vunpack.c.h.b16 %v7234
    %v7642 = vunpack.c.l.b16 %v7235
    %v7643 = vunpack.c.h.b16 %v7235
    %v7644 = vpack.c.b16 %v7582, %v7580
    %v7645 = vpack.c.b16 %v7583, %v7581
    %v7646 = vpack.c.b16 %v7586, %v7584
    %v7647 = vpack.c.b16 %v7587, %v7585
    %v7648 = vpack.c.b16 %v7590, %v7588
    %v7649 = vpack.c.b16 %v7591, %v7589
    %v7650 = vpack.c.b16 %v7594, %v7592
    %v7651 = vpack.c.b16 %v7595, %v7593
    %v7652 = vpack.c.b16 %v7598, %v7596
    %v7653 = vpack.c.b16 %v7599, %v7597
    %v7654 = vpack.c.b16 %v7602, %v7600
    %v7655 = vpack.c.b16 %v7603, %v7601
    %v7656 = vpack.c.b16 %v7606, %v7604
    %v7657 = vpack.c.b16 %v7607, %v7605
    %v7658 = vpack.c.b16 %v7610, %v7608
    %v7659 = vpack.c.b16 %v7611, %v7609
    %v7660 = vpack.c.b16 %v7614, %v7612
    %v7661 = vpack.c.b16 %v7615, %v7613
    %v7662 = vpack.c.b16 %v7618, %v7616
    %v7663 = vpack.c.b16 %v7619, %v7617
    %v7664 = vpack.c.b16 %v7622, %v7620
    %v7665 = vpack.c.b16 %v7623, %v7621
    %v7666 = vpack.c.b16 %v7626, %v7624
    %v7667 = vpack.c.b16 %v7627, %v7625
    %v7668 = vpack.c.b16 %v7630, %v7628
    %v7669 = vpack.c.b16 %v7631, %v7629
    %v7670 = vpack.c.b16 %v7634, %v7632
    %v7671 = vpack.c.b16 %v7635, %v7633
    %v7672 = vpack.c.b16 %v7638, %v7636
    %v7673 = vpack.c.b16 %v7639, %v7637
    %v7674 = vpack.c.b16 %v7642, %v7640
    %v7675 = vpack.c.b16 %v7643, %v7641
    %7708 = vmatprep.subr.bf16.mxu0 %v7645
    %7709 = vmatpush1.bf16.msra.mxu0 %v7644
    %7710 = vmatprep.subr.bf16.mxu0 %v7647
    %7711 = vmatpush1.bf16.msra.mxu0 %v7646
    %7712 = vmatprep.subr.bf16.mxu0 %v7649
    %7713 = vmatpush1.bf16.msra.mxu0 %v7648
    %7714 = vmatprep.subr.bf16.mxu0 %v7651
    %7715 = vmatpush1.bf16.msra.mxu0 %v7650
    %7716 = vmatprep.subr.bf16.mxu0 %v7653
    %7717 = vmatpush1.bf16.msra.mxu0 %v7652
    %7718 = vmatprep.subr.bf16.mxu0 %v7655
    %7719 = vmatpush1.bf16.msra.mxu0 %v7654
    %7720 = vmatprep.subr.bf16.mxu0 %v7657
    %7721 = vmatpush1.bf16.msra.mxu0 %v7656
    %7722 = vmatprep.subr.bf16.mxu0 %v7659
    %7723 = vmatpush1.bf16.msra.mxu0 %v7658
    %7724 = vmatprep.subr.bf16.mxu0 %v7661
    %7725 = vmatpush1.bf16.msra.mxu0 %v7660
    %7726 = vmatprep.subr.bf16.mxu0 %v7663
    %7727 = vmatpush1.bf16.msra.mxu0 %v7662
    %7728 = vmatprep.subr.bf16.mxu0 %v7665
    %7729 = vmatpush1.bf16.msra.mxu0 %v7664
    %7730 = vmatprep.subr.bf16.mxu0 %v7667
    %7731 = vmatpush1.bf16.msra.mxu0 %v7666
    %7732 = vmatprep.subr.bf16.mxu0 %v7669
    %7733 = vmatpush1.bf16.msra.mxu0 %v7668
    %7734 = vmatprep.subr.bf16.mxu0 %v7671
    %7735 = vmatpush1.bf16.msra.mxu0 %v7670
    %7736 = vmatprep.subr.bf16.mxu0 %v7673
    %7737 = vmatpush1.bf16.msra.mxu0 %v7672
    %7738 = vmatprep.subr.bf16.mxu0 %v7675
    %7739 = vmatpush1.bf16.msra.mxu0 %v7674
    %7740 = vmatprep.mubr.bf16.mxu0 %v7203
    %7741 = vmatmul.mubr.bf16.gmra.mrb[0].mxu0 %v7202
    %v7742 = vpop.f32.mrb[0].mxu0
    %v7743 = vadd.f32 %v7542, %v7742
    %v7744 = vpop.f32.mrb[0].mxu0
    %v7745 = vadd.f32 %v7544, %v7744
    %v7746 = vpop.f32.mrb[0].mxu0
    %v7747 = vpop.f32.mrb[0].mxu0
    %7748 = vdwg.mxu0
    %s7749 = scalar_lea.vmem %s45, 16
    %v7750 = vld [vmem:[%s7749] sm:$0xff]
    %v7752 = vsel %vm7127, %v7750, 0
    %7754 = vmatprep.subr.mxu0 %v7125
    %7755 = vmatpush1.msra.mxu0 %v7124
    %7756 = vmatprep.subr.mxu0 0.0
    %7757 = vmatpush1.msra.mxu0 0.0
    %7758 = vmatprep.subr.mxu0 0.0
    %7759 = vmatpush1.msra.mxu0 0.0
    %7760 = vmatprep.subr.mxu0 0.0
    %7761 = vmatpush1.msra.mxu0 0.0
    %7762 = vmatprep.subr.mxu0 0.0
    %7763 = vmatpush1.msra.mxu0 0.0
    %7764 = vmatprep.subr.mxu0 0.0
    %7765 = vmatpush1.msra.mxu0 0.0
    %7766 = vmatprep.subr.mxu0 0.0
    %7767 = vmatpush1.msra.mxu0 0.0
    %7768 = vmatprep.subr.mxu0 0.0
    %7769 = vmatpush1.msra.mxu0 0.0
    %7770 = vmatprep.subr.mxu0 0.0
    %7771 = vmatpush1.msra.mxu0 0.0
    %7772 = vmatprep.subr.mxu0 0.0
    %7773 = vmatpush1.msra.mxu0 0.0
    %7774 = vmatprep.subr.mxu0 0.0
    %7775 = vmatpush1.msra.mxu0 0.0
    %7776 = vmatprep.subr.mxu0 0.0
    %7777 = vmatpush1.msra.mxu0 0.0
    %7778 = vmatprep.subr.mxu0 0.0
    %7779 = vmatpush1.msra.mxu0 0.0
    %7780 = vmatprep.subr.mxu0 0.0
    %7781 = vmatpush1.msra.mxu0 0.0
    %7782 = vmatprep.subr.mxu0 0.0
    %7783 = vmatpush1.msra.mxu0 0.0
    %7784 = vmatprep.subr.mxu0 0.0
    %7785 = vmatpush1.msra.mxu0 0.0
    %7786 = vmatprep.subr.mxu0 0.0
    %7787 = vmatpush1.msra.mxu0 0.0
    %7788 = vmatprep.subr.mxu0 0.0
    %7789 = vmatpush1.msra.mxu0 0.0
    %7790 = vmatprep.subr.mxu0 0.0
    %7791 = vmatpush1.msra.mxu0 0.0
    %7792 = vmatprep.subr.mxu0 0.0
    %7793 = vmatpush1.msra.mxu0 0.0
    %7794 = vmatprep.subr.mxu0 0.0
    %7795 = vmatpush1.msra.mxu0 0.0
    %7796 = vmatprep.subr.mxu0 0.0
    %7797 = vmatpush1.msra.mxu0 0.0
    %7798 = vmatprep.subr.mxu0 0.0
    %7799 = vmatpush1.msra.mxu0 0.0
    %7800 = vmatprep.subr.mxu0 0.0
    %7801 = vmatpush1.msra.mxu0 0.0
    %7802 = vmatprep.subr.mxu0 0.0
    %7803 = vmatpush1.msra.mxu0 0.0
    %7804 = vmatprep.subr.mxu0 0.0
    %7805 = vmatpush1.msra.mxu0 0.0
    %7806 = vmatprep.subr.mxu0 0.0
    %7807 = vmatpush1.msra.mxu0 0.0
    %7808 = vmatprep.subr.mxu0 0.0
    %7809 = vmatpush1.msra.mxu0 0.0
    %7810 = vmatprep.subr.mxu0 0.0
    %7811 = vmatpush1.msra.mxu0 0.0
    %7812 = vmatprep.subr.mxu0 0.0
    %7813 = vmatpush1.msra.mxu0 0.0
    %7814 = vmatprep.subr.mxu0 0.0
    %7815 = vmatpush1.msra.mxu0 0.0
    %7816 = vmatprep.subr.mxu0 0.0
    %7817 = vmatpush1.msra.mxu0 0.0
    %7818 = vmatprep.mubr.f32.mxu0 0.0
    %7819 = vmatmul.mubr.f32.gmra.mrb[0].mxu0 %v7752
    %v7820 = vpop.f32.mrb[0].mxu0
    %v7821 = vadd.f32 0.0, %v7820
    %v7822 = vpop.f32.mrb[0].mxu0
    %v7823 = vadd.f32 0.0, %v7822
    %7824 = vdwg.mxu0
    %v7825 = vpack.c.bf16 %v7821, %v7821
    %v7826 = vpack.c.bf16 %v7823, %v7823
    %s7827 = scalar_lea.vmem [#allocation21], 512
    %v7828 = vld [vmem:[%s7827] sm:$0xff]
    %v7829 = vld [vmem:[%s7827 + $0x8] sm:$0xff]
    %v7830 = vld [vmem:[%s7827 + $0x10] sm:$0xff]
    %v7831 = vld [vmem:[%s7827 + $0x18] sm:$0xff]
    %v7832 = vld [vmem:[%s7827 + $0x20] sm:$0xff]
    %v7833 = vld [vmem:[%s7827 + $0x28] sm:$0xff]
    %v7834 = vld [vmem:[%s7827 + $0x30] sm:$0xff]
    %v7835 = vld [vmem:[%s7827 + $0x38] sm:$0xff]
    %v7836 = vld [vmem:[%s7827 + $0x40] sm:$0xff]
    %v7837 = vld [vmem:[%s7827 + $0x48] sm:$0xff]
    %v7838 = vld [vmem:[%s7827 + $0x50] sm:$0xff]
    %v7839 = vld [vmem:[%s7827 + $0x58] sm:$0xff]
    %v7840 = vld [vmem:[%s7827 + $0x60] sm:$0xff]
    %v7841 = vld [vmem:[%s7827 + $0x68] sm:$0xff]
    %v7842 = vld [vmem:[%s7827 + $0x70] sm:$0xff]
    %v7843 = vld [vmem:[%s7827 + $0x78] sm:$0xff]
    %v7844 = vld [vmem:[%s7827 + $0x80] sm:$0xff]
    %v7845 = vld [vmem:[%s7827 + $0x88] sm:$0xff]
    %v7846 = vld [vmem:[%s7827 + $0x90] sm:$0xff]
    %v7847 = vld [vmem:[%s7827 + $0x98] sm:$0xff]
    %v7848 = vld [vmem:[%s7827 + $0xa0] sm:$0xff]
    %v7849 = vld [vmem:[%s7827 + $0xa8] sm:$0xff]
    %v7850 = vld [vmem:[%s7827 + $0xb0] sm:$0xff]
    %v7851 = vld [vmem:[%s7827 + $0xb8] sm:$0xff]
    %v7852 = vld [vmem:[%s7827 + $0xc0] sm:$0xff]
    %v7853 = vld [vmem:[%s7827 + $0xc8] sm:$0xff]
    %v7854 = vld [vmem:[%s7827 + $0xd0] sm:$0xff]
    %v7855 = vld [vmem:[%s7827 + $0xd8] sm:$0xff]
    %v7856 = vld [vmem:[%s7827 + $0xe0] sm:$0xff]
    %v7857 = vld [vmem:[%s7827 + $0xe8] sm:$0xff]
    %v7858 = vld [vmem:[%s7827 + $0xf0] sm:$0xff]
    %v7859 = vld [vmem:[%s7827 + $0xf8] sm:$0xff]
    %v7892 = vunpack.c.l.b16 %v7828
    %v7893 = vunpack.c.h.b16 %v7828
    %v7894 = vunpack.c.l.b16 %v7829
    %v7895 = vunpack.c.h.b16 %v7829
    %v7896 = vunpack.c.l.b16 %v7830
    %v7897 = vunpack.c.h.b16 %v7830
    %v7898 = vunpack.c.l.b16 %v7831
    %v7899 = vunpack.c.h.b16 %v7831
    %v7900 = vunpack.c.l.b16 %v7832
    %v7901 = vunpack.c.h.b16 %v7832
    %v7902 = vunpack.c.l.b16 %v7833
    %v7903 = vunpack.c.h.b16 %v7833
    %v7904 = vunpack.c.l.b16 %v7834
    %v7905 = vunpack.c.h.b16 %v7834
    %v7906 = vunpack.c.l.b16 %v7835
    %v7907 = vunpack.c.h.b16 %v7835
    %v7908 = vunpack.c.l.b16 %v7836
    %v7909 = vunpack.c.h.b16 %v7836
    %v7910 = vunpack.c.l.b16 %v7837
    %v7911 = vunpack.c.h.b16 %v7837
    %v7912 = vunpack.c.l.b16 %v7838
    %v7913 = vunpack.c.h.b16 %v7838
    %v7914 = vunpack.c.l.b16 %v7839
    %v7915 = vunpack.c.h.b16 %v7839
    %v7916 = vunpack.c.l.b16 %v7840
    %v7917 = vunpack.c.h.b16 %v7840
    %v7918 = vunpack.c.l.b16 %v7841
    %v7919 = vunpack.c.h.b16 %v7841
    %v7920 = vunpack.c.l.b16 %v7842
    %v7921 = vunpack.c.h.b16 %v7842
    %v7922 = vunpack.c.l.b16 %v7843
    %v7923 = vunpack.c.h.b16 %v7843
    %v7924 = vunpack.c.l.b16 %v7844
    %v7925 = vunpack.c.h.b16 %v7844
    %v7926 = vunpack.c.l.b16 %v7845
    %v7927 = vunpack.c.h.b16 %v7845
    %v7928 = vunpack.c.l.b16 %v7846
    %v7929 = vunpack.c.h.b16 %v7846
    %v7930 = vunpack.c.l.b16 %v7847
    %v7931 = vunpack.c.h.b16 %v7847
    %v7932 = vunpack.c.l.b16 %v7848
    %v7933 = vunpack.c.h.b16 %v7848
    %v7934 = vunpack.c.l.b16 %v7849
    %v7935 = vunpack.c.h.b16 %v7849
    %v7936 = vunpack.c.l.b16 %v7850
    %v7937 = vunpack.c.h.b16 %v7850
    %v7938 = vunpack.c.l.b16 %v7851
    %v7939 = vunpack.c.h.b16 %v7851
    %v7940 = vunpack.c.l.b16 %v7852
    %v7941 = vunpack.c.h.b16 %v7852
    %v7942 = vunpack.c.l.b16 %v7853
    %v7943 = vunpack.c.h.b16 %v7853
    %v7944 = vunpack.c.l.b16 %v7854
    %v7945 = vunpack.c.h.b16 %v7854
    %v7946 = vunpack.c.l.b16 %v7855
    %v7947 = vunpack.c.h.b16 %v7855
    %v7948 = vunpack.c.l.b16 %v7856
    %v7949 = vunpack.c.h.b16 %v7856
    %v7950 = vunpack.c.l.b16 %v7857
    %v7951 = vunpack.c.h.b16 %v7857
    %v7952 = vunpack.c.l.b16 %v7858
    %v7953 = vunpack.c.h.b16 %v7858
    %v7954 = vunpack.c.l.b16 %v7859
    %v7955 = vunpack.c.h.b16 %v7859
    %v7956 = vpack.c.b16 %v7894, %v7892
    %v7957 = vpack.c.b16 %v7895, %v7893
    %v7958 = vpack.c.b16 %v7898, %v7896
    %v7959 = vpack.c.b16 %v7899, %v7897
    %v7960 = vpack.c.b16 %v7902, %v7900
    %v7961 = vpack.c.b16 %v7903, %v7901
    %v7962 = vpack.c.b16 %v7906, %v7904
    %v7963 = vpack.c.b16 %v7907, %v7905
    %v7964 = vpack.c.b16 %v7910, %v7908
    %v7965 = vpack.c.b16 %v7911, %v7909
    %v7966 = vpack.c.b16 %v7914, %v7912
    %v7967 = vpack.c.b16 %v7915, %v7913
    %v7968 = vpack.c.b16 %v7918, %v7916
    %v7969 = vpack.c.b16 %v7919, %v7917
    %v7970 = vpack.c.b16 %v7922, %v7920
    %v7971 = vpack.c.b16 %v7923, %v7921
    %v7972 = vpack.c.b16 %v7926, %v7924
    %v7973 = vpack.c.b16 %v7927, %v7925
    %v7974 = vpack.c.b16 %v7930, %v7928
    %v7975 = vpack.c.b16 %v7931, %v7929
    %v7976 = vpack.c.b16 %v7934, %v7932
    %v7977 = vpack.c.b16 %v7935, %v7933
    %v7978 = vpack.c.b16 %v7938, %v7936
    %v7979 = vpack.c.b16 %v7939, %v7937
    %v7980 = vpack.c.b16 %v7942, %v7940
    %v7981 = vpack.c.b16 %v7943, %v7941
    %v7982 = vpack.c.b16 %v7946, %v7944
    %v7983 = vpack.c.b16 %v7947, %v7945
    %v7984 = vpack.c.b16 %v7950, %v7948
    %v7985 = vpack.c.b16 %v7951, %v7949
    %v7986 = vpack.c.b16 %v7954, %v7952
    %v7987 = vpack.c.b16 %v7955, %v7953
    %8020 = vmatprep.subr.bf16.mxu0 %v7957
    %8021 = vmatpush1.bf16.msra.mxu0 %v7956
    %8022 = vmatprep.subr.bf16.mxu0 %v7959
    %8023 = vmatpush1.bf16.msra.mxu0 %v7958
    %8024 = vmatprep.subr.bf16.mxu0 %v7961
    %8025 = vmatpush1.bf16.msra.mxu0 %v7960
    %8026 = vmatprep.subr.bf16.mxu0 %v7963
    %8027 = vmatpush1.bf16.msra.mxu0 %v7962
    %8028 = vmatprep.subr.bf16.mxu0 %v7965
    %8029 = vmatpush1.bf16.msra.mxu0 %v7964
    %8030 = vmatprep.subr.bf16.mxu0 %v7967
    %8031 = vmatpush1.bf16.msra.mxu0 %v7966
    %8032 = vmatprep.subr.bf16.mxu0 %v7969
    %8033 = vmatpush1.bf16.msra.mxu0 %v7968
    %8034 = vmatprep.subr.bf16.mxu0 %v7971
    %8035 = vmatpush1.bf16.msra.mxu0 %v7970
    %8036 = vmatprep.subr.bf16.mxu0 %v7973
    %8037 = vmatpush1.bf16.msra.mxu0 %v7972
    %8038 = vmatprep.subr.bf16.mxu0 %v7975
    %8039 = vmatpush1.bf16.msra.mxu0 %v7974
    %8040 = vmatprep.subr.bf16.mxu0 %v7977
    %8041 = vmatpush1.bf16.msra.mxu0 %v7976
    %8042 = vmatprep.subr.bf16.mxu0 %v7979
    %8043 = vmatpush1.bf16.msra.mxu0 %v7978
    %8044 = vmatprep.subr.bf16.mxu0 %v7981
    %8045 = vmatpush1.bf16.msra.mxu0 %v7980
    %8046 = vmatprep.subr.bf16.mxu0 %v7983
    %8047 = vmatpush1.bf16.msra.mxu0 %v7982
    %8048 = vmatprep.subr.bf16.mxu0 %v7985
    %8049 = vmatpush1.bf16.msra.mxu0 %v7984
    %8050 = vmatprep.subr.bf16.mxu0 %v7987
    %8051 = vmatpush1.bf16.msra.mxu0 %v7986
    %8052 = vmatprep.mubr.bf16.mxu0 %v7826
    %8053 = vmatmul.mubr.bf16.gmra.mrb[0].mxu0 %v7825
    %v8054 = vpop.f32.mrb[0].mxu0
    %v8055 = vadd.f32 0.0, %v8054
    %v8056 = vpop.f32.mrb[0].mxu0
    %v8057 = vadd.f32 0.0, %v8056
    %v8058 = vpop.f32.mrb[0].mxu0
    %v8059 = vpop.f32.mrb[0].mxu0
    %8060 = vdwg.mxu0
    %v8061 = vadd.f32 %v7743, %v8055
    %v8062 = vadd.f32 %v7745, %v8057
    %v8063 = vld [vmem:[%s43] sm:$0xff]
    %8064 = vmatprep.subr.mxu0 0.0
    %8065 = vmatpush1.msra.mxu0 %v8063
    %8066 = vmatprep.subr.mxu0 0.0
    %8067 = vmatpush1.msra.mxu0 0.0
    %8068 = vmatprep.subr.mxu0 0.0
    %8069 = vmatpush1.msra.mxu0 0.0
    %8070 = vmatprep.subr.mxu0 0.0
    %8071 = vmatpush1.msra.mxu0 0.0
    %8072 = vmatprep.subr.mxu0 0.0
    %8073 = vmatpush1.msra.mxu0 0.0
    %8074 = vmatprep.subr.mxu0 0.0
    %8075 = vmatpush1.msra.mxu0 0.0
    %8076 = vmatprep.subr.mxu0 0.0
    %8077 = vmatpush1.msra.mxu0 0.0
    %8078 = vmatprep.subr.mxu0 0.0
    %8079 = vmatpush1.msra.mxu0 0.0
    %8080 = vmatprep.subr.mxu0 0.0
    %8081 = vmatpush1.msra.mxu0 0.0
    %8082 = vmatprep.subr.mxu0 0.0
    %8083 = vmatpush1.msra.mxu0 0.0
    %8084 = vmatprep.subr.mxu0 0.0
    %8085 = vmatpush1.msra.mxu0 0.0
    %8086 = vmatprep.subr.mxu0 0.0
    %8087 = vmatpush1.msra.mxu0 0.0
    %8088 = vmatprep.subr.mxu0 0.0
    %8089 = vmatpush1.msra.mxu0 0.0
    %8090 = vmatprep.subr.mxu0 0.0
    %8091 = vmatpush1.msra.mxu0 0.0
    %8092 = vmatprep.subr.mxu0 0.0
    %8093 = vmatpush1.msra.mxu0 0.0
    %8094 = vmatprep.subr.mxu0 0.0
    %8095 = vmatpush1.msra.mxu0 0.0
    %8096 = vmatprep.subr.mxu0 0.0
    %8097 = vmatpush1.msra.mxu0 0.0
    %8098 = vmatprep.subr.mxu0 0.0
    %8099 = vmatpush1.msra.mxu0 0.0
    %8100 = vmatprep.subr.mxu0 0.0
    %8101 = vmatpush1.msra.mxu0 0.0
    %8102 = vmatprep.subr.mxu0 0.0
    %8103 = vmatpush1.msra.mxu0 0.0
    %8104 = vmatprep.subr.mxu0 0.0
    %8105 = vmatpush1.msra.mxu0 0.0
    %8106 = vmatprep.subr.mxu0 0.0
    %8107 = vmatpush1.msra.mxu0 0.0
    %8108 = vmatprep.subr.mxu0 0.0
    %8109 = vmatpush1.msra.mxu0 0.0
    %8110 = vmatprep.subr.mxu0 0.0
    %8111 = vmatpush1.msra.mxu0 0.0
    %8112 = vmatprep.subr.mxu0 0.0
    %8113 = vmatpush1.msra.mxu0 0.0
    %8114 = vmatprep.subr.mxu0 0.0
    %8115 = vmatpush1.msra.mxu0 0.0
    %8116 = vmatprep.subr.mxu0 0.0
    %8117 = vmatpush1.msra.mxu0 0.0
    %8118 = vmatprep.subr.mxu0 0.0
    %8119 = vmatpush1.msra.mxu0 0.0
    %8120 = vmatprep.subr.mxu0 0.0
    %8121 = vmatpush1.msra.mxu0 0.0
    %8122 = vmatprep.subr.mxu0 0.0
    %8123 = vmatpush1.msra.mxu0 0.0
    %8124 = vmatprep.subr.mxu0 0.0
    %8125 = vmatpush1.msra.mxu0 0.0
    %8126 = vmatprep.subr.mxu0 0.0
    %8127 = vmatpush1.msra.mxu0 0.0
    %8128 = vmatprep.mubr.f32.mxu0 0.0
    %8129 = vmatmul.mubr.f32.gmra.mrb[0].mxu0 %v7129
    %v8130 = vpop.f32.mrb[0].mxu0
    %v8131 = vadd.f32 0.0, %v8130
    %v8132 = vpop.f32.mrb[0].mxu0
    %8133 = vdwg.mxu0
    %v8134 = vpack.c.bf16 %v8131, %v8131
    %v8135 = vld [vmem:[#allocation23] sm:$0xff]
    %v8136 = vld [vmem:[#allocation23 + $0x8] sm:$0xff]
    %v8137 = vld [vmem:[#allocation23 + $0x10] sm:$0xff]
    %v8138 = vld [vmem:[#allocation23 + $0x18] sm:$0xff]
    %v8139 = vld [vmem:[#allocation23 + $0x20] sm:$0xff]
    %v8140 = vld [vmem:[#allocation23 + $0x28] sm:$0xff]
    %v8141 = vld [vmem:[#allocation23 + $0x30] sm:$0xff]
    %v8142 = vld [vmem:[#allocation23 + $0x38] sm:$0xff]
    %8143 = vmatprep.subr.mxu0 0.0
    %8144 = vmatpush1.msra.mxu0 %v8063
    %8145 = vmatprep.subr.mxu0 0.0
    %8146 = vmatpush1.msra.mxu0 0.0
    %8147 = vmatprep.subr.mxu0 0.0
    %8148 = vmatpush1.msra.mxu0 0.0
    %8149 = vmatprep.subr.mxu0 0.0
    %8150 = vmatpush1.msra.mxu0 0.0
    %8151 = vmatprep.subr.mxu0 0.0
    %8152 = vmatpush1.msra.mxu0 0.0
    %8153 = vmatprep.subr.mxu0 0.0
    %8154 = vmatpush1.msra.mxu0 0.0
    %8155 = vmatprep.subr.mxu0 0.0
    %8156 = vmatpush1.msra.mxu0 0.0
    %8157 = vmatprep.subr.mxu0 0.0
    %8158 = vmatpush1.msra.mxu0 0.0
    %8159 = vmatprep.subr.mxu0 0.0
    %8160 = vmatpush1.msra.mxu0 0.0
    %8161 = vmatprep.subr.mxu0 0.0
    %8162 = vmatpush1.msra.mxu0 0.0
    %8163 = vmatprep.subr.mxu0 0.0
    %8164 = vmatpush1.msra.mxu0 0.0
    %8165 = vmatprep.subr.mxu0 0.0
    %8166 = vmatpush1.msra.mxu0 0.0
    %8167 = vmatprep.subr.mxu0 0.0
    %8168 = vmatpush1.msra.mxu0 0.0
    %8169 = vmatprep.subr.mxu0 0.0
    %8170 = vmatpush1.msra.mxu0 0.0
    %8171 = vmatprep.subr.mxu0 0.0
    %8172 = vmatpush1.msra.mxu0 0.0
    %8173 = vmatprep.subr.mxu0 0.0
    %8174 = vmatpush1.msra.mxu0 0.0
    %8175 = vmatprep.subr.mxu0 0.0
    %8176 = vmatpush1.msra.mxu0 0.0
    %8177 = vmatprep.subr.mxu0 0.0
    %8178 = vmatpush1.msra.mxu0 0.0
    %8179 = vmatprep.subr.mxu0 0.0
    %8180 = vmatpush1.msra.mxu0 0.0
    %8181 = vmatprep.subr.mxu0 0.0
    %8182 = vmatpush1.msra.mxu0 0.0
    %8183 = vmatprep.subr.mxu0 0.0
    %8184 = vmatpush1.msra.mxu0 0.0
    %8185 = vmatprep.subr.mxu0 0.0
    %8186 = vmatpush1.msra.mxu0 0.0
    %8187 = vmatprep.subr.mxu0 0.0
    %8188 = vmatpush1.msra.mxu0 0.0
    %8189 = vmatprep.subr.mxu0 0.0
    %8190 = vmatpush1.msra.mxu0 0.0
    %8191 = vmatprep.subr.mxu0 0.0
    %8192 = vmatpush1.msra.mxu0 0.0
    %8193 = vmatprep.subr.mxu0 0.0
    %8194 = vmatpush1.msra.mxu0 0.0
    %8195 = vmatprep.subr.mxu0 0.0
    %8196 = vmatpush1.msra.mxu0 0.0
    %8197 = vmatprep.subr.mxu0 0.0
    %8198 = vmatpush1.msra.mxu0 0.0
    %8199 = vmatprep.subr.mxu0 0.0
    %8200 = vmatpush1.msra.mxu0 0.0
    %8201 = vmatprep.subr.mxu0 0.0
    %8202 = vmatpush1.msra.mxu0 0.0
    %8203 = vmatprep.subr.mxu0 0.0
    %8204 = vmatpush1.msra.mxu0 0.0
    %8205 = vmatprep.subr.mxu0 0.0
    %8206 = vmatpush1.msra.mxu0 0.0
    %8207 = vmatprep.mubr.f32.mxu0 0.0
    %8208 = vmatmul.mubr.f32.gmra.mrb[0].mxu0 %v7239
    %v8209 = vpop.f32.mrb[0].mxu0
    %v8210 = vadd.f32 0.0, %v8209
    %v8211 = vpop.f32.mrb[0].mxu0
    %8212 = vdwg.mxu0
    %v8213 = vpack.c.bf16 %v8210, %v8210
    %s8214 = scalar_lea.vmem [#allocation23], 64
    %v8215 = vld [vmem:[%s8214] sm:$0xff]
    %v8216 = vld [vmem:[%s8214 + $0x8] sm:$0xff]
    %v8217 = vld [vmem:[%s8214 + $0x10] sm:$0xff]
    %v8218 = vld [vmem:[%s8214 + $0x18] sm:$0xff]
    %v8219 = vld [vmem:[%s8214 + $0x20] sm:$0xff]
    %v8220 = vld [vmem:[%s8214 + $0x28] sm:$0xff]
    %v8221 = vld [vmem:[%s8214 + $0x30] sm:$0xff]
    %v8222 = vld [vmem:[%s8214 + $0x38] sm:$0xff]
    %v8231 = vunpack.c.l.b16 %v8215
    %v8232 = vunpack.c.h.b16 %v8215
    %v8233 = vunpack.c.l.b16 %v8216
    %v8234 = vunpack.c.h.b16 %v8216
    %v8235 = vunpack.c.l.b16 %v8217
    %v8236 = vunpack.c.h.b16 %v8217
    %v8237 = vunpack.c.l.b16 %v8218
    %v8238 = vunpack.c.h.b16 %v8218
    %v8239 = vunpack.c.l.b16 %v8219
    %v8240 = vunpack.c.h.b16 %v8219
    %v8241 = vunpack.c.l.b16 %v8220
    %v8242 = vunpack.c.h.b16 %v8220
    %v8243 = vunpack.c.l.b16 %v8221
    %v8244 = vunpack.c.h.b16 %v8221
    %v8245 = vunpack.c.l.b16 %v8222
    %v8246 = vunpack.c.h.b16 %v8222
    %v8247 = vpack.c.b16 %v8233, %v8231
    %v8248 = vpack.c.b16 %v8234, %v8232
    %v8249 = vpack.c.b16 %v8237, %v8235
    %v8250 = vpack.c.b16 %v8238, %v8236
    %v8251 = vpack.c.b16 %v8241, %v8239
    %v8252 = vpack.c.b16 %v8242, %v8240
    %v8253 = vpack.c.b16 %v8245, %v8243
    %v8254 = vpack.c.b16 %v8246, %v8244
    %v8264 = vsel %vm826, %v8213, 0
    %8266 = vmatprep.subr.bf16.mxu0 %v8248
    %8267 = vmatpush1.bf16.msra.mxu0 %v8247
    %8268 = vmatprep.subr.bf16.mxu0 %v8250
    %8269 = vmatpush1.bf16.msra.mxu0 %v8249
    %8270 = vmatprep.subr.bf16.mxu0 %v8252
    %8271 = vmatpush1.bf16.msra.mxu0 %v8251
    %8272 = vmatprep.subr.bf16.mxu0 %v8254
    %8273 = vmatpush1.bf16.msra.mxu0 %v8253
    %8274 = vmatprep.subr.bf16.mxu0 0
    %8275 = vmatpush1.bf16.msra.mxu0 0
    %8276 = vmatprep.subr.bf16.mxu0 0
    %8277 = vmatpush1.bf16.msra.mxu0 0
    %8278 = vmatprep.subr.bf16.mxu0 0
    %8279 = vmatpush1.bf16.msra.mxu0 0
    %8280 = vmatprep.subr.bf16.mxu0 0
    %8281 = vmatpush1.bf16.msra.mxu0 0
    %8282 = vmatprep.subr.bf16.mxu0 0
    %8283 = vmatpush1.bf16.msra.mxu0 0
    %8284 = vmatprep.subr.bf16.mxu0 0
    %8285 = vmatpush1.bf16.msra.mxu0 0
    %8286 = vmatprep.subr.bf16.mxu0 0
    %8287 = vmatpush1.bf16.msra.mxu0 0
    %8288 = vmatprep.subr.bf16.mxu0 0
    %8289 = vmatpush1.bf16.msra.mxu0 0
    %8290 = vmatprep.subr.bf16.mxu0 0
    %8291 = vmatpush1.bf16.msra.mxu0 0
    %8292 = vmatprep.subr.bf16.mxu0 0
    %8293 = vmatpush1.bf16.msra.mxu0 0
    %8294 = vmatprep.subr.bf16.mxu0 0
    %8295 = vmatpush1.bf16.msra.mxu0 0
    %8296 = vmatprep.subr.bf16.mxu0 0
    %8297 = vmatpush1.bf16.msra.mxu0 0
    %8298 = vmatprep.mubr.bf16.mxu0 0
    %8299 = vmatmul.mubr.bf16.gmra.mrb[0].mxu0 %v8264
    %v8300 = vpop.f32.mrb[0].mxu0
    %v8301 = vadd.f32 0.0, %v8300
    %v8302 = vpop.f32.mrb[0].mxu0
    %v8303 = vadd.f32 0.0, %v8302
    %v8304 = vpop.f32.mrb[0].mxu0
    %v8305 = vpop.f32.mrb[0].mxu0
    %8306 = vdwg.mxu0
    %v8315 = vunpack.c.l.b16 %v8135
    %v8316 = vunpack.c.h.b16 %v8135
    %v8317 = vunpack.c.l.b16 %v8136
    %v8318 = vunpack.c.h.b16 %v8136
    %v8319 = vunpack.c.l.b16 %v8137
    %v8320 = vunpack.c.h.b16 %v8137
    %v8321 = vunpack.c.l.b16 %v8138
    %v8322 = vunpack.c.h.b16 %v8138
    %v8323 = vunpack.c.l.b16 %v8139
    %v8324 = vunpack.c.h.b16 %v8139
    %v8325 = vunpack.c.l.b16 %v8140
    %v8326 = vunpack.c.h.b16 %v8140
    %v8327 = vunpack.c.l.b16 %v8141
    %v8328 = vunpack.c.h.b16 %v8141
    %v8329 = vunpack.c.l.b16 %v8142
    %v8330 = vunpack.c.h.b16 %v8142
    %v8331 = vpack.c.b16 %v8317, %v8315
    %v8332 = vpack.c.b16 %v8318, %v8316
    %v8333 = vpack.c.b16 %v8321, %v8319
    %v8334 = vpack.c.b16 %v8322, %v8320
    %v8335 = vpack.c.b16 %v8325, %v8323
    %v8336 = vpack.c.b16 %v8326, %v8324
    %v8337 = vpack.c.b16 %v8329, %v8327
    %v8338 = vpack.c.b16 %v8330, %v8328
    %v8348 = vsel %vm826, %v8134, 0
    %8350 = vmatprep.subr.bf16.mxu0 %v8332
    %8351 = vmatpush1.bf16.msra.mxu0 %v8331
    %8352 = vmatprep.subr.bf16.mxu0 %v8334
    %8353 = vmatpush1.bf16.msra.mxu0 %v8333
    %8354 = vmatprep.subr.bf16.mxu0 %v8336
    %8355 = vmatpush1.bf16.msra.mxu0 %v8335
    %8356 = vmatprep.subr.bf16.mxu0 %v8338
    %8357 = vmatpush1.bf16.msra.mxu0 %v8337
    %8358 = vmatprep.subr.bf16.mxu0 0
    %8359 = vmatpush1.bf16.msra.mxu0 0
    %8360 = vmatprep.subr.bf16.mxu0 0
    %8361 = vmatpush1.bf16.msra.mxu0 0
    %8362 = vmatprep.subr.bf16.mxu0 0
    %8363 = vmatpush1.bf16.msra.mxu0 0
    %8364 = vmatprep.subr.bf16.mxu0 0
    %8365 = vmatpush1.bf16.msra.mxu0 0
    %8366 = vmatprep.subr.bf16.mxu0 0
    %8367 = vmatpush1.bf16.msra.mxu0 0
    %8368 = vmatprep.subr.bf16.mxu0 0
    %8369 = vmatpush1.bf16.msra.mxu0 0
    %8370 = vmatprep.subr.bf16.mxu0 0
    %8371 = vmatpush1.bf16.msra.mxu0 0
    %8372 = vmatprep.subr.bf16.mxu0 0
    %8373 = vmatpush1.bf16.msra.mxu0 0
    %8374 = vmatprep.subr.bf16.mxu0 0
    %8375 = vmatpush1.bf16.msra.mxu0 0
    %8376 = vmatprep.subr.bf16.mxu0 0
    %8377 = vmatpush1.bf16.msra.mxu0 0
    %8378 = vmatprep.subr.bf16.mxu0 0
    %8379 = vmatpush1.bf16.msra.mxu0 0
    %8380 = vmatprep.subr.bf16.mxu0 0
    %8381 = vmatpush1.bf16.msra.mxu0 0
    %8382 = vmatprep.mubr.bf16.mxu0 0
    %8383 = vmatmul.mubr.bf16.gmra.mrb[0].mxu0 %v8348
    %v8384 = vpop.f32.mrb[0].mxu0
    %v8385 = vadd.f32 %v8301, %v8384
    %v8386 = vpop.f32.mrb[0].mxu0
    %v8387 = vadd.f32 %v8303, %v8386
    %v8388 = vpop.f32.mrb[0].mxu0
    %v8389 = vpop.f32.mrb[0].mxu0
    %8390 = vdwg.mxu0
    %8391 = vmatprep.subr.mxu0 0.0
    %8392 = vmatpush1.msra.mxu0 %v8063
    %8393 = vmatprep.subr.mxu0 0.0
    %8394 = vmatpush1.msra.mxu0 0.0
    %8395 = vmatprep.subr.mxu0 0.0
    %8396 = vmatpush1.msra.mxu0 0.0
    %8397 = vmatprep.subr.mxu0 0.0
    %8398 = vmatpush1.msra.mxu0 0.0
    %8399 = vmatprep.subr.mxu0 0.0
    %8400 = vmatpush1.msra.mxu0 0.0
    %8401 = vmatprep.subr.mxu0 0.0
    %8402 = vmatpush1.msra.mxu0 0.0
    %8403 = vmatprep.subr.mxu0 0.0
    %8404 = vmatpush1.msra.mxu0 0.0
    %8405 = vmatprep.subr.mxu0 0.0
    %8406 = vmatpush1.msra.mxu0 0.0
    %8407 = vmatprep.subr.mxu0 0.0
    %8408 = vmatpush1.msra.mxu0 0.0
    %8409 = vmatprep.subr.mxu0 0.0
    %8410 = vmatpush1.msra.mxu0 0.0
    %8411 = vmatprep.subr.mxu0 0.0
    %8412 = vmatpush1.msra.mxu0 0.0
    %8413 = vmatprep.subr.mxu0 0.0
    %8414 = vmatpush1.msra.mxu0 0.0
    %8415 = vmatprep.subr.mxu0 0.0
    %8416 = vmatpush1.msra.mxu0 0.0
    %8417 = vmatprep.subr.mxu0 0.0
    %8418 = vmatpush1.msra.mxu0 0.0
    %8419 = vmatprep.subr.mxu0 0.0
    %8420 = vmatpush1.msra.mxu0 0.0
    %8421 = vmatprep.subr.mxu0 0.0
    %8422 = vmatpush1.msra.mxu0 0.0
    %8423 = vmatprep.subr.mxu0 0.0
    %8424 = vmatpush1.msra.mxu0 0.0
    %8425 = vmatprep.subr.mxu0 0.0
    %8426 = vmatpush1.msra.mxu0 0.0
    %8427 = vmatprep.subr.mxu0 0.0
    %8428 = vmatpush1.msra.mxu0 0.0
    %8429 = vmatprep.subr.mxu0 0.0
    %8430 = vmatpush1.msra.mxu0 0.0
    %8431 = vmatprep.subr.mxu0 0.0
    %8432 = vmatpush1.msra.mxu0 0.0
    %8433 = vmatprep.subr.mxu0 0.0
    %8434 = vmatpush1.msra.mxu0 0.0
    %8435 = vmatprep.subr.mxu0 0.0
    %8436 = vmatpush1.msra.mxu0 0.0
    %8437 = vmatprep.subr.mxu0 0.0
    %8438 = vmatpush1.msra.mxu0 0.0
    %8439 = vmatprep.subr.mxu0 0.0
    %8440 = vmatpush1.msra.mxu0 0.0
    %8441 = vmatprep.subr.mxu0 0.0
    %8442 = vmatpush1.msra.mxu0 0.0
    %8443 = vmatprep.subr.mxu0 0.0
    %8444 = vmatpush1.msra.mxu0 0.0
    %8445 = vmatprep.subr.mxu0 0.0
    %8446 = vmatpush1.msra.mxu0 0.0
    %8447 = vmatprep.subr.mxu0 0.0
    %8448 = vmatpush1.msra.mxu0 0.0
    %8449 = vmatprep.subr.mxu0 0.0
    %8450 = vmatpush1.msra.mxu0 0.0
    %8451 = vmatprep.subr.mxu0 0.0
    %8452 = vmatpush1.msra.mxu0 0.0
    %8453 = vmatprep.subr.mxu0 0.0
    %8454 = vmatpush1.msra.mxu0 0.0
    %8455 = vmatprep.mubr.f32.mxu0 0.0
    %8456 = vmatmul.mubr.f32.gmra.mrb[0].mxu0 %v7752
    %v8457 = vpop.f32.mrb[0].mxu0
    %v8458 = vadd.f32 0.0, %v8457
    %v8459 = vpop.f32.mrb[0].mxu0
    %8460 = vdwg.mxu0
    %v8461 = vpack.c.bf16 %v8458, %v8458
    %s8462 = scalar_lea.vmem [#allocation23], 128
    %v8463 = vld [vmem:[%s8462] sm:$0xff]
    %v8464 = vld [vmem:[%s8462 + $0x8] sm:$0xff]
    %v8465 = vld [vmem:[%s8462 + $0x10] sm:$0xff]
    %v8466 = vld [vmem:[%s8462 + $0x18] sm:$0xff]
    %v8467 = vld [vmem:[%s8462 + $0x20] sm:$0xff]
    %v8468 = vld [vmem:[%s8462 + $0x28] sm:$0xff]
    %v8469 = vld [vmem:[%s8462 + $0x30] sm:$0xff]
    %v8470 = vld [vmem:[%s8462 + $0x38] sm:$0xff]
    %v8479 = vunpack.c.l.b16 %v8463
    %v8480 = vunpack.c.h.b16 %v8463
    %v8481 = vunpack.c.l.b16 %v8464
    %v8482 = vunpack.c.h.b16 %v8464
    %v8483 = vunpack.c.l.b16 %v8465
    %v8484 = vunpack.c.h.b16 %v8465
    %v8485 = vunpack.c.l.b16 %v8466
    %v8486 = vunpack.c.h.b16 %v8466
    %v8487 = vunpack.c.l.b16 %v8467
    %v8488 = vunpack.c.h.b16 %v8467
    %v8489 = vunpack.c.l.b16 %v8468
    %v8490 = vunpack.c.h.b16 %v8468
    %v8491 = vunpack.c.l.b16 %v8469
    %v8492 = vunpack.c.h.b16 %v8469
    %v8493 = vunpack.c.l.b16 %v8470
    %v8494 = vunpack.c.h.b16 %v8470
    %v8495 = vpack.c.b16 %v8481, %v8479
    %v8496 = vpack.c.b16 %v8482, %v8480
    %v8497 = vpack.c.b16 %v8485, %v8483
    %v8498 = vpack.c.b16 %v8486, %v8484
    %v8499 = vpack.c.b16 %v8489, %v8487
    %v8500 = vpack.c.b16 %v8490, %v8488
    %v8501 = vpack.c.b16 %v8493, %v8491
    %v8502 = vpack.c.b16 %v8494, %v8492
    %v8512 = vsel %vm826, %v8461, 0
    %8514 = vmatprep.subr.bf16.mxu0 %v8496
    %8515 = vmatpush1.bf16.msra.mxu0 %v8495
    %8516 = vmatprep.subr.bf16.mxu0 %v8498
    %8517 = vmatpush1.bf16.msra.mxu0 %v8497
    %8518 = vmatprep.subr.bf16.mxu0 %v8500
    %8519 = vmatpush1.bf16.msra.mxu0 %v8499
    %8520 = vmatprep.subr.bf16.mxu0 %v8502
    %8521 = vmatpush1.bf16.msra.mxu0 %v8501
    %8522 = vmatprep.subr.bf16.mxu0 0
    %8523 = vmatpush1.bf16.msra.mxu0 0
    %8524 = vmatprep.subr.bf16.mxu0 0
    %8525 = vmatpush1.bf16.msra.mxu0 0
    %8526 = vmatprep.subr.bf16.mxu0 0
    %8527 = vmatpush1.bf16.msra.mxu0 0
    %8528 = vmatprep.subr.bf16.mxu0 0
    %8529 = vmatpush1.bf16.msra.mxu0 0
    %8530 = vmatprep.subr.bf16.mxu0 0
    %8531 = vmatpush1.bf16.msra.mxu0 0
    %8532 = vmatprep.subr.bf16.mxu0 0
    %8533 = vmatpush1.bf16.msra.mxu0 0
    %8534 = vmatprep.subr.bf16.mxu0 0
    %8535 = vmatpush1.bf16.msra.mxu0 0
    %8536 = vmatprep.subr.bf16.mxu0 0
    %8537 = vmatpush1.bf16.msra.mxu0 0
    %8538 = vmatprep.subr.bf16.mxu0 0
    %8539 = vmatpush1.bf16.msra.mxu0 0
    %8540 = vmatprep.subr.bf16.mxu0 0
    %8541 = vmatpush1.bf16.msra.mxu0 0
    %8542 = vmatprep.subr.bf16.mxu0 0
    %8543 = vmatpush1.bf16.msra.mxu0 0
    %8544 = vmatprep.subr.bf16.mxu0 0
    %8545 = vmatpush1.bf16.msra.mxu0 0
    %8546 = vmatprep.mubr.bf16.mxu0 0
    %8547 = vmatmul.mubr.bf16.gmra.mrb[0].mxu0 %v8512
    %v8548 = vpop.f32.mrb[0].mxu0
    %v8549 = vadd.f32 0.0, %v8548
    %v8550 = vpop.f32.mrb[0].mxu0
    %v8551 = vadd.f32 0.0, %v8550
    %v8552 = vpop.f32.mrb[0].mxu0
    %v8553 = vpop.f32.mrb[0].mxu0
    %8554 = vdwg.mxu0
    %v8555 = vadd.f32 %v8385, %v8549
    %v8556 = vadd.f32 %v8387, %v8551
    %v8557 = vadd.f32 %v8061, %v8555
    %v8558 = vadd.f32 %v8062, %v8556
    %v8559 = vrot.slane %v8557, 4
    %v8560 = vadd.f32 %v8557, %v8559
    %v8561 = vrot.slane %v8560, 2
    %v8562 = vadd.f32 %v8560, %v8561
    %v8563 = vrot.slane %v8562, 1
    %v8564 = vadd.f32 %v8562, %v8563
    %v8565 = vrot.slane %v8558, 4
    %v8566 = vadd.f32 %v8558, %v8565
    %v8567 = vrot.slane %v8566, 2
    %v8568 = vadd.f32 %v8566, %v8567
    %v8569 = vrot.slane %v8568, 1
    %v8570 = vadd.f32 %v8568, %v8569
    %v8571 = vmul.f32 %v8557, %v8557
    %v8572 = vmul.f32 %v8558, %v8558
    %v8573 = vrot.slane %v8571, 4
    %v8574 = vadd.f32 %v8571, %v8573
    %v8575 = vrot.slane %v8574, 2
    %v8576 = vadd.f32 %v8574, %v8575
    %v8577 = vrot.slane %v8576, 1
    %v8578 = vadd.f32 %v8576, %v8577
    %v8579 = vrot.slane %v8572, 4
    %v8580 = vadd.f32 %v8572, %v8579
    %v8581 = vrot.slane %v8580, 2
    %v8582 = vadd.f32 %v8580, %v8581
    %v8583 = vrot.slane %v8582, 1
    %v8584 = vadd.f32 %v8582, %v8583
    %v8585 = vld [vmem:[%s51] sm:$0xff]
    %v8586 = vld [vmem:[%s51 + $0x8] sm:$0xff]
    %v8587 = vld [vmem:[%s51 + $0x10] sm:$0xff]
    %v8588 = vld [vmem:[%s51 + $0x18] sm:$0xff]
    %v8589 = vld [vmem:[%s51 + $0x20] sm:$0xff]
    %v8590 = vld [vmem:[%s51 + $0x28] sm:$0xff]
    %v8591 = vld [vmem:[%s51 + $0x30] sm:$0xff]
    %v8592 = vld [vmem:[%s51 + $0x38] sm:$0xff]
    %v8593 = vld [vmem:[%s51 + $0x40] sm:$0xff]
    %v8594 = vld [vmem:[%s51 + $0x48] sm:$0xff]
    %v8595 = vld [vmem:[%s51 + $0x50] sm:$0xff]
    %v8596 = vld [vmem:[%s51 + $0x58] sm:$0xff]
    %v8597 = vld [vmem:[%s51 + $0x60] sm:$0xff]
    %v8598 = vld [vmem:[%s51 + $0x68] sm:$0xff]
    %v8599 = vld [vmem:[%s51 + $0x70] sm:$0xff]
    %v8600 = vld [vmem:[%s51 + $0x78] sm:$0xff]
    %v8601 = vld [vmem:[%s51 + $0x80] sm:$0xff]
    %v8602 = vld [vmem:[%s51 + $0x88] sm:$0xff]
    %v8603 = vld [vmem:[%s51 + $0x90] sm:$0xff]
    %v8604 = vld [vmem:[%s51 + $0x98] sm:$0xff]
    %v8605 = vld [vmem:[%s51 + $0xa0] sm:$0xff]
    %v8606 = vld [vmem:[%s51 + $0xa8] sm:$0xff]
    %v8607 = vld [vmem:[%s51 + $0xb0] sm:$0xff]
    %v8608 = vld [vmem:[%s51 + $0xb8] sm:$0xff]
    %v8609 = vld [vmem:[%s51 + $0xc0] sm:$0xff]
    %v8610 = vld [vmem:[%s51 + $0xc8] sm:$0xff]
    %v8611 = vld [vmem:[%s51 + $0xd0] sm:$0xff]
    %v8612 = vld [vmem:[%s51 + $0xd8] sm:$0xff]
    %v8613 = vld [vmem:[%s51 + $0xe0] sm:$0xff]
    %v8614 = vld [vmem:[%s51 + $0xe8] sm:$0xff]
    %v8615 = vld [vmem:[%s51 + $0xf0] sm:$0xff]
    %v8616 = vld [vmem:[%s51 + $0xf8] sm:$0xff]
    %8617 = vmatprep.subr.mxu0 0.0
    %8618 = vmatpush1.msra.mxu0 %v8585
    %8619 = vmatprep.subr.mxu0 0.0
    %8620 = vmatpush1.msra.mxu0 %v8586
    %8621 = vmatprep.subr.mxu0 0.0
    %8622 = vmatpush1.msra.mxu0 %v8587
    %8623 = vmatprep.subr.mxu0 0.0
    %8624 = vmatpush1.msra.mxu0 %v8588
    %8625 = vmatprep.subr.mxu0 0.0
    %8626 = vmatpush1.msra.mxu0 %v8589
    %8627 = vmatprep.subr.mxu0 0.0
    %8628 = vmatpush1.msra.mxu0 %v8590
    %8629 = vmatprep.subr.mxu0 0.0
    %8630 = vmatpush1.msra.mxu0 %v8591
    %8631 = vmatprep.subr.mxu0 0.0
    %8632 = vmatpush1.msra.mxu0 %v8592
    %8633 = vmatprep.subr.mxu0 0.0
    %8634 = vmatpush1.msra.mxu0 %v8593
    %8635 = vmatprep.subr.mxu0 0.0
    %8636 = vmatpush1.msra.mxu0 %v8594
    %8637 = vmatprep.subr.mxu0 0.0
    %8638 = vmatpush1.msra.mxu0 %v8595
    %8639 = vmatprep.subr.mxu0 0.0
    %8640 = vmatpush1.msra.mxu0 %v8596
    %8641 = vmatprep.subr.mxu0 0.0
    %8642 = vmatpush1.msra.mxu0 %v8597
    %8643 = vmatprep.subr.mxu0 0.0
    %8644 = vmatpush1.msra.mxu0 %v8598
    %8645 = vmatprep.subr.mxu0 0.0
    %8646 = vmatpush1.msra.mxu0 %v8599
    %8647 = vmatprep.subr.mxu0 0.0
    %8648 = vmatpush1.msra.mxu0 %v8600
    %8649 = vmatprep.subr.mxu0 0.0
    %8650 = vmatpush1.msra.mxu0 %v8601
    %8651 = vmatprep.subr.mxu0 0.0
    %8652 = vmatpush1.msra.mxu0 %v8602
    %8653 = vmatprep.subr.mxu0 0.0
    %8654 = vmatpush1.msra.mxu0 %v8603
    %8655 = vmatprep.subr.mxu0 0.0
    %8656 = vmatpush1.msra.mxu0 %v8604
    %8657 = vmatprep.subr.mxu0 0.0
    %8658 = vmatpush1.msra.mxu0 %v8605
    %8659 = vmatprep.subr.mxu0 0.0
    %8660 = vmatpush1.msra.mxu0 %v8606
    %8661 = vmatprep.subr.mxu0 0.0
    %8662 = vmatpush1.msra.mxu0 %v8607
    %8663 = vmatprep.subr.mxu0 0.0
    %8664 = vmatpush1.msra.mxu0 %v8608
    %8665 = vmatprep.subr.mxu0 0.0
    %8666 = vmatpush1.msra.mxu0 %v8609
    %8667 = vmatprep.subr.mxu0 0.0
    %8668 = vmatpush1.msra.mxu0 %v8610
    %8669 = vmatprep.subr.mxu0 0.0
    %8670 = vmatpush1.msra.mxu0 %v8611
    %8671 = vmatprep.subr.mxu0 0.0
    %8672 = vmatpush1.msra.mxu0 %v8612
    %8673 = vmatprep.subr.mxu0 0.0
    %8674 = vmatpush1.msra.mxu0 %v8613
    %8675 = vmatprep.subr.mxu0 0.0
    %8676 = vmatpush1.msra.mxu0 %v8614
    %8677 = vmatprep.subr.mxu0 0.0
    %8678 = vmatpush1.msra.mxu0 %v8615
    %8679 = vmatprep.subr.mxu0 0.0
    %8680 = vmatpush1.msra.mxu0 %v8616
    %8681 = vmatprep.mubr.f32.mxu0 %v8570
    %8682 = vmatmul.mubr.f32.gmra.mrb[0].mxu0 %v8564
    %v8683 = vpop.f32.mrb[0].mxu0
    %v8684 = vadd.f32 0.0, %v8683
    %v8685 = vpop.f32.mrb[0].mxu0
    %8686 = vdwg.mxu0
    %v8687 = vmul.f32 %v8684, %v6855
    %8688 = vmatprep.subr.mxu0 0.0
    %8689 = vmatpush1.msra.mxu0 %v8585
    %8690 = vmatprep.subr.mxu0 0.0
    %8691 = vmatpush1.msra.mxu0 %v8586
    %8692 = vmatprep.subr.mxu0 0.0
    %8693 = vmatpush1.msra.mxu0 %v8587
    %8694 = vmatprep.subr.mxu0 0.0
    %8695 = vmatpush1.msra.mxu0 %v8588
    %8696 = vmatprep.subr.mxu0 0.0
    %8697 = vmatpush1.msra.mxu0 %v8589
    %8698 = vmatprep.subr.mxu0 0.0
    %8699 = vmatpush1.msra.mxu0 %v8590
    %8700 = vmatprep.subr.mxu0 0.0
    %8701 = vmatpush1.msra.mxu0 %v8591
    %8702 = vmatprep.subr.mxu0 0.0
    %8703 = vmatpush1.msra.mxu0 %v8592
    %8704 = vmatprep.subr.mxu0 0.0
    %8705 = vmatpush1.msra.mxu0 %v8593
    %8706 = vmatprep.subr.mxu0 0.0
    %8707 = vmatpush1.msra.mxu0 %v8594
    %8708 = vmatprep.subr.mxu0 0.0
    %8709 = vmatpush1.msra.mxu0 %v8595
    %8710 = vmatprep.subr.mxu0 0.0
    %8711 = vmatpush1.msra.mxu0 %v8596
    %8712 = vmatprep.subr.mxu0 0.0
    %8713 = vmatpush1.msra.mxu0 %v8597
    %8714 = vmatprep.subr.mxu0 0.0
    %8715 = vmatpush1.msra.mxu0 %v8598
    %8716 = vmatprep.subr.mxu0 0.0
    %8717 = vmatpush1.msra.mxu0 %v8599
    %8718 = vmatprep.subr.mxu0 0.0
    %8719 = vmatpush1.msra.mxu0 %v8600
    %8720 = vmatprep.subr.mxu0 0.0
    %8721 = vmatpush1.msra.mxu0 %v8601
    %8722 = vmatprep.subr.mxu0 0.0
    %8723 = vmatpush1.msra.mxu0 %v8602
    %8724 = vmatprep.subr.mxu0 0.0
    %8725 = vmatpush1.msra.mxu0 %v8603
    %8726 = vmatprep.subr.mxu0 0.0
    %8727 = vmatpush1.msra.mxu0 %v8604
    %8728 = vmatprep.subr.mxu0 0.0
    %8729 = vmatpush1.msra.mxu0 %v8605
    %8730 = vmatprep.subr.mxu0 0.0
    %8731 = vmatpush1.msra.mxu0 %v8606
    %8732 = vmatprep.subr.mxu0 0.0
    %8733 = vmatpush1.msra.mxu0 %v8607
    %8734 = vmatprep.subr.mxu0 0.0
    %8735 = vmatpush1.msra.mxu0 %v8608
    %8736 = vmatprep.subr.mxu0 0.0
    %8737 = vmatpush1.msra.mxu0 %v8609
    %8738 = vmatprep.subr.mxu0 0.0
    %8739 = vmatpush1.msra.mxu0 %v8610
    %8740 = vmatprep.subr.mxu0 0.0
    %8741 = vmatpush1.msra.mxu0 %v8611
    %8742 = vmatprep.subr.mxu0 0.0
    %8743 = vmatpush1.msra.mxu0 %v8612
    %8744 = vmatprep.subr.mxu0 0.0
    %8745 = vmatpush1.msra.mxu0 %v8613
    %8746 = vmatprep.subr.mxu0 0.0
    %8747 = vmatpush1.msra.mxu0 %v8614
    %8748 = vmatprep.subr.mxu0 0.0
    %8749 = vmatpush1.msra.mxu0 %v8615
    %8750 = vmatprep.subr.mxu0 0.0
    %8751 = vmatpush1.msra.mxu0 %v8616
    %8752 = vmatprep.mubr.f32.mxu0 %v8584
    %8753 = vmatmul.mubr.f32.gmra.mrb[0].mxu0 %v8578
    %v8754 = vpop.f32.mrb[0].mxu0
    %v8755 = vadd.f32 0.0, %v8754
    %v8756 = vpop.f32.mrb[0].mxu0
    %8757 = vdwg.mxu0
    %v8758 = vmul.f32 %v8755, %v6855
    %v8759 = vmul.f32 %v8687, %v8687
    %v8760 = vsub.f32 %v8758, %v8759
    %v8761 = vmax.f32 %v8760, 0.0
    %v8762 = vld [vmem:[#allocation26] sm:$0x1]
    %v8763 = vadd.f32 %v8761, 1e-05
    %v8764 = vrsqrt.pop %v8763
    %v8765 = vmul.f32 %v8762, %v8764
    %v8766 = vld [vmem:[#allocation27] sm:$0x1]
    %v8767 = vmul.f32 %v8687, %v8765
    %v8768 = vsub.f32 %v8766, %v8767
    %v8769 = vld [vmem:[#allocation24] sm:$0xff]
    %v8770 = vld [vmem:[#allocation24 + $0x8] sm:$0xff]
    %v8771 = vld [vmem:[#allocation24 + $0x10] sm:$0xff]
    %v8772 = vld [vmem:[#allocation24 + $0x18] sm:$0xff]
    %v8773 = vld [vmem:[#allocation24 + $0x20] sm:$0xff]
    %v8774 = vld [vmem:[#allocation24 + $0x28] sm:$0xff]
    %v8775 = vld [vmem:[#allocation24 + $0x30] sm:$0xff]
    %v8776 = vld [vmem:[#allocation24 + $0x38] sm:$0xff]
    %v8777 = vld [vmem:[#allocation24 + $0x40] sm:$0xff]
    %v8778 = vld [vmem:[#allocation24 + $0x48] sm:$0xff]
    %v8779 = vld [vmem:[#allocation24 + $0x50] sm:$0xff]
    %v8780 = vld [vmem:[#allocation24 + $0x58] sm:$0xff]
    %v8781 = vld [vmem:[#allocation24 + $0x60] sm:$0xff]
    %v8782 = vld [vmem:[#allocation24 + $0x68] sm:$0xff]
    %v8783 = vld [vmem:[#allocation24 + $0x70] sm:$0xff]
    %v8784 = vld [vmem:[#allocation24 + $0x78] sm:$0xff]
    %v8786 = vsel %vm826, %v8765, 0
    %8788 = vmatprep.subr.mxu0 %v8770
    %8789 = vmatpush1.msra.mxu0 %v8769
    %8790 = vmatprep.subr.mxu0 %v8772
    %8791 = vmatpush1.msra.mxu0 %v8771
    %8792 = vmatprep.subr.mxu0 %v8774
    %8793 = vmatpush1.msra.mxu0 %v8773
    %8794 = vmatprep.subr.mxu0 %v8776
    %8795 = vmatpush1.msra.mxu0 %v8775
    %8796 = vmatprep.subr.mxu0 %v8778
    %8797 = vmatpush1.msra.mxu0 %v8777
    %8798 = vmatprep.subr.mxu0 %v8780
    %8799 = vmatpush1.msra.mxu0 %v8779
    %8800 = vmatprep.subr.mxu0 %v8782
    %8801 = vmatpush1.msra.mxu0 %v8781
    %8802 = vmatprep.subr.mxu0 %v8784
    %8803 = vmatpush1.msra.mxu0 %v8783
    %8804 = vmatprep.subr.mxu0 0.0
    %8805 = vmatpush1.msra.mxu0 0.0
    %8806 = vmatprep.subr.mxu0 0.0
    %8807 = vmatpush1.msra.mxu0 0.0
    %8808 = vmatprep.subr.mxu0 0.0
    %8809 = vmatpush1.msra.mxu0 0.0
    %8810 = vmatprep.subr.mxu0 0.0
    %8811 = vmatpush1.msra.mxu0 0.0
    %8812 = vmatprep.subr.mxu0 0.0
    %8813 = vmatpush1.msra.mxu0 0.0
    %8814 = vmatprep.subr.mxu0 0.0
    %8815 = vmatpush1.msra.mxu0 0.0
    %8816 = vmatprep.subr.mxu0 0.0
    %8817 = vmatpush1.msra.mxu0 0.0
    %8818 = vmatprep.subr.mxu0 0.0
    %8819 = vmatpush1.msra.mxu0 0.0
    %8820 = vmatprep.subr.mxu0 0.0
    %8821 = vmatpush1.msra.mxu0 0.0
    %8822 = vmatprep.subr.mxu0 0.0
    %8823 = vmatpush1.msra.mxu0 0.0
    %8824 = vmatprep.subr.mxu0 0.0
    %8825 = vmatpush1.msra.mxu0 0.0
    %8826 = vmatprep.subr.mxu0 0.0
    %8827 = vmatpush1.msra.mxu0 0.0
    %8828 = vmatprep.subr.mxu0 0.0
    %8829 = vmatpush1.msra.mxu0 0.0
    %8830 = vmatprep.subr.mxu0 0.0
    %8831 = vmatpush1.msra.mxu0 0.0
    %8832 = vmatprep.subr.mxu0 0.0
    %8833 = vmatpush1.msra.mxu0 0.0
    %8834 = vmatprep.subr.mxu0 0.0
    %8835 = vmatpush1.msra.mxu0 0.0
    %8836 = vmatprep.subr.mxu0 0.0
    %8837 = vmatpush1.msra.mxu0 0.0
    %8838 = vmatprep.subr.mxu0 0.0
    %8839 = vmatpush1.msra.mxu0 0.0
    %8840 = vmatprep.subr.mxu0 0.0
    %8841 = vmatpush1.msra.mxu0 0.0
    %8842 = vmatprep.subr.mxu0 0.0
    %8843 = vmatpush1.msra.mxu0 0.0
    %8844 = vmatprep.subr.mxu0 0.0
    %8845 = vmatpush1.msra.mxu0 0.0
    %8846 = vmatprep.subr.mxu0 0.0
    %8847 = vmatpush1.msra.mxu0 0.0
    %8848 = vmatprep.subr.mxu0 0.0
    %8849 = vmatpush1.msra.mxu0 0.0
    %8850 = vmatprep.subr.mxu0 0.0
    %8851 = vmatpush1.msra.mxu0 0.0
    %8852 = vmatprep.mubr.f32.mxu0 0.0
    %8853 = vmatmul.mubr.f32.gmra.mrb[0].mxu0 %v8786
    %v8854 = vpop.f32.mrb[0].mxu0
    %v8855 = vadd.f32 0.0, %v8854
    %v8856 = vpop.f32.mrb[0].mxu0
    %v8857 = vadd.f32 0.0, %v8856
    %8858 = vdwg.mxu0
    %v8860 = vsel %vm826, %v8768, 0
    %8862 = vmatprep.subr.mxu0 %v8770
    %8863 = vmatpush1.msra.mxu0 %v8769
    %8864 = vmatprep.subr.mxu0 %v8772
    %8865 = vmatpush1.msra.mxu0 %v8771
    %8866 = vmatprep.subr.mxu0 %v8774
    %8867 = vmatpush1.msra.mxu0 %v8773
    %8868 = vmatprep.subr.mxu0 %v8776
    %8869 = vmatpush1.msra.mxu0 %v8775
    %8870 = vmatprep.subr.mxu0 %v8778
    %8871 = vmatpush1.msra.mxu0 %v8777
    %8872 = vmatprep.subr.mxu0 %v8780
    %8873 = vmatpush1.msra.mxu0 %v8779
    %8874 = vmatprep.subr.mxu0 %v8782
    %8875 = vmatpush1.msra.mxu0 %v8781
    %8876 = vmatprep.subr.mxu0 %v8784
    %8877 = vmatpush1.msra.mxu0 %v8783
    %8878 = vmatprep.subr.mxu0 0.0
    %8879 = vmatpush1.msra.mxu0 0.0
    %8880 = vmatprep.subr.mxu0 0.0
    %8881 = vmatpush1.msra.mxu0 0.0
    %8882 = vmatprep.subr.mxu0 0.0
    %8883 = vmatpush1.msra.mxu0 0.0
    %8884 = vmatprep.subr.mxu0 0.0
    %8885 = vmatpush1.msra.mxu0 0.0
    %8886 = vmatprep.subr.mxu0 0.0
    %8887 = vmatpush1.msra.mxu0 0.0
    %8888 = vmatprep.subr.mxu0 0.0
    %8889 = vmatpush1.msra.mxu0 0.0
    %8890 = vmatprep.subr.mxu0 0.0
    %8891 = vmatpush1.msra.mxu0 0.0
    %8892 = vmatprep.subr.mxu0 0.0
    %8893 = vmatpush1.msra.mxu0 0.0
    %8894 = vmatprep.subr.mxu0 0.0
    %8895 = vmatpush1.msra.mxu0 0.0
    %8896 = vmatprep.subr.mxu0 0.0
    %8897 = vmatpush1.msra.mxu0 0.0
    %8898 = vmatprep.subr.mxu0 0.0
    %8899 = vmatpush1.msra.mxu0 0.0
    %8900 = vmatprep.subr.mxu0 0.0
    %8901 = vmatpush1.msra.mxu0 0.0
    %8902 = vmatprep.subr.mxu0 0.0
    %8903 = vmatpush1.msra.mxu0 0.0
    %8904 = vmatprep.subr.mxu0 0.0
    %8905 = vmatpush1.msra.mxu0 0.0
    %8906 = vmatprep.subr.mxu0 0.0
    %8907 = vmatpush1.msra.mxu0 0.0
    %8908 = vmatprep.subr.mxu0 0.0
    %8909 = vmatpush1.msra.mxu0 0.0
    %8910 = vmatprep.subr.mxu0 0.0
    %8911 = vmatpush1.msra.mxu0 0.0
    %8912 = vmatprep.subr.mxu0 0.0
    %8913 = vmatpush1.msra.mxu0 0.0
    %8914 = vmatprep.subr.mxu0 0.0
    %8915 = vmatpush1.msra.mxu0 0.0
    %8916 = vmatprep.subr.mxu0 0.0
    %8917 = vmatpush1.msra.mxu0 0.0
    %8918 = vmatprep.subr.mxu0 0.0
    %8919 = vmatpush1.msra.mxu0 0.0
    %8920 = vmatprep.subr.mxu0 0.0
    %8921 = vmatpush1.msra.mxu0 0.0
    %8922 = vmatprep.subr.mxu0 0.0
    %8923 = vmatpush1.msra.mxu0 0.0
    %8924 = vmatprep.subr.mxu0 0.0
    %8925 = vmatpush1.msra.mxu0 0.0
    %8926 = vmatprep.mubr.f32.mxu0 0.0
    %8927 = vmatmul.mubr.f32.gmra.mrb[0].mxu0 %v8860
    %v8928 = vpop.f32.mrb[0].mxu0
    %v8929 = vadd.f32 0.0, %v8928
    %v8930 = vpop.f32.mrb[0].mxu0
    %v8931 = vadd.f32 0.0, %v8930
    %8932 = vdwg.mxu0
    %v8933 = vlaneseq
    %v8934 = vshrl.u32 %v8933, 7
    %v8935 = vsub.s32 0, %v8934
    %v8936 = vrot.slane %v8855, %v8935
    %v8937 = vlaneseq
    %v8938 = vshrl.u32 %v8937, 7
    %v8939 = vsub.s32 0, %v8938
    %v8940 = vrot.slane %v8857, %v8939
    %v8941 = vmul.f32 %v8557, %v8936
    %v8942 = vmul.f32 %v8558, %v8940
    %v8943 = vlaneseq
    %v8944 = vshrl.u32 %v8943, 7
    %v8945 = vsub.s32 0, %v8944
    %v8946 = vrot.slane %v8929, %v8945
    %v8947 = vlaneseq
    %v8948 = vshrl.u32 %v8947, 7
    %v8949 = vsub.s32 0, %v8948
    %v8950 = vrot.slane %v8931, %v8949
    %v8951 = vadd.f32 %v8941, %v8946
    %v8952 = vadd.f32 %v8942, %v8950
    %v8953 = vmul.f32 %v8951, 0.2
    %v8954 = vmul.f32 %v8952, 0.2
    %v8955 = vmax.f32 %v8951, %v8953
    %v8956 = vmax.f32 %v8952, %v8954
    %v8957 = vld [vmem:[#allocation29] sm:$0x3]
    %v8959 = vsel %vm7127, %v8957, 0
    %8961 = vmatprep.subr.mxu0 %v8956
    %8962 = vmatpush1.msra.mxu0 %v8955
    %8963 = vmatprep.subr.mxu0 0.0
    %8964 = vmatpush1.msra.mxu0 0.0
    %8965 = vmatprep.subr.mxu0 0.0
    %8966 = vmatpush1.msra.mxu0 0.0
    %8967 = vmatprep.subr.mxu0 0.0
    %8968 = vmatpush1.msra.mxu0 0.0
    %8969 = vmatprep.subr.mxu0 0.0
    %8970 = vmatpush1.msra.mxu0 0.0
    %8971 = vmatprep.subr.mxu0 0.0
    %8972 = vmatpush1.msra.mxu0 0.0
    %8973 = vmatprep.subr.mxu0 0.0
    %8974 = vmatpush1.msra.mxu0 0.0
    %8975 = vmatprep.subr.mxu0 0.0
    %8976 = vmatpush1.msra.mxu0 0.0
    %8977 = vmatprep.subr.mxu0 0.0
    %8978 = vmatpush1.msra.mxu0 0.0
    %8979 = vmatprep.subr.mxu0 0.0
    %8980 = vmatpush1.msra.mxu0 0.0
    %8981 = vmatprep.subr.mxu0 0.0
    %8982 = vmatpush1.msra.mxu0 0.0
    %8983 = vmatprep.subr.mxu0 0.0
    %8984 = vmatpush1.msra.mxu0 0.0
    %8985 = vmatprep.subr.mxu0 0.0
    %8986 = vmatpush1.msra.mxu0 0.0
    %8987 = vmatprep.subr.mxu0 0.0
    %8988 = vmatpush1.msra.mxu0 0.0
    %8989 = vmatprep.subr.mxu0 0.0
    %8990 = vmatpush1.msra.mxu0 0.0
    %8991 = vmatprep.subr.mxu0 0.0
    %8992 = vmatpush1.msra.mxu0 0.0
    %8993 = vmatprep.subr.mxu0 0.0
    %8994 = vmatpush1.msra.mxu0 0.0
    %8995 = vmatprep.subr.mxu0 0.0
    %8996 = vmatpush1.msra.mxu0 0.0
    %8997 = vmatprep.subr.mxu0 0.0
    %8998 = vmatpush1.msra.mxu0 0.0
    %8999 = vmatprep.subr.mxu0 0.0
    %9000 = vmatpush1.msra.mxu0 0.0
    %9001 = vmatprep.subr.mxu0 0.0
    %9002 = vmatpush1.msra.mxu0 0.0
    %9003 = vmatprep.subr.mxu0 0.0
    %9004 = vmatpush1.msra.mxu0 0.0
    %9005 = vmatprep.subr.mxu0 0.0
    %9006 = vmatpush1.msra.mxu0 0.0
    %9007 = vmatprep.subr.mxu0 0.0
    %9008 = vmatpush1.msra.mxu0 0.0
    %9009 = vmatprep.subr.mxu0 0.0
    %9010 = vmatpush1.msra.mxu0 0.0
    %9011 = vmatprep.subr.mxu0 0.0
    %9012 = vmatpush1.msra.mxu0 0.0
    %9013 = vmatprep.subr.mxu0 0.0
    %9014 = vmatpush1.msra.mxu0 0.0
    %9015 = vmatprep.subr.mxu0 0.0
    %9016 = vmatpush1.msra.mxu0 0.0
    %9017 = vmatprep.subr.mxu0 0.0
    %9018 = vmatpush1.msra.mxu0 0.0
    %9019 = vmatprep.subr.mxu0 0.0
    %9020 = vmatpush1.msra.mxu0 0.0
    %9021 = vmatprep.subr.mxu0 0.0
    %9022 = vmatpush1.msra.mxu0 0.0
    %9023 = vmatprep.subr.mxu0 0.0
    %9024 = vmatpush1.msra.mxu0 0.0
    %9025 = vmatprep.mubr.f32.mxu0 0.0
    %9026 = vmatmul.mubr.f32.gmra.mrb[0].mxu0 %v8959
    %v9027 = vpop.f32.mrb[0].mxu0
    %v9028 = vadd.f32 0.0, %v9027
    %v9029 = vpop.f32.mrb[0].mxu0
    %v9030 = vadd.f32 0.0, %v9029
    %9031 = vdwg.mxu0
    %v9032 = vpack.c.bf16 %v9028, %v9028
    %v9033 = vpack.c.bf16 %v9030, %v9030
    %v9034 = vld [vmem:[%s61] sm:$0xf]
    %v9035 = vld [vmem:[%s61 + $0x4] sm:$0xf]
    %v9036 = vld [vmem:[%s61 + $0x8] sm:$0xf]
    %v9037 = vld [vmem:[%s61 + $0xc] sm:$0xf]
    %v9038 = vld [vmem:[%s61 + $0x10] sm:$0xf]
    %v9039 = vld [vmem:[%s61 + $0x14] sm:$0xf]
    %v9040 = vld [vmem:[%s61 + $0x18] sm:$0xf]
    %v9041 = vld [vmem:[%s61 + $0x1c] sm:$0xf]
    %v9042 = vld [vmem:[%s61 + $0x20] sm:$0xf]
    %v9043 = vld [vmem:[%s61 + $0x24] sm:$0xf]
    %v9044 = vld [vmem:[%s61 + $0x28] sm:$0xf]
    %v9045 = vld [vmem:[%s61 + $0x2c] sm:$0xf]
    %v9046 = vld [vmem:[%s61 + $0x30] sm:$0xf]
    %v9047 = vld [vmem:[%s61 + $0x34] sm:$0xf]
    %v9048 = vld [vmem:[%s61 + $0x38] sm:$0xf]
    %v9049 = vld [vmem:[%s61 + $0x3c] sm:$0xf]
    %v9050 = vld [vmem:[%s61 + $0x40] sm:$0xf]
    %v9051 = vld [vmem:[%s61 + $0x44] sm:$0xf]
    %v9052 = vld [vmem:[%s61 + $0x48] sm:$0xf]
    %v9053 = vld [vmem:[%s61 + $0x4c] sm:$0xf]
    %v9054 = vld [vmem:[%s61 + $0x50] sm:$0xf]
    %v9055 = vld [vmem:[%s61 + $0x54] sm:$0xf]
    %v9056 = vld [vmem:[%s61 + $0x58] sm:$0xf]
    %v9057 = vld [vmem:[%s61 + $0x5c] sm:$0xf]
    %v9058 = vld [vmem:[%s61 + $0x60] sm:$0xf]
    %v9059 = vld [vmem:[%s61 + $0x64] sm:$0xf]
    %v9060 = vld [vmem:[%s61 + $0x68] sm:$0xf]
    %v9061 = vld [vmem:[%s61 + $0x6c] sm:$0xf]
    %v9062 = vld [vmem:[%s61 + $0x70] sm:$0xf]
    %v9063 = vld [vmem:[%s61 + $0x74] sm:$0xf]
    %v9064 = vld [vmem:[%s61 + $0x78] sm:$0xf]
    %v9065 = vld [vmem:[%s61 + $0x7c] sm:$0xf]
    %s9066 = scalar_lea.vmem [#allocation29], 2
    %v9067 = vld [vmem:[%s9066] sm:$0x3]
    %v9069 = vsel %vm7127, %v9067, 0
    %9071 = vmatprep.subr.mxu0 %v8956
    %9072 = vmatpush1.msra.mxu0 %v8955
    %9073 = vmatprep.subr.mxu0 0.0
    %9074 = vmatpush1.msra.mxu0 0.0
    %9075 = vmatprep.subr.mxu0 0.0
    %9076 = vmatpush1.msra.mxu0 0.0
    %9077 = vmatprep.subr.mxu0 0.0
    %9078 = vmatpush1.msra.mxu0 0.0
    %9079 = vmatprep.subr.mxu0 0.0
    %9080 = vmatpush1.msra.mxu0 0.0
    %9081 = vmatprep.subr.mxu0 0.0
    %9082 = vmatpush1.msra.mxu0 0.0
    %9083 = vmatprep.subr.mxu0 0.0
    %9084 = vmatpush1.msra.mxu0 0.0
    %9085 = vmatprep.subr.mxu0 0.0
    %9086 = vmatpush1.msra.mxu0 0.0
    %9087 = vmatprep.subr.mxu0 0.0
    %9088 = vmatpush1.msra.mxu0 0.0
    %9089 = vmatprep.subr.mxu0 0.0
    %9090 = vmatpush1.msra.mxu0 0.0
    %9091 = vmatprep.subr.mxu0 0.0
    %9092 = vmatpush1.msra.mxu0 0.0
    %9093 = vmatprep.subr.mxu0 0.0
    %9094 = vmatpush1.msra.mxu0 0.0
    %9095 = vmatprep.subr.mxu0 0.0
    %9096 = vmatpush1.msra.mxu0 0.0
    %9097 = vmatprep.subr.mxu0 0.0
    %9098 = vmatpush1.msra.mxu0 0.0
    %9099 = vmatprep.subr.mxu0 0.0
    %9100 = vmatpush1.msra.mxu0 0.0
    %9101 = vmatprep.subr.mxu0 0.0
    %9102 = vmatpush1.msra.mxu0 0.0
    %9103 = vmatprep.subr.mxu0 0.0
    %9104 = vmatpush1.msra.mxu0 0.0
    %9105 = vmatprep.subr.mxu0 0.0
    %9106 = vmatpush1.msra.mxu0 0.0
    %9107 = vmatprep.subr.mxu0 0.0
    %9108 = vmatpush1.msra.mxu0 0.0
    %9109 = vmatprep.subr.mxu0 0.0
    %9110 = vmatpush1.msra.mxu0 0.0
    %9111 = vmatprep.subr.mxu0 0.0
    %9112 = vmatpush1.msra.mxu0 0.0
    %9113 = vmatprep.subr.mxu0 0.0
    %9114 = vmatpush1.msra.mxu0 0.0
    %9115 = vmatprep.subr.mxu0 0.0
    %9116 = vmatpush1.msra.mxu0 0.0
    %9117 = vmatprep.subr.mxu0 0.0
    %9118 = vmatpush1.msra.mxu0 0.0
    %9119 = vmatprep.subr.mxu0 0.0
    %9120 = vmatpush1.msra.mxu0 0.0
    %9121 = vmatprep.subr.mxu0 0.0
    %9122 = vmatpush1.msra.mxu0 0.0
    %9123 = vmatprep.subr.mxu0 0.0
    %9124 = vmatpush1.msra.mxu0 0.0
    %9125 = vmatprep.subr.mxu0 0.0
    %9126 = vmatpush1.msra.mxu0 0.0
    %9127 = vmatprep.subr.mxu0 0.0
    %9128 = vmatpush1.msra.mxu0 0.0
    %9129 = vmatprep.subr.mxu0 0.0
    %9130 = vmatpush1.msra.mxu0 0.0
    %9131 = vmatprep.subr.mxu0 0.0
    %9132 = vmatpush1.msra.mxu0 0.0
    %9133 = vmatprep.subr.mxu0 0.0
    %9134 = vmatpush1.msra.mxu0 0.0
    %9135 = vmatprep.mubr.f32.mxu0 0.0
    %9136 = vmatmul.mubr.f32.gmra.mrb[0].mxu0 %v9069
    %v9137 = vpop.f32.mrb[0].mxu0
    %v9138 = vadd.f32 0.0, %v9137
    %v9139 = vpop.f32.mrb[0].mxu0
    %v9140 = vadd.f32 0.0, %v9139
    %9141 = vdwg.mxu0
    %v9142 = vpack.c.bf16 %v9138, %v9138
    %v9143 = vpack.c.bf16 %v9140, %v9140
    %s9144 = scalar_lea.vmem %s61, 128
    %v9145 = vld [vmem:[%s9144] sm:$0xf]
    %v9146 = vld [vmem:[%s9144 + $0x4] sm:$0xf]
    %v9147 = vld [vmem:[%s9144 + $0x8] sm:$0xf]
    %v9148 = vld [vmem:[%s9144 + $0xc] sm:$0xf]
    %v9149 = vld [vmem:[%s9144 + $0x10] sm:$0xf]
    %v9150 = vld [vmem:[%s9144 + $0x14] sm:$0xf]
    %v9151 = vld [vmem:[%s9144 + $0x18] sm:$0xf]
    %v9152 = vld [vmem:[%s9144 + $0x1c] sm:$0xf]
    %v9153 = vld [vmem:[%s9144 + $0x20] sm:$0xf]
    %v9154 = vld [vmem:[%s9144 + $0x24] sm:$0xf]
    %v9155 = vld [vmem:[%s9144 + $0x28] sm:$0xf]
    %v9156 = vld [vmem:[%s9144 + $0x2c] sm:$0xf]
    %v9157 = vld [vmem:[%s9144 + $0x30] sm:$0xf]
    %v9158 = vld [vmem:[%s9144 + $0x34] sm:$0xf]
    %v9159 = vld [vmem:[%s9144 + $0x38] sm:$0xf]
    %v9160 = vld [vmem:[%s9144 + $0x3c] sm:$0xf]
    %v9161 = vld [vmem:[%s9144 + $0x40] sm:$0xf]
    %v9162 = vld [vmem:[%s9144 + $0x44] sm:$0xf]
    %v9163 = vld [vmem:[%s9144 + $0x48] sm:$0xf]
    %v9164 = vld [vmem:[%s9144 + $0x4c] sm:$0xf]
    %v9165 = vld [vmem:[%s9144 + $0x50] sm:$0xf]
    %v9166 = vld [vmem:[%s9144 + $0x54] sm:$0xf]
    %v9167 = vld [vmem:[%s9144 + $0x58] sm:$0xf]
    %v9168 = vld [vmem:[%s9144 + $0x5c] sm:$0xf]
    %v9169 = vld [vmem:[%s9144 + $0x60] sm:$0xf]
    %v9170 = vld [vmem:[%s9144 + $0x64] sm:$0xf]
    %v9171 = vld [vmem:[%s9144 + $0x68] sm:$0xf]
    %v9172 = vld [vmem:[%s9144 + $0x6c] sm:$0xf]
    %v9173 = vld [vmem:[%s9144 + $0x70] sm:$0xf]
    %v9174 = vld [vmem:[%s9144 + $0x74] sm:$0xf]
    %v9175 = vld [vmem:[%s9144 + $0x78] sm:$0xf]
    %v9176 = vld [vmem:[%s9144 + $0x7c] sm:$0xf]
    %v9209 = vunpack.c.l.b16 %v9145
    %v9210 = vunpack.c.l.b16 %v9146
    %v9211 = vunpack.c.l.b16 %v9147
    %v9212 = vunpack.c.l.b16 %v9148
    %v9213 = vunpack.c.l.b16 %v9149
    %v9214 = vunpack.c.l.b16 %v9150
    %v9215 = vunpack.c.l.b16 %v9151
    %v9216 = vunpack.c.l.b16 %v9152
    %v9217 = vunpack.c.l.b16 %v9153
    %v9218 = vunpack.c.l.b16 %v9154
    %v9219 = vunpack.c.l.b16 %v9155
    %v9220 = vunpack.c.l.b16 %v9156
    %v9221 = vunpack.c.l.b16 %v9157
    %v9222 = vunpack.c.l.b16 %v9158
    %v9223 = vunpack.c.l.b16 %v9159
    %v9224 = vunpack.c.l.b16 %v9160
    %v9225 = vunpack.c.l.b16 %v9161
    %v9226 = vunpack.c.l.b16 %v9162
    %v9227 = vunpack.c.l.b16 %v9163
    %v9228 = vunpack.c.l.b16 %v9164
    %v9229 = vunpack.c.l.b16 %v9165
    %v9230 = vunpack.c.l.b16 %v9166
    %v9231 = vunpack.c.l.b16 %v9167
    %v9232 = vunpack.c.l.b16 %v9168
    %v9233 = vunpack.c.l.b16 %v9169
    %v9234 = vunpack.c.l.b16 %v9170
    %v9235 = vunpack.c.l.b16 %v9171
    %v9236 = vunpack.c.l.b16 %v9172
    %v9237 = vunpack.c.l.b16 %v9173
    %v9238 = vunpack.c.l.b16 %v9174
    %v9239 = vunpack.c.l.b16 %v9175
    %v9240 = vunpack.c.l.b16 %v9176
    %v9241 = vpack.c.b16 %v9210, %v9209
    %v9242 = vpack.c.b16 %v9212, %v9211
    %v9243 = vpack.c.b16 %v9214, %v9213
    %v9244 = vpack.c.b16 %v9216, %v9215
    %v9245 = vpack.c.b16 %v9218, %v9217
    %v9246 = vpack.c.b16 %v9220, %v9219
    %v9247 = vpack.c.b16 %v9222, %v9221
    %v9248 = vpack.c.b16 %v9224, %v9223
    %v9249 = vpack.c.b16 %v9226, %v9225
    %v9250 = vpack.c.b16 %v9228, %v9227
    %v9251 = vpack.c.b16 %v9230, %v9229
    %v9252 = vpack.c.b16 %v9232, %v9231
    %v9253 = vpack.c.b16 %v9234, %v9233
    %v9254 = vpack.c.b16 %v9236, %v9235
    %v9255 = vpack.c.b16 %v9238, %v9237
    %v9256 = vpack.c.b16 %v9240, %v9239
    %9273 = vmatprep.subr.bf16.mxu0 0
    %9274 = vmatpush1.bf16.msra.mxu0 %v9241
    %9275 = vmatprep.subr.bf16.mxu0 0
    %9276 = vmatpush1.bf16.msra.mxu0 %v9242
    %9277 = vmatprep.subr.bf16.mxu0 0
    %9278 = vmatpush1.bf16.msra.mxu0 %v9243
    %9279 = vmatprep.subr.bf16.mxu0 0
    %9280 = vmatpush1.bf16.msra.mxu0 %v9244
    %9281 = vmatprep.subr.bf16.mxu0 0
    %9282 = vmatpush1.bf16.msra.mxu0 %v9245
    %9283 = vmatprep.subr.bf16.mxu0 0
    %9284 = vmatpush1.bf16.msra.mxu0 %v9246
    %9285 = vmatprep.subr.bf16.mxu0 0
    %9286 = vmatpush1.bf16.msra.mxu0 %v9247
    %9287 = vmatprep.subr.bf16.mxu0 0
    %9288 = vmatpush1.bf16.msra.mxu0 %v9248
    %9289 = vmatprep.subr.bf16.mxu0 0
    %9290 = vmatpush1.bf16.msra.mxu0 %v9249
    %9291 = vmatprep.subr.bf16.mxu0 0
    %9292 = vmatpush1.bf16.msra.mxu0 %v9250
    %9293 = vmatprep.subr.bf16.mxu0 0
    %9294 = vmatpush1.bf16.msra.mxu0 %v9251
    %9295 = vmatprep.subr.bf16.mxu0 0
    %9296 = vmatpush1.bf16.msra.mxu0 %v9252
    %9297 = vmatprep.subr.bf16.mxu0 0
    %9298 = vmatpush1.bf16.msra.mxu0 %v9253
    %9299 = vmatprep.subr.bf16.mxu0 0
    %9300 = vmatpush1.bf16.msra.mxu0 %v9254
    %9301 = vmatprep.subr.bf16.mxu0 0
    %9302 = vmatpush1.bf16.msra.mxu0 %v9255
    %9303 = vmatprep.subr.bf16.mxu0 0
    %9304 = vmatpush1.bf16.msra.mxu0 %v9256
    %9305 = vmatprep.mubr.bf16.mxu0 %v9143
    %9306 = vmatmul.mubr.bf16.gmra.mrb[0].mxu0 %v9142
    %v9307 = vpop.f32.mrb[0].mxu0
    %v9308 = vadd.f32 0.0, %v9307
    %v9309 = vpop.f32.mrb[0].mxu0
    %v9310 = vpop.f32.mrb[0].mxu0
    %v9311 = vpop.f32.mrb[0].mxu0
    %9312 = vdwg.mxu0
    %v9345 = vunpack.c.l.b16 %v9034
    %v9346 = vunpack.c.l.b16 %v9035
    %v9347 = vunpack.c.l.b16 %v9036
    %v9348 = vunpack.c.l.b16 %v9037
    %v9349 = vunpack.c.l.b16 %v9038
    %v9350 = vunpack.c.l.b16 %v9039
    %v9351 = vunpack.c.l.b16 %v9040
    %v9352 = vunpack.c.l.b16 %v9041
    %v9353 = vunpack.c.l.b16 %v9042
    %v9354 = vunpack.c.l.b16 %v9043
    %v9355 = vunpack.c.l.b16 %v9044
    %v9356 = vunpack.c.l.b16 %v9045
    %v9357 = vunpack.c.l.b16 %v9046
    %v9358 = vunpack.c.l.b16 %v9047
    %v9359 = vunpack.c.l.b16 %v9048
    %v9360 = vunpack.c.l.b16 %v9049
    %v9361 = vunpack.c.l.b16 %v9050
    %v9362 = vunpack.c.l.b16 %v9051
    %v9363 = vunpack.c.l.b16 %v9052
    %v9364 = vunpack.c.l.b16 %v9053
    %v9365 = vunpack.c.l.b16 %v9054
    %v9366 = vunpack.c.l.b16 %v9055
    %v9367 = vunpack.c.l.b16 %v9056
    %v9368 = vunpack.c.l.b16 %v9057
    %v9369 = vunpack.c.l.b16 %v9058
    %v9370 = vunpack.c.l.b16 %v9059
    %v9371 = vunpack.c.l.b16 %v9060
    %v9372 = vunpack.c.l.b16 %v9061
    %v9373 = vunpack.c.l.b16 %v9062
    %v9374 = vunpack.c.l.b16 %v9063
    %v9375 = vunpack.c.l.b16 %v9064
    %v9376 = vunpack.c.l.b16 %v9065
    %v9377 = vpack.c.b16 %v9346, %v9345
    %v9378 = vpack.c.b16 %v9348, %v9347
    %v9379 = vpack.c.b16 %v9350, %v9349
    %v9380 = vpack.c.b16 %v9352, %v9351
    %v9381 = vpack.c.b16 %v9354, %v9353
    %v9382 = vpack.c.b16 %v9356, %v9355
    %v9383 = vpack.c.b16 %v9358, %v9357
    %v9384 = vpack.c.b16 %v9360, %v9359
    %v9385 = vpack.c.b16 %v9362, %v9361
    %v9386 = vpack.c.b16 %v9364, %v9363
    %v9387 = vpack.c.b16 %v9366, %v9365
    %v9388 = vpack.c.b16 %v9368, %v9367
    %v9389 = vpack.c.b16 %v9370, %v9369
    %v9390 = vpack.c.b16 %v9372, %v9371
    %v9391 = vpack.c.b16 %v9374, %v9373
    %v9392 = vpack.c.b16 %v9376, %v9375
    %9409 = vmatprep.subr.bf16.mxu0 0
    %9410 = vmatpush1.bf16.msra.mxu0 %v9377
    %9411 = vmatprep.subr.bf16.mxu0 0
    %9412 = vmatpush1.bf16.msra.mxu0 %v9378
    %9413 = vmatprep.subr.bf16.mxu0 0
    %9414 = vmatpush1.bf16.msra.mxu0 %v9379
    %9415 = vmatprep.subr.bf16.mxu0 0
    %9416 = vmatpush1.bf16.msra.mxu0 %v9380
    %9417 = vmatprep.subr.bf16.mxu0 0
    %9418 = vmatpush1.bf16.msra.mxu0 %v9381
    %9419 = vmatprep.subr.bf16.mxu0 0
    %9420 = vmatpush1.bf16.msra.mxu0 %v9382
    %9421 = vmatprep.subr.bf16.mxu0 0
    %9422 = vmatpush1.bf16.msra.mxu0 %v9383
    %9423 = vmatprep.subr.bf16.mxu0 0
    %9424 = vmatpush1.bf16.msra.mxu0 %v9384
    %9425 = vmatprep.subr.bf16.mxu0 0
    %9426 = vmatpush1.bf16.msra.mxu0 %v9385
    %9427 = vmatprep.subr.bf16.mxu0 0
    %9428 = vmatpush1.bf16.msra.mxu0 %v9386
    %9429 = vmatprep.subr.bf16.mxu0 0
    %9430 = vmatpush1.bf16.msra.mxu0 %v9387
    %9431 = vmatprep.subr.bf16.mxu0 0
    %9432 = vmatpush1.bf16.msra.mxu0 %v9388
    %9433 = vmatprep.subr.bf16.mxu0 0
    %9434 = vmatpush1.bf16.msra.mxu0 %v9389
    %9435 = vmatprep.subr.bf16.mxu0 0
    %9436 = vmatpush1.bf16.msra.mxu0 %v9390
    %9437 = vmatprep.subr.bf16.mxu0 0
    %9438 = vmatpush1.bf16.msra.mxu0 %v9391
    %9439 = vmatprep.subr.bf16.mxu0 0
    %9440 = vmatpush1.bf16.msra.mxu0 %v9392
    %9441 = vmatprep.mubr.bf16.mxu0 %v9033
    %9442 = vmatmul.mubr.bf16.gmra.mrb[0].mxu0 %v9032
    %v9443 = vpop.f32.mrb[0].mxu0
    %v9444 = vadd.f32 %v9308, %v9443
    %v9445 = vpop.f32.mrb[0].mxu0
    %v9446 = vpop.f32.mrb[0].mxu0
    %v9447 = vpop.f32.mrb[0].mxu0
    %9448 = vdwg.mxu0
    %s9449 = scalar_lea.vmem [#allocation29], 4
    %v9450 = vld [vmem:[%s9449] sm:$0x3]
    %v9452 = vsel %vm7127, %v9450, 0
    %9454 = vmatprep.subr.mxu0 %v8956
    %9455 = vmatpush1.msra.mxu0 %v8955
    %9456 = vmatprep.subr.mxu0 0.0
    %9457 = vmatpush1.msra.mxu0 0.0
    %9458 = vmatprep.subr.mxu0 0.0
    %9459 = vmatpush1.msra.mxu0 0.0
    %9460 = vmatprep.subr.mxu0 0.0
    %9461 = vmatpush1.msra.mxu0 0.0
    %9462 = vmatprep.subr.mxu0 0.0
    %9463 = vmatpush1.msra.mxu0 0.0
    %9464 = vmatprep.subr.mxu0 0.0
    %9465 = vmatpush1.msra.mxu0 0.0
    %9466 = vmatprep.subr.mxu0 0.0
    %9467 = vmatpush1.msra.mxu0 0.0
    %9468 = vmatprep.subr.mxu0 0.0
    %9469 = vmatpush1.msra.mxu0 0.0
    %9470 = vmatprep.subr.mxu0 0.0
    %9471 = vmatpush1.msra.mxu0 0.0
    %9472 = vmatprep.subr.mxu0 0.0
    %9473 = vmatpush1.msra.mxu0 0.0
    %9474 = vmatprep.subr.mxu0 0.0
    %9475 = vmatpush1.msra.mxu0 0.0
    %9476 = vmatprep.subr.mxu0 0.0
    %9477 = vmatpush1.msra.mxu0 0.0
    %9478 = vmatprep.subr.mxu0 0.0
    %9479 = vmatpush1.msra.mxu0 0.0
    %9480 = vmatprep.subr.mxu0 0.0
    %9481 = vmatpush1.msra.mxu0 0.0
    %9482 = vmatprep.subr.mxu0 0.0
    %9483 = vmatpush1.msra.mxu0 0.0
    %9484 = vmatprep.subr.mxu0 0.0
    %9485 = vmatpush1.msra.mxu0 0.0
    %9486 = vmatprep.subr.mxu0 0.0
    %9487 = vmatpush1.msra.mxu0 0.0
    %9488 = vmatprep.subr.mxu0 0.0
    %9489 = vmatpush1.msra.mxu0 0.0
    %9490 = vmatprep.subr.mxu0 0.0
    %9491 = vmatpush1.msra.mxu0 0.0
    %9492 = vmatprep.subr.mxu0 0.0
    %9493 = vmatpush1.msra.mxu0 0.0
    %9494 = vmatprep.subr.mxu0 0.0
    %9495 = vmatpush1.msra.mxu0 0.0
    %9496 = vmatprep.subr.mxu0 0.0
    %9497 = vmatpush1.msra.mxu0 0.0
    %9498 = vmatprep.subr.mxu0 0.0
    %9499 = vmatpush1.msra.mxu0 0.0
    %9500 = vmatprep.subr.mxu0 0.0
    %9501 = vmatpush1.msra.mxu0 0.0
    %9502 = vmatprep.subr.mxu0 0.0
    %9503 = vmatpush1.msra.mxu0 0.0
    %9504 = vmatprep.subr.mxu0 0.0
    %9505 = vmatpush1.msra.mxu0 0.0
    %9506 = vmatprep.subr.mxu0 0.0
    %9507 = vmatpush1.msra.mxu0 0.0
    %9508 = vmatprep.subr.mxu0 0.0
    %9509 = vmatpush1.msra.mxu0 0.0
    %9510 = vmatprep.subr.mxu0 0.0
    %9511 = vmatpush1.msra.mxu0 0.0
    %9512 = vmatprep.subr.mxu0 0.0
    %9513 = vmatpush1.msra.mxu0 0.0
    %9514 = vmatprep.subr.mxu0 0.0
    %9515 = vmatpush1.msra.mxu0 0.0
    %9516 = vmatprep.subr.mxu0 0.0
    %9517 = vmatpush1.msra.mxu0 0.0
    %9518 = vmatprep.mubr.f32.mxu0 0.0
    %9519 = vmatmul.mubr.f32.gmra.mrb[0].mxu0 %v9452
    %v9520 = vpop.f32.mrb[0].mxu0
    %v9521 = vadd.f32 0.0, %v9520
    %v9522 = vpop.f32.mrb[0].mxu0
    %v9523 = vadd.f32 0.0, %v9522
    %9524 = vdwg.mxu0
    %v9525 = vpack.c.bf16 %v9521, %v9521
    %v9526 = vpack.c.bf16 %v9523, %v9523
    %s9527 = scalar_lea.vmem %s61, 256
    %v9528 = vld [vmem:[%s9527] sm:$0xf]
    %v9529 = vld [vmem:[%s9527 + $0x4] sm:$0xf]
    %v9530 = vld [vmem:[%s9527 + $0x8] sm:$0xf]
    %v9531 = vld [vmem:[%s9527 + $0xc] sm:$0xf]
    %v9532 = vld [vmem:[%s9527 + $0x10] sm:$0xf]
    %v9533 = vld [vmem:[%s9527 + $0x14] sm:$0xf]
    %v9534 = vld [vmem:[%s9527 + $0x18] sm:$0xf]
    %v9535 = vld [vmem:[%s9527 + $0x1c] sm:$0xf]
    %v9536 = vld [vmem:[%s9527 + $0x20] sm:$0xf]
    %v9537 = vld [vmem:[%s9527 + $0x24] sm:$0xf]
    %v9538 = vld [vmem:[%s9527 + $0x28] sm:$0xf]
    %v9539 = vld [vmem:[%s9527 + $0x2c] sm:$0xf]
    %v9540 = vld [vmem:[%s9527 + $0x30] sm:$0xf]
    %v9541 = vld [vmem:[%s9527 + $0x34] sm:$0xf]
    %v9542 = vld [vmem:[%s9527 + $0x38] sm:$0xf]
    %v9543 = vld [vmem:[%s9527 + $0x3c] sm:$0xf]
    %v9544 = vld [vmem:[%s9527 + $0x40] sm:$0xf]
    %v9545 = vld [vmem:[%s9527 + $0x44] sm:$0xf]
    %v9546 = vld [vmem:[%s9527 + $0x48] sm:$0xf]
    %v9547 = vld [vmem:[%s9527 + $0x4c] sm:$0xf]
    %v9548 = vld [vmem:[%s9527 + $0x50] sm:$0xf]
    %v9549 = vld [vmem:[%s9527 + $0x54] sm:$0xf]
    %v9550 = vld [vmem:[%s9527 + $0x58] sm:$0xf]
    %v9551 = vld [vmem:[%s9527 + $0x5c] sm:$0xf]
    %v9552 = vld [vmem:[%s9527 + $0x60] sm:$0xf]
    %v9553 = vld [vmem:[%s9527 + $0x64] sm:$0xf]
    %v9554 = vld [vmem:[%s9527 + $0x68] sm:$0xf]
    %v9555 = vld [vmem:[%s9527 + $0x6c] sm:$0xf]
    %v9556 = vld [vmem:[%s9527 + $0x70] sm:$0xf]
    %v9557 = vld [vmem:[%s9527 + $0x74] sm:$0xf]
    %v9558 = vld [vmem:[%s9527 + $0x78] sm:$0xf]
    %v9559 = vld [vmem:[%s9527 + $0x7c] sm:$0xf]
    %v9592 = vunpack.c.l.b16 %v9528
    %v9593 = vunpack.c.l.b16 %v9529
    %v9594 = vunpack.c.l.b16 %v9530
    %v9595 = vunpack.c.l.b16 %v9531
    %v9596 = vunpack.c.l.b16 %v9532
    %v9597 = vunpack.c.l.b16 %v9533
    %v9598 = vunpack.c.l.b16 %v9534
    %v9599 = vunpack.c.l.b16 %v9535
    %v9600 = vunpack.c.l.b16 %v9536
    %v9601 = vunpack.c.l.b16 %v9537
    %v9602 = vunpack.c.l.b16 %v9538
    %v9603 = vunpack.c.l.b16 %v9539
    %v9604 = vunpack.c.l.b16 %v9540
    %v9605 = vunpack.c.l.b16 %v9541
    %v9606 = vunpack.c.l.b16 %v9542
    %v9607 = vunpack.c.l.b16 %v9543
    %v9608 = vunpack.c.l.b16 %v9544
    %v9609 = vunpack.c.l.b16 %v9545
    %v9610 = vunpack.c.l.b16 %v9546
    %v9611 = vunpack.c.l.b16 %v9547
    %v9612 = vunpack.c.l.b16 %v9548
    %v9613 = vunpack.c.l.b16 %v9549
    %v9614 = vunpack.c.l.b16 %v9550
    %v9615 = vunpack.c.l.b16 %v9551
    %v9616 = vunpack.c.l.b16 %v9552
    %v9617 = vunpack.c.l.b16 %v9553
    %v9618 = vunpack.c.l.b16 %v9554
    %v9619 = vunpack.c.l.b16 %v9555
    %v9620 = vunpack.c.l.b16 %v9556
    %v9621 = vunpack.c.l.b16 %v9557
    %v9622 = vunpack.c.l.b16 %v9558
    %v9623 = vunpack.c.l.b16 %v9559
    %v9624 = vpack.c.b16 %v9593, %v9592
    %v9625 = vpack.c.b16 %v9595, %v9594
    %v9626 = vpack.c.b16 %v9597, %v9596
    %v9627 = vpack.c.b16 %v9599, %v9598
    %v9628 = vpack.c.b16 %v9601, %v9600
    %v9629 = vpack.c.b16 %v9603, %v9602
    %v9630 = vpack.c.b16 %v9605, %v9604
    %v9631 = vpack.c.b16 %v9607, %v9606
    %v9632 = vpack.c.b16 %v9609, %v9608
    %v9633 = vpack.c.b16 %v9611, %v9610
    %v9634 = vpack.c.b16 %v9613, %v9612
    %v9635 = vpack.c.b16 %v9615, %v9614
    %v9636 = vpack.c.b16 %v9617, %v9616
    %v9637 = vpack.c.b16 %v9619, %v9618
    %v9638 = vpack.c.b16 %v9621, %v9620
    %v9639 = vpack.c.b16 %v9623, %v9622
    %9656 = vmatprep.subr.bf16.mxu0 0
    %9657 = vmatpush1.bf16.msra.mxu0 %v9624
    %9658 = vmatprep.subr.bf16.mxu0 0
    %9659 = vmatpush1.bf16.msra.mxu0 %v9625
    %9660 = vmatprep.subr.bf16.mxu0 0
    %9661 = vmatpush1.bf16.msra.mxu0 %v9626
    %9662 = vmatprep.subr.bf16.mxu0 0
    %9663 = vmatpush1.bf16.msra.mxu0 %v9627
    %9664 = vmatprep.subr.bf16.mxu0 0
    %9665 = vmatpush1.bf16.msra.mxu0 %v9628
    %9666 = vmatprep.subr.bf16.mxu0 0
    %9667 = vmatpush1.bf16.msra.mxu0 %v9629
    %9668 = vmatprep.subr.bf16.mxu0 0
    %9669 = vmatpush1.bf16.msra.mxu0 %v9630
    %9670 = vmatprep.subr.bf16.mxu0 0
    %9671 = vmatpush1.bf16.msra.mxu0 %v9631
    %9672 = vmatprep.subr.bf16.mxu0 0
    %9673 = vmatpush1.bf16.msra.mxu0 %v9632
    %9674 = vmatprep.subr.bf16.mxu0 0
    %9675 = vmatpush1.bf16.msra.mxu0 %v9633
    %9676 = vmatprep.subr.bf16.mxu0 0
    %9677 = vmatpush1.bf16.msra.mxu0 %v9634
    %9678 = vmatprep.subr.bf16.mxu0 0
    %9679 = vmatpush1.bf16.msra.mxu0 %v9635
    %9680 = vmatprep.subr.bf16.mxu0 0
    %9681 = vmatpush1.bf16.msra.mxu0 %v9636
    %9682 = vmatprep.subr.bf16.mxu0 0
    %9683 = vmatpush1.bf16.msra.mxu0 %v9637
    %9684 = vmatprep.subr.bf16.mxu0 0
    %9685 = vmatpush1.bf16.msra.mxu0 %v9638
    %9686 = vmatprep.subr.bf16.mxu0 0
    %9687 = vmatpush1.bf16.msra.mxu0 %v9639
    %9688 = vmatprep.mubr.bf16.mxu0 %v9526
    %9689 = vmatmul.mubr.bf16.gmra.mrb[0].mxu0 %v9525
    %v9690 = vpop.f32.mrb[0].mxu0
    %v9691 = vadd.f32 0.0, %v9690
    %v9692 = vpop.f32.mrb[0].mxu0
    %v9693 = vpop.f32.mrb[0].mxu0
    %v9694 = vpop.f32.mrb[0].mxu0
    %9695 = vdwg.mxu0
    %v9696 = vadd.f32 %v9444, %v9691
    %s9697 = scalar_lea.vmem [#allocation29], 6
    %v9698 = vld [vmem:[%s9697] sm:$0x3]
    %v9700 = vsel %vm7127, %v9698, 0
    %9702 = vmatprep.subr.mxu0 %v8956
    %9703 = vmatpush1.msra.mxu0 %v8955
    %9704 = vmatprep.subr.mxu0 0.0
    %9705 = vmatpush1.msra.mxu0 0.0
    %9706 = vmatprep.subr.mxu0 0.0
    %9707 = vmatpush1.msra.mxu0 0.0
    %9708 = vmatprep.subr.mxu0 0.0
    %9709 = vmatpush1.msra.mxu0 0.0
    %9710 = vmatprep.subr.mxu0 0.0
    %9711 = vmatpush1.msra.mxu0 0.0
    %9712 = vmatprep.subr.mxu0 0.0
    %9713 = vmatpush1.msra.mxu0 0.0
    %9714 = vmatprep.subr.mxu0 0.0
    %9715 = vmatpush1.msra.mxu0 0.0
    %9716 = vmatprep.subr.mxu0 0.0
    %9717 = vmatpush1.msra.mxu0 0.0
    %9718 = vmatprep.subr.mxu0 0.0
    %9719 = vmatpush1.msra.mxu0 0.0
    %9720 = vmatprep.subr.mxu0 0.0
    %9721 = vmatpush1.msra.mxu0 0.0
    %9722 = vmatprep.subr.mxu0 0.0
    %9723 = vmatpush1.msra.mxu0 0.0
    %9724 = vmatprep.subr.mxu0 0.0
    %9725 = vmatpush1.msra.mxu0 0.0
    %9726 = vmatprep.subr.mxu0 0.0
    %9727 = vmatpush1.msra.mxu0 0.0
    %9728 = vmatprep.subr.mxu0 0.0
    %9729 = vmatpush1.msra.mxu0 0.0
    %9730 = vmatprep.subr.mxu0 0.0
    %9731 = vmatpush1.msra.mxu0 0.0
    %9732 = vmatprep.subr.mxu0 0.0
    %9733 = vmatpush1.msra.mxu0 0.0
    %9734 = vmatprep.subr.mxu0 0.0
    %9735 = vmatpush1.msra.mxu0 0.0
    %9736 = vmatprep.subr.mxu0 0.0
    %9737 = vmatpush1.msra.mxu0 0.0
    %9738 = vmatprep.subr.mxu0 0.0
    %9739 = vmatpush1.msra.mxu0 0.0
    %9740 = vmatprep.subr.mxu0 0.0
    %9741 = vmatpush1.msra.mxu0 0.0
    %9742 = vmatprep.subr.mxu0 0.0
    %9743 = vmatpush1.msra.mxu0 0.0
    %9744 = vmatprep.subr.mxu0 0.0
    %9745 = vmatpush1.msra.mxu0 0.0
    %9746 = vmatprep.subr.mxu0 0.0
    %9747 = vmatpush1.msra.mxu0 0.0
    %9748 = vmatprep.subr.mxu0 0.0
    %9749 = vmatpush1.msra.mxu0 0.0
    %9750 = vmatprep.subr.mxu0 0.0
    %9751 = vmatpush1.msra.mxu0 0.0
    %9752 = vmatprep.subr.mxu0 0.0
    %9753 = vmatpush1.msra.mxu0 0.0
    %9754 = vmatprep.subr.mxu0 0.0
    %9755 = vmatpush1.msra.mxu0 0.0
    %9756 = vmatprep.subr.mxu0 0.0
    %9757 = vmatpush1.msra.mxu0 0.0
    %9758 = vmatprep.subr.mxu0 0.0
    %9759 = vmatpush1.msra.mxu0 0.0
    %9760 = vmatprep.subr.mxu0 0.0
    %9761 = vmatpush1.msra.mxu0 0.0
    %9762 = vmatprep.subr.mxu0 0.0
    %9763 = vmatpush1.msra.mxu0 0.0
    %9764 = vmatprep.subr.mxu0 0.0
    %9765 = vmatpush1.msra.mxu0 0.0
    %9766 = vmatprep.mubr.f32.mxu0 0.0
    %9767 = vmatmul.mubr.f32.gmra.mrb[0].mxu0 %v9700
    %v9768 = vpop.f32.mrb[0].mxu0
    %v9769 = vadd.f32 0.0, %v9768
    %v9770 = vpop.f32.mrb[0].mxu0
    %v9771 = vadd.f32 0.0, %v9770
    %9772 = vdwg.mxu0
    %v9773 = vpack.c.bf16 %v9769, %v9769
    %v9774 = vpack.c.bf16 %v9771, %v9771
    %s9775 = scalar_lea.vmem %s61, 384
    %v9776 = vld [vmem:[%s9775] sm:$0xf]
    %v9777 = vld [vmem:[%s9775 + $0x4] sm:$0xf]
    %v9778 = vld [vmem:[%s9775 + $0x8] sm:$0xf]
    %v9779 = vld [vmem:[%s9775 + $0xc] sm:$0xf]
    %v9780 = vld [vmem:[%s9775 + $0x10] sm:$0xf]
    %v9781 = vld [vmem:[%s9775 + $0x14] sm:$0xf]
    %v9782 = vld [vmem:[%s9775 + $0x18] sm:$0xf]
    %v9783 = vld [vmem:[%s9775 + $0x1c] sm:$0xf]
    %v9784 = vld [vmem:[%s9775 + $0x20] sm:$0xf]
    %v9785 = vld [vmem:[%s9775 + $0x24] sm:$0xf]
    %v9786 = vld [vmem:[%s9775 + $0x28] sm:$0xf]
    %v9787 = vld [vmem:[%s9775 + $0x2c] sm:$0xf]
    %v9788 = vld [vmem:[%s9775 + $0x30] sm:$0xf]
    %v9789 = vld [vmem:[%s9775 + $0x34] sm:$0xf]
    %v9790 = vld [vmem:[%s9775 + $0x38] sm:$0xf]
    %v9791 = vld [vmem:[%s9775 + $0x3c] sm:$0xf]
    %v9792 = vld [vmem:[%s9775 + $0x40] sm:$0xf]
    %v9793 = vld [vmem:[%s9775 + $0x44] sm:$0xf]
    %v9794 = vld [vmem:[%s9775 + $0x48] sm:$0xf]
    %v9795 = vld [vmem:[%s9775 + $0x4c] sm:$0xf]
    %v9796 = vld [vmem:[%s9775 + $0x50] sm:$0xf]
    %v9797 = vld [vmem:[%s9775 + $0x54] sm:$0xf]
    %v9798 = vld [vmem:[%s9775 + $0x58] sm:$0xf]
    %v9799 = vld [vmem:[%s9775 + $0x5c] sm:$0xf]
    %v9800 = vld [vmem:[%s9775 + $0x60] sm:$0xf]
    %v9801 = vld [vmem:[%s9775 + $0x64] sm:$0xf]
    %v9802 = vld [vmem:[%s9775 + $0x68] sm:$0xf]
    %v9803 = vld [vmem:[%s9775 + $0x6c] sm:$0xf]
    %v9804 = vld [vmem:[%s9775 + $0x70] sm:$0xf]
    %v9805 = vld [vmem:[%s9775 + $0x74] sm:$0xf]
    %v9806 = vld [vmem:[%s9775 + $0x78] sm:$0xf]
    %v9807 = vld [vmem:[%s9775 + $0x7c] sm:$0xf]
    %v9840 = vunpack.c.l.b16 %v9776
    %v9841 = vunpack.c.l.b16 %v9777
    %v9842 = vunpack.c.l.b16 %v9778
    %v9843 = vunpack.c.l.b16 %v9779
    %v9844 = vunpack.c.l.b16 %v9780
    %v9845 = vunpack.c.l.b16 %v9781
    %v9846 = vunpack.c.l.b16 %v9782
    %v9847 = vunpack.c.l.b16 %v9783
    %v9848 = vunpack.c.l.b16 %v9784
    %v9849 = vunpack.c.l.b16 %v9785
    %v9850 = vunpack.c.l.b16 %v9786
    %v9851 = vunpack.c.l.b16 %v9787
    %v9852 = vunpack.c.l.b16 %v9788
    %v9853 = vunpack.c.l.b16 %v9789
    %v9854 = vunpack.c.l.b16 %v9790
    %v9855 = vunpack.c.l.b16 %v9791
    %v9856 = vunpack.c.l.b16 %v9792
    %v9857 = vunpack.c.l.b16 %v9793
    %v9858 = vunpack.c.l.b16 %v9794
    %v9859 = vunpack.c.l.b16 %v9795
    %v9860 = vunpack.c.l.b16 %v9796
    %v9861 = vunpack.c.l.b16 %v9797
    %v9862 = vunpack.c.l.b16 %v9798
    %v9863 = vunpack.c.l.b16 %v9799
    %v9864 = vunpack.c.l.b16 %v9800
    %v9865 = vunpack.c.l.b16 %v9801
    %v9866 = vunpack.c.l.b16 %v9802
    %v9867 = vunpack.c.l.b16 %v9803
    %v9868 = vunpack.c.l.b16 %v9804
    %v9869 = vunpack.c.l.b16 %v9805
    %v9870 = vunpack.c.l.b16 %v9806
    %v9871 = vunpack.c.l.b16 %v9807
    %v9872 = vpack.c.b16 %v9841, %v9840
    %v9873 = vpack.c.b16 %v9843, %v9842
    %v9874 = vpack.c.b16 %v9845, %v9844
    %v9875 = vpack.c.b16 %v9847, %v9846
    %v9876 = vpack.c.b16 %v9849, %v9848
    %v9877 = vpack.c.b16 %v9851, %v9850
    %v9878 = vpack.c.b16 %v9853, %v9852
    %v9879 = vpack.c.b16 %v9855, %v9854
    %v9880 = vpack.c.b16 %v9857, %v9856
    %v9881 = vpack.c.b16 %v9859, %v9858
    %v9882 = vpack.c.b16 %v9861, %v9860
    %v9883 = vpack.c.b16 %v9863, %v9862
    %v9884 = vpack.c.b16 %v9865, %v9864
    %v9885 = vpack.c.b16 %v9867, %v9866
    %v9886 = vpack.c.b16 %v9869, %v9868
    %v9887 = vpack.c.b16 %v9871, %v9870
    %9904 = vmatprep.subr.bf16.mxu0 0
    %9905 = vmatpush1.bf16.msra.mxu0 %v9872
    %9906 = vmatprep.subr.bf16.mxu0 0
    %9907 = vmatpush1.bf16.msra.mxu0 %v9873
    %9908 = vmatprep.subr.bf16.mxu0 0
    %9909 = vmatpush1.bf16.msra.mxu0 %v9874
    %9910 = vmatprep.subr.bf16.mxu0 0
    %9911 = vmatpush1.bf16.msra.mxu0 %v9875
    %9912 = vmatprep.subr.bf16.mxu0 0
    %9913 = vmatpush1.bf16.msra.mxu0 %v9876
    %9914 = vmatprep.subr.bf16.mxu0 0
    %9915 = vmatpush1.bf16.msra.mxu0 %v9877
    %9916 = vmatprep.subr.bf16.mxu0 0
    %9917 = vmatpush1.bf16.msra.mxu0 %v9878
    %9918 = vmatprep.subr.bf16.mxu0 0
    %9919 = vmatpush1.bf16.msra.mxu0 %v9879
    %9920 = vmatprep.subr.bf16.mxu0 0
    %9921 = vmatpush1.bf16.msra.mxu0 %v9880
    %9922 = vmatprep.subr.bf16.mxu0 0
    %9923 = vmatpush1.bf16.msra.mxu0 %v9881
    %9924 = vmatprep.subr.bf16.mxu0 0
    %9925 = vmatpush1.bf16.msra.mxu0 %v9882
    %9926 = vmatprep.subr.bf16.mxu0 0
    %9927 = vmatpush1.bf16.msra.mxu0 %v9883
    %9928 = vmatprep.subr.bf16.mxu0 0
    %9929 = vmatpush1.bf16.msra.mxu0 %v9884
    %9930 = vmatprep.subr.bf16.mxu0 0
    %9931 = vmatpush1.bf16.msra.mxu0 %v9885
    %9932 = vmatprep.subr.bf16.mxu0 0
    %9933 = vmatpush1.bf16.msra.mxu0 %v9886
    %9934 = vmatprep.subr.bf16.mxu0 0
    %9935 = vmatpush1.bf16.msra.mxu0 %v9887
    %9936 = vmatprep.mubr.bf16.mxu0 %v9774
    %9937 = vmatmul.mubr.bf16.gmra.mrb[0].mxu0 %v9773
    %v9938 = vpop.f32.mrb[0].mxu0
    %v9939 = vadd.f32 0.0, %v9938
    %v9940 = vpop.f32.mrb[0].mxu0
    %v9941 = vpop.f32.mrb[0].mxu0
    %v9942 = vpop.f32.mrb[0].mxu0
    %9943 = vdwg.mxu0
    %v9944 = vadd.f32 %v9696, %v9939
    %v9945 = vld [vmem:[#allocation2] sm:$0x1]
    %v9947 = vlaneseq
    %v9948 = vshrl.u32 %v9947, 7
    %v9949 = vsub.s32 0, %v9948
    %v9950 = vrot.slane %v9945, %v9949
    %v9952 = vadd.f32 %v9944, %v9950
    %v9953 = vxor.u32 %v9952, 2147483648
    %v9954 = vmul.f32 %v9953, 1.442695
    %v9955 = vpow.pop %v9954
    %v9956 = vadd.f32 %v9955, 1.0
    %v9957 = vrcp.pop %v9956
    %v9958 = vmul.f32 1.0, %v9957
    %vm9959 = vcmask 1024
    %9960 = vst.msk [vmem:[%s69] sm:$0x3] %vm9959, %v9958
    %v9961 = vld [vmem:[#allocation29] sm:$0x3]
    %v9963 = vsel %vm7127, %v9961, 0
    %9965 = vmatprep.subr.mxu0 %v7125
    %9966 = vmatpush1.msra.mxu0 %v7124
    %9967 = vmatprep.subr.mxu0 0.0
    %9968 = vmatpush1.msra.mxu0 0.0
    %9969 = vmatprep.subr.mxu0 0.0
    %9970 = vmatpush1.msra.mxu0 0.0
    %9971 = vmatprep.subr.mxu0 0.0
    %9972 = vmatpush1.msra.mxu0 0.0
    %9973 = vmatprep.subr.mxu0 0.0
    %9974 = vmatpush1.msra.mxu0 0.0
    %9975 = vmatprep.subr.mxu0 0.0
    %9976 = vmatpush1.msra.mxu0 0.0
    %9977 = vmatprep.subr.mxu0 0.0
    %9978 = vmatpush1.msra.mxu0 0.0
    %9979 = vmatprep.subr.mxu0 0.0
    %9980 = vmatpush1.msra.mxu0 0.0
    %9981 = vmatprep.subr.mxu0 0.0
    %9982 = vmatpush1.msra.mxu0 0.0
    %9983 = vmatprep.subr.mxu0 0.0
    %9984 = vmatpush1.msra.mxu0 0.0
    %9985 = vmatprep.subr.mxu0 0.0
    %9986 = vmatpush1.msra.mxu0 0.0
    %9987 = vmatprep.subr.mxu0 0.0
    %9988 = vmatpush1.msra.mxu0 0.0
    %9989 = vmatprep.subr.mxu0 0.0
    %9990 = vmatpush1.msra.mxu0 0.0
    %9991 = vmatprep.subr.mxu0 0.0
    %9992 = vmatpush1.msra.mxu0 0.0
    %9993 = vmatprep.subr.mxu0 0.0
    %9994 = vmatpush1.msra.mxu0 0.0
    %9995 = vmatprep.subr.mxu0 0.0
    %9996 = vmatpush1.msra.mxu0 0.0
    %9997 = vmatprep.subr.mxu0 0.0
    %9998 = vmatpush1.msra.mxu0 0.0
    %9999 = vmatprep.subr.mxu0 0.0
    %10000 = vmatpush1.msra.mxu0 0.0
    %10001 = vmatprep.subr.mxu0 0.0
    %10002 = vmatpush1.msra.mxu0 0.0
    %10003 = vmatprep.subr.mxu0 0.0
    %10004 = vmatpush1.msra.mxu0 0.0
    %10005 = vmatprep.subr.mxu0 0.0
    %10006 = vmatpush1.msra.mxu0 0.0
    %10007 = vmatprep.subr.mxu0 0.0
    %10008 = vmatpush1.msra.mxu0 0.0
    %10009 = vmatprep.subr.mxu0 0.0
    %10010 = vmatpush1.msra.mxu0 0.0
    %10011 = vmatprep.subr.mxu0 0.0
    %10012 = vmatpush1.msra.mxu0 0.0
    %10013 = vmatprep.subr.mxu0 0.0
    %10014 = vmatpush1.msra.mxu0 0.0
    %10015 = vmatprep.subr.mxu0 0.0
    %10016 = vmatpush1.msra.mxu0 0.0
    %10017 = vmatprep.subr.mxu0 0.0
    %10018 = vmatpush1.msra.mxu0 0.0
    %10019 = vmatprep.subr.mxu0 0.0
    %10020 = vmatpush1.msra.mxu0 0.0
    %10021 = vmatprep.subr.mxu0 0.0
    %10022 = vmatpush1.msra.mxu0 0.0
    %10023 = vmatprep.subr.mxu0 0.0
    %10024 = vmatpush1.msra.mxu0 0.0
    %10025 = vmatprep.subr.mxu0 0.0
    %10026 = vmatpush1.msra.mxu0 0.0
    %10027 = vmatprep.subr.mxu0 0.0
    %10028 = vmatpush1.msra.mxu0 0.0
    %10029 = vmatprep.mubr.f32.mxu0 0.0
    %10030 = vmatmul.mubr.f32.gmra.mrb[0].mxu0 %v9963
    %v10031 = vpop.f32.mrb[0].mxu0
    %v10032 = vadd.f32 0.0, %v10031
    %v10033 = vpop.f32.mrb[0].mxu0
    %v10034 = vadd.f32 0.0, %v10033
    %10035 = vdwg.mxu0
    %v10036 = vpack.c.bf16 %v10032, %v10032
    %v10037 = vpack.c.bf16 %v10034, %v10034
    %v10038 = vld [vmem:[%s65] sm:$0xf]
    %v10039 = vld [vmem:[%s65 + $0x4] sm:$0xf]
    %v10040 = vld [vmem:[%s65 + $0x8] sm:$0xf]
    %v10041 = vld [vmem:[%s65 + $0xc] sm:$0xf]
    %v10042 = vld [vmem:[%s65 + $0x10] sm:$0xf]
    %v10043 = vld [vmem:[%s65 + $0x14] sm:$0xf]
    %v10044 = vld [vmem:[%s65 + $0x18] sm:$0xf]
    %v10045 = vld [vmem:[%s65 + $0x1c] sm:$0xf]
    %v10046 = vld [vmem:[%s65 + $0x20] sm:$0xf]
    %v10047 = vld [vmem:[%s65 + $0x24] sm:$0xf]
    %v10048 = vld [vmem:[%s65 + $0x28] sm:$0xf]
    %v10049 = vld [vmem:[%s65 + $0x2c] sm:$0xf]
    %v10050 = vld [vmem:[%s65 + $0x30] sm:$0xf]
    %v10051 = vld [vmem:[%s65 + $0x34] sm:$0xf]
    %v10052 = vld [vmem:[%s65 + $0x38] sm:$0xf]
    %v10053 = vld [vmem:[%s65 + $0x3c] sm:$0xf]
    %v10054 = vld [vmem:[%s65 + $0x40] sm:$0xf]
    %v10055 = vld [vmem:[%s65 + $0x44] sm:$0xf]
    %v10056 = vld [vmem:[%s65 + $0x48] sm:$0xf]
    %v10057 = vld [vmem:[%s65 + $0x4c] sm:$0xf]
    %v10058 = vld [vmem:[%s65 + $0x50] sm:$0xf]
    %v10059 = vld [vmem:[%s65 + $0x54] sm:$0xf]
    %v10060 = vld [vmem:[%s65 + $0x58] sm:$0xf]
    %v10061 = vld [vmem:[%s65 + $0x5c] sm:$0xf]
    %v10062 = vld [vmem:[%s65 + $0x60] sm:$0xf]
    %v10063 = vld [vmem:[%s65 + $0x64] sm:$0xf]
    %v10064 = vld [vmem:[%s65 + $0x68] sm:$0xf]
    %v10065 = vld [vmem:[%s65 + $0x6c] sm:$0xf]
    %v10066 = vld [vmem:[%s65 + $0x70] sm:$0xf]
    %v10067 = vld [vmem:[%s65 + $0x74] sm:$0xf]
    %v10068 = vld [vmem:[%s65 + $0x78] sm:$0xf]
    %v10069 = vld [vmem:[%s65 + $0x7c] sm:$0xf]
    %v10070 = vld [vmem:[%s9066] sm:$0x3]
    %v10072 = vsel %vm7127, %v10070, 0
    %10074 = vmatprep.subr.mxu0 %v7125
    %10075 = vmatpush1.msra.mxu0 %v7124
    %10076 = vmatprep.subr.mxu0 0.0
    %10077 = vmatpush1.msra.mxu0 0.0
    %10078 = vmatprep.subr.mxu0 0.0
    %10079 = vmatpush1.msra.mxu0 0.0
    %10080 = vmatprep.subr.mxu0 0.0
    %10081 = vmatpush1.msra.mxu0 0.0
    %10082 = vmatprep.subr.mxu0 0.0
    %10083 = vmatpush1.msra.mxu0 0.0
    %10084 = vmatprep.subr.mxu0 0.0
    %10085 = vmatpush1.msra.mxu0 0.0
    %10086 = vmatprep.subr.mxu0 0.0
    %10087 = vmatpush1.msra.mxu0 0.0
    %10088 = vmatprep.subr.mxu0 0.0
    %10089 = vmatpush1.msra.mxu0 0.0
    %10090 = vmatprep.subr.mxu0 0.0
    %10091 = vmatpush1.msra.mxu0 0.0
    %10092 = vmatprep.subr.mxu0 0.0
    %10093 = vmatpush1.msra.mxu0 0.0
    %10094 = vmatprep.subr.mxu0 0.0
    %10095 = vmatpush1.msra.mxu0 0.0
    %10096 = vmatprep.subr.mxu0 0.0
    %10097 = vmatpush1.msra.mxu0 0.0
    %10098 = vmatprep.subr.mxu0 0.0
    %10099 = vmatpush1.msra.mxu0 0.0
    %10100 = vmatprep.subr.mxu0 0.0
    %10101 = vmatpush1.msra.mxu0 0.0
    %10102 = vmatprep.subr.mxu0 0.0
    %10103 = vmatpush1.msra.mxu0 0.0
    %10104 = vmatprep.subr.mxu0 0.0
    %10105 = vmatpush1.msra.mxu0 0.0
    %10106 = vmatprep.subr.mxu0 0.0
    %10107 = vmatpush1.msra.mxu0 0.0
    %10108 = vmatprep.subr.mxu0 0.0
    %10109 = vmatpush1.msra.mxu0 0.0
    %10110 = vmatprep.subr.mxu0 0.0
    %10111 = vmatpush1.msra.mxu0 0.0
    %10112 = vmatprep.subr.mxu0 0.0
    %10113 = vmatpush1.msra.mxu0 0.0
    %10114 = vmatprep.subr.mxu0 0.0
    %10115 = vmatpush1.msra.mxu0 0.0
    %10116 = vmatprep.subr.mxu0 0.0
    %10117 = vmatpush1.msra.mxu0 0.0
    %10118 = vmatprep.subr.mxu0 0.0
    %10119 = vmatpush1.msra.mxu0 0.0
    %10120 = vmatprep.subr.mxu0 0.0
    %10121 = vmatpush1.msra.mxu0 0.0
    %10122 = vmatprep.subr.mxu0 0.0
    %10123 = vmatpush1.msra.mxu0 0.0
    %10124 = vmatprep.subr.mxu0 0.0
    %10125 = vmatpush1.msra.mxu0 0.0
    %10126 = vmatprep.subr.mxu0 0.0
    %10127 = vmatpush1.msra.mxu0 0.0
    %10128 = vmatprep.subr.mxu0 0.0
    %10129 = vmatpush1.msra.mxu0 0.0
    %10130 = vmatprep.subr.mxu0 0.0
    %10131 = vmatpush1.msra.mxu0 0.0
    %10132 = vmatprep.subr.mxu0 0.0
    %10133 = vmatpush1.msra.mxu0 0.0
    %10134 = vmatprep.subr.mxu0 0.0
    %10135 = vmatpush1.msra.mxu0 0.0
    %10136 = vmatprep.subr.mxu0 0.0
    %10137 = vmatpush1.msra.mxu0 0.0
    %10138 = vmatprep.mubr.f32.mxu0 0.0
    %10139 = vmatmul.mubr.f32.gmra.mrb[0].mxu0 %v10072
    %v10140 = vpop.f32.mrb[0].mxu0
    %v10141 = vadd.f32 0.0, %v10140
    %v10142 = vpop.f32.mrb[0].mxu0
    %v10143 = vadd.f32 0.0, %v10142
    %10144 = vdwg.mxu0
    %v10145 = vpack.c.bf16 %v10141, %v10141
    %v10146 = vpack.c.bf16 %v10143, %v10143
    %s10147 = scalar_lea.vmem %s65, 128
    %v10148 = vld [vmem:[%s10147] sm:$0xf]
    %v10149 = vld [vmem:[%s10147 + $0x4] sm:$0xf]
    %v10150 = vld [vmem:[%s10147 + $0x8] sm:$0xf]
    %v10151 = vld [vmem:[%s10147 + $0xc] sm:$0xf]
    %v10152 = vld [vmem:[%s10147 + $0x10] sm:$0xf]
    %v10153 = vld [vmem:[%s10147 + $0x14] sm:$0xf]
    %v10154 = vld [vmem:[%s10147 + $0x18] sm:$0xf]
    %v10155 = vld [vmem:[%s10147 + $0x1c] sm:$0xf]
    %v10156 = vld [vmem:[%s10147 + $0x20] sm:$0xf]
    %v10157 = vld [vmem:[%s10147 + $0x24] sm:$0xf]
    %v10158 = vld [vmem:[%s10147 + $0x28] sm:$0xf]
    %v10159 = vld [vmem:[%s10147 + $0x2c] sm:$0xf]
    %v10160 = vld [vmem:[%s10147 + $0x30] sm:$0xf]
    %v10161 = vld [vmem:[%s10147 + $0x34] sm:$0xf]
    %v10162 = vld [vmem:[%s10147 + $0x38] sm:$0xf]
    %v10163 = vld [vmem:[%s10147 + $0x3c] sm:$0xf]
    %v10164 = vld [vmem:[%s10147 + $0x40] sm:$0xf]
    %v10165 = vld [vmem:[%s10147 + $0x44] sm:$0xf]
    %v10166 = vld [vmem:[%s10147 + $0x48] sm:$0xf]
    %v10167 = vld [vmem:[%s10147 + $0x4c] sm:$0xf]
    %v10168 = vld [vmem:[%s10147 + $0x50] sm:$0xf]
    %v10169 = vld [vmem:[%s10147 + $0x54] sm:$0xf]
    %v10170 = vld [vmem:[%s10147 + $0x58] sm:$0xf]
    %v10171 = vld [vmem:[%s10147 + $0x5c] sm:$0xf]
    %v10172 = vld [vmem:[%s10147 + $0x60] sm:$0xf]
    %v10173 = vld [vmem:[%s10147 + $0x64] sm:$0xf]
    %v10174 = vld [vmem:[%s10147 + $0x68] sm:$0xf]
    %v10175 = vld [vmem:[%s10147 + $0x6c] sm:$0xf]
    %v10176 = vld [vmem:[%s10147 + $0x70] sm:$0xf]
    %v10177 = vld [vmem:[%s10147 + $0x74] sm:$0xf]
    %v10178 = vld [vmem:[%s10147 + $0x78] sm:$0xf]
    %v10179 = vld [vmem:[%s10147 + $0x7c] sm:$0xf]
    %v10212 = vunpack.c.l.b16 %v10148
    %v10213 = vunpack.c.l.b16 %v10149
    %v10214 = vunpack.c.l.b16 %v10150
    %v10215 = vunpack.c.l.b16 %v10151
    %v10216 = vunpack.c.l.b16 %v10152
    %v10217 = vunpack.c.l.b16 %v10153
    %v10218 = vunpack.c.l.b16 %v10154
    %v10219 = vunpack.c.l.b16 %v10155
    %v10220 = vunpack.c.l.b16 %v10156
    %v10221 = vunpack.c.l.b16 %v10157
    %v10222 = vunpack.c.l.b16 %v10158
    %v10223 = vunpack.c.l.b16 %v10159
    %v10224 = vunpack.c.l.b16 %v10160
    %v10225 = vunpack.c.l.b16 %v10161
    %v10226 = vunpack.c.l.b16 %v10162
    %v10227 = vunpack.c.l.b16 %v10163
    %v10228 = vunpack.c.l.b16 %v10164
    %v10229 = vunpack.c.l.b16 %v10165
    %v10230 = vunpack.c.l.b16 %v10166
    %v10231 = vunpack.c.l.b16 %v10167
    %v10232 = vunpack.c.l.b16 %v10168
    %v10233 = vunpack.c.l.b16 %v10169
    %v10234 = vunpack.c.l.b16 %v10170
    %v10235 = vunpack.c.l.b16 %v10171
    %v10236 = vunpack.c.l.b16 %v10172
    %v10237 = vunpack.c.l.b16 %v10173
    %v10238 = vunpack.c.l.b16 %v10174
    %v10239 = vunpack.c.l.b16 %v10175
    %v10240 = vunpack.c.l.b16 %v10176
    %v10241 = vunpack.c.l.b16 %v10177
    %v10242 = vunpack.c.l.b16 %v10178
    %v10243 = vunpack.c.l.b16 %v10179
    %v10244 = vpack.c.b16 %v10213, %v10212
    %v10245 = vpack.c.b16 %v10215, %v10214
    %v10246 = vpack.c.b16 %v10217, %v10216
    %v10247 = vpack.c.b16 %v10219, %v10218
    %v10248 = vpack.c.b16 %v10221, %v10220
    %v10249 = vpack.c.b16 %v10223, %v10222
    %v10250 = vpack.c.b16 %v10225, %v10224
    %v10251 = vpack.c.b16 %v10227, %v10226
    %v10252 = vpack.c.b16 %v10229, %v10228
    %v10253 = vpack.c.b16 %v10231, %v10230
    %v10254 = vpack.c.b16 %v10233, %v10232
    %v10255 = vpack.c.b16 %v10235, %v10234
    %v10256 = vpack.c.b16 %v10237, %v10236
    %v10257 = vpack.c.b16 %v10239, %v10238
    %v10258 = vpack.c.b16 %v10241, %v10240
    %v10259 = vpack.c.b16 %v10243, %v10242
    %10276 = vmatprep.subr.bf16.mxu0 0
    %10277 = vmatpush1.bf16.msra.mxu0 %v10244
    %10278 = vmatprep.subr.bf16.mxu0 0
    %10279 = vmatpush1.bf16.msra.mxu0 %v10245
    %10280 = vmatprep.subr.bf16.mxu0 0
    %10281 = vmatpush1.bf16.msra.mxu0 %v10246
    %10282 = vmatprep.subr.bf16.mxu0 0
    %10283 = vmatpush1.bf16.msra.mxu0 %v10247
    %10284 = vmatprep.subr.bf16.mxu0 0
    %10285 = vmatpush1.bf16.msra.mxu0 %v10248
    %10286 = vmatprep.subr.bf16.mxu0 0
    %10287 = vmatpush1.bf16.msra.mxu0 %v10249
    %10288 = vmatprep.subr.bf16.mxu0 0
    %10289 = vmatpush1.bf16.msra.mxu0 %v10250
    %10290 = vmatprep.subr.bf16.mxu0 0
    %10291 = vmatpush1.bf16.msra.mxu0 %v10251
    %10292 = vmatprep.subr.bf16.mxu0 0
    %10293 = vmatpush1.bf16.msra.mxu0 %v10252
    %10294 = vmatprep.subr.bf16.mxu0 0
    %10295 = vmatpush1.bf16.msra.mxu0 %v10253
    %10296 = vmatprep.subr.bf16.mxu0 0
    %10297 = vmatpush1.bf16.msra.mxu0 %v10254
    %10298 = vmatprep.subr.bf16.mxu0 0
    %10299 = vmatpush1.bf16.msra.mxu0 %v10255
    %10300 = vmatprep.subr.bf16.mxu0 0
    %10301 = vmatpush1.bf16.msra.mxu0 %v10256
    %10302 = vmatprep.subr.bf16.mxu0 0
    %10303 = vmatpush1.bf16.msra.mxu0 %v10257
    %10304 = vmatprep.subr.bf16.mxu0 0
    %10305 = vmatpush1.bf16.msra.mxu0 %v10258
    %10306 = vmatprep.subr.bf16.mxu0 0
    %10307 = vmatpush1.bf16.msra.mxu0 %v10259
    %10308 = vmatprep.mubr.bf16.mxu0 %v10146
    %10309 = vmatmul.mubr.bf16.gmra.mrb[0].mxu0 %v10145
    %v10310 = vpop.f32.mrb[0].mxu0
    %v10311 = vadd.f32 0.0, %v10310
    %v10312 = vpop.f32.mrb[0].mxu0
    %v10313 = vpop.f32.mrb[0].mxu0
    %v10314 = vpop.f32.mrb[0].mxu0
    %10315 = vdwg.mxu0
    %v10348 = vunpack.c.l.b16 %v10038
    %v10349 = vunpack.c.l.b16 %v10039
    %v10350 = vunpack.c.l.b16 %v10040
    %v10351 = vunpack.c.l.b16 %v10041
    %v10352 = vunpack.c.l.b16 %v10042
    %v10353 = vunpack.c.l.b16 %v10043
    %v10354 = vunpack.c.l.b16 %v10044
    %v10355 = vunpack.c.l.b16 %v10045
    %v10356 = vunpack.c.l.b16 %v10046
    %v10357 = vunpack.c.l.b16 %v10047
    %v10358 = vunpack.c.l.b16 %v10048
    %v10359 = vunpack.c.l.b16 %v10049
    %v10360 = vunpack.c.l.b16 %v10050
    %v10361 = vunpack.c.l.b16 %v10051
    %v10362 = vunpack.c.l.b16 %v10052
    %v10363 = vunpack.c.l.b16 %v10053
    %v10364 = vunpack.c.l.b16 %v10054
    %v10365 = vunpack.c.l.b16 %v10055
    %v10366 = vunpack.c.l.b16 %v10056
    %v10367 = vunpack.c.l.b16 %v10057
    %v10368 = vunpack.c.l.b16 %v10058
    %v10369 = vunpack.c.l.b16 %v10059
    %v10370 = vunpack.c.l.b16 %v10060
    %v10371 = vunpack.c.l.b16 %v10061
    %v10372 = vunpack.c.l.b16 %v10062
    %v10373 = vunpack.c.l.b16 %v10063
    %v10374 = vunpack.c.l.b16 %v10064
    %v10375 = vunpack.c.l.b16 %v10065
    %v10376 = vunpack.c.l.b16 %v10066
    %v10377 = vunpack.c.l.b16 %v10067
    %v10378 = vunpack.c.l.b16 %v10068
    %v10379 = vunpack.c.l.b16 %v10069
    %v10380 = vpack.c.b16 %v10349, %v10348
    %v10381 = vpack.c.b16 %v10351, %v10350
    %v10382 = vpack.c.b16 %v10353, %v10352
    %v10383 = vpack.c.b16 %v10355, %v10354
    %v10384 = vpack.c.b16 %v10357, %v10356
    %v10385 = vpack.c.b16 %v10359, %v10358
    %v10386 = vpack.c.b16 %v10361, %v10360
    %v10387 = vpack.c.b16 %v10363, %v10362
    %v10388 = vpack.c.b16 %v10365, %v10364
    %v10389 = vpack.c.b16 %v10367, %v10366
    %v10390 = vpack.c.b16 %v10369, %v10368
    %v10391 = vpack.c.b16 %v10371, %v10370
    %v10392 = vpack.c.b16 %v10373, %v10372
    %v10393 = vpack.c.b16 %v10375, %v10374
    %v10394 = vpack.c.b16 %v10377, %v10376
    %v10395 = vpack.c.b16 %v10379, %v10378
    %10412 = vmatprep.subr.bf16.mxu0 0
    %10413 = vmatpush1.bf16.msra.mxu0 %v10380
    %10414 = vmatprep.subr.bf16.mxu0 0
    %10415 = vmatpush1.bf16.msra.mxu0 %v10381
    %10416 = vmatprep.subr.bf16.mxu0 0
    %10417 = vmatpush1.bf16.msra.mxu0 %v10382
    %10418 = vmatprep.subr.bf16.mxu0 0
    %10419 = vmatpush1.bf16.msra.mxu0 %v10383
    %10420 = vmatprep.subr.bf16.mxu0 0
    %10421 = vmatpush1.bf16.msra.mxu0 %v10384
    %10422 = vmatprep.subr.bf16.mxu0 0
    %10423 = vmatpush1.bf16.msra.mxu0 %v10385
    %10424 = vmatprep.subr.bf16.mxu0 0
    %10425 = vmatpush1.bf16.msra.mxu0 %v10386
    %10426 = vmatprep.subr.bf16.mxu0 0
    %10427 = vmatpush1.bf16.msra.mxu0 %v10387
    %10428 = vmatprep.subr.bf16.mxu0 0
    %10429 = vmatpush1.bf16.msra.mxu0 %v10388
    %10430 = vmatprep.subr.bf16.mxu0 0
    %10431 = vmatpush1.bf16.msra.mxu0 %v10389
    %10432 = vmatprep.subr.bf16.mxu0 0
    %10433 = vmatpush1.bf16.msra.mxu0 %v10390
    %10434 = vmatprep.subr.bf16.mxu0 0
    %10435 = vmatpush1.bf16.msra.mxu0 %v10391
    %10436 = vmatprep.subr.bf16.mxu0 0
    %10437 = vmatpush1.bf16.msra.mxu0 %v10392
    %10438 = vmatprep.subr.bf16.mxu0 0
    %10439 = vmatpush1.bf16.msra.mxu0 %v10393
    %10440 = vmatprep.subr.bf16.mxu0 0
    %10441 = vmatpush1.bf16.msra.mxu0 %v10394
    %10442 = vmatprep.subr.bf16.mxu0 0
    %10443 = vmatpush1.bf16.msra.mxu0 %v10395
    %10444 = vmatprep.mubr.bf16.mxu0 %v10037
    %10445 = vmatmul.mubr.bf16.gmra.mrb[0].mxu0 %v10036
    %v10446 = vpop.f32.mrb[0].mxu0
    %v10447 = vadd.f32 %v10311, %v10446
    %v10448 = vpop.f32.mrb[0].mxu0
    %v10449 = vpop.f32.mrb[0].mxu0
    %v10450 = vpop.f32.mrb[0].mxu0
    %10451 = vdwg.mxu0
    %v10452 = vld [vmem:[%s9449] sm:$0x3]
    %v10454 = vsel %vm7127, %v10452, 0
    %10456 = vmatprep.subr.mxu0 %v7125
    %10457 = vmatpush1.msra.mxu0 %v7124
    %10458 = vmatprep.subr.mxu0 0.0
    %10459 = vmatpush1.msra.mxu0 0.0
    %10460 = vmatprep.subr.mxu0 0.0
    %10461 = vmatpush1.msra.mxu0 0.0
    %10462 = vmatprep.subr.mxu0 0.0
    %10463 = vmatpush1.msra.mxu0 0.0
    %10464 = vmatprep.subr.mxu0 0.0
    %10465 = vmatpush1.msra.mxu0 0.0
    %10466 = vmatprep.subr.mxu0 0.0
    %10467 = vmatpush1.msra.mxu0 0.0
    %10468 = vmatprep.subr.mxu0 0.0
    %10469 = vmatpush1.msra.mxu0 0.0
    %10470 = vmatprep.subr.mxu0 0.0
    %10471 = vmatpush1.msra.mxu0 0.0
    %10472 = vmatprep.subr.mxu0 0.0
    %10473 = vmatpush1.msra.mxu0 0.0
    %10474 = vmatprep.subr.mxu0 0.0
    %10475 = vmatpush1.msra.mxu0 0.0
    %10476 = vmatprep.subr.mxu0 0.0
    %10477 = vmatpush1.msra.mxu0 0.0
    %10478 = vmatprep.subr.mxu0 0.0
    %10479 = vmatpush1.msra.mxu0 0.0
    %10480 = vmatprep.subr.mxu0 0.0
    %10481 = vmatpush1.msra.mxu0 0.0
    %10482 = vmatprep.subr.mxu0 0.0
    %10483 = vmatpush1.msra.mxu0 0.0
    %10484 = vmatprep.subr.mxu0 0.0
    %10485 = vmatpush1.msra.mxu0 0.0
    %10486 = vmatprep.subr.mxu0 0.0
    %10487 = vmatpush1.msra.mxu0 0.0
    %10488 = vmatprep.subr.mxu0 0.0
    %10489 = vmatpush1.msra.mxu0 0.0
    %10490 = vmatprep.subr.mxu0 0.0
    %10491 = vmatpush1.msra.mxu0 0.0
    %10492 = vmatprep.subr.mxu0 0.0
    %10493 = vmatpush1.msra.mxu0 0.0
    %10494 = vmatprep.subr.mxu0 0.0
    %10495 = vmatpush1.msra.mxu0 0.0
    %10496 = vmatprep.subr.mxu0 0.0
    %10497 = vmatpush1.msra.mxu0 0.0
    %10498 = vmatprep.subr.mxu0 0.0
    %10499 = vmatpush1.msra.mxu0 0.0
    %10500 = vmatprep.subr.mxu0 0.0
    %10501 = vmatpush1.msra.mxu0 0.0
    %10502 = vmatprep.subr.mxu0 0.0
    %10503 = vmatpush1.msra.mxu0 0.0
    %10504 = vmatprep.subr.mxu0 0.0
    %10505 = vmatpush1.msra.mxu0 0.0
    %10506 = vmatprep.subr.mxu0 0.0
    %10507 = vmatpush1.msra.mxu0 0.0
    %10508 = vmatprep.subr.mxu0 0.0
    %10509 = vmatpush1.msra.mxu0 0.0
    %10510 = vmatprep.subr.mxu0 0.0
    %10511 = vmatpush1.msra.mxu0 0.0
    %10512 = vmatprep.subr.mxu0 0.0
    %10513 = vmatpush1.msra.mxu0 0.0
    %10514 = vmatprep.subr.mxu0 0.0
    %10515 = vmatpush1.msra.mxu0 0.0
    %10516 = vmatprep.subr.mxu0 0.0
    %10517 = vmatpush1.msra.mxu0 0.0
    %10518 = vmatprep.subr.mxu0 0.0
    %10519 = vmatpush1.msra.mxu0 0.0
    %10520 = vmatprep.mubr.f32.mxu0 0.0
    %10521 = vmatmul.mubr.f32.gmra.mrb[0].mxu0 %v10454
    %v10522 = vpop.f32.mrb[0].mxu0
    %v10523 = vadd.f32 0.0, %v10522
    %v10524 = vpop.f32.mrb[0].mxu0
    %v10525 = vadd.f32 0.0, %v10524
    %10526 = vdwg.mxu0
    %v10527 = vpack.c.bf16 %v10523, %v10523
    %v10528 = vpack.c.bf16 %v10525, %v10525
    %s10529 = scalar_lea.vmem %s65, 256
    %v10530 = vld [vmem:[%s10529] sm:$0xf]
    %v10531 = vld [vmem:[%s10529 + $0x4] sm:$0xf]
    %v10532 = vld [vmem:[%s10529 + $0x8] sm:$0xf]
    %v10533 = vld [vmem:[%s10529 + $0xc] sm:$0xf]
    %v10534 = vld [vmem:[%s10529 + $0x10] sm:$0xf]
    %v10535 = vld [vmem:[%s10529 + $0x14] sm:$0xf]
    %v10536 = vld [vmem:[%s10529 + $0x18] sm:$0xf]
    %v10537 = vld [vmem:[%s10529 + $0x1c] sm:$0xf]
    %v10538 = vld [vmem:[%s10529 + $0x20] sm:$0xf]
    %v10539 = vld [vmem:[%s10529 + $0x24] sm:$0xf]
    %v10540 = vld [vmem:[%s10529 + $0x28] sm:$0xf]
    %v10541 = vld [vmem:[%s10529 + $0x2c] sm:$0xf]
    %v10542 = vld [vmem:[%s10529 + $0x30] sm:$0xf]
    %v10543 = vld [vmem:[%s10529 + $0x34] sm:$0xf]
    %v10544 = vld [vmem:[%s10529 + $0x38] sm:$0xf]
    %v10545 = vld [vmem:[%s10529 + $0x3c] sm:$0xf]
    %v10546 = vld [vmem:[%s10529 + $0x40] sm:$0xf]
    %v10547 = vld [vmem:[%s10529 + $0x44] sm:$0xf]
    %v10548 = vld [vmem:[%s10529 + $0x48] sm:$0xf]
    %v10549 = vld [vmem:[%s10529 + $0x4c] sm:$0xf]
    %v10550 = vld [vmem:[%s10529 + $0x50] sm:$0xf]
    %v10551 = vld [vmem:[%s10529 + $0x54] sm:$0xf]
    %v10552 = vld [vmem:[%s10529 + $0x58] sm:$0xf]
    %v10553 = vld [vmem:[%s10529 + $0x5c] sm:$0xf]
    %v10554 = vld [vmem:[%s10529 + $0x60] sm:$0xf]
    %v10555 = vld [vmem:[%s10529 + $0x64] sm:$0xf]
    %v10556 = vld [vmem:[%s10529 + $0x68] sm:$0xf]
    %v10557 = vld [vmem:[%s10529 + $0x6c] sm:$0xf]
    %v10558 = vld [vmem:[%s10529 + $0x70] sm:$0xf]
    %v10559 = vld [vmem:[%s10529 + $0x74] sm:$0xf]
    %v10560 = vld [vmem:[%s10529 + $0x78] sm:$0xf]
    %v10561 = vld [vmem:[%s10529 + $0x7c] sm:$0xf]
    %v10594 = vunpack.c.l.b16 %v10530
    %v10595 = vunpack.c.l.b16 %v10531
    %v10596 = vunpack.c.l.b16 %v10532
    %v10597 = vunpack.c.l.b16 %v10533
    %v10598 = vunpack.c.l.b16 %v10534
    %v10599 = vunpack.c.l.b16 %v10535
    %v10600 = vunpack.c.l.b16 %v10536
    %v10601 = vunpack.c.l.b16 %v10537
    %v10602 = vunpack.c.l.b16 %v10538
    %v10603 = vunpack.c.l.b16 %v10539
    %v10604 = vunpack.c.l.b16 %v10540
    %v10605 = vunpack.c.l.b16 %v10541
    %v10606 = vunpack.c.l.b16 %v10542
    %v10607 = vunpack.c.l.b16 %v10543
    %v10608 = vunpack.c.l.b16 %v10544
    %v10609 = vunpack.c.l.b16 %v10545
    %v10610 = vunpack.c.l.b16 %v10546
    %v10611 = vunpack.c.l.b16 %v10547
    %v10612 = vunpack.c.l.b16 %v10548
    %v10613 = vunpack.c.l.b16 %v10549
    %v10614 = vunpack.c.l.b16 %v10550
    %v10615 = vunpack.c.l.b16 %v10551
    %v10616 = vunpack.c.l.b16 %v10552
    %v10617 = vunpack.c.l.b16 %v10553
    %v10618 = vunpack.c.l.b16 %v10554
    %v10619 = vunpack.c.l.b16 %v10555
    %v10620 = vunpack.c.l.b16 %v10556
    %v10621 = vunpack.c.l.b16 %v10557
    %v10622 = vunpack.c.l.b16 %v10558
    %v10623 = vunpack.c.l.b16 %v10559
    %v10624 = vunpack.c.l.b16 %v10560
    %v10625 = vunpack.c.l.b16 %v10561
    %v10626 = vpack.c.b16 %v10595, %v10594
    %v10627 = vpack.c.b16 %v10597, %v10596
    %v10628 = vpack.c.b16 %v10599, %v10598
    %v10629 = vpack.c.b16 %v10601, %v10600
    %v10630 = vpack.c.b16 %v10603, %v10602
    %v10631 = vpack.c.b16 %v10605, %v10604
    %v10632 = vpack.c.b16 %v10607, %v10606
    %v10633 = vpack.c.b16 %v10609, %v10608
    %v10634 = vpack.c.b16 %v10611, %v10610
    %v10635 = vpack.c.b16 %v10613, %v10612
    %v10636 = vpack.c.b16 %v10615, %v10614
    %v10637 = vpack.c.b16 %v10617, %v10616
    %v10638 = vpack.c.b16 %v10619, %v10618
    %v10639 = vpack.c.b16 %v10621, %v10620
    %v10640 = vpack.c.b16 %v10623, %v10622
    %v10641 = vpack.c.b16 %v10625, %v10624
    %10658 = vmatprep.subr.bf16.mxu0 0
    %10659 = vmatpush1.bf16.msra.mxu0 %v10626
    %10660 = vmatprep.subr.bf16.mxu0 0
    %10661 = vmatpush1.bf16.msra.mxu0 %v10627
    %10662 = vmatprep.subr.bf16.mxu0 0
    %10663 = vmatpush1.bf16.msra.mxu0 %v10628
    %10664 = vmatprep.subr.bf16.mxu0 0
    %10665 = vmatpush1.bf16.msra.mxu0 %v10629
    %10666 = vmatprep.subr.bf16.mxu0 0
    %10667 = vmatpush1.bf16.msra.mxu0 %v10630
    %10668 = vmatprep.subr.bf16.mxu0 0
    %10669 = vmatpush1.bf16.msra.mxu0 %v10631
    %10670 = vmatprep.subr.bf16.mxu0 0
    %10671 = vmatpush1.bf16.msra.mxu0 %v10632
    %10672 = vmatprep.subr.bf16.mxu0 0
    %10673 = vmatpush1.bf16.msra.mxu0 %v10633
    %10674 = vmatprep.subr.bf16.mxu0 0
    %10675 = vmatpush1.bf16.msra.mxu0 %v10634
    %10676 = vmatprep.subr.bf16.mxu0 0
    %10677 = vmatpush1.bf16.msra.mxu0 %v10635
    %10678 = vmatprep.subr.bf16.mxu0 0
    %10679 = vmatpush1.bf16.msra.mxu0 %v10636
    %10680 = vmatprep.subr.bf16.mxu0 0
    %10681 = vmatpush1.bf16.msra.mxu0 %v10637
    %10682 = vmatprep.subr.bf16.mxu0 0
    %10683 = vmatpush1.bf16.msra.mxu0 %v10638
    %10684 = vmatprep.subr.bf16.mxu0 0
    %10685 = vmatpush1.bf16.msra.mxu0 %v10639
    %10686 = vmatprep.subr.bf16.mxu0 0
    %10687 = vmatpush1.bf16.msra.mxu0 %v10640
    %10688 = vmatprep.subr.bf16.mxu0 0
    %10689 = vmatpush1.bf16.msra.mxu0 %v10641
    %10690 = vmatprep.mubr.bf16.mxu0 %v10528
    %10691 = vmatmul.mubr.bf16.gmra.mrb[0].mxu0 %v10527
    %v10692 = vpop.f32.mrb[0].mxu0
    %v10693 = vadd.f32 0.0, %v10692
    %v10694 = vpop.f32.mrb[0].mxu0
    %v10695 = vpop.f32.mrb[0].mxu0
    %v10696 = vpop.f32.mrb[0].mxu0
    %10697 = vdwg.mxu0
    %v10698 = vadd.f32 %v10447, %v10693
    %v10699 = vld [vmem:[%s9697] sm:$0x3]
    %v10701 = vsel %vm7127, %v10699, 0
    %10703 = vmatprep.subr.mxu0 %v7125
    %10704 = vmatpush1.msra.mxu0 %v7124
    %10705 = vmatprep.subr.mxu0 0.0
    %10706 = vmatpush1.msra.mxu0 0.0
    %10707 = vmatprep.subr.mxu0 0.0
    %10708 = vmatpush1.msra.mxu0 0.0
    %10709 = vmatprep.subr.mxu0 0.0
    %10710 = vmatpush1.msra.mxu0 0.0
    %10711 = vmatprep.subr.mxu0 0.0
    %10712 = vmatpush1.msra.mxu0 0.0
    %10713 = vmatprep.subr.mxu0 0.0
    %10714 = vmatpush1.msra.mxu0 0.0
    %10715 = vmatprep.subr.mxu0 0.0
    %10716 = vmatpush1.msra.mxu0 0.0
    %10717 = vmatprep.subr.mxu0 0.0
    %10718 = vmatpush1.msra.mxu0 0.0
    %10719 = vmatprep.subr.mxu0 0.0
    %10720 = vmatpush1.msra.mxu0 0.0
    %10721 = vmatprep.subr.mxu0 0.0
    %10722 = vmatpush1.msra.mxu0 0.0
    %10723 = vmatprep.subr.mxu0 0.0
    %10724 = vmatpush1.msra.mxu0 0.0
    %10725 = vmatprep.subr.mxu0 0.0
    %10726 = vmatpush1.msra.mxu0 0.0
    %10727 = vmatprep.subr.mxu0 0.0
    %10728 = vmatpush1.msra.mxu0 0.0
    %10729 = vmatprep.subr.mxu0 0.0
    %10730 = vmatpush1.msra.mxu0 0.0
    %10731 = vmatprep.subr.mxu0 0.0
    %10732 = vmatpush1.msra.mxu0 0.0
    %10733 = vmatprep.subr.mxu0 0.0
    %10734 = vmatpush1.msra.mxu0 0.0
    %10735 = vmatprep.subr.mxu0 0.0
    %10736 = vmatpush1.msra.mxu0 0.0
    %10737 = vmatprep.subr.mxu0 0.0
    %10738 = vmatpush1.msra.mxu0 0.0
    %10739 = vmatprep.subr.mxu0 0.0
    %10740 = vmatpush1.msra.mxu0 0.0
    %10741 = vmatprep.subr.mxu0 0.0
    %10742 = vmatpush1.msra.mxu0 0.0
    %10743 = vmatprep.subr.mxu0 0.0
    %10744 = vmatpush1.msra.mxu0 0.0
    %10745 = vmatprep.subr.mxu0 0.0
    %10746 = vmatpush1.msra.mxu0 0.0
    %10747 = vmatprep.subr.mxu0 0.0
    %10748 = vmatpush1.msra.mxu0 0.0
    %10749 = vmatprep.subr.mxu0 0.0
    %10750 = vmatpush1.msra.mxu0 0.0
    %10751 = vmatprep.subr.mxu0 0.0
    %10752 = vmatpush1.msra.mxu0 0.0
    %10753 = vmatprep.subr.mxu0 0.0
    %10754 = vmatpush1.msra.mxu0 0.0
    %10755 = vmatprep.subr.mxu0 0.0
    %10756 = vmatpush1.msra.mxu0 0.0
    %10757 = vmatprep.subr.mxu0 0.0
    %10758 = vmatpush1.msra.mxu0 0.0
    %10759 = vmatprep.subr.mxu0 0.0
    %10760 = vmatpush1.msra.mxu0 0.0
    %10761 = vmatprep.subr.mxu0 0.0
    %10762 = vmatpush1.msra.mxu0 0.0
    %10763 = vmatprep.subr.mxu0 0.0
    %10764 = vmatpush1.msra.mxu0 0.0
    %10765 = vmatprep.subr.mxu0 0.0
    %10766 = vmatpush1.msra.mxu0 0.0
    %10767 = vmatprep.mubr.f32.mxu0 0.0
    %10768 = vmatmul.mubr.f32.gmra.mrb[0].mxu0 %v10701
    %v10769 = vpop.f32.mrb[0].mxu0
    %v10770 = vadd.f32 0.0, %v10769
    %v10771 = vpop.f32.mrb[0].mxu0
    %v10772 = vadd.f32 0.0, %v10771
    %10773 = vdwg.mxu0
    %v10774 = vpack.c.bf16 %v10770, %v10770
    %v10775 = vpack.c.bf16 %v10772, %v10772
    %s10776 = scalar_lea.vmem %s65, 384
    %v10777 = vld [vmem:[%s10776] sm:$0xf]
    %v10778 = vld [vmem:[%s10776 + $0x4] sm:$0xf]
    %v10779 = vld [vmem:[%s10776 + $0x8] sm:$0xf]
    %v10780 = vld [vmem:[%s10776 + $0xc] sm:$0xf]
    %v10781 = vld [vmem:[%s10776 + $0x10] sm:$0xf]
    %v10782 = vld [vmem:[%s10776 + $0x14] sm:$0xf]
    %v10783 = vld [vmem:[%s10776 + $0x18] sm:$0xf]
    %v10784 = vld [vmem:[%s10776 + $0x1c] sm:$0xf]
    %v10785 = vld [vmem:[%s10776 + $0x20] sm:$0xf]
    %v10786 = vld [vmem:[%s10776 + $0x24] sm:$0xf]
    %v10787 = vld [vmem:[%s10776 + $0x28] sm:$0xf]
    %v10788 = vld [vmem:[%s10776 + $0x2c] sm:$0xf]
    %v10789 = vld [vmem:[%s10776 + $0x30] sm:$0xf]
    %v10790 = vld [vmem:[%s10776 + $0x34] sm:$0xf]
    %v10791 = vld [vmem:[%s10776 + $0x38] sm:$0xf]
    %v10792 = vld [vmem:[%s10776 + $0x3c] sm:$0xf]
    %v10793 = vld [vmem:[%s10776 + $0x40] sm:$0xf]
    %v10794 = vld [vmem:[%s10776 + $0x44] sm:$0xf]
    %v10795 = vld [vmem:[%s10776 + $0x48] sm:$0xf]
    %v10796 = vld [vmem:[%s10776 + $0x4c] sm:$0xf]
    %v10797 = vld [vmem:[%s10776 + $0x50] sm:$0xf]
    %v10798 = vld [vmem:[%s10776 + $0x54] sm:$0xf]
    %v10799 = vld [vmem:[%s10776 + $0x58] sm:$0xf]
    %v10800 = vld [vmem:[%s10776 + $0x5c] sm:$0xf]
    %v10801 = vld [vmem:[%s10776 + $0x60] sm:$0xf]
    %v10802 = vld [vmem:[%s10776 + $0x64] sm:$0xf]
    %v10803 = vld [vmem:[%s10776 + $0x68] sm:$0xf]
    %v10804 = vld [vmem:[%s10776 + $0x6c] sm:$0xf]
    %v10805 = vld [vmem:[%s10776 + $0x70] sm:$0xf]
    %v10806 = vld [vmem:[%s10776 + $0x74] sm:$0xf]
    %v10807 = vld [vmem:[%s10776 + $0x78] sm:$0xf]
    %v10808 = vld [vmem:[%s10776 + $0x7c] sm:$0xf]
    %v10841 = vunpack.c.l.b16 %v10777
    %v10842 = vunpack.c.l.b16 %v10778
    %v10843 = vunpack.c.l.b16 %v10779
    %v10844 = vunpack.c.l.b16 %v10780
    %v10845 = vunpack.c.l.b16 %v10781
    %v10846 = vunpack.c.l.b16 %v10782
    %v10847 = vunpack.c.l.b16 %v10783
    %v10848 = vunpack.c.l.b16 %v10784
    %v10849 = vunpack.c.l.b16 %v10785
    %v10850 = vunpack.c.l.b16 %v10786
    %v10851 = vunpack.c.l.b16 %v10787
    %v10852 = vunpack.c.l.b16 %v10788
    %v10853 = vunpack.c.l.b16 %v10789
    %v10854 = vunpack.c.l.b16 %v10790
    %v10855 = vunpack.c.l.b16 %v10791
    %v10856 = vunpack.c.l.b16 %v10792
    %v10857 = vunpack.c.l.b16 %v10793
    %v10858 = vunpack.c.l.b16 %v10794
    %v10859 = vunpack.c.l.b16 %v10795
    %v10860 = vunpack.c.l.b16 %v10796
    %v10861 = vunpack.c.l.b16 %v10797
    %v10862 = vunpack.c.l.b16 %v10798
    %v10863 = vunpack.c.l.b16 %v10799
    %v10864 = vunpack.c.l.b16 %v10800
    %v10865 = vunpack.c.l.b16 %v10801
    %v10866 = vunpack.c.l.b16 %v10802
    %v10867 = vunpack.c.l.b16 %v10803
    %v10868 = vunpack.c.l.b16 %v10804
    %v10869 = vunpack.c.l.b16 %v10805
    %v10870 = vunpack.c.l.b16 %v10806
    %v10871 = vunpack.c.l.b16 %v10807
    %v10872 = vunpack.c.l.b16 %v10808
    %v10873 = vpack.c.b16 %v10842, %v10841
    %v10874 = vpack.c.b16 %v10844, %v10843
    %v10875 = vpack.c.b16 %v10846, %v10845
    %v10876 = vpack.c.b16 %v10848, %v10847
    %v10877 = vpack.c.b16 %v10850, %v10849
    %v10878 = vpack.c.b16 %v10852, %v10851
    %v10879 = vpack.c.b16 %v10854, %v10853
    %v10880 = vpack.c.b16 %v10856, %v10855
    %v10881 = vpack.c.b16 %v10858, %v10857
    %v10882 = vpack.c.b16 %v10860, %v10859
    %v10883 = vpack.c.b16 %v10862, %v10861
    %v10884 = vpack.c.b16 %v10864, %v10863
    %v10885 = vpack.c.b16 %v10866, %v10865
    %v10886 = vpack.c.b16 %v10868, %v10867
    %v10887 = vpack.c.b16 %v10870, %v10869
    %v10888 = vpack.c.b16 %v10872, %v10871
    %10905 = vmatprep.subr.bf16.mxu0 0
    %10906 = vmatpush1.bf16.msra.mxu0 %v10873
    %10907 = vmatprep.subr.bf16.mxu0 0
    %10908 = vmatpush1.bf16.msra.mxu0 %v10874
    %10909 = vmatprep.subr.bf16.mxu0 0
    %10910 = vmatpush1.bf16.msra.mxu0 %v10875
    %10911 = vmatprep.subr.bf16.mxu0 0
    %10912 = vmatpush1.bf16.msra.mxu0 %v10876
    %10913 = vmatprep.subr.bf16.mxu0 0
    %10914 = vmatpush1.bf16.msra.mxu0 %v10877
    %10915 = vmatprep.subr.bf16.mxu0 0
    %10916 = vmatpush1.bf16.msra.mxu0 %v10878
    %10917 = vmatprep.subr.bf16.mxu0 0
    %10918 = vmatpush1.bf16.msra.mxu0 %v10879
    %10919 = vmatprep.subr.bf16.mxu0 0
    %10920 = vmatpush1.bf16.msra.mxu0 %v10880
    %10921 = vmatprep.subr.bf16.mxu0 0
    %10922 = vmatpush1.bf16.msra.mxu0 %v10881
    %10923 = vmatprep.subr.bf16.mxu0 0
    %10924 = vmatpush1.bf16.msra.mxu0 %v10882
    %10925 = vmatprep.subr.bf16.mxu0 0
    %10926 = vmatpush1.bf16.msra.mxu0 %v10883
    %10927 = vmatprep.subr.bf16.mxu0 0
    %10928 = vmatpush1.bf16.msra.mxu0 %v10884
    %10929 = vmatprep.subr.bf16.mxu0 0
    %10930 = vmatpush1.bf16.msra.mxu0 %v10885
    %10931 = vmatprep.subr.bf16.mxu0 0
    %10932 = vmatpush1.bf16.msra.mxu0 %v10886
    %10933 = vmatprep.subr.bf16.mxu0 0
    %10934 = vmatpush1.bf16.msra.mxu0 %v10887
    %10935 = vmatprep.subr.bf16.mxu0 0
    %10936 = vmatpush1.bf16.msra.mxu0 %v10888
    %10937 = vmatprep.mubr.bf16.mxu0 %v10775
    %10938 = vmatmul.mubr.bf16.gmra.mrb[0].mxu0 %v10774
    %v10939 = vpop.f32.mrb[0].mxu0
    %v10940 = vadd.f32 0.0, %v10939
    %v10941 = vpop.f32.mrb[0].mxu0
    %v10942 = vpop.f32.mrb[0].mxu0
    %v10943 = vpop.f32.mrb[0].mxu0
    %10944 = vdwg.mxu0
    %v10945 = vadd.f32 %v10698, %v10940
    %v10946 = vld [vmem:[#allocation3] sm:$0x1]
    %v10948 = vlaneseq
    %v10949 = vshrl.u32 %v10948, 7
    %v10950 = vsub.s32 0, %v10949
    %v10951 = vrot.slane %v10946, %v10950
    %v10953 = vadd.f32 %v10945, %v10951
    %v10954 = vxor.u32 %v10953, 2147483648
    %v10955 = vmul.f32 %v10954, 1.442695
    %v10956 = vpow.pop %v10955
    %v10957 = vadd.f32 %v10956, 1.0
    %v10958 = vrcp.pop %v10957
    %v10959 = vmul.f32 1.0, %v10958
    %10960 = vst.msk [vmem:[%s71] sm:$0x3] %vm9959, %v10959
    // Predicated region
    $region206: #{d_net64_forward.1} parent=1 // pred_check
      _
    $region207: #{d_net64_forward.1} parent=1 // pred_check_branch
      %10962 = sbr.rel (0) target = $region209
    $region208: #{d_net64_forward.1} parent=1 // pred_region
      _
    $region209: #{d_net64_forward.1} parent=1 // pred_fallthru
      _
    // Predicated region
    $region210: #{d_net64_forward.1} parent=1 // pred_check
      _
    $region211: #{d_net64_forward.1} parent=1 // pred_check_branch
      %10964 = sbr.rel (0) target = $region213
    $region212: #{d_net64_forward.1} parent=1 // pred_region
      _
    $region213: #{d_net64_forward.1} parent=1 // pred_fallthru
      _
    // Predicated region
    $region214: #{d_net64_forward.1} parent=1 // pred_check
      _
    $region215: #{d_net64_forward.1} parent=1 // pred_check_branch
      %10966 = sbr.rel (0) target = $region217
    $region216: #{d_net64_forward.1} parent=1 // pred_region
      _
    $region217: #{d_net64_forward.1} parent=1 // pred_fallthru
      _
    // Predicated region
    $region218: #{d_net64_forward.1} parent=1 // pred_check
      _
    $region219: #{d_net64_forward.1} parent=1 // pred_check_branch
      %10968 = sbr.rel (0) target = $region221
    $region220: #{d_net64_forward.1} parent=1 // pred_region
      _
    $region221: #{d_net64_forward.1} parent=1 // pred_fallthru
      _
    %10969 = vsyncpa [#allocation5], 1
    %10970 = vsyncpa [#allocation7], 1
    %10971 = vsyncpa [#allocation10], 1
    %10972 = vsyncpa [#allocation13], 1
    %10973 = vsyncpa [#allocation16], 1
    %10974 = vsyncpa [#allocation19], 1
    %10975 = vsyncpa [#allocation22], 1
    %10976 = vsyncpa [#allocation25], 1
    %10977 = vsyncpa [#allocation28], 1

</llo_original>
